<compile_context>
chip_gen: v5e
topology: v5e:2x2
jax: 0.10.0
libtpu: 0.0.40
codegen_flags: <defaults>
</compile_context>

<pallas_src>
import jax
import jax.numpy as jnp
from jax.experimental import pallas as pl
from jax.experimental.pallas import tpu as pltpu

# Problem constants (from the module definition).
C = 816          # channels (depthwise groups)
KH = KW = 5      # kernel size
STRIDE = 2
PAD = 2
EPS = 1e-5


def _dwconv_bn_kernel(x0_ref, x1_ref, x2_ref, x3_ref, x4_ref,
                      w_ref, gamma_ref, beta_ref, o_ref):
    """Fused depthwise 5x5/s2 conv + batch-norm (batch statistics).

    x{kw}_ref: (N, Hp, Wo, C) per-kw pre-shifted padded input planes, VMEM
    w_ref:     (KH*KW, C)     depthwise filters, tap-major (t = kh*KW + kw), VMEM
    gamma_ref: (1, 1, 1, C)   BN scale
    beta_ref:  (1, 1, 1, C)   BN shift
    o_ref:     (N, Ho, Wo, C) output
    """
    n, ho_n, wo_n, c = o_ref.shape
    x_refs = (x0_ref, x1_ref, x2_ref, x3_ref, x4_ref)
    inv_nhw = 1.0 / float(n * ho_n * wo_n)

    # Row-shaped BN-stat accumulators: pure VALU adds inside the row loop; the
    # cross-sublane (XLU) reduction over W happens exactly twice, after the loop.
    s_row = jnp.zeros((1, 1, wo_n, c), jnp.float32)
    ss_row = jnp.zeros((1, 1, wo_n, c), jnp.float32)

    # Pass 1: conv, one output row at a time; row accumulator lives in vregs and is
    # stored to VMEM exactly once per row.
    for ho in range(ho_n):
        acc = jnp.zeros((n, 1, wo_n, c), jnp.float32)
        for kh in range(KH):
            hin = ho * STRIDE + kh                       # padded input row
            for kw in range(KW):
                t = kh * KW + kw
                # Per-tap weight row loaded on demand (short live range; avoids
                # ~175 vregs of hoisted broadcast constants spilling the accumulator).
                wt = w_ref[t:t + 1, :]                   # (1, C), sublane-broadcasts
                # Pre-shifted per-kw plane => full, sublane-aligned unit-stride row.
                patch = x_refs[kw][:, hin:hin + 1, :, :]  # (N, 1, Wo, C)
                acc = acc + patch * wt
        o_ref[:, ho:ho + 1, :, :] = acc                  # single store per row
        s_row = s_row + jnp.sum(acc, axis=0, keepdims=True)          # VALU only
        ss_row = ss_row + jnp.sum(acc * acc, axis=0, keepdims=True)  # VALU only

    # Final per-channel reductions over W (the only two XLU reduction trees).
    s = jnp.sum(s_row, axis=2, keepdims=True)            # (1, 1, 1, C)
    ss = jnp.sum(ss_row, axis=2, keepdims=True)          # (1, 1, 1, C)

    # BatchNorm2d (training mode): per-channel mean / biased variance over N,H,W.
    # TODO(synk): E[x^2]-E[x]^2 can cancel when |mean| >> std per channel; switch to a
    # true two-pass (mean, then centered variance) if robustness beyond unit-scale
    # activations is required.
    mean = s * inv_nhw
    var = ss * inv_nhw - mean * mean
    scale = jax.lax.rsqrt(var + EPS) * gamma_ref[...]    # (1, 1, 1, C)
    shift = beta_ref[...] - mean * scale                 # (1, 1, 1, C)

    # Pass 2: one whole-block normalize (single contiguous vld/vst epilogue).
    o_ref[...] = o_ref[...] * scale + shift


def dwconv_bn_nhwc(x_nhwc, w_oihw, gamma, beta):
    """NHWC-native entry point. x_nhwc: (N, H, W, C); w_oihw: (C,1,KH,KW); gamma/beta: (C,)."""
    n, h, w, c = x_nhwc.shape
    assert c == C
    ho = (h + 2 * PAD - KH) // STRIDE + 1
    wo = (w + 2 * PAD - KW) // STRIDE + 1
    hp = h + 2 * PAD

    x_pad = jnp.pad(x_nhwc.astype(jnp.float32),
                    ((0, 0), (PAD, PAD), (PAD, PAD), (0, 0)))
    # Per-kw pre-shifted planes: plane[kw][n, hi, j, c] == x_pad[n, hi, STRIDE*j + kw, c].
    # XLA fuses this with the pad; in the kernel every tap becomes an aligned row read.
    planes = [x_pad[:, :, kw::STRIDE, :][:, :, :wo, :] for kw in range(KW)]
    for p in planes:
        assert p.shape == (n, hp, wo, C), p.shape

    # (C,1,KH,KW) -> (KH*KW, C), tap-major so tap index = kh*KW + kw.
    w_flat = jnp.transpose(w_oihw[:, 0, :, :], (1, 2, 0)).reshape(KH * KW, C)
    w_flat = w_flat.astype(jnp.float32)
    g = gamma.reshape(1, 1, 1, C).astype(jnp.float32)
    b = beta.reshape(1, 1, 1, C).astype(jnp.float32)

    # grid=(1,): nothing to overlap, so single-buffer every operand (halves VMEM).
    buf1 = pl.Buffered(1)
    plane_spec = pl.BlockSpec((n, hp, wo, C), lambda i: (0, 0, 0, 0),
                              pipeline_mode=buf1)

    out_nhwc = pl.pallas_call(
        _dwconv_bn_kernel,
        grid=(1,),
        in_specs=[
            plane_spec, plane_spec, plane_spec, plane_spec, plane_spec,
            pl.BlockSpec((KH * KW, C), lambda i: (0, 0), pipeline_mode=buf1),
            pl.BlockSpec((1, 1, 1, C), lambda i: (0, 0, 0, 0), pipeline_mode=buf1),
            pl.BlockSpec((1, 1, 1, C), lambda i: (0, 0, 0, 0), pipeline_mode=buf1),
        ],
        out_specs=pl.BlockSpec((n, ho, wo, C), lambda i: (0, 0, 0, 0),
                               pipeline_mode=buf1),
        out_shape=jax.ShapeDtypeStruct((n, ho, wo, C), jnp.float32),
        compiler_params=pltpu.CompilerParams(
            dimension_semantics=("arbitrary",)),
    )(*planes, w_flat, g, b)
    return out_nhwc


def dwconv_bn(x_nchw, w_oihw, gamma, beta):
    """PyTorch-facing NCHW wrapper. x_nchw: (N, C, H, W)."""
    x_nhwc = jnp.transpose(x_nchw, (0, 2, 3, 1))
    out_nhwc = dwconv_bn_nhwc(x_nhwc, w_oihw, gamma, beta)
    return jnp.transpose(out_nhwc, (0, 3, 1, 2))


def _reference(x_nchw, w_oihw, gamma, beta):
    """Pure-JAX reference matching PyTorch semantics (training-mode BN)."""
    conv = jax.lax.conv_general_dilated(
        x_nchw, w_oihw,
        window_strides=(STRIDE, STRIDE),
        padding=((PAD, PAD), (PAD, PAD)),
        dimension_numbers=("NCHW", "OIHW", "NCHW"),
        feature_group_count=C,
    )
    mean = jnp.mean(conv, axis=(0, 2, 3), keepdims=True)
    var = jnp.mean((conv - mean) ** 2, axis=(0, 2, 3), keepdims=True)
    y = (conv - mean) / jnp.sqrt(var + EPS)
    return y * gamma.reshape(1, C, 1, 1) + beta.reshape(1, C, 1, 1)


if __name__ == "__main__":
    key = jax.random.PRNGKey(0)
    k1, k2, k3, k4 = jax.random.split(key, 4)

    # Shapes implied by the module's forward: (1, 816, 14, 14) input.
    x = jax.random.normal(k1, (1, C, 14, 14), dtype=jnp.float32)
    w = jax.random.normal(k2, (C, 1, KH, KW), dtype=jnp.float32) * 0.1
    gamma = 1.0 + 0.1 * jax.random.normal(k3, (C,), dtype=jnp.float32)
    beta = 0.1 * jax.random.normal(k4, (C,), dtype=jnp.float32)

    out = dwconv_bn(x, w, gamma, beta)
    out = jax.block_until_ready(out)

    ref = jax.block_until_ready(_reference(x, w, gamma, beta))
    assert out.shape == (1, C, 7, 7), out.shape
    assert jnp.allclose(out, ref, atol=1e-4, rtol=1e-4), float(
        jnp.max(jnp.abs(out - ref)))

    print("KERNEL_OK")
</pallas_src>

<mosaic_0001>
module attributes {stable_mosaic.version = 11 : i64} {
  func.func @_dwconv_bn_kernel(%arg0: i32, %arg1: memref<1x18x7x816xf32, #tpu.memory_space<vmem>>, %arg2: memref<1x18x7x816xf32, #tpu.memory_space<vmem>>, %arg3: memref<1x18x7x816xf32, #tpu.memory_space<vmem>>, %arg4: memref<1x18x7x816xf32, #tpu.memory_space<vmem>>, %arg5: memref<1x18x7x816xf32, #tpu.memory_space<vmem>>, %arg6: memref<25x816xf32, #tpu.memory_space<vmem>>, %arg7: memref<1x1x1x816xf32, #tpu.memory_space<vmem>>, %arg8: memref<1x1x1x816xf32, #tpu.memory_space<vmem>>, %arg9: memref<1x7x7x816xf32, #tpu.memory_space<vmem>>) attributes {dimension_semantics = [#tpu.dimension_semantics<arbitrary>], iteration_bounds = array<i64: 1>, scalar_prefetch = 0 : i64, scratch_operands = 0 : i64, tpu.core_type = #tpu.core_type<tc>, window_params = [{pipeline_mode = #tpu.pipeline_mode<synchronous>, transform_indices = @transform_0, window_bounds = array<i64: 1, 18, 7, 816>}, {pipeline_mode = #tpu.pipeline_mode<synchronous>, transform_indices = @transform_1, window_bounds = array<i64: 1, 18, 7, 816>}, {pipeline_mode = #tpu.pipeline_mode<synchronous>, transform_indices = @transform_2, window_bounds = array<i64: 1, 18, 7, 816>}, {pipeline_mode = #tpu.pipeline_mode<synchronous>, transform_indices = @transform_3, window_bounds = array<i64: 1, 18, 7, 816>}, {pipeline_mode = #tpu.pipeline_mode<synchronous>, transform_indices = @transform_4, window_bounds = array<i64: 1, 18, 7, 816>}, {pipeline_mode = #tpu.pipeline_mode<synchronous>, transform_indices = @transform_5, window_bounds = array<i64: 25, 816>}, {pipeline_mode = #tpu.pipeline_mode<synchronous>, transform_indices = @transform_6, window_bounds = array<i64: 1, 1, 1, 816>}, {pipeline_mode = #tpu.pipeline_mode<synchronous>, transform_indices = @transform_7, window_bounds = array<i64: 1, 1, 1, 816>}, {pipeline_mode = #tpu.pipeline_mode<synchronous>, transform_indices = @transform_8, window_bounds = array<i64: 1, 7, 7, 816>}]} {
    %cst = arith.constant 0.000000e+00 : f32
    %0 = vector.broadcast %cst : f32 to vector<1x1x7x816xf32>
    %cst_0 = arith.constant 0.000000e+00 : f32
    %1 = vector.broadcast %cst_0 : f32 to vector<1x1x7x816xf32>
    %cst_1 = arith.constant 0.000000e+00 : f32
    %2 = vector.broadcast %cst_1 : f32 to vector<1x1x7x816xf32>
    %c0 = arith.constant 0 : index
    %c0_2 = arith.constant 0 : index
    %3 = vector.load %arg6[%c0, %c0_2] : memref<25x816xf32, #tpu.memory_space<vmem>>, vector<1x816xf32>
    %c0_3 = arith.constant 0 : index
    %c0_4 = arith.constant 0 : index
    %c0_5 = arith.constant 0 : index
    %c0_6 = arith.constant 0 : index
    %4 = vector.load %arg1[%c0_3, %c0_4, %c0_5, %c0_6] : memref<1x18x7x816xf32, #tpu.memory_space<vmem>>, vector<1x1x7x816xf32>
    %5 = vector.shape_cast %3 : vector<1x816xf32> to vector<1x1x1x816xf32>
    %6 = vector.broadcast %5 : vector<1x1x1x816xf32> to vector<1x1x7x816xf32>
    %7 = arith.mulf %4, %6 : vector<1x1x7x816xf32>
    %8 = arith.addf %2, %7 : vector<1x1x7x816xf32>
    %c1 = arith.constant 1 : index
    %c0_7 = arith.constant 0 : index
    %9 = vector.load %arg6[%c1, %c0_7] : memref<25x816xf32, #tpu.memory_space<vmem>>, vector<1x816xf32>
    %c0_8 = arith.constant 0 : index
    %c0_9 = arith.constant 0 : index
    %c0_10 = arith.constant 0 : index
    %c0_11 = arith.constant 0 : index
    %10 = vector.load %arg2[%c0_8, %c0_9, %c0_10, %c0_11] : memref<1x18x7x816xf32, #tpu.memory_space<vmem>>, vector<1x1x7x816xf32>
    %11 = vector.shape_cast %9 : vector<1x816xf32> to vector<1x1x1x816xf32>
    %12 = vector.broadcast %11 : vector<1x1x1x816xf32> to vector<1x1x7x816xf32>
    %13 = arith.mulf %10, %12 : vector<1x1x7x816xf32>
    %14 = arith.addf %8, %13 : vector<1x1x7x816xf32>
    %c2 = arith.constant 2 : index
    %c0_12 = arith.constant 0 : index
    %15 = vector.load %arg6[%c2, %c0_12] : memref<25x816xf32, #tpu.memory_space<vmem>>, vector<1x816xf32>
    %c0_13 = arith.constant 0 : index
    %c0_14 = arith.constant 0 : index
    %c0_15 = arith.constant 0 : index
    %c0_16 = arith.constant 0 : index
    %16 = vector.load %arg3[%c0_13, %c0_14, %c0_15, %c0_16] : memref<1x18x7x816xf32, #tpu.memory_space<vmem>>, vector<1x1x7x816xf32>
    %17 = vector.shape_cast %15 : vector<1x816xf32> to vector<1x1x1x816xf32>
    %18 = vector.broadcast %17 : vector<1x1x1x816xf32> to vector<1x1x7x816xf32>
    %19 = arith.mulf %16, %18 : vector<1x1x7x816xf32>
    %20 = arith.addf %14, %19 : vector<1x1x7x816xf32>
    %c3 = arith.constant 3 : index
    %c0_17 = arith.constant 0 : index
    %21 = vector.load %arg6[%c3, %c0_17] : memref<25x816xf32, #tpu.memory_space<vmem>>, vector<1x816xf32>
    %c0_18 = arith.constant 0 : index
    %c0_19 = arith.constant 0 : index
    %c0_20 = arith.constant 0 : index
    %c0_21 = arith.constant 0 : index
    %22 = vector.load %arg4[%c0_18, %c0_19, %c0_20, %c0_21] : memref<1x18x7x816xf32, #tpu.memory_space<vmem>>, vector<1x1x7x816xf32>
    %23 = vector.shape_cast %21 : vector<1x816xf32> to vector<1x1x1x816xf32>
    %24 = vector.broadcast %23 : vector<1x1x1x816xf32> to vector<1x1x7x816xf32>
    %25 = arith.mulf %22, %24 : vector<1x1x7x816xf32>
    %26 = arith.addf %20, %25 : vector<1x1x7x816xf32>
    %c4 = arith.constant 4 : index
    %c0_22 = arith.constant 0 : index
    %27 = vector.load %arg6[%c4, %c0_22] : memref<25x816xf32, #tpu.memory_space<vmem>>, vector<1x816xf32>
    %c0_23 = arith.constant 0 : index
    %c0_24 = arith.constant 0 : index
    %c0_25 = arith.constant 0 : index
    %c0_26 = arith.constant 0 : index
    %28 = vector.load %arg5[%c0_23, %c0_24, %c0_25, %c0_26] : memref<1x18x7x816xf32, #tpu.memory_space<vmem>>, vector<1x1x7x816xf32>
    %29 = vector.shape_cast %27 : vector<1x816xf32> to vector<1x1x1x816xf32>
    %30 = vector.broadcast %29 : vector<1x1x1x816xf32> to vector<1x1x7x816xf32>
    %31 = arith.mulf %28, %30 : vector<1x1x7x816xf32>
    %32 = arith.addf %26, %31 : vector<1x1x7x816xf32>
    %c5 = arith.constant 5 : index
    %c0_27 = arith.constant 0 : index
    %33 = vector.load %arg6[%c5, %c0_27] : memref<25x816xf32, #tpu.memory_space<vmem>>, vector<1x816xf32>
    %c0_28 = arith.constant 0 : index
    %c1_29 = arith.constant 1 : index
    %c0_30 = arith.constant 0 : index
    %c0_31 = arith.constant 0 : index
    %34 = vector.load %arg1[%c0_28, %c1_29, %c0_30, %c0_31] : memref<1x18x7x816xf32, #tpu.memory_space<vmem>>, vector<1x1x7x816xf32>
    %35 = vector.shape_cast %33 : vector<1x816xf32> to vector<1x1x1x816xf32>
    %36 = vector.broadcast %35 : vector<1x1x1x816xf32> to vector<1x1x7x816xf32>
    %37 = arith.mulf %34, %36 : vector<1x1x7x816xf32>
    %38 = arith.addf %32, %37 : vector<1x1x7x816xf32>
    %c6 = arith.constant 6 : index
    %c0_32 = arith.constant 0 : index
    %39 = vector.load %arg6[%c6, %c0_32] : memref<25x816xf32, #tpu.memory_space<vmem>>, vector<1x816xf32>
    %c0_33 = arith.constant 0 : index
    %c1_34 = arith.constant 1 : index
    %c0_35 = arith.constant 0 : index
    %c0_36 = arith.constant 0 : index
    %40 = vector.load %arg2[%c0_33, %c1_34, %c0_35, %c0_36] : memref<1x18x7x816xf32, #tpu.memory_space<vmem>>, vector<1x1x7x816xf32>
    %41 = vector.shape_cast %39 : vector<1x816xf32> to vector<1x1x1x816xf32>
    %42 = vector.broadcast %41 : vector<1x1x1x816xf32> to vector<1x1x7x816xf32>
    %43 = arith.mulf %40, %42 : vector<1x1x7x816xf32>
    %44 = arith.addf %38, %43 : vector<1x1x7x816xf32>
    %c7 = arith.constant 7 : index
    %c0_37 = arith.constant 0 : index
    %45 = vector.load %arg6[%c7, %c0_37] : memref<25x816xf32, #tpu.memory_space<vmem>>, vector<1x816xf32>
    %c0_38 = arith.constant 0 : index
    %c1_39 = arith.constant 1 : index
    %c0_40 = arith.constant 0 : index
    %c0_41 = arith.constant 0 : index
    %46 = vector.load %arg3[%c0_38, %c1_39, %c0_40, %c0_41] : memref<1x18x7x816xf32, #tpu.memory_space<vmem>>, vector<1x1x7x816xf32>
    %47 = vector.shape_cast %45 : vector<1x816xf32> to vector<1x1x1x816xf32>
    %48 = vector.broadcast %47 : vector<1x1x1x816xf32> to vector<1x1x7x816xf32>
    %49 = arith.mulf %46, %48 : vector<1x1x7x816xf32>
    %50 = arith.addf %44, %49 : vector<1x1x7x816xf32>
    %c8 = arith.constant 8 : index
    %c0_42 = arith.constant 0 : index
    %51 = vector.load %arg6[%c8, %c0_42] : memref<25x816xf32, #tpu.memory_space<vmem>>, vector<1x816xf32>
    %c0_43 = arith.constant 0 : index
    %c1_44 = arith.constant 1 : index
    %c0_45 = arith.constant 0 : index
    %c0_46 = arith.constant 0 : index
    %52 = vector.load %arg4[%c0_43, %c1_44, %c0_45, %c0_46] : memref<1x18x7x816xf32, #tpu.memory_space<vmem>>, vector<1x1x7x816xf32>
    %53 = vector.shape_cast %51 : vector<1x816xf32> to vector<1x1x1x816xf32>
    %54 = vector.broadcast %53 : vector<1x1x1x816xf32> to vector<1x1x7x816xf32>
    %55 = arith.mulf %52, %54 : vector<1x1x7x816xf32>
    %56 = arith.addf %50, %55 : vector<1x1x7x816xf32>
    %c9 = arith.constant 9 : index
    %c0_47 = arith.constant 0 : index
    %57 = vector.load %arg6[%c9, %c0_47] : memref<25x816xf32, #tpu.memory_space<vmem>>, vector<1x816xf32>
    %c0_48 = arith.constant 0 : index
    %c1_49 = arith.constant 1 : index
    %c0_50 = arith.constant 0 : index
    %c0_51 = arith.constant 0 : index
    %58 = vector.load %arg5[%c0_48, %c1_49, %c0_50, %c0_51] : memref<1x18x7x816xf32, #tpu.memory_space<vmem>>, vector<1x1x7x816xf32>
    %59 = vector.shape_cast %57 : vector<1x816xf32> to vector<1x1x1x816xf32>
    %60 = vector.broadcast %59 : vector<1x1x1x816xf32> to vector<1x1x7x816xf32>
    %61 = arith.mulf %58, %60 : vector<1x1x7x816xf32>
    %62 = arith.addf %56, %61 : vector<1x1x7x816xf32>
    %c10 = arith.constant 10 : index
    %c0_52 = arith.constant 0 : index
    %63 = vector.load %arg6[%c10, %c0_52] : memref<25x816xf32, #tpu.memory_space<vmem>>, vector<1x816xf32>
    %c0_53 = arith.constant 0 : index
    %c2_54 = arith.constant 2 : index
    %c0_55 = arith.constant 0 : index
    %c0_56 = arith.constant 0 : index
    %64 = vector.load %arg1[%c0_53, %c2_54, %c0_55, %c0_56] : memref<1x18x7x816xf32, #tpu.memory_space<vmem>>, vector<1x1x7x816xf32>
    %65 = vector.shape_cast %63 : vector<1x816xf32> to vector<1x1x1x816xf32>
    %66 = vector.broadcast %65 : vector<1x1x1x816xf32> to vector<1x1x7x816xf32>
    %67 = arith.mulf %64, %66 : vector<1x1x7x816xf32>
    %68 = arith.addf %62, %67 : vector<1x1x7x816xf32>
    %c11 = arith.constant 11 : index
    %c0_57 = arith.constant 0 : index
    %69 = vector.load %arg6[%c11, %c0_57] : memref<25x816xf32, #tpu.memory_space<vmem>>, vector<1x816xf32>
    %c0_58 = arith.constant 0 : index
    %c2_59 = arith.constant 2 : index
    %c0_60 = arith.constant 0 : index
    %c0_61 = arith.constant 0 : index
    %70 = vector.load %arg2[%c0_58, %c2_59, %c0_60, %c0_61] : memref<1x18x7x816xf32, #tpu.memory_space<vmem>>, vector<1x1x7x816xf32>
    %71 = vector.shape_cast %69 : vector<1x816xf32> to vector<1x1x1x816xf32>
    %72 = vector.broadcast %71 : vector<1x1x1x816xf32> to vector<1x1x7x816xf32>
    %73 = arith.mulf %70, %72 : vector<1x1x7x816xf32>
    %74 = arith.addf %68, %73 : vector<1x1x7x816xf32>
    %c12 = arith.constant 12 : index
    %c0_62 = arith.constant 0 : index
    %75 = vector.load %arg6[%c12, %c0_62] : memref<25x816xf32, #tpu.memory_space<vmem>>, vector<1x816xf32>
    %c0_63 = arith.constant 0 : index
    %c2_64 = arith.constant 2 : index
    %c0_65 = arith.constant 0 : index
    %c0_66 = arith.constant 0 : index
    %76 = vector.load %arg3[%c0_63, %c2_64, %c0_65, %c0_66] : memref<1x18x7x816xf32, #tpu.memory_space<vmem>>, vector<1x1x7x816xf32>
    %77 = vector.shape_cast %75 : vector<1x816xf32> to vector<1x1x1x816xf32>
    %78 = vector.broadcast %77 : vector<1x1x1x816xf32> to vector<1x1x7x816xf32>
    %79 = arith.mulf %76, %78 : vector<1x1x7x816xf32>
    %80 = arith.addf %74, %79 : vector<1x1x7x816xf32>
    %c13 = arith.constant 13 : index
    %c0_67 = arith.constant 0 : index
    %81 = vector.load %arg6[%c13, %c0_67] : memref<25x816xf32, #tpu.memory_space<vmem>>, vector<1x816xf32>
    %c0_68 = arith.constant 0 : index
    %c2_69 = arith.constant 2 : index
    %c0_70 = arith.constant 0 : index
    %c0_71 = arith.constant 0 : index
    %82 = vector.load %arg4[%c0_68, %c2_69, %c0_70, %c0_71] : memref<1x18x7x816xf32, #tpu.memory_space<vmem>>, vector<1x1x7x816xf32>
    %83 = vector.shape_cast %81 : vector<1x816xf32> to vector<1x1x1x816xf32>
    %84 = vector.broadcast %83 : vector<1x1x1x816xf32> to vector<1x1x7x816xf32>
    %85 = arith.mulf %82, %84 : vector<1x1x7x816xf32>
    %86 = arith.addf %80, %85 : vector<1x1x7x816xf32>
    %c14 = arith.constant 14 : index
    %c0_72 = arith.constant 0 : index
    %87 = vector.load %arg6[%c14, %c0_72] : memref<25x816xf32, #tpu.memory_space<vmem>>, vector<1x816xf32>
    %c0_73 = arith.constant 0 : index
    %c2_74 = arith.constant 2 : index
    %c0_75 = arith.constant 0 : index
    %c0_76 = arith.constant 0 : index
    %88 = vector.load %arg5[%c0_73, %c2_74, %c0_75, %c0_76] : memref<1x18x7x816xf32, #tpu.memory_space<vmem>>, vector<1x1x7x816xf32>
    %89 = vector.shape_cast %87 : vector<1x816xf32> to vector<1x1x1x816xf32>
    %90 = vector.broadcast %89 : vector<1x1x1x816xf32> to vector<1x1x7x816xf32>
    %91 = arith.mulf %88, %90 : vector<1x1x7x816xf32>
    %92 = arith.addf %86, %91 : vector<1x1x7x816xf32>
    %c15 = arith.constant 15 : index
    %c0_77 = arith.constant 0 : index
    %93 = vector.load %arg6[%c15, %c0_77] : memref<25x816xf32, #tpu.memory_space<vmem>>, vector<1x816xf32>
    %c0_78 = arith.constant 0 : index
    %c3_79 = arith.constant 3 : index
    %c0_80 = arith.constant 0 : index
    %c0_81 = arith.constant 0 : index
    %94 = vector.load %arg1[%c0_78, %c3_79, %c0_80, %c0_81] : memref<1x18x7x816xf32, #tpu.memory_space<vmem>>, vector<1x1x7x816xf32>
    %95 = vector.shape_cast %93 : vector<1x816xf32> to vector<1x1x1x816xf32>
    %96 = vector.broadcast %95 : vector<1x1x1x816xf32> to vector<1x1x7x816xf32>
    %97 = arith.mulf %94, %96 : vector<1x1x7x816xf32>
    %98 = arith.addf %92, %97 : vector<1x1x7x816xf32>
    %c16 = arith.constant 16 : index
    %c0_82 = arith.constant 0 : index
    %99 = vector.load %arg6[%c16, %c0_82] : memref<25x816xf32, #tpu.memory_space<vmem>>, vector<1x816xf32>
    %c0_83 = arith.constant 0 : index
    %c3_84 = arith.constant 3 : index
    %c0_85 = arith.constant 0 : index
    %c0_86 = arith.constant 0 : index
    %100 = vector.load %arg2[%c0_83, %c3_84, %c0_85, %c0_86] : memref<1x18x7x816xf32, #tpu.memory_space<vmem>>, vector<1x1x7x816xf32>
    %101 = vector.shape_cast %99 : vector<1x816xf32> to vector<1x1x1x816xf32>
    %102 = vector.broadcast %101 : vector<1x1x1x816xf32> to vector<1x1x7x816xf32>
    %103 = arith.mulf %100, %102 : vector<1x1x7x816xf32>
    %104 = arith.addf %98, %103 : vector<1x1x7x816xf32>
    %c17 = arith.constant 17 : index
    %c0_87 = arith.constant 0 : index
    %105 = vector.load %arg6[%c17, %c0_87] : memref<25x816xf32, #tpu.memory_space<vmem>>, vector<1x816xf32>
    %c0_88 = arith.constant 0 : index
    %c3_89 = arith.constant 3 : index
    %c0_90 = arith.constant 0 : index
    %c0_91 = arith.constant 0 : index
    %106 = vector.load %arg3[%c0_88, %c3_89, %c0_90, %c0_91] : memref<1x18x7x816xf32, #tpu.memory_space<vmem>>, vector<1x1x7x816xf32>
    %107 = vector.shape_cast %105 : vector<1x816xf32> to vector<1x1x1x816xf32>
    %108 = vector.broadcast %107 : vector<1x1x1x816xf32> to vector<1x1x7x816xf32>
    %109 = arith.mulf %106, %108 : vector<1x1x7x816xf32>
    %110 = arith.addf %104, %109 : vector<1x1x7x816xf32>
    %c18 = arith.constant 18 : index
    %c0_92 = arith.constant 0 : index
    %111 = vector.load %arg6[%c18, %c0_92] : memref<25x816xf32, #tpu.memory_space<vmem>>, vector<1x816xf32>
    %c0_93 = arith.constant 0 : index
    %c3_94 = arith.constant 3 : index
    %c0_95 = arith.constant 0 : index
    %c0_96 = arith.constant 0 : index
    %112 = vector.load %arg4[%c0_93, %c3_94, %c0_95, %c0_96] : memref<1x18x7x816xf32, #tpu.memory_space<vmem>>, vector<1x1x7x816xf32>
    %113 = vector.shape_cast %111 : vector<1x816xf32> to vector<1x1x1x816xf32>
    %114 = vector.broadcast %113 : vector<1x1x1x816xf32> to vector<1x1x7x816xf32>
    %115 = arith.mulf %112, %114 : vector<1x1x7x816xf32>
    %116 = arith.addf %110, %115 : vector<1x1x7x816xf32>
    %c19 = arith.constant 19 : index
    %c0_97 = arith.constant 0 : index
    %117 = vector.load %arg6[%c19, %c0_97] : memref<25x816xf32, #tpu.memory_space<vmem>>, vector<1x816xf32>
    %c0_98 = arith.constant 0 : index
    %c3_99 = arith.constant 3 : index
    %c0_100 = arith.constant 0 : index
    %c0_101 = arith.constant 0 : index
    %118 = vector.load %arg5[%c0_98, %c3_99, %c0_100, %c0_101] : memref<1x18x7x816xf32, #tpu.memory_space<vmem>>, vector<1x1x7x816xf32>
    %119 = vector.shape_cast %117 : vector<1x816xf32> to vector<1x1x1x816xf32>
    %120 = vector.broadcast %119 : vector<1x1x1x816xf32> to vector<1x1x7x816xf32>
    %121 = arith.mulf %118, %120 : vector<1x1x7x816xf32>
    %122 = arith.addf %116, %121 : vector<1x1x7x816xf32>
    %c20 = arith.constant 20 : index
    %c0_102 = arith.constant 0 : index
    %123 = vector.load %arg6[%c20, %c0_102] : memref<25x816xf32, #tpu.memory_space<vmem>>, vector<1x816xf32>
    %c0_103 = arith.constant 0 : index
    %c4_104 = arith.constant 4 : index
    %c0_105 = arith.constant 0 : index
    %c0_106 = arith.constant 0 : index
    %124 = vector.load %arg1[%c0_103, %c4_104, %c0_105, %c0_106] : memref<1x18x7x816xf32, #tpu.memory_space<vmem>>, vector<1x1x7x816xf32>
    %125 = vector.shape_cast %123 : vector<1x816xf32> to vector<1x1x1x816xf32>
    %126 = vector.broadcast %125 : vector<1x1x1x816xf32> to vector<1x1x7x816xf32>
    %127 = arith.mulf %124, %126 : vector<1x1x7x816xf32>
    %128 = arith.addf %122, %127 : vector<1x1x7x816xf32>
    %c21 = arith.constant 21 : index
    %c0_107 = arith.constant 0 : index
    %129 = vector.load %arg6[%c21, %c0_107] : memref<25x816xf32, #tpu.memory_space<vmem>>, vector<1x816xf32>
    %c0_108 = arith.constant 0 : index
    %c4_109 = arith.constant 4 : index
    %c0_110 = arith.constant 0 : index
    %c0_111 = arith.constant 0 : index
    %130 = vector.load %arg2[%c0_108, %c4_109, %c0_110, %c0_111] : memref<1x18x7x816xf32, #tpu.memory_space<vmem>>, vector<1x1x7x816xf32>
    %131 = vector.shape_cast %129 : vector<1x816xf32> to vector<1x1x1x816xf32>
    %132 = vector.broadcast %131 : vector<1x1x1x816xf32> to vector<1x1x7x816xf32>
    %133 = arith.mulf %130, %132 : vector<1x1x7x816xf32>
    %134 = arith.addf %128, %133 : vector<1x1x7x816xf32>
    %c22 = arith.constant 22 : index
    %c0_112 = arith.constant 0 : index
    %135 = vector.load %arg6[%c22, %c0_112] : memref<25x816xf32, #tpu.memory_space<vmem>>, vector<1x816xf32>
    %c0_113 = arith.constant 0 : index
    %c4_114 = arith.constant 4 : index
    %c0_115 = arith.constant 0 : index
    %c0_116 = arith.constant 0 : index
    %136 = vector.load %arg3[%c0_113, %c4_114, %c0_115, %c0_116] : memref<1x18x7x816xf32, #tpu.memory_space<vmem>>, vector<1x1x7x816xf32>
    %137 = vector.shape_cast %135 : vector<1x816xf32> to vector<1x1x1x816xf32>
    %138 = vector.broadcast %137 : vector<1x1x1x816xf32> to vector<1x1x7x816xf32>
    %139 = arith.mulf %136, %138 : vector<1x1x7x816xf32>
    %140 = arith.addf %134, %139 : vector<1x1x7x816xf32>
    %c23 = arith.constant 23 : index
    %c0_117 = arith.constant 0 : index
    %141 = vector.load %arg6[%c23, %c0_117] : memref<25x816xf32, #tpu.memory_space<vmem>>, vector<1x816xf32>
    %c0_118 = arith.constant 0 : index
    %c4_119 = arith.constant 4 : index
    %c0_120 = arith.constant 0 : index
    %c0_121 = arith.constant 0 : index
    %142 = vector.load %arg4[%c0_118, %c4_119, %c0_120, %c0_121] : memref<1x18x7x816xf32, #tpu.memory_space<vmem>>, vector<1x1x7x816xf32>
    %143 = vector.shape_cast %141 : vector<1x816xf32> to vector<1x1x1x816xf32>
    %144 = vector.broadcast %143 : vector<1x1x1x816xf32> to vector<1x1x7x816xf32>
    %145 = arith.mulf %142, %144 : vector<1x1x7x816xf32>
    %146 = arith.addf %140, %145 : vector<1x1x7x816xf32>
    %c24 = arith.constant 24 : index
    %c0_122 = arith.constant 0 : index
    %147 = vector.load %arg6[%c24, %c0_122] : memref<25x816xf32, #tpu.memory_space<vmem>>, vector<1x816xf32>
    %c0_123 = arith.constant 0 : index
    %c4_124 = arith.constant 4 : index
    %c0_125 = arith.constant 0 : index
    %c0_126 = arith.constant 0 : index
    %148 = vector.load %arg5[%c0_123, %c4_124, %c0_125, %c0_126] : memref<1x18x7x816xf32, #tpu.memory_space<vmem>>, vector<1x1x7x816xf32>
    %149 = vector.shape_cast %147 : vector<1x816xf32> to vector<1x1x1x816xf32>
    %150 = vector.broadcast %149 : vector<1x1x1x816xf32> to vector<1x1x7x816xf32>
    %151 = arith.mulf %148, %150 : vector<1x1x7x816xf32>
    %152 = arith.addf %146, %151 : vector<1x1x7x816xf32>
    %c0_127 = arith.constant 0 : index
    %c0_128 = arith.constant 0 : index
    %c0_129 = arith.constant 0 : index
    %c0_130 = arith.constant 0 : index
    %153 = vector.load %arg9[%c0_127, %c0_128, %c0_129, %c0_130] : memref<1x7x7x816xf32, #tpu.memory_space<vmem>>, vector<1x1x7x816xf32>
    tpu.vector_store %arg9[%c0_127, %c0_128, %c0_129, %c0_130], %152 {strides = array<i32>} : memref<1x7x7x816xf32, #tpu.memory_space<vmem>>, vector<1x1x7x816xf32>,
    %cst_131 = arith.constant dense<0.000000e+00> : vector<1x7x816xf32>
    %154 = vector.multi_reduction <add>, %152, %cst_131 [0] : vector<1x1x7x816xf32> to vector<1x7x816xf32>
    %155 = vector.shape_cast %154 : vector<1x7x816xf32> to vector<1x1x7x816xf32>
    %156 = arith.addf %0, %155 : vector<1x1x7x816xf32>
    %157 = arith.mulf %152, %152 : vector<1x1x7x816xf32>
    %cst_132 = arith.constant dense<0.000000e+00> : vector<1x7x816xf32>
    %158 = vector.multi_reduction <add>, %157, %cst_132 [0] : vector<1x1x7x816xf32> to vector<1x7x816xf32>
    %159 = vector.shape_cast %158 : vector<1x7x816xf32> to vector<1x1x7x816xf32>
    %160 = arith.addf %1, %159 : vector<1x1x7x816xf32>
    %cst_133 = arith.constant 0.000000e+00 : f32
    %161 = vector.broadcast %cst_133 : f32 to vector<1x1x7x816xf32>
    %c0_134 = arith.constant 0 : index
    %c0_135 = arith.constant 0 : index
    %162 = vector.load %arg6[%c0_134, %c0_135] : memref<25x816xf32, #tpu.memory_space<vmem>>, vector<1x816xf32>
    %c0_136 = arith.constant 0 : index
    %c2_137 = arith.constant 2 : index
    %c0_138 = arith.constant 0 : index
    %c0_139 = arith.constant 0 : index
    %163 = vector.load %arg1[%c0_136, %c2_137, %c0_138, %c0_139] : memref<1x18x7x816xf32, #tpu.memory_space<vmem>>, vector<1x1x7x816xf32>
    %164 = vector.shape_cast %162 : vector<1x816xf32> to vector<1x1x1x816xf32>
    %165 = vector.broadcast %164 : vector<1x1x1x816xf32> to vector<1x1x7x816xf32>
    %166 = arith.mulf %163, %165 : vector<1x1x7x816xf32>
    %167 = arith.addf %161, %166 : vector<1x1x7x816xf32>
    %c1_140 = arith.constant 1 : index
    %c0_141 = arith.constant 0 : index
    %168 = vector.load %arg6[%c1_140, %c0_141] : memref<25x816xf32, #tpu.memory_space<vmem>>, vector<1x816xf32>
    %c0_142 = arith.constant 0 : index
    %c2_143 = arith.constant 2 : index
    %c0_144 = arith.constant 0 : index
    %c0_145 = arith.constant 0 : index
    %169 = vector.load %arg2[%c0_142, %c2_143, %c0_144, %c0_145] : memref<1x18x7x816xf32, #tpu.memory_space<vmem>>, vector<1x1x7x816xf32>
    %170 = vector.shape_cast %168 : vector<1x816xf32> to vector<1x1x1x816xf32>
    %171 = vector.broadcast %170 : vector<1x1x1x816xf32> to vector<1x1x7x816xf32>
    %172 = arith.mulf %169, %171 : vector<1x1x7x816xf32>
    %173 = arith.addf %167, %172 : vector<1x1x7x816xf32>
    %c2_146 = arith.constant 2 : index
    %c0_147 = arith.constant 0 : index
    %174 = vector.load %arg6[%c2_146, %c0_147] : memref<25x816xf32, #tpu.memory_space<vmem>>, vector<1x816xf32>
    %c0_148 = arith.constant 0 : index
    %c2_149 = arith.constant 2 : index
    %c0_150 = arith.constant 0 : index
    %c0_151 = arith.constant 0 : index
    %175 = vector.load %arg3[%c0_148, %c2_149, %c0_150, %c0_151] : memref<1x18x7x816xf32, #tpu.memory_space<vmem>>, vector<1x1x7x816xf32>
    %176 = vector.shape_cast %174 : vector<1x816xf32> to vector<1x1x1x816xf32>
    %177 = vector.broadcast %176 : vector<1x1x1x816xf32> to vector<1x1x7x816xf32>
    %178 = arith.mulf %175, %177 : vector<1x1x7x816xf32>
    %179 = arith.addf %173, %178 : vector<1x1x7x816xf32>
    %c3_152 = arith.constant 3 : index
    %c0_153 = arith.constant 0 : index
    %180 = vector.load %arg6[%c3_152, %c0_153] : memref<25x816xf32, #tpu.memory_space<vmem>>, vector<1x816xf32>
    %c0_154 = arith.constant 0 : index
    %c2_155 = arith.constant 2 : index
    %c0_156 = arith.constant 0 : index
    %c0_157 = arith.constant 0 : index
    %181 = vector.load %arg4[%c0_154, %c2_155, %c0_156, %c0_157] : memref<1x18x7x816xf32, #tpu.memory_space<vmem>>, vector<1x1x7x816xf32>
    %182 = vector.shape_cast %180 : vector<1x816xf32> to vector<1x1x1x816xf32>
    %183 = vector.broadcast %182 : vector<1x1x1x816xf32> to vector<1x1x7x816xf32>
    %184 = arith.mulf %181, %183 : vector<1x1x7x816xf32>
    %185 = arith.addf %179, %184 : vector<1x1x7x816xf32>
    %c4_158 = arith.constant 4 : index
    %c0_159 = arith.constant 0 : index
    %186 = vector.load %arg6[%c4_158, %c0_159] : memref<25x816xf32, #tpu.memory_space<vmem>>, vector<1x816xf32>
    %c0_160 = arith.constant 0 : index
    %c2_161 = arith.constant 2 : index
    %c0_162 = arith.constant 0 : index
    %c0_163 = arith.constant 0 : index
    %187 = vector.load %arg5[%c0_160, %c2_161, %c0_162, %c0_163] : memref<1x18x7x816xf32, #tpu.memory_space<vmem>>, vector<1x1x7x816xf32>
    %188 = vector.shape_cast %186 : vector<1x816xf32> to vector<1x1x1x816xf32>
    %189 = vector.broadcast %188 : vector<1x1x1x816xf32> to vector<1x1x7x816xf32>
    %190 = arith.mulf %187, %189 : vector<1x1x7x816xf32>
    %191 = arith.addf %185, %190 : vector<1x1x7x816xf32>
    %c5_164 = arith.constant 5 : index
    %c0_165 = arith.constant 0 : index
    %192 = vector.load %arg6[%c5_164, %c0_165] : memref<25x816xf32, #tpu.memory_space<vmem>>, vector<1x816xf32>
    %c0_166 = arith.constant 0 : index
    %c3_167 = arith.constant 3 : index
    %c0_168 = arith.constant 0 : index
    %c0_169 = arith.constant 0 : index
    %193 = vector.load %arg1[%c0_166, %c3_167, %c0_168, %c0_169] : memref<1x18x7x816xf32, #tpu.memory_space<vmem>>, vector<1x1x7x816xf32>
    %194 = vector.shape_cast %192 : vector<1x816xf32> to vector<1x1x1x816xf32>
    %195 = vector.broadcast %194 : vector<1x1x1x816xf32> to vector<1x1x7x816xf32>
    %196 = arith.mulf %193, %195 : vector<1x1x7x816xf32>
    %197 = arith.addf %191, %196 : vector<1x1x7x816xf32>
    %c6_170 = arith.constant 6 : index
    %c0_171 = arith.constant 0 : index
    %198 = vector.load %arg6[%c6_170, %c0_171] : memref<25x816xf32, #tpu.memory_space<vmem>>, vector<1x816xf32>
    %c0_172 = arith.constant 0 : index
    %c3_173 = arith.constant 3 : index
    %c0_174 = arith.constant 0 : index
    %c0_175 = arith.constant 0 : index
    %199 = vector.load %arg2[%c0_172, %c3_173, %c0_174, %c0_175] : memref<1x18x7x816xf32, #tpu.memory_space<vmem>>, vector<1x1x7x816xf32>
    %200 = vector.shape_cast %198 : vector<1x816xf32> to vector<1x1x1x816xf32>
    %201 = vector.broadcast %200 : vector<1x1x1x816xf32> to vector<1x1x7x816xf32>
    %202 = arith.mulf %199, %201 : vector<1x1x7x816xf32>
    %203 = arith.addf %197, %202 : vector<1x1x7x816xf32>
    %c7_176 = arith.constant 7 : index
    %c0_177 = arith.constant 0 : index
    %204 = vector.load %arg6[%c7_176, %c0_177] : memref<25x816xf32, #tpu.memory_space<vmem>>, vector<1x816xf32>
    %c0_178 = arith.constant 0 : index
    %c3_179 = arith.constant 3 : index
    %c0_180 = arith.constant 0 : index
    %c0_181 = arith.constant 0 : index
    %205 = vector.load %arg3[%c0_178, %c3_179, %c0_180, %c0_181] : memref<1x18x7x816xf32, #tpu.memory_space<vmem>>, vector<1x1x7x816xf32>
    %206 = vector.shape_cast %204 : vector<1x816xf32> to vector<1x1x1x816xf32>
    %207 = vector.broadcast %206 : vector<1x1x1x816xf32> to vector<1x1x7x816xf32>
    %208 = arith.mulf %205, %207 : vector<1x1x7x816xf32>
    %209 = arith.addf %203, %208 : vector<1x1x7x816xf32>
    %c8_182 = arith.constant 8 : index
    %c0_183 = arith.constant 0 : index
    %210 = vector.load %arg6[%c8_182, %c0_183] : memref<25x816xf32, #tpu.memory_space<vmem>>, vector<1x816xf32>
    %c0_184 = arith.constant 0 : index
    %c3_185 = arith.constant 3 : index
    %c0_186 = arith.constant 0 : index
    %c0_187 = arith.constant 0 : index
    %211 = vector.load %arg4[%c0_184, %c3_185, %c0_186, %c0_187] : memref<1x18x7x816xf32, #tpu.memory_space<vmem>>, vector<1x1x7x816xf32>
    %212 = vector.shape_cast %210 : vector<1x816xf32> to vector<1x1x1x816xf32>
    %213 = vector.broadcast %212 : vector<1x1x1x816xf32> to vector<1x1x7x816xf32>
    %214 = arith.mulf %211, %213 : vector<1x1x7x816xf32>
    %215 = arith.addf %209, %214 : vector<1x1x7x816xf32>
    %c9_188 = arith.constant 9 : index
    %c0_189 = arith.constant 0 : index
    %216 = vector.load %arg6[%c9_188, %c0_189] : memref<25x816xf32, #tpu.memory_space<vmem>>, vector<1x816xf32>
    %c0_190 = arith.constant 0 : index
    %c3_191 = arith.constant 3 : index
    %c0_192 = arith.constant 0 : index
    %c0_193 = arith.constant 0 : index
    %217 = vector.load %arg5[%c0_190, %c3_191, %c0_192, %c0_193] : memref<1x18x7x816xf32, #tpu.memory_space<vmem>>, vector<1x1x7x816xf32>
    %218 = vector.shape_cast %216 : vector<1x816xf32> to vector<1x1x1x816xf32>
    %219 = vector.broadcast %218 : vector<1x1x1x816xf32> to vector<1x1x7x816xf32>
    %220 = arith.mulf %217, %219 : vector<1x1x7x816xf32>
    %221 = arith.addf %215, %220 : vector<1x1x7x816xf32>
    %c10_194 = arith.constant 10 : index
    %c0_195 = arith.constant 0 : index
    %222 = vector.load %arg6[%c10_194, %c0_195] : memref<25x816xf32, #tpu.memory_space<vmem>>, vector<1x816xf32>
    %c0_196 = arith.constant 0 : index
    %c4_197 = arith.constant 4 : index
    %c0_198 = arith.constant 0 : index
    %c0_199 = arith.constant 0 : index
    %223 = vector.load %arg1[%c0_196, %c4_197, %c0_198, %c0_199] : memref<1x18x7x816xf32, #tpu.memory_space<vmem>>, vector<1x1x7x816xf32>
    %224 = vector.shape_cast %222 : vector<1x816xf32> to vector<1x1x1x816xf32>
    %225 = vector.broadcast %224 : vector<1x1x1x816xf32> to vector<1x1x7x816xf32>
    %226 = arith.mulf %223, %225 : vector<1x1x7x816xf32>
    %227 = arith.addf %221, %226 : vector<1x1x7x816xf32>
    %c11_200 = arith.constant 11 : index
    %c0_201 = arith.constant 0 : index
    %228 = vector.load %arg6[%c11_200, %c0_201] : memref<25x816xf32, #tpu.memory_space<vmem>>, vector<1x816xf32>
    %c0_202 = arith.constant 0 : index
    %c4_203 = arith.constant 4 : index
    %c0_204 = arith.constant 0 : index
    %c0_205 = arith.constant 0 : index
    %229 = vector.load %arg2[%c0_202, %c4_203, %c0_204, %c0_205] : memref<1x18x7x816xf32, #tpu.memory_space<vmem>>, vector<1x1x7x816xf32>
    %230 = vector.shape_cast %228 : vector<1x816xf32> to vector<1x1x1x816xf32>
    %231 = vector.broadcast %230 : vector<1x1x1x816xf32> to vector<1x1x7x816xf32>
    %232 = arith.mulf %229, %231 : vector<1x1x7x816xf32>
    %233 = arith.addf %227, %232 : vector<1x1x7x816xf32>
    %c12_206 = arith.constant 12 : index
    %c0_207 = arith.constant 0 : index
    %234 = vector.load %arg6[%c12_206, %c0_207] : memref<25x816xf32, #tpu.memory_space<vmem>>, vector<1x816xf32>
    %c0_208 = arith.constant 0 : index
    %c4_209 = arith.constant 4 : index
    %c0_210 = arith.constant 0 : index
    %c0_211 = arith.constant 0 : index
    %235 = vector.load %arg3[%c0_208, %c4_209, %c0_210, %c0_211] : memref<1x18x7x816xf32, #tpu.memory_space<vmem>>, vector<1x1x7x816xf32>
    %236 = vector.shape_cast %234 : vector<1x816xf32> to vector<1x1x1x816xf32>
    %237 = vector.broadcast %236 : vector<1x1x1x816xf32> to vector<1x1x7x816xf32>
    %238 = arith.mulf %235, %237 : vector<1x1x7x816xf32>
    %239 = arith.addf %233, %238 : vector<1x1x7x816xf32>
    %c13_212 = arith.constant 13 : index
    %c0_213 = arith.constant 0 : index
    %240 = vector.load %arg6[%c13_212, %c0_213] : memref<25x816xf32, #tpu.memory_space<vmem>>, vector<1x816xf32>
    %c0_214 = arith.constant 0 : index
    %c4_215 = arith.constant 4 : index
    %c0_216 = arith.constant 0 : index
    %c0_217 = arith.constant 0 : index
    %241 = vector.load %arg4[%c0_214, %c4_215, %c0_216, %c0_217] : memref<1x18x7x816xf32, #tpu.memory_space<vmem>>, vector<1x1x7x816xf32>
    %242 = vector.shape_cast %240 : vector<1x816xf32> to vector<1x1x1x816xf32>
    %243 = vector.broadcast %242 : vector<1x1x1x816xf32> to vector<1x1x7x816xf32>
    %244 = arith.mulf %241, %243 : vector<1x1x7x816xf32>
    %245 = arith.addf %239, %244 : vector<1x1x7x816xf32>
    %c14_218 = arith.constant 14 : index
    %c0_219 = arith.constant 0 : index
    %246 = vector.load %arg6[%c14_218, %c0_219] : memref<25x816xf32, #tpu.memory_space<vmem>>, vector<1x816xf32>
    %c0_220 = arith.constant 0 : index
    %c4_221 = arith.constant 4 : index
    %c0_222 = arith.constant 0 : index
    %c0_223 = arith.constant 0 : index
    %247 = vector.load %arg5[%c0_220, %c4_221, %c0_222, %c0_223] : memref<1x18x7x816xf32, #tpu.memory_space<vmem>>, vector<1x1x7x816xf32>
    %248 = vector.shape_cast %246 : vector<1x816xf32> to vector<1x1x1x816xf32>
    %249 = vector.broadcast %248 : vector<1x1x1x816xf32> to vector<1x1x7x816xf32>
    %250 = arith.mulf %247, %249 : vector<1x1x7x816xf32>
    %251 = arith.addf %245, %250 : vector<1x1x7x816xf32>
    %c15_224 = arith.constant 15 : index
    %c0_225 = arith.constant 0 : index
    %252 = vector.load %arg6[%c15_224, %c0_225] : memref<25x816xf32, #tpu.memory_space<vmem>>, vector<1x816xf32>
    %c0_226 = arith.constant 0 : index
    %c5_227 = arith.constant 5 : index
    %c0_228 = arith.constant 0 : index
    %c0_229 = arith.constant 0 : index
    %253 = vector.load %arg1[%c0_226, %c5_227, %c0_228, %c0_229] : memref<1x18x7x816xf32, #tpu.memory_space<vmem>>, vector<1x1x7x816xf32>
    %254 = vector.shape_cast %252 : vector<1x816xf32> to vector<1x1x1x816xf32>
    %255 = vector.broadcast %254 : vector<1x1x1x816xf32> to vector<1x1x7x816xf32>
    %256 = arith.mulf %253, %255 : vector<1x1x7x816xf32>
    %257 = arith.addf %251, %256 : vector<1x1x7x816xf32>
    %c16_230 = arith.constant 16 : index
    %c0_231 = arith.constant 0 : index
    %258 = vector.load %arg6[%c16_230, %c0_231] : memref<25x816xf32, #tpu.memory_space<vmem>>, vector<1x816xf32>
    %c0_232 = arith.constant 0 : index
    %c5_233 = arith.constant 5 : index
    %c0_234 = arith.constant 0 : index
    %c0_235 = arith.constant 0 : index
    %259 = vector.load %arg2[%c0_232, %c5_233, %c0_234, %c0_235] : memref<1x18x7x816xf32, #tpu.memory_space<vmem>>, vector<1x1x7x816xf32>
    %260 = vector.shape_cast %258 : vector<1x816xf32> to vector<1x1x1x816xf32>
    %261 = vector.broadcast %260 : vector<1x1x1x816xf32> to vector<1x1x7x816xf32>
    %262 = arith.mulf %259, %261 : vector<1x1x7x816xf32>
    %263 = arith.addf %257, %262 : vector<1x1x7x816xf32>
    %c17_236 = arith.constant 17 : index
    %c0_237 = arith.constant 0 : index
    %264 = vector.load %arg6[%c17_236, %c0_237] : memref<25x816xf32, #tpu.memory_space<vmem>>, vector<1x816xf32>
    %c0_238 = arith.constant 0 : index
    %c5_239 = arith.constant 5 : index
    %c0_240 = arith.constant 0 : index
    %c0_241 = arith.constant 0 : index
    %265 = vector.load %arg3[%c0_238, %c5_239, %c0_240, %c0_241] : memref<1x18x7x816xf32, #tpu.memory_space<vmem>>, vector<1x1x7x816xf32>
    %266 = vector.shape_cast %264 : vector<1x816xf32> to vector<1x1x1x816xf32>
    %267 = vector.broadcast %266 : vector<1x1x1x816xf32> to vector<1x1x7x816xf32>
    %268 = arith.mulf %265, %267 : vector<1x1x7x816xf32>
    %269 = arith.addf %263, %268 : vector<1x1x7x816xf32>
    %c18_242 = arith.constant 18 : index
    %c0_243 = arith.constant 0 : index
    %270 = vector.load %arg6[%c18_242, %c0_243] : memref<25x816xf32, #tpu.memory_space<vmem>>, vector<1x816xf32>
    %c0_244 = arith.constant 0 : index
    %c5_245 = arith.constant 5 : index
    %c0_246 = arith.constant 0 : index
    %c0_247 = arith.constant 0 : index
    %271 = vector.load %arg4[%c0_244, %c5_245, %c0_246, %c0_247] : memref<1x18x7x816xf32, #tpu.memory_space<vmem>>, vector<1x1x7x816xf32>
    %272 = vector.shape_cast %270 : vector<1x816xf32> to vector<1x1x1x816xf32>
    %273 = vector.broadcast %272 : vector<1x1x1x816xf32> to vector<1x1x7x816xf32>
    %274 = arith.mulf %271, %273 : vector<1x1x7x816xf32>
    %275 = arith.addf %269, %274 : vector<1x1x7x816xf32>
    %c19_248 = arith.constant 19 : index
    %c0_249 = arith.constant 0 : index
    %276 = vector.load %arg6[%c19_248, %c0_249] : memref<25x816xf32, #tpu.memory_space<vmem>>, vector<1x816xf32>
    %c0_250 = arith.constant 0 : index
    %c5_251 = arith.constant 5 : index
    %c0_252 = arith.constant 0 : index
    %c0_253 = arith.constant 0 : index
    %277 = vector.load %arg5[%c0_250, %c5_251, %c0_252, %c0_253] : memref<1x18x7x816xf32, #tpu.memory_space<vmem>>, vector<1x1x7x816xf32>
    %278 = vector.shape_cast %276 : vector<1x816xf32> to vector<1x1x1x816xf32>
    %279 = vector.broadcast %278 : vector<1x1x1x816xf32> to vector<1x1x7x816xf32>
    %280 = arith.mulf %277, %279 : vector<1x1x7x816xf32>
    %281 = arith.addf %275, %280 : vector<1x1x7x816xf32>
    %c20_254 = arith.constant 20 : index
    %c0_255 = arith.constant 0 : index
    %282 = vector.load %arg6[%c20_254, %c0_255] : memref<25x816xf32, #tpu.memory_space<vmem>>, vector<1x816xf32>
    %c0_256 = arith.constant 0 : index
    %c6_257 = arith.constant 6 : index
    %c0_258 = arith.constant 0 : index
    %c0_259 = arith.constant 0 : index
    %283 = vector.load %arg1[%c0_256, %c6_257, %c0_258, %c0_259] : memref<1x18x7x816xf32, #tpu.memory_space<vmem>>, vector<1x1x7x816xf32>
    %284 = vector.shape_cast %282 : vector<1x816xf32> to vector<1x1x1x816xf32>
    %285 = vector.broadcast %284 : vector<1x1x1x816xf32> to vector<1x1x7x816xf32>
    %286 = arith.mulf %283, %285 : vector<1x1x7x816xf32>
    %287 = arith.addf %281, %286 : vector<1x1x7x816xf32>
    %c21_260 = arith.constant 21 : index
    %c0_261 = arith.constant 0 : index
    %288 = vector.load %arg6[%c21_260, %c0_261] : memref<25x816xf32, #tpu.memory_space<vmem>>, vector<1x816xf32>
    %c0_262 = arith.constant 0 : index
    %c6_263 = arith.constant 6 : index
    %c0_264 = arith.constant 0 : index
    %c0_265 = arith.constant 0 : index
    %289 = vector.load %arg2[%c0_262, %c6_263, %c0_264, %c0_265] : memref<1x18x7x816xf32, #tpu.memory_space<vmem>>, vector<1x1x7x816xf32>
    %290 = vector.shape_cast %288 : vector<1x816xf32> to vector<1x1x1x816xf32>
    %291 = vector.broadcast %290 : vector<1x1x1x816xf32> to vector<1x1x7x816xf32>
    %292 = arith.mulf %289, %291 : vector<1x1x7x816xf32>
    %293 = arith.addf %287, %292 : vector<1x1x7x816xf32>
    %c22_266 = arith.constant 22 : index
    %c0_267 = arith.constant 0 : index
    %294 = vector.load %arg6[%c22_266, %c0_267] : memref<25x816xf32, #tpu.memory_space<vmem>>, vector<1x816xf32>
    %c0_268 = arith.constant 0 : index
    %c6_269 = arith.constant 6 : index
    %c0_270 = arith.constant 0 : index
    %c0_271 = arith.constant 0 : index
    %295 = vector.load %arg3[%c0_268, %c6_269, %c0_270, %c0_271] : memref<1x18x7x816xf32, #tpu.memory_space<vmem>>, vector<1x1x7x816xf32>
    %296 = vector.shape_cast %294 : vector<1x816xf32> to vector<1x1x1x816xf32>
    %297 = vector.broadcast %296 : vector<1x1x1x816xf32> to vector<1x1x7x816xf32>
    %298 = arith.mulf %295, %297 : vector<1x1x7x816xf32>
    %299 = arith.addf %293, %298 : vector<1x1x7x816xf32>
    %c23_272 = arith.constant 23 : index
    %c0_273 = arith.constant 0 : index
    %300 = vector.load %arg6[%c23_272, %c0_273] : memref<25x816xf32, #tpu.memory_space<vmem>>, vector<1x816xf32>
    %c0_274 = arith.constant 0 : index
    %c6_275 = arith.constant 6 : index
    %c0_276 = arith.constant 0 : index
    %c0_277 = arith.constant 0 : index
    %301 = vector.load %arg4[%c0_274, %c6_275, %c0_276, %c0_277] : memref<1x18x7x816xf32, #tpu.memory_space<vmem>>, vector<1x1x7x816xf32>
    %302 = vector.shape_cast %300 : vector<1x816xf32> to vector<1x1x1x816xf32>
    %303 = vector.broadcast %302 : vector<1x1x1x816xf32> to vector<1x1x7x816xf32>
    %304 = arith.mulf %301, %303 : vector<1x1x7x816xf32>
    %305 = arith.addf %299, %304 : vector<1x1x7x816xf32>
    %c24_278 = arith.constant 24 : index
    %c0_279 = arith.constant 0 : index
    %306 = vector.load %arg6[%c24_278, %c0_279] : memref<25x816xf32, #tpu.memory_space<vmem>>, vector<1x816xf32>
    %c0_280 = arith.constant 0 : index
    %c6_281 = arith.constant 6 : index
    %c0_282 = arith.constant 0 : index
    %c0_283 = arith.constant 0 : index
    %307 = vector.load %arg5[%c0_280, %c6_281, %c0_282, %c0_283] : memref<1x18x7x816xf32, #tpu.memory_space<vmem>>, vector<1x1x7x816xf32>
    %308 = vector.shape_cast %306 : vector<1x816xf32> to vector<1x1x1x816xf32>
    %309 = vector.broadcast %308 : vector<1x1x1x816xf32> to vector<1x1x7x816xf32>
    %310 = arith.mulf %307, %309 : vector<1x1x7x816xf32>
    %311 = arith.addf %305, %310 : vector<1x1x7x816xf32>
    %c0_284 = arith.constant 0 : index
    %c1_285 = arith.constant 1 : index
    %c0_286 = arith.constant 0 : index
    %c0_287 = arith.constant 0 : index
    %312 = vector.load %arg9[%c0_284, %c1_285, %c0_286, %c0_287] : memref<1x7x7x816xf32, #tpu.memory_space<vmem>>, vector<1x1x7x816xf32>
    tpu.vector_store %arg9[%c0_284, %c1_285, %c0_286, %c0_287], %311 {strides = array<i32>} : memref<1x7x7x816xf32, #tpu.memory_space<vmem>>, vector<1x1x7x816xf32>,
    %cst_288 = arith.constant dense<0.000000e+00> : vector<1x7x816xf32>
    %313 = vector.multi_reduction <add>, %311, %cst_288 [0] : vector<1x1x7x816xf32> to vector<1x7x816xf32>
    %314 = vector.shape_cast %313 : vector<1x7x816xf32> to vector<1x1x7x816xf32>
    %315 = arith.addf %156, %314 : vector<1x1x7x816xf32>
    %316 = arith.mulf %311, %311 : vector<1x1x7x816xf32>
    %cst_289 = arith.constant dense<0.000000e+00> : vector<1x7x816xf32>
    %317 = vector.multi_reduction <add>, %316, %cst_289 [0] : vector<1x1x7x816xf32> to vector<1x7x816xf32>
    %318 = vector.shape_cast %317 : vector<1x7x816xf32> to vector<1x1x7x816xf32>
    %319 = arith.addf %160, %318 : vector<1x1x7x816xf32>
    %cst_290 = arith.constant 0.000000e+00 : f32
    %320 = vector.broadcast %cst_290 : f32 to vector<1x1x7x816xf32>
    %c0_291 = arith.constant 0 : index
    %c0_292 = arith.constant 0 : index
    %321 = vector.load %arg6[%c0_291, %c0_292] : memref<25x816xf32, #tpu.memory_space<vmem>>, vector<1x816xf32>
    %c0_293 = arith.constant 0 : index
    %c4_294 = arith.constant 4 : index
    %c0_295 = arith.constant 0 : index
    %c0_296 = arith.constant 0 : index
    %322 = vector.load %arg1[%c0_293, %c4_294, %c0_295, %c0_296] : memref<1x18x7x816xf32, #tpu.memory_space<vmem>>, vector<1x1x7x816xf32>
    %323 = vector.shape_cast %321 : vector<1x816xf32> to vector<1x1x1x816xf32>
    %324 = vector.broadcast %323 : vector<1x1x1x816xf32> to vector<1x1x7x816xf32>
    %325 = arith.mulf %322, %324 : vector<1x1x7x816xf32>
    %326 = arith.addf %320, %325 : vector<1x1x7x816xf32>
    %c1_297 = arith.constant 1 : index
    %c0_298 = arith.constant 0 : index
    %327 = vector.load %arg6[%c1_297, %c0_298] : memref<25x816xf32, #tpu.memory_space<vmem>>, vector<1x816xf32>
    %c0_299 = arith.constant 0 : index
    %c4_300 = arith.constant 4 : index
    %c0_301 = arith.constant 0 : index
    %c0_302 = arith.constant 0 : index
    %328 = vector.load %arg2[%c0_299, %c4_300, %c0_301, %c0_302] : memref<1x18x7x816xf32, #tpu.memory_space<vmem>>, vector<1x1x7x816xf32>
    %329 = vector.shape_cast %327 : vector<1x816xf32> to vector<1x1x1x816xf32>
    %330 = vector.broadcast %329 : vector<1x1x1x816xf32> to vector<1x1x7x816xf32>
    %331 = arith.mulf %328, %330 : vector<1x1x7x816xf32>
    %332 = arith.addf %326, %331 : vector<1x1x7x816xf32>
    %c2_303 = arith.constant 2 : index
    %c0_304 = arith.constant 0 : index
    %333 = vector.load %arg6[%c2_303, %c0_304] : memref<25x816xf32, #tpu.memory_space<vmem>>, vector<1x816xf32>
    %c0_305 = arith.constant 0 : index
    %c4_306 = arith.constant 4 : index
    %c0_307 = arith.constant 0 : index
    %c0_308 = arith.constant 0 : index
    %334 = vector.load %arg3[%c0_305, %c4_306, %c0_307, %c0_308] : memref<1x18x7x816xf32, #tpu.memory_space<vmem>>, vector<1x1x7x816xf32>
    %335 = vector.shape_cast %333 : vector<1x816xf32> to vector<1x1x1x816xf32>
    %336 = vector.broadcast %335 : vector<1x1x1x816xf32> to vector<1x1x7x816xf32>
    %337 = arith.mulf %334, %336 : vector<1x1x7x816xf32>
    %338 = arith.addf %332, %337 : vector<1x1x7x816xf32>
    %c3_309 = arith.constant 3 : index
    %c0_310 = arith.constant 0 : index
    %339 = vector.load %arg6[%c3_309, %c0_310] : memref<25x816xf32, #tpu.memory_space<vmem>>, vector<1x816xf32>
    %c0_311 = arith.constant 0 : index
    %c4_312 = arith.constant 4 : index
    %c0_313 = arith.constant 0 : index
    %c0_314 = arith.constant 0 : index
    %340 = vector.load %arg4[%c0_311, %c4_312, %c0_313, %c0_314] : memref<1x18x7x816xf32, #tpu.memory_space<vmem>>, vector<1x1x7x816xf32>
    %341 = vector.shape_cast %339 : vector<1x816xf32> to vector<1x1x1x816xf32>
    %342 = vector.broadcast %341 : vector<1x1x1x816xf32> to vector<1x1x7x816xf32>
    %343 = arith.mulf %340, %342 : vector<1x1x7x816xf32>
    %344 = arith.addf %338, %343 : vector<1x1x7x816xf32>
    %c4_315 = arith.constant 4 : index
    %c0_316 = arith.constant 0 : index
    %345 = vector.load %arg6[%c4_315, %c0_316] : memref<25x816xf32, #tpu.memory_space<vmem>>, vector<1x816xf32>
    %c0_317 = arith.constant 0 : index
    %c4_318 = arith.constant 4 : index
    %c0_319 = arith.constant 0 : index
    %c0_320 = arith.constant 0 : index
    %346 = vector.load %arg5[%c0_317, %c4_318, %c0_319, %c0_320] : memref<1x18x7x816xf32, #tpu.memory_space<vmem>>, vector<1x1x7x816xf32>
    %347 = vector.shape_cast %345 : vector<1x816xf32> to vector<1x1x1x816xf32>
    %348 = vector.broadcast %347 : vector<1x1x1x816xf32> to vector<1x1x7x816xf32>
    %349 = arith.mulf %346, %348 : vector<1x1x7x816xf32>
    %350 = arith.addf %344, %349 : vector<1x1x7x816xf32>
    %c5_321 = arith.constant 5 : index
    %c0_322 = arith.constant 0 : index
    %351 = vector.load %arg6[%c5_321, %c0_322] : memref<25x816xf32, #tpu.memory_space<vmem>>, vector<1x816xf32>
    %c0_323 = arith.constant 0 : index
    %c5_324 = arith.constant 5 : index
    %c0_325 = arith.constant 0 : index
    %c0_326 = arith.constant 0 : index
    %352 = vector.load %arg1[%c0_323, %c5_324, %c0_325, %c0_326] : memref<1x18x7x816xf32, #tpu.memory_space<vmem>>, vector<1x1x7x816xf32>
    %353 = vector.shape_cast %351 : vector<1x816xf32> to vector<1x1x1x816xf32>
    %354 = vector.broadcast %353 : vector<1x1x1x816xf32> to vector<1x1x7x816xf32>
    %355 = arith.mulf %352, %354 : vector<1x1x7x816xf32>
    %356 = arith.addf %350, %355 : vector<1x1x7x816xf32>
    %c6_327 = arith.constant 6 : index
    %c0_328 = arith.constant 0 : index
    %357 = vector.load %arg6[%c6_327, %c0_328] : memref<25x816xf32, #tpu.memory_space<vmem>>, vector<1x816xf32>
    %c0_329 = arith.constant 0 : index
    %c5_330 = arith.constant 5 : index
    %c0_331 = arith.constant 0 : index
    %c0_332 = arith.constant 0 : index
    %358 = vector.load %arg2[%c0_329, %c5_330, %c0_331, %c0_332] : memref<1x18x7x816xf32, #tpu.memory_space<vmem>>, vector<1x1x7x816xf32>
    %359 = vector.shape_cast %357 : vector<1x816xf32> to vector<1x1x1x816xf32>
    %360 = vector.broadcast %359 : vector<1x1x1x816xf32> to vector<1x1x7x816xf32>
    %361 = arith.mulf %358, %360 : vector<1x1x7x816xf32>
    %362 = arith.addf %356, %361 : vector<1x1x7x816xf32>
    %c7_333 = arith.constant 7 : index
    %c0_334 = arith.constant 0 : index
    %363 = vector.load %arg6[%c7_333, %c0_334] : memref<25x816xf32, #tpu.memory_space<vmem>>, vector<1x816xf32>
    %c0_335 = arith.constant 0 : index
    %c5_336 = arith.constant 5 : index
    %c0_337 = arith.constant 0 : index
    %c0_338 = arith.constant 0 : index
    %364 = vector.load %arg3[%c0_335, %c5_336, %c0_337, %c0_338] : memref<1x18x7x816xf32, #tpu.memory_space<vmem>>, vector<1x1x7x816xf32>
    %365 = vector.shape_cast %363 : vector<1x816xf32> to vector<1x1x1x816xf32>
    %366 = vector.broadcast %365 : vector<1x1x1x816xf32> to vector<1x1x7x816xf32>
    %367 = arith.mulf %364, %366 : vector<1x1x7x816xf32>
    %368 = arith.addf %362, %367 : vector<1x1x7x816xf32>
    %c8_339 = arith.constant 8 : index
    %c0_340 = arith.constant 0 : index
    %369 = vector.load %arg6[%c8_339, %c0_340] : memref<25x816xf32, #tpu.memory_space<vmem>>, vector<1x816xf32>
    %c0_341 = arith.constant 0 : index
    %c5_342 = arith.constant 5 : index
    %c0_343 = arith.constant 0 : index
    %c0_344 = arith.constant 0 : index
    %370 = vector.load %arg4[%c0_341, %c5_342, %c0_343, %c0_344] : memref<1x18x7x816xf32, #tpu.memory_space<vmem>>, vector<1x1x7x816xf32>
    %371 = vector.shape_cast %369 : vector<1x816xf32> to vector<1x1x1x816xf32>
    %372 = vector.broadcast %371 : vector<1x1x1x816xf32> to vector<1x1x7x816xf32>
    %373 = arith.mulf %370, %372 : vector<1x1x7x816xf32>
    %374 = arith.addf %368, %373 : vector<1x1x7x816xf32>
    %c9_345 = arith.constant 9 : index
    %c0_346 = arith.constant 0 : index
    %375 = vector.load %arg6[%c9_345, %c0_346] : memref<25x816xf32, #tpu.memory_space<vmem>>, vector<1x816xf32>
    %c0_347 = arith.constant 0 : index
    %c5_348 = arith.constant 5 : index
    %c0_349 = arith.constant 0 : index
    %c0_350 = arith.constant 0 : index
    %376 = vector.load %arg5[%c0_347, %c5_348, %c0_349, %c0_350] : memref<1x18x7x816xf32, #tpu.memory_space<vmem>>, vector<1x1x7x816xf32>
    %377 = vector.shape_cast %375 : vector<1x816xf32> to vector<1x1x1x816xf32>
    %378 = vector.broadcast %377 : vector<1x1x1x816xf32> to vector<1x1x7x816xf32>
    %379 = arith.mulf %376, %378 : vector<1x1x7x816xf32>
    %380 = arith.addf %374, %379 : vector<1x1x7x816xf32>
    %c10_351 = arith.constant 10 : index
    %c0_352 = arith.constant 0 : index
    %381 = vector.load %arg6[%c10_351, %c0_352] : memref<25x816xf32, #tpu.memory_space<vmem>>, vector<1x816xf32>
    %c0_353 = arith.constant 0 : index
    %c6_354 = arith.constant 6 : index
    %c0_355 = arith.constant 0 : index
    %c0_356 = arith.constant 0 : index
    %382 = vector.load %arg1[%c0_353, %c6_354, %c0_355, %c0_356] : memref<1x18x7x816xf32, #tpu.memory_space<vmem>>, vector<1x1x7x816xf32>
    %383 = vector.shape_cast %381 : vector<1x816xf32> to vector<1x1x1x816xf32>
    %384 = vector.broadcast %383 : vector<1x1x1x816xf32> to vector<1x1x7x816xf32>
    %385 = arith.mulf %382, %384 : vector<1x1x7x816xf32>
    %386 = arith.addf %380, %385 : vector<1x1x7x816xf32>
    %c11_357 = arith.constant 11 : index
    %c0_358 = arith.constant 0 : index
    %387 = vector.load %arg6[%c11_357, %c0_358] : memref<25x816xf32, #tpu.memory_space<vmem>>, vector<1x816xf32>
    %c0_359 = arith.constant 0 : index
    %c6_360 = arith.constant 6 : index
    %c0_361 = arith.constant 0 : index
    %c0_362 = arith.constant 0 : index
    %388 = vector.load %arg2[%c0_359, %c6_360, %c0_361, %c0_362] : memref<1x18x7x816xf32, #tpu.memory_space<vmem>>, vector<1x1x7x816xf32>
    %389 = vector.shape_cast %387 : vector<1x816xf32> to vector<1x1x1x816xf32>
    %390 = vector.broadcast %389 : vector<1x1x1x816xf32> to vector<1x1x7x816xf32>
    %391 = arith.mulf %388, %390 : vector<1x1x7x816xf32>
    %392 = arith.addf %386, %391 : vector<1x1x7x816xf32>
    %c12_363 = arith.constant 12 : index
    %c0_364 = arith.constant 0 : index
    %393 = vector.load %arg6[%c12_363, %c0_364] : memref<25x816xf32, #tpu.memory_space<vmem>>, vector<1x816xf32>
    %c0_365 = arith.constant 0 : index
    %c6_366 = arith.constant 6 : index
    %c0_367 = arith.constant 0 : index
    %c0_368 = arith.constant 0 : index
    %394 = vector.load %arg3[%c0_365, %c6_366, %c0_367, %c0_368] : memref<1x18x7x816xf32, #tpu.memory_space<vmem>>, vector<1x1x7x816xf32>
    %395 = vector.shape_cast %393 : vector<1x816xf32> to vector<1x1x1x816xf32>
    %396 = vector.broadcast %395 : vector<1x1x1x816xf32> to vector<1x1x7x816xf32>
    %397 = arith.mulf %394, %396 : vector<1x1x7x816xf32>
    %398 = arith.addf %392, %397 : vector<1x1x7x816xf32>
    %c13_369 = arith.constant 13 : index
    %c0_370 = arith.constant 0 : index
    %399 = vector.load %arg6[%c13_369, %c0_370] : memref<25x816xf32, #tpu.memory_space<vmem>>, vector<1x816xf32>
    %c0_371 = arith.constant 0 : index
    %c6_372 = arith.constant 6 : index
    %c0_373 = arith.constant 0 : index
    %c0_374 = arith.constant 0 : index
    %400 = vector.load %arg4[%c0_371, %c6_372, %c0_373, %c0_374] : memref<1x18x7x816xf32, #tpu.memory_space<vmem>>, vector<1x1x7x816xf32>
    %401 = vector.shape_cast %399 : vector<1x816xf32> to vector<1x1x1x816xf32>
    %402 = vector.broadcast %401 : vector<1x1x1x816xf32> to vector<1x1x7x816xf32>
    %403 = arith.mulf %400, %402 : vector<1x1x7x816xf32>
    %404 = arith.addf %398, %403 : vector<1x1x7x816xf32>
    %c14_375 = arith.constant 14 : index
    %c0_376 = arith.constant 0 : index
    %405 = vector.load %arg6[%c14_375, %c0_376] : memref<25x816xf32, #tpu.memory_space<vmem>>, vector<1x816xf32>
    %c0_377 = arith.constant 0 : index
    %c6_378 = arith.constant 6 : index
    %c0_379 = arith.constant 0 : index
    %c0_380 = arith.constant 0 : index
    %406 = vector.load %arg5[%c0_377, %c6_378, %c0_379, %c0_380] : memref<1x18x7x816xf32, #tpu.memory_space<vmem>>, vector<1x1x7x816xf32>
    %407 = vector.shape_cast %405 : vector<1x816xf32> to vector<1x1x1x816xf32>
    %408 = vector.broadcast %407 : vector<1x1x1x816xf32> to vector<1x1x7x816xf32>
    %409 = arith.mulf %406, %408 : vector<1x1x7x816xf32>
    %410 = arith.addf %404, %409 : vector<1x1x7x816xf32>
    %c15_381 = arith.constant 15 : index
    %c0_382 = arith.constant 0 : index
    %411 = vector.load %arg6[%c15_381, %c0_382] : memref<25x816xf32, #tpu.memory_space<vmem>>, vector<1x816xf32>
    %c0_383 = arith.constant 0 : index
    %c7_384 = arith.constant 7 : index
    %c0_385 = arith.constant 0 : index
    %c0_386 = arith.constant 0 : index
    %412 = vector.load %arg1[%c0_383, %c7_384, %c0_385, %c0_386] : memref<1x18x7x816xf32, #tpu.memory_space<vmem>>, vector<1x1x7x816xf32>
    %413 = vector.shape_cast %411 : vector<1x816xf32> to vector<1x1x1x816xf32>
    %414 = vector.broadcast %413 : vector<1x1x1x816xf32> to vector<1x1x7x816xf32>
    %415 = arith.mulf %412, %414 : vector<1x1x7x816xf32>
    %416 = arith.addf %410, %415 : vector<1x1x7x816xf32>
    %c16_387 = arith.constant 16 : index
    %c0_388 = arith.constant 0 : index
    %417 = vector.load %arg6[%c16_387, %c0_388] : memref<25x816xf32, #tpu.memory_space<vmem>>, vector<1x816xf32>
    %c0_389 = arith.constant 0 : index
    %c7_390 = arith.constant 7 : index
    %c0_391 = arith.constant 0 : index
    %c0_392 = arith.constant 0 : index
    %418 = vector.load %arg2[%c0_389, %c7_390, %c0_391, %c0_392] : memref<1x18x7x816xf32, #tpu.memory_space<vmem>>, vector<1x1x7x816xf32>
    %419 = vector.shape_cast %417 : vector<1x816xf32> to vector<1x1x1x816xf32>
    %420 = vector.broadcast %419 : vector<1x1x1x816xf32> to vector<1x1x7x816xf32>
    %421 = arith.mulf %418, %420 : vector<1x1x7x816xf32>
    %422 = arith.addf %416, %421 : vector<1x1x7x816xf32>
    %c17_393 = arith.constant 17 : index
    %c0_394 = arith.constant 0 : index
    %423 = vector.load %arg6[%c17_393, %c0_394] : memref<25x816xf32, #tpu.memory_space<vmem>>, vector<1x816xf32>
    %c0_395 = arith.constant 0 : index
    %c7_396 = arith.constant 7 : index
    %c0_397 = arith.constant 0 : index
    %c0_398 = arith.constant 0 : index
    %424 = vector.load %arg3[%c0_395, %c7_396, %c0_397, %c0_398] : memref<1x18x7x816xf32, #tpu.memory_space<vmem>>, vector<1x1x7x816xf32>
    %425 = vector.shape_cast %423 : vector<1x816xf32> to vector<1x1x1x816xf32>
    %426 = vector.broadcast %425 : vector<1x1x1x816xf32> to vector<1x1x7x816xf32>
    %427 = arith.mulf %424, %426 : vector<1x1x7x816xf32>
    %428 = arith.addf %422, %427 : vector<1x1x7x816xf32>
    %c18_399 = arith.constant 18 : index
    %c0_400 = arith.constant 0 : index
    %429 = vector.load %arg6[%c18_399, %c0_400] : memref<25x816xf32, #tpu.memory_space<vmem>>, vector<1x816xf32>
    %c0_401 = arith.constant 0 : index
    %c7_402 = arith.constant 7 : index
    %c0_403 = arith.constant 0 : index
    %c0_404 = arith.constant 0 : index
    %430 = vector.load %arg4[%c0_401, %c7_402, %c0_403, %c0_404] : memref<1x18x7x816xf32, #tpu.memory_space<vmem>>, vector<1x1x7x816xf32>
    %431 = vector.shape_cast %429 : vector<1x816xf32> to vector<1x1x1x816xf32>
    %432 = vector.broadcast %431 : vector<1x1x1x816xf32> to vector<1x1x7x816xf32>
    %433 = arith.mulf %430, %432 : vector<1x1x7x816xf32>
    %434 = arith.addf %428, %433 : vector<1x1x7x816xf32>
    %c19_405 = arith.constant 19 : index
    %c0_406 = arith.constant 0 : index
    %435 = vector.load %arg6[%c19_405, %c0_406] : memref<25x816xf32, #tpu.memory_space<vmem>>, vector<1x816xf32>
    %c0_407 = arith.constant 0 : index
    %c7_408 = arith.constant 7 : index
    %c0_409 = arith.constant 0 : index
    %c0_410 = arith.constant 0 : index
    %436 = vector.load %arg5[%c0_407, %c7_408, %c0_409, %c0_410] : memref<1x18x7x816xf32, #tpu.memory_space<vmem>>, vector<1x1x7x816xf32>
    %437 = vector.shape_cast %435 : vector<1x816xf32> to vector<1x1x1x816xf32>
    %438 = vector.broadcast %437 : vector<1x1x1x816xf32> to vector<1x1x7x816xf32>
    %439 = arith.mulf %436, %438 : vector<1x1x7x816xf32>
    %440 = arith.addf %434, %439 : vector<1x1x7x816xf32>
    %c20_411 = arith.constant 20 : index
    %c0_412 = arith.constant 0 : index
    %441 = vector.load %arg6[%c20_411, %c0_412] : memref<25x816xf32, #tpu.memory_space<vmem>>, vector<1x816xf32>
    %c0_413 = arith.constant 0 : index
    %c8_414 = arith.constant 8 : index
    %c0_415 = arith.constant 0 : index
    %c0_416 = arith.constant 0 : index
    %442 = vector.load %arg1[%c0_413, %c8_414, %c0_415, %c0_416] : memref<1x18x7x816xf32, #tpu.memory_space<vmem>>, vector<1x1x7x816xf32>
    %443 = vector.shape_cast %441 : vector<1x816xf32> to vector<1x1x1x816xf32>
    %444 = vector.broadcast %443 : vector<1x1x1x816xf32> to vector<1x1x7x816xf32>
    %445 = arith.mulf %442, %444 : vector<1x1x7x816xf32>
    %446 = arith.addf %440, %445 : vector<1x1x7x816xf32>
    %c21_417 = arith.constant 21 : index
    %c0_418 = arith.constant 0 : index
    %447 = vector.load %arg6[%c21_417, %c0_418] : memref<25x816xf32, #tpu.memory_space<vmem>>, vector<1x816xf32>
    %c0_419 = arith.constant 0 : index
    %c8_420 = arith.constant 8 : index
    %c0_421 = arith.constant 0 : index
    %c0_422 = arith.constant 0 : index
    %448 = vector.load %arg2[%c0_419, %c8_420, %c0_421, %c0_422] : memref<1x18x7x816xf32, #tpu.memory_space<vmem>>, vector<1x1x7x816xf32>
    %449 = vector.shape_cast %447 : vector<1x816xf32> to vector<1x1x1x816xf32>
    %450 = vector.broadcast %449 : vector<1x1x1x816xf32> to vector<1x1x7x816xf32>
    %451 = arith.mulf %448, %450 : vector<1x1x7x816xf32>
    %452 = arith.addf %446, %451 : vector<1x1x7x816xf32>
    %c22_423 = arith.constant 22 : index
    %c0_424 = arith.constant 0 : index
    %453 = vector.load %arg6[%c22_423, %c0_424] : memref<25x816xf32, #tpu.memory_space<vmem>>, vector<1x816xf32>
    %c0_425 = arith.constant 0 : index
    %c8_426 = arith.constant 8 : index
    %c0_427 = arith.constant 0 : index
    %c0_428 = arith.constant 0 : index
    %454 = vector.load %arg3[%c0_425, %c8_426, %c0_427, %c0_428] : memref<1x18x7x816xf32, #tpu.memory_space<vmem>>, vector<1x1x7x816xf32>
    %455 = vector.shape_cast %453 : vector<1x816xf32> to vector<1x1x1x816xf32>
    %456 = vector.broadcast %455 : vector<1x1x1x816xf32> to vector<1x1x7x816xf32>
    %457 = arith.mulf %454, %456 : vector<1x1x7x816xf32>
    %458 = arith.addf %452, %457 : vector<1x1x7x816xf32>
    %c23_429 = arith.constant 23 : index
    %c0_430 = arith.constant 0 : index
    %459 = vector.load %arg6[%c23_429, %c0_430] : memref<25x816xf32, #tpu.memory_space<vmem>>, vector<1x816xf32>
    %c0_431 = arith.constant 0 : index
    %c8_432 = arith.constant 8 : index
    %c0_433 = arith.constant 0 : index
    %c0_434 = arith.constant 0 : index
    %460 = vector.load %arg4[%c0_431, %c8_432, %c0_433, %c0_434] : memref<1x18x7x816xf32, #tpu.memory_space<vmem>>, vector<1x1x7x816xf32>
    %461 = vector.shape_cast %459 : vector<1x816xf32> to vector<1x1x1x816xf32>
    %462 = vector.broadcast %461 : vector<1x1x1x816xf32> to vector<1x1x7x816xf32>
    %463 = arith.mulf %460, %462 : vector<1x1x7x816xf32>
    %464 = arith.addf %458, %463 : vector<1x1x7x816xf32>
    %c24_435 = arith.constant 24 : index
    %c0_436 = arith.constant 0 : index
    %465 = vector.load %arg6[%c24_435, %c0_436] : memref<25x816xf32, #tpu.memory_space<vmem>>, vector<1x816xf32>
    %c0_437 = arith.constant 0 : index
    %c8_438 = arith.constant 8 : index
    %c0_439 = arith.constant 0 : index
    %c0_440 = arith.constant 0 : index
    %466 = vector.load %arg5[%c0_437, %c8_438, %c0_439, %c0_440] : memref<1x18x7x816xf32, #tpu.memory_space<vmem>>, vector<1x1x7x816xf32>
    %467 = vector.shape_cast %465 : vector<1x816xf32> to vector<1x1x1x816xf32>
    %468 = vector.broadcast %467 : vector<1x1x1x816xf32> to vector<1x1x7x816xf32>
    %469 = arith.mulf %466, %468 : vector<1x1x7x816xf32>
    %470 = arith.addf %464, %469 : vector<1x1x7x816xf32>
    %c0_441 = arith.constant 0 : index
    %c2_442 = arith.constant 2 : index
    %c0_443 = arith.constant 0 : index
    %c0_444 = arith.constant 0 : index
    %471 = vector.load %arg9[%c0_441, %c2_442, %c0_443, %c0_444] : memref<1x7x7x816xf32, #tpu.memory_space<vmem>>, vector<1x1x7x816xf32>
    tpu.vector_store %arg9[%c0_441, %c2_442, %c0_443, %c0_444], %470 {strides = array<i32>} : memref<1x7x7x816xf32, #tpu.memory_space<vmem>>, vector<1x1x7x816xf32>,
    %cst_445 = arith.constant dense<0.000000e+00> : vector<1x7x816xf32>
    %472 = vector.multi_reduction <add>, %470, %cst_445 [0] : vector<1x1x7x816xf32> to vector<1x7x816xf32>
    %473 = vector.shape_cast %472 : vector<1x7x816xf32> to vector<1x1x7x816xf32>
    %474 = arith.addf %315, %473 : vector<1x1x7x816xf32>
    %475 = arith.mulf %470, %470 : vector<1x1x7x816xf32>
    %cst_446 = arith.constant dense<0.000000e+00> : vector<1x7x816xf32>
    %476 = vector.multi_reduction <add>, %475, %cst_446 [0] : vector<1x1x7x816xf32> to vector<1x7x816xf32>
    %477 = vector.shape_cast %476 : vector<1x7x816xf32> to vector<1x1x7x816xf32>
    %478 = arith.addf %319, %477 : vector<1x1x7x816xf32>
    %cst_447 = arith.constant 0.000000e+00 : f32
    %479 = vector.broadcast %cst_447 : f32 to vector<1x1x7x816xf32>
    %c0_448 = arith.constant 0 : index
    %c0_449 = arith.constant 0 : index
    %480 = vector.load %arg6[%c0_448, %c0_449] : memref<25x816xf32, #tpu.memory_space<vmem>>, vector<1x816xf32>
    %c0_450 = arith.constant 0 : index
    %c6_451 = arith.constant 6 : index
    %c0_452 = arith.constant 0 : index
    %c0_453 = arith.constant 0 : index
    %481 = vector.load %arg1[%c0_450, %c6_451, %c0_452, %c0_453] : memref<1x18x7x816xf32, #tpu.memory_space<vmem>>, vector<1x1x7x816xf32>
    %482 = vector.shape_cast %480 : vector<1x816xf32> to vector<1x1x1x816xf32>
    %483 = vector.broadcast %482 : vector<1x1x1x816xf32> to vector<1x1x7x816xf32>
    %484 = arith.mulf %481, %483 : vector<1x1x7x816xf32>
    %485 = arith.addf %479, %484 : vector<1x1x7x816xf32>
    %c1_454 = arith.constant 1 : index
    %c0_455 = arith.constant 0 : index
    %486 = vector.load %arg6[%c1_454, %c0_455] : memref<25x816xf32, #tpu.memory_space<vmem>>, vector<1x816xf32>
    %c0_456 = arith.constant 0 : index
    %c6_457 = arith.constant 6 : index
    %c0_458 = arith.constant 0 : index
    %c0_459 = arith.constant 0 : index
    %487 = vector.load %arg2[%c0_456, %c6_457, %c0_458, %c0_459] : memref<1x18x7x816xf32, #tpu.memory_space<vmem>>, vector<1x1x7x816xf32>
    %488 = vector.shape_cast %486 : vector<1x816xf32> to vector<1x1x1x816xf32>
    %489 = vector.broadcast %488 : vector<1x1x1x816xf32> to vector<1x1x7x816xf32>
    %490 = arith.mulf %487, %489 : vector<1x1x7x816xf32>
    %491 = arith.addf %485, %490 : vector<1x1x7x816xf32>
    %c2_460 = arith.constant 2 : index
    %c0_461 = arith.constant 0 : index
    %492 = vector.load %arg6[%c2_460, %c0_461] : memref<25x816xf32, #tpu.memory_space<vmem>>, vector<1x816xf32>
    %c0_462 = arith.constant 0 : index
    %c6_463 = arith.constant 6 : index
    %c0_464 = arith.constant 0 : index
    %c0_465 = arith.constant 0 : index
    %493 = vector.load %arg3[%c0_462, %c6_463, %c0_464, %c0_465] : memref<1x18x7x816xf32, #tpu.memory_space<vmem>>, vector<1x1x7x816xf32>
    %494 = vector.shape_cast %492 : vector<1x816xf32> to vector<1x1x1x816xf32>
    %495 = vector.broadcast %494 : vector<1x1x1x816xf32> to vector<1x1x7x816xf32>
    %496 = arith.mulf %493, %495 : vector<1x1x7x816xf32>
    %497 = arith.addf %491, %496 : vector<1x1x7x816xf32>
    %c3_466 = arith.constant 3 : index
    %c0_467 = arith.constant 0 : index
    %498 = vector.load %arg6[%c3_466, %c0_467] : memref<25x816xf32, #tpu.memory_space<vmem>>, vector<1x816xf32>
    %c0_468 = arith.constant 0 : index
    %c6_469 = arith.constant 6 : index
    %c0_470 = arith.constant 0 : index
    %c0_471 = arith.constant 0 : index
    %499 = vector.load %arg4[%c0_468, %c6_469, %c0_470, %c0_471] : memref<1x18x7x816xf32, #tpu.memory_space<vmem>>, vector<1x1x7x816xf32>
    %500 = vector.shape_cast %498 : vector<1x816xf32> to vector<1x1x1x816xf32>
    %501 = vector.broadcast %500 : vector<1x1x1x816xf32> to vector<1x1x7x816xf32>
    %502 = arith.mulf %499, %501 : vector<1x1x7x816xf32>
    %503 = arith.addf %497, %502 : vector<1x1x7x816xf32>
    %c4_472 = arith.constant 4 : index
    %c0_473 = arith.constant 0 : index
    %504 = vector.load %arg6[%c4_472, %c0_473] : memref<25x816xf32, #tpu.memory_space<vmem>>, vector<1x816xf32>
    %c0_474 = arith.constant 0 : index
    %c6_475 = arith.constant 6 : index
    %c0_476 = arith.constant 0 : index
    %c0_477 = arith.constant 0 : index
    %505 = vector.load %arg5[%c0_474, %c6_475, %c0_476, %c0_477] : memref<1x18x7x816xf32, #tpu.memory_space<vmem>>, vector<1x1x7x816xf32>
    %506 = vector.shape_cast %504 : vector<1x816xf32> to vector<1x1x1x816xf32>
    %507 = vector.broadcast %506 : vector<1x1x1x816xf32> to vector<1x1x7x816xf32>
    %508 = arith.mulf %505, %507 : vector<1x1x7x816xf32>
    %509 = arith.addf %503, %508 : vector<1x1x7x816xf32>
    %c5_478 = arith.constant 5 : index
    %c0_479 = arith.constant 0 : index
    %510 = vector.load %arg6[%c5_478, %c0_479] : memref<25x816xf32, #tpu.memory_space<vmem>>, vector<1x816xf32>
    %c0_480 = arith.constant 0 : index
    %c7_481 = arith.constant 7 : index
    %c0_482 = arith.constant 0 : index
    %c0_483 = arith.constant 0 : index
    %511 = vector.load %arg1[%c0_480, %c7_481, %c0_482, %c0_483] : memref<1x18x7x816xf32, #tpu.memory_space<vmem>>, vector<1x1x7x816xf32>
    %512 = vector.shape_cast %510 : vector<1x816xf32> to vector<1x1x1x816xf32>
    %513 = vector.broadcast %512 : vector<1x1x1x816xf32> to vector<1x1x7x816xf32>
    %514 = arith.mulf %511, %513 : vector<1x1x7x816xf32>
    %515 = arith.addf %509, %514 : vector<1x1x7x816xf32>
    %c6_484 = arith.constant 6 : index
    %c0_485 = arith.constant 0 : index
    %516 = vector.load %arg6[%c6_484, %c0_485] : memref<25x816xf32, #tpu.memory_space<vmem>>, vector<1x816xf32>
    %c0_486 = arith.constant 0 : index
    %c7_487 = arith.constant 7 : index
    %c0_488 = arith.constant 0 : index
    %c0_489 = arith.constant 0 : index
    %517 = vector.load %arg2[%c0_486, %c7_487, %c0_488, %c0_489] : memref<1x18x7x816xf32, #tpu.memory_space<vmem>>, vector<1x1x7x816xf32>
    %518 = vector.shape_cast %516 : vector<1x816xf32> to vector<1x1x1x816xf32>
    %519 = vector.broadcast %518 : vector<1x1x1x816xf32> to vector<1x1x7x816xf32>
    %520 = arith.mulf %517, %519 : vector<1x1x7x816xf32>
    %521 = arith.addf %515, %520 : vector<1x1x7x816xf32>
    %c7_490 = arith.constant 7 : index
    %c0_491 = arith.constant 0 : index
    %522 = vector.load %arg6[%c7_490, %c0_491] : memref<25x816xf32, #tpu.memory_space<vmem>>, vector<1x816xf32>
    %c0_492 = arith.constant 0 : index
    %c7_493 = arith.constant 7 : index
    %c0_494 = arith.constant 0 : index
    %c0_495 = arith.constant 0 : index
    %523 = vector.load %arg3[%c0_492, %c7_493, %c0_494, %c0_495] : memref<1x18x7x816xf32, #tpu.memory_space<vmem>>, vector<1x1x7x816xf32>
    %524 = vector.shape_cast %522 : vector<1x816xf32> to vector<1x1x1x816xf32>
    %525 = vector.broadcast %524 : vector<1x1x1x816xf32> to vector<1x1x7x816xf32>
    %526 = arith.mulf %523, %525 : vector<1x1x7x816xf32>
    %527 = arith.addf %521, %526 : vector<1x1x7x816xf32>
    %c8_496 = arith.constant 8 : index
    %c0_497 = arith.constant 0 : index
    %528 = vector.load %arg6[%c8_496, %c0_497] : memref<25x816xf32, #tpu.memory_space<vmem>>, vector<1x816xf32>
    %c0_498 = arith.constant 0 : index
    %c7_499 = arith.constant 7 : index
    %c0_500 = arith.constant 0 : index
    %c0_501 = arith.constant 0 : index
    %529 = vector.load %arg4[%c0_498, %c7_499, %c0_500, %c0_501] : memref<1x18x7x816xf32, #tpu.memory_space<vmem>>, vector<1x1x7x816xf32>
    %530 = vector.shape_cast %528 : vector<1x816xf32> to vector<1x1x1x816xf32>
    %531 = vector.broadcast %530 : vector<1x1x1x816xf32> to vector<1x1x7x816xf32>
    %532 = arith.mulf %529, %531 : vector<1x1x7x816xf32>
    %533 = arith.addf %527, %532 : vector<1x1x7x816xf32>
    %c9_502 = arith.constant 9 : index
    %c0_503 = arith.constant 0 : index
    %534 = vector.load %arg6[%c9_502, %c0_503] : memref<25x816xf32, #tpu.memory_space<vmem>>, vector<1x816xf32>
    %c0_504 = arith.constant 0 : index
    %c7_505 = arith.constant 7 : index
    %c0_506 = arith.constant 0 : index
    %c0_507 = arith.constant 0 : index
    %535 = vector.load %arg5[%c0_504, %c7_505, %c0_506, %c0_507] : memref<1x18x7x816xf32, #tpu.memory_space<vmem>>, vector<1x1x7x816xf32>
    %536 = vector.shape_cast %534 : vector<1x816xf32> to vector<1x1x1x816xf32>
    %537 = vector.broadcast %536 : vector<1x1x1x816xf32> to vector<1x1x7x816xf32>
    %538 = arith.mulf %535, %537 : vector<1x1x7x816xf32>
    %539 = arith.addf %533, %538 : vector<1x1x7x816xf32>
    %c10_508 = arith.constant 10 : index
    %c0_509 = arith.constant 0 : index
    %540 = vector.load %arg6[%c10_508, %c0_509] : memref<25x816xf32, #tpu.memory_space<vmem>>, vector<1x816xf32>
    %c0_510 = arith.constant 0 : index
    %c8_511 = arith.constant 8 : index
    %c0_512 = arith.constant 0 : index
    %c0_513 = arith.constant 0 : index
    %541 = vector.load %arg1[%c0_510, %c8_511, %c0_512, %c0_513] : memref<1x18x7x816xf32, #tpu.memory_space<vmem>>, vector<1x1x7x816xf32>
    %542 = vector.shape_cast %540 : vector<1x816xf32> to vector<1x1x1x816xf32>
    %543 = vector.broadcast %542 : vector<1x1x1x816xf32> to vector<1x1x7x816xf32>
    %544 = arith.mulf %541, %543 : vector<1x1x7x816xf32>
    %545 = arith.addf %539, %544 : vector<1x1x7x816xf32>
    %c11_514 = arith.constant 11 : index
    %c0_515 = arith.constant 0 : index
    %546 = vector.load %arg6[%c11_514, %c0_515] : memref<25x816xf32, #tpu.memory_space<vmem>>, vector<1x816xf32>
    %c0_516 = arith.constant 0 : index
    %c8_517 = arith.constant 8 : index
    %c0_518 = arith.constant 0 : index
    %c0_519 = arith.constant 0 : index
    %547 = vector.load %arg2[%c0_516, %c8_517, %c0_518, %c0_519] : memref<1x18x7x816xf32, #tpu.memory_space<vmem>>, vector<1x1x7x816xf32>
    %548 = vector.shape_cast %546 : vector<1x816xf32> to vector<1x1x1x816xf32>
    %549 = vector.broadcast %548 : vector<1x1x1x816xf32> to vector<1x1x7x816xf32>
    %550 = arith.mulf %547, %549 : vector<1x1x7x816xf32>
    %551 = arith.addf %545, %550 : vector<1x1x7x816xf32>
    %c12_520 = arith.constant 12 : index
    %c0_521 = arith.constant 0 : index
    %552 = vector.load %arg6[%c12_520, %c0_521] : memref<25x816xf32, #tpu.memory_space<vmem>>, vector<1x816xf32>
    %c0_522 = arith.constant 0 : index
    %c8_523 = arith.constant 8 : index
    %c0_524 = arith.constant 0 : index
    %c0_525 = arith.constant 0 : index
    %553 = vector.load %arg3[%c0_522, %c8_523, %c0_524, %c0_525] : memref<1x18x7x816xf32, #tpu.memory_space<vmem>>, vector<1x1x7x816xf32>
    %554 = vector.shape_cast %552 : vector<1x816xf32> to vector<1x1x1x816xf32>
    %555 = vector.broadcast %554 : vector<1x1x1x816xf32> to vector<1x1x7x816xf32>
    %556 = arith.mulf %553, %555 : vector<1x1x7x816xf32>
    %557 = arith.addf %551, %556 : vector<1x1x7x816xf32>
    %c13_526 = arith.constant 13 : index
    %c0_527 = arith.constant 0 : index
    %558 = vector.load %arg6[%c13_526, %c0_527] : memref<25x816xf32, #tpu.memory_space<vmem>>, vector<1x816xf32>
    %c0_528 = arith.constant 0 : index
    %c8_529 = arith.constant 8 : index
    %c0_530 = arith.constant 0 : index
    %c0_531 = arith.constant 0 : index
    %559 = vector.load %arg4[%c0_528, %c8_529, %c0_530, %c0_531] : memref<1x18x7x816xf32, #tpu.memory_space<vmem>>, vector<1x1x7x816xf32>
    %560 = vector.shape_cast %558 : vector<1x816xf32> to vector<1x1x1x816xf32>
    %561 = vector.broadcast %560 : vector<1x1x1x816xf32> to vector<1x1x7x816xf32>
    %562 = arith.mulf %559, %561 : vector<1x1x7x816xf32>
    %563 = arith.addf %557, %562 : vector<1x1x7x816xf32>
    %c14_532 = arith.constant 14 : index
    %c0_533 = arith.constant 0 : index
    %564 = vector.load %arg6[%c14_532, %c0_533] : memref<25x816xf32, #tpu.memory_space<vmem>>, vector<1x816xf32>
    %c0_534 = arith.constant 0 : index
    %c8_535 = arith.constant 8 : index
    %c0_536 = arith.constant 0 : index
    %c0_537 = arith.constant 0 : index
    %565 = vector.load %arg5[%c0_534, %c8_535, %c0_536, %c0_537] : memref<1x18x7x816xf32, #tpu.memory_space<vmem>>, vector<1x1x7x816xf32>
    %566 = vector.shape_cast %564 : vector<1x816xf32> to vector<1x1x1x816xf32>
    %567 = vector.broadcast %566 : vector<1x1x1x816xf32> to vector<1x1x7x816xf32>
    %568 = arith.mulf %565, %567 : vector<1x1x7x816xf32>
    %569 = arith.addf %563, %568 : vector<1x1x7x816xf32>
    %c15_538 = arith.constant 15 : index
    %c0_539 = arith.constant 0 : index
    %570 = vector.load %arg6[%c15_538, %c0_539] : memref<25x816xf32, #tpu.memory_space<vmem>>, vector<1x816xf32>
    %c0_540 = arith.constant 0 : index
    %c9_541 = arith.constant 9 : index
    %c0_542 = arith.constant 0 : index
    %c0_543 = arith.constant 0 : index
    %571 = vector.load %arg1[%c0_540, %c9_541, %c0_542, %c0_543] : memref<1x18x7x816xf32, #tpu.memory_space<vmem>>, vector<1x1x7x816xf32>
    %572 = vector.shape_cast %570 : vector<1x816xf32> to vector<1x1x1x816xf32>
    %573 = vector.broadcast %572 : vector<1x1x1x816xf32> to vector<1x1x7x816xf32>
    %574 = arith.mulf %571, %573 : vector<1x1x7x816xf32>
    %575 = arith.addf %569, %574 : vector<1x1x7x816xf32>
    %c16_544 = arith.constant 16 : index
    %c0_545 = arith.constant 0 : index
    %576 = vector.load %arg6[%c16_544, %c0_545] : memref<25x816xf32, #tpu.memory_space<vmem>>, vector<1x816xf32>
    %c0_546 = arith.constant 0 : index
    %c9_547 = arith.constant 9 : index
    %c0_548 = arith.constant 0 : index
    %c0_549 = arith.constant 0 : index
    %577 = vector.load %arg2[%c0_546, %c9_547, %c0_548, %c0_549] : memref<1x18x7x816xf32, #tpu.memory_space<vmem>>, vector<1x1x7x816xf32>
    %578 = vector.shape_cast %576 : vector<1x816xf32> to vector<1x1x1x816xf32>
    %579 = vector.broadcast %578 : vector<1x1x1x816xf32> to vector<1x1x7x816xf32>
    %580 = arith.mulf %577, %579 : vector<1x1x7x816xf32>
    %581 = arith.addf %575, %580 : vector<1x1x7x816xf32>
    %c17_550 = arith.constant 17 : index
    %c0_551 = arith.constant 0 : index
    %582 = vector.load %arg6[%c17_550, %c0_551] : memref<25x816xf32, #tpu.memory_space<vmem>>, vector<1x816xf32>
    %c0_552 = arith.constant 0 : index
    %c9_553 = arith.constant 9 : index
    %c0_554 = arith.constant 0 : index
    %c0_555 = arith.constant 0 : index
    %583 = vector.load %arg3[%c0_552, %c9_553, %c0_554, %c0_555] : memref<1x18x7x816xf32, #tpu.memory_space<vmem>>, vector<1x1x7x816xf32>
    %584 = vector.shape_cast %582 : vector<1x816xf32> to vector<1x1x1x816xf32>
    %585 = vector.broadcast %584 : vector<1x1x1x816xf32> to vector<1x1x7x816xf32>
    %586 = arith.mulf %583, %585 : vector<1x1x7x816xf32>
    %587 = arith.addf %581, %586 : vector<1x1x7x816xf32>
    %c18_556 = arith.constant 18 : index
    %c0_557 = arith.constant 0 : index
    %588 = vector.load %arg6[%c18_556, %c0_557] : memref<25x816xf32, #tpu.memory_space<vmem>>, vector<1x816xf32>
    %c0_558 = arith.constant 0 : index
    %c9_559 = arith.constant 9 : index
    %c0_560 = arith.constant 0 : index
    %c0_561 = arith.constant 0 : index
    %589 = vector.load %arg4[%c0_558, %c9_559, %c0_560, %c0_561] : memref<1x18x7x816xf32, #tpu.memory_space<vmem>>, vector<1x1x7x816xf32>
    %590 = vector.shape_cast %588 : vector<1x816xf32> to vector<1x1x1x816xf32>
    %591 = vector.broadcast %590 : vector<1x1x1x816xf32> to vector<1x1x7x816xf32>
    %592 = arith.mulf %589, %591 : vector<1x1x7x816xf32>
    %593 = arith.addf %587, %592 : vector<1x1x7x816xf32>
    %c19_562 = arith.constant 19 : index
    %c0_563 = arith.constant 0 : index
    %594 = vector.load %arg6[%c19_562, %c0_563] : memref<25x816xf32, #tpu.memory_space<vmem>>, vector<1x816xf32>
    %c0_564 = arith.constant 0 : index
    %c9_565 = arith.constant 9 : index
    %c0_566 = arith.constant 0 : index
    %c0_567 = arith.constant 0 : index
    %595 = vector.load %arg5[%c0_564, %c9_565, %c0_566, %c0_567] : memref<1x18x7x816xf32, #tpu.memory_space<vmem>>, vector<1x1x7x816xf32>
    %596 = vector.shape_cast %594 : vector<1x816xf32> to vector<1x1x1x816xf32>
    %597 = vector.broadcast %596 : vector<1x1x1x816xf32> to vector<1x1x7x816xf32>
    %598 = arith.mulf %595, %597 : vector<1x1x7x816xf32>
    %599 = arith.addf %593, %598 : vector<1x1x7x816xf32>
    %c20_568 = arith.constant 20 : index
    %c0_569 = arith.constant 0 : index
    %600 = vector.load %arg6[%c20_568, %c0_569] : memref<25x816xf32, #tpu.memory_space<vmem>>, vector<1x816xf32>
    %c0_570 = arith.constant 0 : index
    %c10_571 = arith.constant 10 : index
    %c0_572 = arith.constant 0 : index
    %c0_573 = arith.constant 0 : index
    %601 = vector.load %arg1[%c0_570, %c10_571, %c0_572, %c0_573] : memref<1x18x7x816xf32, #tpu.memory_space<vmem>>, vector<1x1x7x816xf32>
    %602 = vector.shape_cast %600 : vector<1x816xf32> to vector<1x1x1x816xf32>
    %603 = vector.broadcast %602 : vector<1x1x1x816xf32> to vector<1x1x7x816xf32>
    %604 = arith.mulf %601, %603 : vector<1x1x7x816xf32>
    %605 = arith.addf %599, %604 : vector<1x1x7x816xf32>
    %c21_574 = arith.constant 21 : index
    %c0_575 = arith.constant 0 : index
    %606 = vector.load %arg6[%c21_574, %c0_575] : memref<25x816xf32, #tpu.memory_space<vmem>>, vector<1x816xf32>
    %c0_576 = arith.constant 0 : index
    %c10_577 = arith.constant 10 : index
    %c0_578 = arith.constant 0 : index
    %c0_579 = arith.constant 0 : index
    %607 = vector.load %arg2[%c0_576, %c10_577, %c0_578, %c0_579] : memref<1x18x7x816xf32, #tpu.memory_space<vmem>>, vector<1x1x7x816xf32>
    %608 = vector.shape_cast %606 : vector<1x816xf32> to vector<1x1x1x816xf32>
    %609 = vector.broadcast %608 : vector<1x1x1x816xf32> to vector<1x1x7x816xf32>
    %610 = arith.mulf %607, %609 : vector<1x1x7x816xf32>
    %611 = arith.addf %605, %610 : vector<1x1x7x816xf32>
    %c22_580 = arith.constant 22 : index
    %c0_581 = arith.constant 0 : index
    %612 = vector.load %arg6[%c22_580, %c0_581] : memref<25x816xf32, #tpu.memory_space<vmem>>, vector<1x816xf32>
    %c0_582 = arith.constant 0 : index
    %c10_583 = arith.constant 10 : index
    %c0_584 = arith.constant 0 : index
    %c0_585 = arith.constant 0 : index
    %613 = vector.load %arg3[%c0_582, %c10_583, %c0_584, %c0_585] : memref<1x18x7x816xf32, #tpu.memory_space<vmem>>, vector<1x1x7x816xf32>
    %614 = vector.shape_cast %612 : vector<1x816xf32> to vector<1x1x1x816xf32>
    %615 = vector.broadcast %614 : vector<1x1x1x816xf32> to vector<1x1x7x816xf32>
    %616 = arith.mulf %613, %615 : vector<1x1x7x816xf32>
    %617 = arith.addf %611, %616 : vector<1x1x7x816xf32>
    %c23_586 = arith.constant 23 : index
    %c0_587 = arith.constant 0 : index
    %618 = vector.load %arg6[%c23_586, %c0_587] : memref<25x816xf32, #tpu.memory_space<vmem>>, vector<1x816xf32>
    %c0_588 = arith.constant 0 : index
    %c10_589 = arith.constant 10 : index
    %c0_590 = arith.constant 0 : index
    %c0_591 = arith.constant 0 : index
    %619 = vector.load %arg4[%c0_588, %c10_589, %c0_590, %c0_591] : memref<1x18x7x816xf32, #tpu.memory_space<vmem>>, vector<1x1x7x816xf32>
    %620 = vector.shape_cast %618 : vector<1x816xf32> to vector<1x1x1x816xf32>
    %621 = vector.broadcast %620 : vector<1x1x1x816xf32> to vector<1x1x7x816xf32>
    %622 = arith.mulf %619, %621 : vector<1x1x7x816xf32>
    %623 = arith.addf %617, %622 : vector<1x1x7x816xf32>
    %c24_592 = arith.constant 24 : index
    %c0_593 = arith.constant 0 : index
    %624 = vector.load %arg6[%c24_592, %c0_593] : memref<25x816xf32, #tpu.memory_space<vmem>>, vector<1x816xf32>
    %c0_594 = arith.constant 0 : index
    %c10_595 = arith.constant 10 : index
    %c0_596 = arith.constant 0 : index
    %c0_597 = arith.constant 0 : index
    %625 = vector.load %arg5[%c0_594, %c10_595, %c0_596, %c0_597] : memref<1x18x7x816xf32, #tpu.memory_space<vmem>>, vector<1x1x7x816xf32>
    %626 = vector.shape_cast %624 : vector<1x816xf32> to vector<1x1x1x816xf32>
    %627 = vector.broadcast %626 : vector<1x1x1x816xf32> to vector<1x1x7x816xf32>
    %628 = arith.mulf %625, %627 : vector<1x1x7x816xf32>
    %629 = arith.addf %623, %628 : vector<1x1x7x816xf32>
    %c0_598 = arith.constant 0 : index
    %c3_599 = arith.constant 3 : index
    %c0_600 = arith.constant 0 : index
    %c0_601 = arith.constant 0 : index
    %630 = vector.load %arg9[%c0_598, %c3_599, %c0_600, %c0_601] : memref<1x7x7x816xf32, #tpu.memory_space<vmem>>, vector<1x1x7x816xf32>
    tpu.vector_store %arg9[%c0_598, %c3_599, %c0_600, %c0_601], %629 {strides = array<i32>} : memref<1x7x7x816xf32, #tpu.memory_space<vmem>>, vector<1x1x7x816xf32>,
    %cst_602 = arith.constant dense<0.000000e+00> : vector<1x7x816xf32>
    %631 = vector.multi_reduction <add>, %629, %cst_602 [0] : vector<1x1x7x816xf32> to vector<1x7x816xf32>
    %632 = vector.shape_cast %631 : vector<1x7x816xf32> to vector<1x1x7x816xf32>
    %633 = arith.addf %474, %632 : vector<1x1x7x816xf32>
    %634 = arith.mulf %629, %629 : vector<1x1x7x816xf32>
    %cst_603 = arith.constant dense<0.000000e+00> : vector<1x7x816xf32>
    %635 = vector.multi_reduction <add>, %634, %cst_603 [0] : vector<1x1x7x816xf32> to vector<1x7x816xf32>
    %636 = vector.shape_cast %635 : vector<1x7x816xf32> to vector<1x1x7x816xf32>
    %637 = arith.addf %478, %636 : vector<1x1x7x816xf32>
    %cst_604 = arith.constant 0.000000e+00 : f32
    %638 = vector.broadcast %cst_604 : f32 to vector<1x1x7x816xf32>
    %c0_605 = arith.constant 0 : index
    %c0_606 = arith.constant 0 : index
    %639 = vector.load %arg6[%c0_605, %c0_606] : memref<25x816xf32, #tpu.memory_space<vmem>>, vector<1x816xf32>
    %c0_607 = arith.constant 0 : index
    %c8_608 = arith.constant 8 : index
    %c0_609 = arith.constant 0 : index
    %c0_610 = arith.constant 0 : index
    %640 = vector.load %arg1[%c0_607, %c8_608, %c0_609, %c0_610] : memref<1x18x7x816xf32, #tpu.memory_space<vmem>>, vector<1x1x7x816xf32>
    %641 = vector.shape_cast %639 : vector<1x816xf32> to vector<1x1x1x816xf32>
    %642 = vector.broadcast %641 : vector<1x1x1x816xf32> to vector<1x1x7x816xf32>
    %643 = arith.mulf %640, %642 : vector<1x1x7x816xf32>
    %644 = arith.addf %638, %643 : vector<1x1x7x816xf32>
    %c1_611 = arith.constant 1 : index
    %c0_612 = arith.constant 0 : index
    %645 = vector.load %arg6[%c1_611, %c0_612] : memref<25x816xf32, #tpu.memory_space<vmem>>, vector<1x816xf32>
    %c0_613 = arith.constant 0 : index
    %c8_614 = arith.constant 8 : index
    %c0_615 = arith.constant 0 : index
    %c0_616 = arith.constant 0 : index
    %646 = vector.load %arg2[%c0_613, %c8_614, %c0_615, %c0_616] : memref<1x18x7x816xf32, #tpu.memory_space<vmem>>, vector<1x1x7x816xf32>
    %647 = vector.shape_cast %645 : vector<1x816xf32> to vector<1x1x1x816xf32>
    %648 = vector.broadcast %647 : vector<1x1x1x816xf32> to vector<1x1x7x816xf32>
    %649 = arith.mulf %646, %648 : vector<1x1x7x816xf32>
    %650 = arith.addf %644, %649 : vector<1x1x7x816xf32>
    %c2_617 = arith.constant 2 : index
    %c0_618 = arith.constant 0 : index
    %651 = vector.load %arg6[%c2_617, %c0_618] : memref<25x816xf32, #tpu.memory_space<vmem>>, vector<1x816xf32>
    %c0_619 = arith.constant 0 : index
    %c8_620 = arith.constant 8 : index
    %c0_621 = arith.constant 0 : index
    %c0_622 = arith.constant 0 : index
    %652 = vector.load %arg3[%c0_619, %c8_620, %c0_621, %c0_622] : memref<1x18x7x816xf32, #tpu.memory_space<vmem>>, vector<1x1x7x816xf32>
    %653 = vector.shape_cast %651 : vector<1x816xf32> to vector<1x1x1x816xf32>
    %654 = vector.broadcast %653 : vector<1x1x1x816xf32> to vector<1x1x7x816xf32>
    %655 = arith.mulf %652, %654 : vector<1x1x7x816xf32>
    %656 = arith.addf %650, %655 : vector<1x1x7x816xf32>
    %c3_623 = arith.constant 3 : index
    %c0_624 = arith.constant 0 : index
    %657 = vector.load %arg6[%c3_623, %c0_624] : memref<25x816xf32, #tpu.memory_space<vmem>>, vector<1x816xf32>
    %c0_625 = arith.constant 0 : index
    %c8_626 = arith.constant 8 : index
    %c0_627 = arith.constant 0 : index
    %c0_628 = arith.constant 0 : index
    %658 = vector.load %arg4[%c0_625, %c8_626, %c0_627, %c0_628] : memref<1x18x7x816xf32, #tpu.memory_space<vmem>>, vector<1x1x7x816xf32>
    %659 = vector.shape_cast %657 : vector<1x816xf32> to vector<1x1x1x816xf32>
    %660 = vector.broadcast %659 : vector<1x1x1x816xf32> to vector<1x1x7x816xf32>
    %661 = arith.mulf %658, %660 : vector<1x1x7x816xf32>
    %662 = arith.addf %656, %661 : vector<1x1x7x816xf32>
    %c4_629 = arith.constant 4 : index
    %c0_630 = arith.constant 0 : index
    %663 = vector.load %arg6[%c4_629, %c0_630] : memref<25x816xf32, #tpu.memory_space<vmem>>, vector<1x816xf32>
    %c0_631 = arith.constant 0 : index
    %c8_632 = arith.constant 8 : index
    %c0_633 = arith.constant 0 : index
    %c0_634 = arith.constant 0 : index
    %664 = vector.load %arg5[%c0_631, %c8_632, %c0_633, %c0_634] : memref<1x18x7x816xf32, #tpu.memory_space<vmem>>, vector<1x1x7x816xf32>
    %665 = vector.shape_cast %663 : vector<1x816xf32> to vector<1x1x1x816xf32>
    %666 = vector.broadcast %665 : vector<1x1x1x816xf32> to vector<1x1x7x816xf32>
    %667 = arith.mulf %664, %666 : vector<1x1x7x816xf32>
    %668 = arith.addf %662, %667 : vector<1x1x7x816xf32>
    %c5_635 = arith.constant 5 : index
    %c0_636 = arith.constant 0 : index
    %669 = vector.load %arg6[%c5_635, %c0_636] : memref<25x816xf32, #tpu.memory_space<vmem>>, vector<1x816xf32>
    %c0_637 = arith.constant 0 : index
    %c9_638 = arith.constant 9 : index
    %c0_639 = arith.constant 0 : index
    %c0_640 = arith.constant 0 : index
    %670 = vector.load %arg1[%c0_637, %c9_638, %c0_639, %c0_640] : memref<1x18x7x816xf32, #tpu.memory_space<vmem>>, vector<1x1x7x816xf32>
    %671 = vector.shape_cast %669 : vector<1x816xf32> to vector<1x1x1x816xf32>
    %672 = vector.broadcast %671 : vector<1x1x1x816xf32> to vector<1x1x7x816xf32>
    %673 = arith.mulf %670, %672 : vector<1x1x7x816xf32>
    %674 = arith.addf %668, %673 : vector<1x1x7x816xf32>
    %c6_641 = arith.constant 6 : index
    %c0_642 = arith.constant 0 : index
    %675 = vector.load %arg6[%c6_641, %c0_642] : memref<25x816xf32, #tpu.memory_space<vmem>>, vector<1x816xf32>
    %c0_643 = arith.constant 0 : index
    %c9_644 = arith.constant 9 : index
    %c0_645 = arith.constant 0 : index
    %c0_646 = arith.constant 0 : index
    %676 = vector.load %arg2[%c0_643, %c9_644, %c0_645, %c0_646] : memref<1x18x7x816xf32, #tpu.memory_space<vmem>>, vector<1x1x7x816xf32>
    %677 = vector.shape_cast %675 : vector<1x816xf32> to vector<1x1x1x816xf32>
    %678 = vector.broadcast %677 : vector<1x1x1x816xf32> to vector<1x1x7x816xf32>
    %679 = arith.mulf %676, %678 : vector<1x1x7x816xf32>
    %680 = arith.addf %674, %679 : vector<1x1x7x816xf32>
    %c7_647 = arith.constant 7 : index
    %c0_648 = arith.constant 0 : index
    %681 = vector.load %arg6[%c7_647, %c0_648] : memref<25x816xf32, #tpu.memory_space<vmem>>, vector<1x816xf32>
    %c0_649 = arith.constant 0 : index
    %c9_650 = arith.constant 9 : index
    %c0_651 = arith.constant 0 : index
    %c0_652 = arith.constant 0 : index
    %682 = vector.load %arg3[%c0_649, %c9_650, %c0_651, %c0_652] : memref<1x18x7x816xf32, #tpu.memory_space<vmem>>, vector<1x1x7x816xf32>
    %683 = vector.shape_cast %681 : vector<1x816xf32> to vector<1x1x1x816xf32>
    %684 = vector.broadcast %683 : vector<1x1x1x816xf32> to vector<1x1x7x816xf32>
    %685 = arith.mulf %682, %684 : vector<1x1x7x816xf32>
    %686 = arith.addf %680, %685 : vector<1x1x7x816xf32>
    %c8_653 = arith.constant 8 : index
    %c0_654 = arith.constant 0 : index
    %687 = vector.load %arg6[%c8_653, %c0_654] : memref<25x816xf32, #tpu.memory_space<vmem>>, vector<1x816xf32>
    %c0_655 = arith.constant 0 : index
    %c9_656 = arith.constant 9 : index
    %c0_657 = arith.constant 0 : index
    %c0_658 = arith.constant 0 : index
    %688 = vector.load %arg4[%c0_655, %c9_656, %c0_657, %c0_658] : memref<1x18x7x816xf32, #tpu.memory_space<vmem>>, vector<1x1x7x816xf32>
    %689 = vector.shape_cast %687 : vector<1x816xf32> to vector<1x1x1x816xf32>
    %690 = vector.broadcast %689 : vector<1x1x1x816xf32> to vector<1x1x7x816xf32>
    %691 = arith.mulf %688, %690 : vector<1x1x7x816xf32>
    %692 = arith.addf %686, %691 : vector<1x1x7x816xf32>
    %c9_659 = arith.constant 9 : index
    %c0_660 = arith.constant 0 : index
    %693 = vector.load %arg6[%c9_659, %c0_660] : memref<25x816xf32, #tpu.memory_space<vmem>>, vector<1x816xf32>
    %c0_661 = arith.constant 0 : index
    %c9_662 = arith.constant 9 : index
    %c0_663 = arith.constant 0 : index
    %c0_664 = arith.constant 0 : index
    %694 = vector.load %arg5[%c0_661, %c9_662, %c0_663, %c0_664] : memref<1x18x7x816xf32, #tpu.memory_space<vmem>>, vector<1x1x7x816xf32>
    %695 = vector.shape_cast %693 : vector<1x816xf32> to vector<1x1x1x816xf32>
    %696 = vector.broadcast %695 : vector<1x1x1x816xf32> to vector<1x1x7x816xf32>
    %697 = arith.mulf %694, %696 : vector<1x1x7x816xf32>
    %698 = arith.addf %692, %697 : vector<1x1x7x816xf32>
    %c10_665 = arith.constant 10 : index
    %c0_666 = arith.constant 0 : index
    %699 = vector.load %arg6[%c10_665, %c0_666] : memref<25x816xf32, #tpu.memory_space<vmem>>, vector<1x816xf32>
    %c0_667 = arith.constant 0 : index
    %c10_668 = arith.constant 10 : index
    %c0_669 = arith.constant 0 : index
    %c0_670 = arith.constant 0 : index
    %700 = vector.load %arg1[%c0_667, %c10_668, %c0_669, %c0_670] : memref<1x18x7x816xf32, #tpu.memory_space<vmem>>, vector<1x1x7x816xf32>
    %701 = vector.shape_cast %699 : vector<1x816xf32> to vector<1x1x1x816xf32>
    %702 = vector.broadcast %701 : vector<1x1x1x816xf32> to vector<1x1x7x816xf32>
    %703 = arith.mulf %700, %702 : vector<1x1x7x816xf32>
    %704 = arith.addf %698, %703 : vector<1x1x7x816xf32>
    %c11_671 = arith.constant 11 : index
    %c0_672 = arith.constant 0 : index
    %705 = vector.load %arg6[%c11_671, %c0_672] : memref<25x816xf32, #tpu.memory_space<vmem>>, vector<1x816xf32>
    %c0_673 = arith.constant 0 : index
    %c10_674 = arith.constant 10 : index
    %c0_675 = arith.constant 0 : index
    %c0_676 = arith.constant 0 : index
    %706 = vector.load %arg2[%c0_673, %c10_674, %c0_675, %c0_676] : memref<1x18x7x816xf32, #tpu.memory_space<vmem>>, vector<1x1x7x816xf32>
    %707 = vector.shape_cast %705 : vector<1x816xf32> to vector<1x1x1x816xf32>
    %708 = vector.broadcast %707 : vector<1x1x1x816xf32> to vector<1x1x7x816xf32>
    %709 = arith.mulf %706, %708 : vector<1x1x7x816xf32>
    %710 = arith.addf %704, %709 : vector<1x1x7x816xf32>
    %c12_677 = arith.constant 12 : index
    %c0_678 = arith.constant 0 : index
    %711 = vector.load %arg6[%c12_677, %c0_678] : memref<25x816xf32, #tpu.memory_space<vmem>>, vector<1x816xf32>
    %c0_679 = arith.constant 0 : index
    %c10_680 = arith.constant 10 : index
    %c0_681 = arith.constant 0 : index
    %c0_682 = arith.constant 0 : index
    %712 = vector.load %arg3[%c0_679, %c10_680, %c0_681, %c0_682] : memref<1x18x7x816xf32, #tpu.memory_space<vmem>>, vector<1x1x7x816xf32>
    %713 = vector.shape_cast %711 : vector<1x816xf32> to vector<1x1x1x816xf32>
    %714 = vector.broadcast %713 : vector<1x1x1x816xf32> to vector<1x1x7x816xf32>
    %715 = arith.mulf %712, %714 : vector<1x1x7x816xf32>
    %716 = arith.addf %710, %715 : vector<1x1x7x816xf32>
    %c13_683 = arith.constant 13 : index
    %c0_684 = arith.constant 0 : index
    %717 = vector.load %arg6[%c13_683, %c0_684] : memref<25x816xf32, #tpu.memory_space<vmem>>, vector<1x816xf32>
    %c0_685 = arith.constant 0 : index
    %c10_686 = arith.constant 10 : index
    %c0_687 = arith.constant 0 : index
    %c0_688 = arith.constant 0 : index
    %718 = vector.load %arg4[%c0_685, %c10_686, %c0_687, %c0_688] : memref<1x18x7x816xf32, #tpu.memory_space<vmem>>, vector<1x1x7x816xf32>
    %719 = vector.shape_cast %717 : vector<1x816xf32> to vector<1x1x1x816xf32>
    %720 = vector.broadcast %719 : vector<1x1x1x816xf32> to vector<1x1x7x816xf32>
    %721 = arith.mulf %718, %720 : vector<1x1x7x816xf32>
    %722 = arith.addf %716, %721 : vector<1x1x7x816xf32>
    %c14_689 = arith.constant 14 : index
    %c0_690 = arith.constant 0 : index
    %723 = vector.load %arg6[%c14_689, %c0_690] : memref<25x816xf32, #tpu.memory_space<vmem>>, vector<1x816xf32>
    %c0_691 = arith.constant 0 : index
    %c10_692 = arith.constant 10 : index
    %c0_693 = arith.constant 0 : index
    %c0_694 = arith.constant 0 : index
    %724 = vector.load %arg5[%c0_691, %c10_692, %c0_693, %c0_694] : memref<1x18x7x816xf32, #tpu.memory_space<vmem>>, vector<1x1x7x816xf32>
    %725 = vector.shape_cast %723 : vector<1x816xf32> to vector<1x1x1x816xf32>
    %726 = vector.broadcast %725 : vector<1x1x1x816xf32> to vector<1x1x7x816xf32>
    %727 = arith.mulf %724, %726 : vector<1x1x7x816xf32>
    %728 = arith.addf %722, %727 : vector<1x1x7x816xf32>
    %c15_695 = arith.constant 15 : index
    %c0_696 = arith.constant 0 : index
    %729 = vector.load %arg6[%c15_695, %c0_696] : memref<25x816xf32, #tpu.memory_space<vmem>>, vector<1x816xf32>
    %c0_697 = arith.constant 0 : index
    %c11_698 = arith.constant 11 : index
    %c0_699 = arith.constant 0 : index
    %c0_700 = arith.constant 0 : index
    %730 = vector.load %arg1[%c0_697, %c11_698, %c0_699, %c0_700] : memref<1x18x7x816xf32, #tpu.memory_space<vmem>>, vector<1x1x7x816xf32>
    %731 = vector.shape_cast %729 : vector<1x816xf32> to vector<1x1x1x816xf32>
    %732 = vector.broadcast %731 : vector<1x1x1x816xf32> to vector<1x1x7x816xf32>
    %733 = arith.mulf %730, %732 : vector<1x1x7x816xf32>
    %734 = arith.addf %728, %733 : vector<1x1x7x816xf32>
    %c16_701 = arith.constant 16 : index
    %c0_702 = arith.constant 0 : index
    %735 = vector.load %arg6[%c16_701, %c0_702] : memref<25x816xf32, #tpu.memory_space<vmem>>, vector<1x816xf32>
    %c0_703 = arith.constant 0 : index
    %c11_704 = arith.constant 11 : index
    %c0_705 = arith.constant 0 : index
    %c0_706 = arith.constant 0 : index
    %736 = vector.load %arg2[%c0_703, %c11_704, %c0_705, %c0_706] : memref<1x18x7x816xf32, #tpu.memory_space<vmem>>, vector<1x1x7x816xf32>
    %737 = vector.shape_cast %735 : vector<1x816xf32> to vector<1x1x1x816xf32>
    %738 = vector.broadcast %737 : vector<1x1x1x816xf32> to vector<1x1x7x816xf32>
    %739 = arith.mulf %736, %738 : vector<1x1x7x816xf32>
    %740 = arith.addf %734, %739 : vector<1x1x7x816xf32>
    %c17_707 = arith.constant 17 : index
    %c0_708 = arith.constant 0 : index
    %741 = vector.load %arg6[%c17_707, %c0_708] : memref<25x816xf32, #tpu.memory_space<vmem>>, vector<1x816xf32>
    %c0_709 = arith.constant 0 : index
    %c11_710 = arith.constant 11 : index
    %c0_711 = arith.constant 0 : index
    %c0_712 = arith.constant 0 : index
    %742 = vector.load %arg3[%c0_709, %c11_710, %c0_711, %c0_712] : memref<1x18x7x816xf32, #tpu.memory_space<vmem>>, vector<1x1x7x816xf32>
    %743 = vector.shape_cast %741 : vector<1x816xf32> to vector<1x1x1x816xf32>
    %744 = vector.broadcast %743 : vector<1x1x1x816xf32> to vector<1x1x7x816xf32>
    %745 = arith.mulf %742, %744 : vector<1x1x7x816xf32>
    %746 = arith.addf %740, %745 : vector<1x1x7x816xf32>
    %c18_713 = arith.constant 18 : index
    %c0_714 = arith.constant 0 : index
    %747 = vector.load %arg6[%c18_713, %c0_714] : memref<25x816xf32, #tpu.memory_space<vmem>>, vector<1x816xf32>
    %c0_715 = arith.constant 0 : index
    %c11_716 = arith.constant 11 : index
    %c0_717 = arith.constant 0 : index
    %c0_718 = arith.constant 0 : index
    %748 = vector.load %arg4[%c0_715, %c11_716, %c0_717, %c0_718] : memref<1x18x7x816xf32, #tpu.memory_space<vmem>>, vector<1x1x7x816xf32>
    %749 = vector.shape_cast %747 : vector<1x816xf32> to vector<1x1x1x816xf32>
    %750 = vector.broadcast %749 : vector<1x1x1x816xf32> to vector<1x1x7x816xf32>
    %751 = arith.mulf %748, %750 : vector<1x1x7x816xf32>
    %752 = arith.addf %746, %751 : vector<1x1x7x816xf32>
    %c19_719 = arith.constant 19 : index
    %c0_720 = arith.constant 0 : index
    %753 = vector.load %arg6[%c19_719, %c0_720] : memref<25x816xf32, #tpu.memory_space<vmem>>, vector<1x816xf32>
    %c0_721 = arith.constant 0 : index
    %c11_722 = arith.constant 11 : index
    %c0_723 = arith.constant 0 : index
    %c0_724 = arith.constant 0 : index
    %754 = vector.load %arg5[%c0_721, %c11_722, %c0_723, %c0_724] : memref<1x18x7x816xf32, #tpu.memory_space<vmem>>, vector<1x1x7x816xf32>
    %755 = vector.shape_cast %753 : vector<1x816xf32> to vector<1x1x1x816xf32>
    %756 = vector.broadcast %755 : vector<1x1x1x816xf32> to vector<1x1x7x816xf32>
    %757 = arith.mulf %754, %756 : vector<1x1x7x816xf32>
    %758 = arith.addf %752, %757 : vector<1x1x7x816xf32>
    %c20_725 = arith.constant 20 : index
    %c0_726 = arith.constant 0 : index
    %759 = vector.load %arg6[%c20_725, %c0_726] : memref<25x816xf32, #tpu.memory_space<vmem>>, vector<1x816xf32>
    %c0_727 = arith.constant 0 : index
    %c12_728 = arith.constant 12 : index
    %c0_729 = arith.constant 0 : index
    %c0_730 = arith.constant 0 : index
    %760 = vector.load %arg1[%c0_727, %c12_728, %c0_729, %c0_730] : memref<1x18x7x816xf32, #tpu.memory_space<vmem>>, vector<1x1x7x816xf32>
    %761 = vector.shape_cast %759 : vector<1x816xf32> to vector<1x1x1x816xf32>
    %762 = vector.broadcast %761 : vector<1x1x1x816xf32> to vector<1x1x7x816xf32>
    %763 = arith.mulf %760, %762 : vector<1x1x7x816xf32>
    %764 = arith.addf %758, %763 : vector<1x1x7x816xf32>
    %c21_731 = arith.constant 21 : index
    %c0_732 = arith.constant 0 : index
    %765 = vector.load %arg6[%c21_731, %c0_732] : memref<25x816xf32, #tpu.memory_space<vmem>>, vector<1x816xf32>
    %c0_733 = arith.constant 0 : index
    %c12_734 = arith.constant 12 : index
    %c0_735 = arith.constant 0 : index
    %c0_736 = arith.constant 0 : index
    %766 = vector.load %arg2[%c0_733, %c12_734, %c0_735, %c0_736] : memref<1x18x7x816xf32, #tpu.memory_space<vmem>>, vector<1x1x7x816xf32>
    %767 = vector.shape_cast %765 : vector<1x816xf32> to vector<1x1x1x816xf32>
    %768 = vector.broadcast %767 : vector<1x1x1x816xf32> to vector<1x1x7x816xf32>
    %769 = arith.mulf %766, %768 : vector<1x1x7x816xf32>
    %770 = arith.addf %764, %769 : vector<1x1x7x816xf32>
    %c22_737 = arith.constant 22 : index
    %c0_738 = arith.constant 0 : index
    %771 = vector.load %arg6[%c22_737, %c0_738] : memref<25x816xf32, #tpu.memory_space<vmem>>, vector<1x816xf32>
    %c0_739 = arith.constant 0 : index
    %c12_740 = arith.constant 12 : index
    %c0_741 = arith.constant 0 : index
    %c0_742 = arith.constant 0 : index
    %772 = vector.load %arg3[%c0_739, %c12_740, %c0_741, %c0_742] : memref<1x18x7x816xf32, #tpu.memory_space<vmem>>, vector<1x1x7x816xf32>
    %773 = vector.shape_cast %771 : vector<1x816xf32> to vector<1x1x1x816xf32>
    %774 = vector.broadcast %773 : vector<1x1x1x816xf32> to vector<1x1x7x816xf32>
    %775 = arith.mulf %772, %774 : vector<1x1x7x816xf32>
    %776 = arith.addf %770, %775 : vector<1x1x7x816xf32>
    %c23_743 = arith.constant 23 : index
    %c0_744 = arith.constant 0 : index
    %777 = vector.load %arg6[%c23_743, %c0_744] : memref<25x816xf32, #tpu.memory_space<vmem>>, vector<1x816xf32>
    %c0_745 = arith.constant 0 : index
    %c12_746 = arith.constant 12 : index
    %c0_747 = arith.constant 0 : index
    %c0_748 = arith.constant 0 : index
    %778 = vector.load %arg4[%c0_745, %c12_746, %c0_747, %c0_748] : memref<1x18x7x816xf32, #tpu.memory_space<vmem>>, vector<1x1x7x816xf32>
    %779 = vector.shape_cast %777 : vector<1x816xf32> to vector<1x1x1x816xf32>
    %780 = vector.broadcast %779 : vector<1x1x1x816xf32> to vector<1x1x7x816xf32>
    %781 = arith.mulf %778, %780 : vector<1x1x7x816xf32>
    %782 = arith.addf %776, %781 : vector<1x1x7x816xf32>
    %c24_749 = arith.constant 24 : index
    %c0_750 = arith.constant 0 : index
    %783 = vector.load %arg6[%c24_749, %c0_750] : memref<25x816xf32, #tpu.memory_space<vmem>>, vector<1x816xf32>
    %c0_751 = arith.constant 0 : index
    %c12_752 = arith.constant 12 : index
    %c0_753 = arith.constant 0 : index
    %c0_754 = arith.constant 0 : index
    %784 = vector.load %arg5[%c0_751, %c12_752, %c0_753, %c0_754] : memref<1x18x7x816xf32, #tpu.memory_space<vmem>>, vector<1x1x7x816xf32>
    %785 = vector.shape_cast %783 : vector<1x816xf32> to vector<1x1x1x816xf32>
    %786 = vector.broadcast %785 : vector<1x1x1x816xf32> to vector<1x1x7x816xf32>
    %787 = arith.mulf %784, %786 : vector<1x1x7x816xf32>
    %788 = arith.addf %782, %787 : vector<1x1x7x816xf32>
    %c0_755 = arith.constant 0 : index
    %c4_756 = arith.constant 4 : index
    %c0_757 = arith.constant 0 : index
    %c0_758 = arith.constant 0 : index
    %789 = vector.load %arg9[%c0_755, %c4_756, %c0_757, %c0_758] : memref<1x7x7x816xf32, #tpu.memory_space<vmem>>, vector<1x1x7x816xf32>
    tpu.vector_store %arg9[%c0_755, %c4_756, %c0_757, %c0_758], %788 {strides = array<i32>} : memref<1x7x7x816xf32, #tpu.memory_space<vmem>>, vector<1x1x7x816xf32>,
    %cst_759 = arith.constant dense<0.000000e+00> : vector<1x7x816xf32>
    %790 = vector.multi_reduction <add>, %788, %cst_759 [0] : vector<1x1x7x816xf32> to vector<1x7x816xf32>
    %791 = vector.shape_cast %790 : vector<1x7x816xf32> to vector<1x1x7x816xf32>
    %792 = arith.addf %633, %791 : vector<1x1x7x816xf32>
    %793 = arith.mulf %788, %788 : vector<1x1x7x816xf32>
    %cst_760 = arith.constant dense<0.000000e+00> : vector<1x7x816xf32>
    %794 = vector.multi_reduction <add>, %793, %cst_760 [0] : vector<1x1x7x816xf32> to vector<1x7x816xf32>
    %795 = vector.shape_cast %794 : vector<1x7x816xf32> to vector<1x1x7x816xf32>
    %796 = arith.addf %637, %795 : vector<1x1x7x816xf32>
    %cst_761 = arith.constant 0.000000e+00 : f32
    %797 = vector.broadcast %cst_761 : f32 to vector<1x1x7x816xf32>
    %c0_762 = arith.constant 0 : index
    %c0_763 = arith.constant 0 : index
    %798 = vector.load %arg6[%c0_762, %c0_763] : memref<25x816xf32, #tpu.memory_space<vmem>>, vector<1x816xf32>
    %c0_764 = arith.constant 0 : index
    %c10_765 = arith.constant 10 : index
    %c0_766 = arith.constant 0 : index
    %c0_767 = arith.constant 0 : index
    %799 = vector.load %arg1[%c0_764, %c10_765, %c0_766, %c0_767] : memref<1x18x7x816xf32, #tpu.memory_space<vmem>>, vector<1x1x7x816xf32>
    %800 = vector.shape_cast %798 : vector<1x816xf32> to vector<1x1x1x816xf32>
    %801 = vector.broadcast %800 : vector<1x1x1x816xf32> to vector<1x1x7x816xf32>
    %802 = arith.mulf %799, %801 : vector<1x1x7x816xf32>
    %803 = arith.addf %797, %802 : vector<1x1x7x816xf32>
    %c1_768 = arith.constant 1 : index
    %c0_769 = arith.constant 0 : index
    %804 = vector.load %arg6[%c1_768, %c0_769] : memref<25x816xf32, #tpu.memory_space<vmem>>, vector<1x816xf32>
    %c0_770 = arith.constant 0 : index
    %c10_771 = arith.constant 10 : index
    %c0_772 = arith.constant 0 : index
    %c0_773 = arith.constant 0 : index
    %805 = vector.load %arg2[%c0_770, %c10_771, %c0_772, %c0_773] : memref<1x18x7x816xf32, #tpu.memory_space<vmem>>, vector<1x1x7x816xf32>
    %806 = vector.shape_cast %804 : vector<1x816xf32> to vector<1x1x1x816xf32>
    %807 = vector.broadcast %806 : vector<1x1x1x816xf32> to vector<1x1x7x816xf32>
    %808 = arith.mulf %805, %807 : vector<1x1x7x816xf32>
    %809 = arith.addf %803, %808 : vector<1x1x7x816xf32>
    %c2_774 = arith.constant 2 : index
    %c0_775 = arith.constant 0 : index
    %810 = vector.load %arg6[%c2_774, %c0_775] : memref<25x816xf32, #tpu.memory_space<vmem>>, vector<1x816xf32>
    %c0_776 = arith.constant 0 : index
    %c10_777 = arith.constant 10 : index
    %c0_778 = arith.constant 0 : index
    %c0_779 = arith.constant 0 : index
    %811 = vector.load %arg3[%c0_776, %c10_777, %c0_778, %c0_779] : memref<1x18x7x816xf32, #tpu.memory_space<vmem>>, vector<1x1x7x816xf32>
    %812 = vector.shape_cast %810 : vector<1x816xf32> to vector<1x1x1x816xf32>
    %813 = vector.broadcast %812 : vector<1x1x1x816xf32> to vector<1x1x7x816xf32>
    %814 = arith.mulf %811, %813 : vector<1x1x7x816xf32>
    %815 = arith.addf %809, %814 : vector<1x1x7x816xf32>
    %c3_780 = arith.constant 3 : index
    %c0_781 = arith.constant 0 : index
    %816 = vector.load %arg6[%c3_780, %c0_781] : memref<25x816xf32, #tpu.memory_space<vmem>>, vector<1x816xf32>
    %c0_782 = arith.constant 0 : index
    %c10_783 = arith.constant 10 : index
    %c0_784 = arith.constant 0 : index
    %c0_785 = arith.constant 0 : index
    %817 = vector.load %arg4[%c0_782, %c10_783, %c0_784, %c0_785] : memref<1x18x7x816xf32, #tpu.memory_space<vmem>>, vector<1x1x7x816xf32>
    %818 = vector.shape_cast %816 : vector<1x816xf32> to vector<1x1x1x816xf32>
    %819 = vector.broadcast %818 : vector<1x1x1x816xf32> to vector<1x1x7x816xf32>
    %820 = arith.mulf %817, %819 : vector<1x1x7x816xf32>
    %821 = arith.addf %815, %820 : vector<1x1x7x816xf32>
    %c4_786 = arith.constant 4 : index
    %c0_787 = arith.constant 0 : index
    %822 = vector.load %arg6[%c4_786, %c0_787] : memref<25x816xf32, #tpu.memory_space<vmem>>, vector<1x816xf32>
    %c0_788 = arith.constant 0 : index
    %c10_789 = arith.constant 10 : index
    %c0_790 = arith.constant 0 : index
    %c0_791 = arith.constant 0 : index
    %823 = vector.load %arg5[%c0_788, %c10_789, %c0_790, %c0_791] : memref<1x18x7x816xf32, #tpu.memory_space<vmem>>, vector<1x1x7x816xf32>
    %824 = vector.shape_cast %822 : vector<1x816xf32> to vector<1x1x1x816xf32>
    %825 = vector.broadcast %824 : vector<1x1x1x816xf32> to vector<1x1x7x816xf32>
    %826 = arith.mulf %823, %825 : vector<1x1x7x816xf32>
    %827 = arith.addf %821, %826 : vector<1x1x7x816xf32>
    %c5_792 = arith.constant 5 : index
    %c0_793 = arith.constant 0 : index
    %828 = vector.load %arg6[%c5_792, %c0_793] : memref<25x816xf32, #tpu.memory_space<vmem>>, vector<1x816xf32>
    %c0_794 = arith.constant 0 : index
    %c11_795 = arith.constant 11 : index
    %c0_796 = arith.constant 0 : index
    %c0_797 = arith.constant 0 : index
    %829 = vector.load %arg1[%c0_794, %c11_795, %c0_796, %c0_797] : memref<1x18x7x816xf32, #tpu.memory_space<vmem>>, vector<1x1x7x816xf32>
    %830 = vector.shape_cast %828 : vector<1x816xf32> to vector<1x1x1x816xf32>
    %831 = vector.broadcast %830 : vector<1x1x1x816xf32> to vector<1x1x7x816xf32>
    %832 = arith.mulf %829, %831 : vector<1x1x7x816xf32>
    %833 = arith.addf %827, %832 : vector<1x1x7x816xf32>
    %c6_798 = arith.constant 6 : index
    %c0_799 = arith.constant 0 : index
    %834 = vector.load %arg6[%c6_798, %c0_799] : memref<25x816xf32, #tpu.memory_space<vmem>>, vector<1x816xf32>
    %c0_800 = arith.constant 0 : index
    %c11_801 = arith.constant 11 : index
    %c0_802 = arith.constant 0 : index
    %c0_803 = arith.constant 0 : index
    %835 = vector.load %arg2[%c0_800, %c11_801, %c0_802, %c0_803] : memref<1x18x7x816xf32, #tpu.memory_space<vmem>>, vector<1x1x7x816xf32>
    %836 = vector.shape_cast %834 : vector<1x816xf32> to vector<1x1x1x816xf32>
    %837 = vector.broadcast %836 : vector<1x1x1x816xf32> to vector<1x1x7x816xf32>
    %838 = arith.mulf %835, %837 : vector<1x1x7x816xf32>
    %839 = arith.addf %833, %838 : vector<1x1x7x816xf32>
    %c7_804 = arith.constant 7 : index
    %c0_805 = arith.constant 0 : index
    %840 = vector.load %arg6[%c7_804, %c0_805] : memref<25x816xf32, #tpu.memory_space<vmem>>, vector<1x816xf32>
    %c0_806 = arith.constant 0 : index
    %c11_807 = arith.constant 11 : index
    %c0_808 = arith.constant 0 : index
    %c0_809 = arith.constant 0 : index
    %841 = vector.load %arg3[%c0_806, %c11_807, %c0_808, %c0_809] : memref<1x18x7x816xf32, #tpu.memory_space<vmem>>, vector<1x1x7x816xf32>
    %842 = vector.shape_cast %840 : vector<1x816xf32> to vector<1x1x1x816xf32>
    %843 = vector.broadcast %842 : vector<1x1x1x816xf32> to vector<1x1x7x816xf32>
    %844 = arith.mulf %841, %843 : vector<1x1x7x816xf32>
    %845 = arith.addf %839, %844 : vector<1x1x7x816xf32>
    %c8_810 = arith.constant 8 : index
    %c0_811 = arith.constant 0 : index
    %846 = vector.load %arg6[%c8_810, %c0_811] : memref<25x816xf32, #tpu.memory_space<vmem>>, vector<1x816xf32>
    %c0_812 = arith.constant 0 : index
    %c11_813 = arith.constant 11 : index
    %c0_814 = arith.constant 0 : index
    %c0_815 = arith.constant 0 : index
    %847 = vector.load %arg4[%c0_812, %c11_813, %c0_814, %c0_815] : memref<1x18x7x816xf32, #tpu.memory_space<vmem>>, vector<1x1x7x816xf32>
    %848 = vector.shape_cast %846 : vector<1x816xf32> to vector<1x1x1x816xf32>
    %849 = vector.broadcast %848 : vector<1x1x1x816xf32> to vector<1x1x7x816xf32>
    %850 = arith.mulf %847, %849 : vector<1x1x7x816xf32>
    %851 = arith.addf %845, %850 : vector<1x1x7x816xf32>
    %c9_816 = arith.constant 9 : index
    %c0_817 = arith.constant 0 : index
    %852 = vector.load %arg6[%c9_816, %c0_817] : memref<25x816xf32, #tpu.memory_space<vmem>>, vector<1x816xf32>
    %c0_818 = arith.constant 0 : index
    %c11_819 = arith.constant 11 : index
    %c0_820 = arith.constant 0 : index
    %c0_821 = arith.constant 0 : index
    %853 = vector.load %arg5[%c0_818, %c11_819, %c0_820, %c0_821] : memref<1x18x7x816xf32, #tpu.memory_space<vmem>>, vector<1x1x7x816xf32>
    %854 = vector.shape_cast %852 : vector<1x816xf32> to vector<1x1x1x816xf32>
    %855 = vector.broadcast %854 : vector<1x1x1x816xf32> to vector<1x1x7x816xf32>
    %856 = arith.mulf %853, %855 : vector<1x1x7x816xf32>
    %857 = arith.addf %851, %856 : vector<1x1x7x816xf32>
    %c10_822 = arith.constant 10 : index
    %c0_823 = arith.constant 0 : index
    %858 = vector.load %arg6[%c10_822, %c0_823] : memref<25x816xf32, #tpu.memory_space<vmem>>, vector<1x816xf32>
    %c0_824 = arith.constant 0 : index
    %c12_825 = arith.constant 12 : index
    %c0_826 = arith.constant 0 : index
    %c0_827 = arith.constant 0 : index
    %859 = vector.load %arg1[%c0_824, %c12_825, %c0_826, %c0_827] : memref<1x18x7x816xf32, #tpu.memory_space<vmem>>, vector<1x1x7x816xf32>
    %860 = vector.shape_cast %858 : vector<1x816xf32> to vector<1x1x1x816xf32>
    %861 = vector.broadcast %860 : vector<1x1x1x816xf32> to vector<1x1x7x816xf32>
    %862 = arith.mulf %859, %861 : vector<1x1x7x816xf32>
    %863 = arith.addf %857, %862 : vector<1x1x7x816xf32>
    %c11_828 = arith.constant 11 : index
    %c0_829 = arith.constant 0 : index
    %864 = vector.load %arg6[%c11_828, %c0_829] : memref<25x816xf32, #tpu.memory_space<vmem>>, vector<1x816xf32>
    %c0_830 = arith.constant 0 : index
    %c12_831 = arith.constant 12 : index
    %c0_832 = arith.constant 0 : index
    %c0_833 = arith.constant 0 : index
    %865 = vector.load %arg2[%c0_830, %c12_831, %c0_832, %c0_833] : memref<1x18x7x816xf32, #tpu.memory_space<vmem>>, vector<1x1x7x816xf32>
    %866 = vector.shape_cast %864 : vector<1x816xf32> to vector<1x1x1x816xf32>
    %867 = vector.broadcast %866 : vector<1x1x1x816xf32> to vector<1x1x7x816xf32>
    %868 = arith.mulf %865, %867 : vector<1x1x7x816xf32>
    %869 = arith.addf %863, %868 : vector<1x1x7x816xf32>
    %c12_834 = arith.constant 12 : index
    %c0_835 = arith.constant 0 : index
    %870 = vector.load %arg6[%c12_834, %c0_835] : memref<25x816xf32, #tpu.memory_space<vmem>>, vector<1x816xf32>
    %c0_836 = arith.constant 0 : index
    %c12_837 = arith.constant 12 : index
    %c0_838 = arith.constant 0 : index
    %c0_839 = arith.constant 0 : index
    %871 = vector.load %arg3[%c0_836, %c12_837, %c0_838, %c0_839] : memref<1x18x7x816xf32, #tpu.memory_space<vmem>>, vector<1x1x7x816xf32>
    %872 = vector.shape_cast %870 : vector<1x816xf32> to vector<1x1x1x816xf32>
    %873 = vector.broadcast %872 : vector<1x1x1x816xf32> to vector<1x1x7x816xf32>
    %874 = arith.mulf %871, %873 : vector<1x1x7x816xf32>
    %875 = arith.addf %869, %874 : vector<1x1x7x816xf32>
    %c13_840 = arith.constant 13 : index
    %c0_841 = arith.constant 0 : index
    %876 = vector.load %arg6[%c13_840, %c0_841] : memref<25x816xf32, #tpu.memory_space<vmem>>, vector<1x816xf32>
    %c0_842 = arith.constant 0 : index
    %c12_843 = arith.constant 12 : index
    %c0_844 = arith.constant 0 : index
    %c0_845 = arith.constant 0 : index
    %877 = vector.load %arg4[%c0_842, %c12_843, %c0_844, %c0_845] : memref<1x18x7x816xf32, #tpu.memory_space<vmem>>, vector<1x1x7x816xf32>
    %878 = vector.shape_cast %876 : vector<1x816xf32> to vector<1x1x1x816xf32>
    %879 = vector.broadcast %878 : vector<1x1x1x816xf32> to vector<1x1x7x816xf32>
    %880 = arith.mulf %877, %879 : vector<1x1x7x816xf32>
    %881 = arith.addf %875, %880 : vector<1x1x7x816xf32>
    %c14_846 = arith.constant 14 : index
    %c0_847 = arith.constant 0 : index
    %882 = vector.load %arg6[%c14_846, %c0_847] : memref<25x816xf32, #tpu.memory_space<vmem>>, vector<1x816xf32>
    %c0_848 = arith.constant 0 : index
    %c12_849 = arith.constant 12 : index
    %c0_850 = arith.constant 0 : index
    %c0_851 = arith.constant 0 : index
    %883 = vector.load %arg5[%c0_848, %c12_849, %c0_850, %c0_851] : memref<1x18x7x816xf32, #tpu.memory_space<vmem>>, vector<1x1x7x816xf32>
    %884 = vector.shape_cast %882 : vector<1x816xf32> to vector<1x1x1x816xf32>
    %885 = vector.broadcast %884 : vector<1x1x1x816xf32> to vector<1x1x7x816xf32>
    %886 = arith.mulf %883, %885 : vector<1x1x7x816xf32>
    %887 = arith.addf %881, %886 : vector<1x1x7x816xf32>
    %c15_852 = arith.constant 15 : index
    %c0_853 = arith.constant 0 : index
    %888 = vector.load %arg6[%c15_852, %c0_853] : memref<25x816xf32, #tpu.memory_space<vmem>>, vector<1x816xf32>
    %c0_854 = arith.constant 0 : index
    %c13_855 = arith.constant 13 : index
    %c0_856 = arith.constant 0 : index
    %c0_857 = arith.constant 0 : index
    %889 = vector.load %arg1[%c0_854, %c13_855, %c0_856, %c0_857] : memref<1x18x7x816xf32, #tpu.memory_space<vmem>>, vector<1x1x7x816xf32>
    %890 = vector.shape_cast %888 : vector<1x816xf32> to vector<1x1x1x816xf32>
    %891 = vector.broadcast %890 : vector<1x1x1x816xf32> to vector<1x1x7x816xf32>
    %892 = arith.mulf %889, %891 : vector<1x1x7x816xf32>
    %893 = arith.addf %887, %892 : vector<1x1x7x816xf32>
    %c16_858 = arith.constant 16 : index
    %c0_859 = arith.constant 0 : index
    %894 = vector.load %arg6[%c16_858, %c0_859] : memref<25x816xf32, #tpu.memory_space<vmem>>, vector<1x816xf32>
    %c0_860 = arith.constant 0 : index
    %c13_861 = arith.constant 13 : index
    %c0_862 = arith.constant 0 : index
    %c0_863 = arith.constant 0 : index
    %895 = vector.load %arg2[%c0_860, %c13_861, %c0_862, %c0_863] : memref<1x18x7x816xf32, #tpu.memory_space<vmem>>, vector<1x1x7x816xf32>
    %896 = vector.shape_cast %894 : vector<1x816xf32> to vector<1x1x1x816xf32>
    %897 = vector.broadcast %896 : vector<1x1x1x816xf32> to vector<1x1x7x816xf32>
    %898 = arith.mulf %895, %897 : vector<1x1x7x816xf32>
    %899 = arith.addf %893, %898 : vector<1x1x7x816xf32>
    %c17_864 = arith.constant 17 : index
    %c0_865 = arith.constant 0 : index
    %900 = vector.load %arg6[%c17_864, %c0_865] : memref<25x816xf32, #tpu.memory_space<vmem>>, vector<1x816xf32>
    %c0_866 = arith.constant 0 : index
    %c13_867 = arith.constant 13 : index
    %c0_868 = arith.constant 0 : index
    %c0_869 = arith.constant 0 : index
    %901 = vector.load %arg3[%c0_866, %c13_867, %c0_868, %c0_869] : memref<1x18x7x816xf32, #tpu.memory_space<vmem>>, vector<1x1x7x816xf32>
    %902 = vector.shape_cast %900 : vector<1x816xf32> to vector<1x1x1x816xf32>
    %903 = vector.broadcast %902 : vector<1x1x1x816xf32> to vector<1x1x7x816xf32>
    %904 = arith.mulf %901, %903 : vector<1x1x7x816xf32>
    %905 = arith.addf %899, %904 : vector<1x1x7x816xf32>
    %c18_870 = arith.constant 18 : index
    %c0_871 = arith.constant 0 : index
    %906 = vector.load %arg6[%c18_870, %c0_871] : memref<25x816xf32, #tpu.memory_space<vmem>>, vector<1x816xf32>
    %c0_872 = arith.constant 0 : index
    %c13_873 = arith.constant 13 : index
    %c0_874 = arith.constant 0 : index
    %c0_875 = arith.constant 0 : index
    %907 = vector.load %arg4[%c0_872, %c13_873, %c0_874, %c0_875] : memref<1x18x7x816xf32, #tpu.memory_space<vmem>>, vector<1x1x7x816xf32>
    %908 = vector.shape_cast %906 : vector<1x816xf32> to vector<1x1x1x816xf32>
    %909 = vector.broadcast %908 : vector<1x1x1x816xf32> to vector<1x1x7x816xf32>
    %910 = arith.mulf %907, %909 : vector<1x1x7x816xf32>
    %911 = arith.addf %905, %910 : vector<1x1x7x816xf32>
    %c19_876 = arith.constant 19 : index
    %c0_877 = arith.constant 0 : index
    %912 = vector.load %arg6[%c19_876, %c0_877] : memref<25x816xf32, #tpu.memory_space<vmem>>, vector<1x816xf32>
    %c0_878 = arith.constant 0 : index
    %c13_879 = arith.constant 13 : index
    %c0_880 = arith.constant 0 : index
    %c0_881 = arith.constant 0 : index
    %913 = vector.load %arg5[%c0_878, %c13_879, %c0_880, %c0_881] : memref<1x18x7x816xf32, #tpu.memory_space<vmem>>, vector<1x1x7x816xf32>
    %914 = vector.shape_cast %912 : vector<1x816xf32> to vector<1x1x1x816xf32>
    %915 = vector.broadcast %914 : vector<1x1x1x816xf32> to vector<1x1x7x816xf32>
    %916 = arith.mulf %913, %915 : vector<1x1x7x816xf32>
    %917 = arith.addf %911, %916 : vector<1x1x7x816xf32>
    %c20_882 = arith.constant 20 : index
    %c0_883 = arith.constant 0 : index
    %918 = vector.load %arg6[%c20_882, %c0_883] : memref<25x816xf32, #tpu.memory_space<vmem>>, vector<1x816xf32>
    %c0_884 = arith.constant 0 : index
    %c14_885 = arith.constant 14 : index
    %c0_886 = arith.constant 0 : index
    %c0_887 = arith.constant 0 : index
    %919 = vector.load %arg1[%c0_884, %c14_885, %c0_886, %c0_887] : memref<1x18x7x816xf32, #tpu.memory_space<vmem>>, vector<1x1x7x816xf32>
    %920 = vector.shape_cast %918 : vector<1x816xf32> to vector<1x1x1x816xf32>
    %921 = vector.broadcast %920 : vector<1x1x1x816xf32> to vector<1x1x7x816xf32>
    %922 = arith.mulf %919, %921 : vector<1x1x7x816xf32>
    %923 = arith.addf %917, %922 : vector<1x1x7x816xf32>
    %c21_888 = arith.constant 21 : index
    %c0_889 = arith.constant 0 : index
    %924 = vector.load %arg6[%c21_888, %c0_889] : memref<25x816xf32, #tpu.memory_space<vmem>>, vector<1x816xf32>
    %c0_890 = arith.constant 0 : index
    %c14_891 = arith.constant 14 : index
    %c0_892 = arith.constant 0 : index
    %c0_893 = arith.constant 0 : index
    %925 = vector.load %arg2[%c0_890, %c14_891, %c0_892, %c0_893] : memref<1x18x7x816xf32, #tpu.memory_space<vmem>>, vector<1x1x7x816xf32>
    %926 = vector.shape_cast %924 : vector<1x816xf32> to vector<1x1x1x816xf32>
    %927 = vector.broadcast %926 : vector<1x1x1x816xf32> to vector<1x1x7x816xf32>
    %928 = arith.mulf %925, %927 : vector<1x1x7x816xf32>
    %929 = arith.addf %923, %928 : vector<1x1x7x816xf32>
    %c22_894 = arith.constant 22 : index
    %c0_895 = arith.constant 0 : index
    %930 = vector.load %arg6[%c22_894, %c0_895] : memref<25x816xf32, #tpu.memory_space<vmem>>, vector<1x816xf32>
    %c0_896 = arith.constant 0 : index
    %c14_897 = arith.constant 14 : index
    %c0_898 = arith.constant 0 : index
    %c0_899 = arith.constant 0 : index
    %931 = vector.load %arg3[%c0_896, %c14_897, %c0_898, %c0_899] : memref<1x18x7x816xf32, #tpu.memory_space<vmem>>, vector<1x1x7x816xf32>
    %932 = vector.shape_cast %930 : vector<1x816xf32> to vector<1x1x1x816xf32>
    %933 = vector.broadcast %932 : vector<1x1x1x816xf32> to vector<1x1x7x816xf32>
    %934 = arith.mulf %931, %933 : vector<1x1x7x816xf32>
    %935 = arith.addf %929, %934 : vector<1x1x7x816xf32>
    %c23_900 = arith.constant 23 : index
    %c0_901 = arith.constant 0 : index
    %936 = vector.load %arg6[%c23_900, %c0_901] : memref<25x816xf32, #tpu.memory_space<vmem>>, vector<1x816xf32>
    %c0_902 = arith.constant 0 : index
    %c14_903 = arith.constant 14 : index
    %c0_904 = arith.constant 0 : index
    %c0_905 = arith.constant 0 : index
    %937 = vector.load %arg4[%c0_902, %c14_903, %c0_904, %c0_905] : memref<1x18x7x816xf32, #tpu.memory_space<vmem>>, vector<1x1x7x816xf32>
    %938 = vector.shape_cast %936 : vector<1x816xf32> to vector<1x1x1x816xf32>
    %939 = vector.broadcast %938 : vector<1x1x1x816xf32> to vector<1x1x7x816xf32>
    %940 = arith.mulf %937, %939 : vector<1x1x7x816xf32>
    %941 = arith.addf %935, %940 : vector<1x1x7x816xf32>
    %c24_906 = arith.constant 24 : index
    %c0_907 = arith.constant 0 : index
    %942 = vector.load %arg6[%c24_906, %c0_907] : memref<25x816xf32, #tpu.memory_space<vmem>>, vector<1x816xf32>
    %c0_908 = arith.constant 0 : index
    %c14_909 = arith.constant 14 : index
    %c0_910 = arith.constant 0 : index
    %c0_911 = arith.constant 0 : index
    %943 = vector.load %arg5[%c0_908, %c14_909, %c0_910, %c0_911] : memref<1x18x7x816xf32, #tpu.memory_space<vmem>>, vector<1x1x7x816xf32>
    %944 = vector.shape_cast %942 : vector<1x816xf32> to vector<1x1x1x816xf32>
    %945 = vector.broadcast %944 : vector<1x1x1x816xf32> to vector<1x1x7x816xf32>
    %946 = arith.mulf %943, %945 : vector<1x1x7x816xf32>
    %947 = arith.addf %941, %946 : vector<1x1x7x816xf32>
    %c0_912 = arith.constant 0 : index
    %c5_913 = arith.constant 5 : index
    %c0_914 = arith.constant 0 : index
    %c0_915 = arith.constant 0 : index
    %948 = vector.load %arg9[%c0_912, %c5_913, %c0_914, %c0_915] : memref<1x7x7x816xf32, #tpu.memory_space<vmem>>, vector<1x1x7x816xf32>
    tpu.vector_store %arg9[%c0_912, %c5_913, %c0_914, %c0_915], %947 {strides = array<i32>} : memref<1x7x7x816xf32, #tpu.memory_space<vmem>>, vector<1x1x7x816xf32>,
    %cst_916 = arith.constant dense<0.000000e+00> : vector<1x7x816xf32>
    %949 = vector.multi_reduction <add>, %947, %cst_916 [0] : vector<1x1x7x816xf32> to vector<1x7x816xf32>
    %950 = vector.shape_cast %949 : vector<1x7x816xf32> to vector<1x1x7x816xf32>
    %951 = arith.addf %792, %950 : vector<1x1x7x816xf32>
    %952 = arith.mulf %947, %947 : vector<1x1x7x816xf32>
    %cst_917 = arith.constant dense<0.000000e+00> : vector<1x7x816xf32>
    %953 = vector.multi_reduction <add>, %952, %cst_917 [0] : vector<1x1x7x816xf32> to vector<1x7x816xf32>
    %954 = vector.shape_cast %953 : vector<1x7x816xf32> to vector<1x1x7x816xf32>
    %955 = arith.addf %796, %954 : vector<1x1x7x816xf32>
    %cst_918 = arith.constant 0.000000e+00 : f32
    %956 = vector.broadcast %cst_918 : f32 to vector<1x1x7x816xf32>
    %c0_919 = arith.constant 0 : index
    %c0_920 = arith.constant 0 : index
    %957 = vector.load %arg6[%c0_919, %c0_920] : memref<25x816xf32, #tpu.memory_space<vmem>>, vector<1x816xf32>
    %c0_921 = arith.constant 0 : index
    %c12_922 = arith.constant 12 : index
    %c0_923 = arith.constant 0 : index
    %c0_924 = arith.constant 0 : index
    %958 = vector.load %arg1[%c0_921, %c12_922, %c0_923, %c0_924] : memref<1x18x7x816xf32, #tpu.memory_space<vmem>>, vector<1x1x7x816xf32>
    %959 = vector.shape_cast %957 : vector<1x816xf32> to vector<1x1x1x816xf32>
    %960 = vector.broadcast %959 : vector<1x1x1x816xf32> to vector<1x1x7x816xf32>
    %961 = arith.mulf %958, %960 : vector<1x1x7x816xf32>
    %962 = arith.addf %956, %961 : vector<1x1x7x816xf32>
    %c1_925 = arith.constant 1 : index
    %c0_926 = arith.constant 0 : index
    %963 = vector.load %arg6[%c1_925, %c0_926] : memref<25x816xf32, #tpu.memory_space<vmem>>, vector<1x816xf32>
    %c0_927 = arith.constant 0 : index
    %c12_928 = arith.constant 12 : index
    %c0_929 = arith.constant 0 : index
    %c0_930 = arith.constant 0 : index
    %964 = vector.load %arg2[%c0_927, %c12_928, %c0_929, %c0_930] : memref<1x18x7x816xf32, #tpu.memory_space<vmem>>, vector<1x1x7x816xf32>
    %965 = vector.shape_cast %963 : vector<1x816xf32> to vector<1x1x1x816xf32>
    %966 = vector.broadcast %965 : vector<1x1x1x816xf32> to vector<1x1x7x816xf32>
    %967 = arith.mulf %964, %966 : vector<1x1x7x816xf32>
    %968 = arith.addf %962, %967 : vector<1x1x7x816xf32>
    %c2_931 = arith.constant 2 : index
    %c0_932 = arith.constant 0 : index
    %969 = vector.load %arg6[%c2_931, %c0_932] : memref<25x816xf32, #tpu.memory_space<vmem>>, vector<1x816xf32>
    %c0_933 = arith.constant 0 : index
    %c12_934 = arith.constant 12 : index
    %c0_935 = arith.constant 0 : index
    %c0_936 = arith.constant 0 : index
    %970 = vector.load %arg3[%c0_933, %c12_934, %c0_935, %c0_936] : memref<1x18x7x816xf32, #tpu.memory_space<vmem>>, vector<1x1x7x816xf32>
    %971 = vector.shape_cast %969 : vector<1x816xf32> to vector<1x1x1x816xf32>
    %972 = vector.broadcast %971 : vector<1x1x1x816xf32> to vector<1x1x7x816xf32>
    %973 = arith.mulf %970, %972 : vector<1x1x7x816xf32>
    %974 = arith.addf %968, %973 : vector<1x1x7x816xf32>
    %c3_937 = arith.constant 3 : index
    %c0_938 = arith.constant 0 : index
    %975 = vector.load %arg6[%c3_937, %c0_938] : memref<25x816xf32, #tpu.memory_space<vmem>>, vector<1x816xf32>
    %c0_939 = arith.constant 0 : index
    %c12_940 = arith.constant 12 : index
    %c0_941 = arith.constant 0 : index
    %c0_942 = arith.constant 0 : index
    %976 = vector.load %arg4[%c0_939, %c12_940, %c0_941, %c0_942] : memref<1x18x7x816xf32, #tpu.memory_space<vmem>>, vector<1x1x7x816xf32>
    %977 = vector.shape_cast %975 : vector<1x816xf32> to vector<1x1x1x816xf32>
    %978 = vector.broadcast %977 : vector<1x1x1x816xf32> to vector<1x1x7x816xf32>
    %979 = arith.mulf %976, %978 : vector<1x1x7x816xf32>
    %980 = arith.addf %974, %979 : vector<1x1x7x816xf32>
    %c4_943 = arith.constant 4 : index
    %c0_944 = arith.constant 0 : index
    %981 = vector.load %arg6[%c4_943, %c0_944] : memref<25x816xf32, #tpu.memory_space<vmem>>, vector<1x816xf32>
    %c0_945 = arith.constant 0 : index
    %c12_946 = arith.constant 12 : index
    %c0_947 = arith.constant 0 : index
    %c0_948 = arith.constant 0 : index
    %982 = vector.load %arg5[%c0_945, %c12_946, %c0_947, %c0_948] : memref<1x18x7x816xf32, #tpu.memory_space<vmem>>, vector<1x1x7x816xf32>
    %983 = vector.shape_cast %981 : vector<1x816xf32> to vector<1x1x1x816xf32>
    %984 = vector.broadcast %983 : vector<1x1x1x816xf32> to vector<1x1x7x816xf32>
    %985 = arith.mulf %982, %984 : vector<1x1x7x816xf32>
    %986 = arith.addf %980, %985 : vector<1x1x7x816xf32>
    %c5_949 = arith.constant 5 : index
    %c0_950 = arith.constant 0 : index
    %987 = vector.load %arg6[%c5_949, %c0_950] : memref<25x816xf32, #tpu.memory_space<vmem>>, vector<1x816xf32>
    %c0_951 = arith.constant 0 : index
    %c13_952 = arith.constant 13 : index
    %c0_953 = arith.constant 0 : index
    %c0_954 = arith.constant 0 : index
    %988 = vector.load %arg1[%c0_951, %c13_952, %c0_953, %c0_954] : memref<1x18x7x816xf32, #tpu.memory_space<vmem>>, vector<1x1x7x816xf32>
    %989 = vector.shape_cast %987 : vector<1x816xf32> to vector<1x1x1x816xf32>
    %990 = vector.broadcast %989 : vector<1x1x1x816xf32> to vector<1x1x7x816xf32>
    %991 = arith.mulf %988, %990 : vector<1x1x7x816xf32>
    %992 = arith.addf %986, %991 : vector<1x1x7x816xf32>
    %c6_955 = arith.constant 6 : index
    %c0_956 = arith.constant 0 : index
    %993 = vector.load %arg6[%c6_955, %c0_956] : memref<25x816xf32, #tpu.memory_space<vmem>>, vector<1x816xf32>
    %c0_957 = arith.constant 0 : index
    %c13_958 = arith.constant 13 : index
    %c0_959 = arith.constant 0 : index
    %c0_960 = arith.constant 0 : index
    %994 = vector.load %arg2[%c0_957, %c13_958, %c0_959, %c0_960] : memref<1x18x7x816xf32, #tpu.memory_space<vmem>>, vector<1x1x7x816xf32>
    %995 = vector.shape_cast %993 : vector<1x816xf32> to vector<1x1x1x816xf32>
    %996 = vector.broadcast %995 : vector<1x1x1x816xf32> to vector<1x1x7x816xf32>
    %997 = arith.mulf %994, %996 : vector<1x1x7x816xf32>
    %998 = arith.addf %992, %997 : vector<1x1x7x816xf32>
    %c7_961 = arith.constant 7 : index
    %c0_962 = arith.constant 0 : index
    %999 = vector.load %arg6[%c7_961, %c0_962] : memref<25x816xf32, #tpu.memory_space<vmem>>, vector<1x816xf32>
    %c0_963 = arith.constant 0 : index
    %c13_964 = arith.constant 13 : index
    %c0_965 = arith.constant 0 : index
    %c0_966 = arith.constant 0 : index
    %1000 = vector.load %arg3[%c0_963, %c13_964, %c0_965, %c0_966] : memref<1x18x7x816xf32, #tpu.memory_space<vmem>>, vector<1x1x7x816xf32>
    %1001 = vector.shape_cast %999 : vector<1x816xf32> to vector<1x1x1x816xf32>
    %1002 = vector.broadcast %1001 : vector<1x1x1x816xf32> to vector<1x1x7x816xf32>
    %1003 = arith.mulf %1000, %1002 : vector<1x1x7x816xf32>
    %1004 = arith.addf %998, %1003 : vector<1x1x7x816xf32>
    %c8_967 = arith.constant 8 : index
    %c0_968 = arith.constant 0 : index
    %1005 = vector.load %arg6[%c8_967, %c0_968] : memref<25x816xf32, #tpu.memory_space<vmem>>, vector<1x816xf32>
    %c0_969 = arith.constant 0 : index
    %c13_970 = arith.constant 13 : index
    %c0_971 = arith.constant 0 : index
    %c0_972 = arith.constant 0 : index
    %1006 = vector.load %arg4[%c0_969, %c13_970, %c0_971, %c0_972] : memref<1x18x7x816xf32, #tpu.memory_space<vmem>>, vector<1x1x7x816xf32>
    %1007 = vector.shape_cast %1005 : vector<1x816xf32> to vector<1x1x1x816xf32>
    %1008 = vector.broadcast %1007 : vector<1x1x1x816xf32> to vector<1x1x7x816xf32>
    %1009 = arith.mulf %1006, %1008 : vector<1x1x7x816xf32>
    %1010 = arith.addf %1004, %1009 : vector<1x1x7x816xf32>
    %c9_973 = arith.constant 9 : index
    %c0_974 = arith.constant 0 : index
    %1011 = vector.load %arg6[%c9_973, %c0_974] : memref<25x816xf32, #tpu.memory_space<vmem>>, vector<1x816xf32>
    %c0_975 = arith.constant 0 : index
    %c13_976 = arith.constant 13 : index
    %c0_977 = arith.constant 0 : index
    %c0_978 = arith.constant 0 : index
    %1012 = vector.load %arg5[%c0_975, %c13_976, %c0_977, %c0_978] : memref<1x18x7x816xf32, #tpu.memory_space<vmem>>, vector<1x1x7x816xf32>
    %1013 = vector.shape_cast %1011 : vector<1x816xf32> to vector<1x1x1x816xf32>
    %1014 = vector.broadcast %1013 : vector<1x1x1x816xf32> to vector<1x1x7x816xf32>
    %1015 = arith.mulf %1012, %1014 : vector<1x1x7x816xf32>
    %1016 = arith.addf %1010, %1015 : vector<1x1x7x816xf32>
    %c10_979 = arith.constant 10 : index
    %c0_980 = arith.constant 0 : index
    %1017 = vector.load %arg6[%c10_979, %c0_980] : memref<25x816xf32, #tpu.memory_space<vmem>>, vector<1x816xf32>
    %c0_981 = arith.constant 0 : index
    %c14_982 = arith.constant 14 : index
    %c0_983 = arith.constant 0 : index
    %c0_984 = arith.constant 0 : index
    %1018 = vector.load %arg1[%c0_981, %c14_982, %c0_983, %c0_984] : memref<1x18x7x816xf32, #tpu.memory_space<vmem>>, vector<1x1x7x816xf32>
    %1019 = vector.shape_cast %1017 : vector<1x816xf32> to vector<1x1x1x816xf32>
    %1020 = vector.broadcast %1019 : vector<1x1x1x816xf32> to vector<1x1x7x816xf32>
    %1021 = arith.mulf %1018, %1020 : vector<1x1x7x816xf32>
    %1022 = arith.addf %1016, %1021 : vector<1x1x7x816xf32>
    %c11_985 = arith.constant 11 : index
    %c0_986 = arith.constant 0 : index
    %1023 = vector.load %arg6[%c11_985, %c0_986] : memref<25x816xf32, #tpu.memory_space<vmem>>, vector<1x816xf32>
    %c0_987 = arith.constant 0 : index
    %c14_988 = arith.constant 14 : index
    %c0_989 = arith.constant 0 : index
    %c0_990 = arith.constant 0 : index
    %1024 = vector.load %arg2[%c0_987, %c14_988, %c0_989, %c0_990] : memref<1x18x7x816xf32, #tpu.memory_space<vmem>>, vector<1x1x7x816xf32>
    %1025 = vector.shape_cast %1023 : vector<1x816xf32> to vector<1x1x1x816xf32>
    %1026 = vector.broadcast %1025 : vector<1x1x1x816xf32> to vector<1x1x7x816xf32>
    %1027 = arith.mulf %1024, %1026 : vector<1x1x7x816xf32>
    %1028 = arith.addf %1022, %1027 : vector<1x1x7x816xf32>
    %c12_991 = arith.constant 12 : index
    %c0_992 = arith.constant 0 : index
    %1029 = vector.load %arg6[%c12_991, %c0_992] : memref<25x816xf32, #tpu.memory_space<vmem>>, vector<1x816xf32>
    %c0_993 = arith.constant 0 : index
    %c14_994 = arith.constant 14 : index
    %c0_995 = arith.constant 0 : index
    %c0_996 = arith.constant 0 : index
    %1030 = vector.load %arg3[%c0_993, %c14_994, %c0_995, %c0_996] : memref<1x18x7x816xf32, #tpu.memory_space<vmem>>, vector<1x1x7x816xf32>
    %1031 = vector.shape_cast %1029 : vector<1x816xf32> to vector<1x1x1x816xf32>
    %1032 = vector.broadcast %1031 : vector<1x1x1x816xf32> to vector<1x1x7x816xf32>
    %1033 = arith.mulf %1030, %1032 : vector<1x1x7x816xf32>
    %1034 = arith.addf %1028, %1033 : vector<1x1x7x816xf32>
    %c13_997 = arith.constant 13 : index
    %c0_998 = arith.constant 0 : index
    %1035 = vector.load %arg6[%c13_997, %c0_998] : memref<25x816xf32, #tpu.memory_space<vmem>>, vector<1x816xf32>
    %c0_999 = arith.constant 0 : index
    %c14_1000 = arith.constant 14 : index
    %c0_1001 = arith.constant 0 : index
    %c0_1002 = arith.constant 0 : index
    %1036 = vector.load %arg4[%c0_999, %c14_1000, %c0_1001, %c0_1002] : memref<1x18x7x816xf32, #tpu.memory_space<vmem>>, vector<1x1x7x816xf32>
    %1037 = vector.shape_cast %1035 : vector<1x816xf32> to vector<1x1x1x816xf32>
    %1038 = vector.broadcast %1037 : vector<1x1x1x816xf32> to vector<1x1x7x816xf32>
    %1039 = arith.mulf %1036, %1038 : vector<1x1x7x816xf32>
    %1040 = arith.addf %1034, %1039 : vector<1x1x7x816xf32>
    %c14_1003 = arith.constant 14 : index
    %c0_1004 = arith.constant 0 : index
    %1041 = vector.load %arg6[%c14_1003, %c0_1004] : memref<25x816xf32, #tpu.memory_space<vmem>>, vector<1x816xf32>
    %c0_1005 = arith.constant 0 : index
    %c14_1006 = arith.constant 14 : index
    %c0_1007 = arith.constant 0 : index
    %c0_1008 = arith.constant 0 : index
    %1042 = vector.load %arg5[%c0_1005, %c14_1006, %c0_1007, %c0_1008] : memref<1x18x7x816xf32, #tpu.memory_space<vmem>>, vector<1x1x7x816xf32>
    %1043 = vector.shape_cast %1041 : vector<1x816xf32> to vector<1x1x1x816xf32>
    %1044 = vector.broadcast %1043 : vector<1x1x1x816xf32> to vector<1x1x7x816xf32>
    %1045 = arith.mulf %1042, %1044 : vector<1x1x7x816xf32>
    %1046 = arith.addf %1040, %1045 : vector<1x1x7x816xf32>
    %c15_1009 = arith.constant 15 : index
    %c0_1010 = arith.constant 0 : index
    %1047 = vector.load %arg6[%c15_1009, %c0_1010] : memref<25x816xf32, #tpu.memory_space<vmem>>, vector<1x816xf32>
    %c0_1011 = arith.constant 0 : index
    %c15_1012 = arith.constant 15 : index
    %c0_1013 = arith.constant 0 : index
    %c0_1014 = arith.constant 0 : index
    %1048 = vector.load %arg1[%c0_1011, %c15_1012, %c0_1013, %c0_1014] : memref<1x18x7x816xf32, #tpu.memory_space<vmem>>, vector<1x1x7x816xf32>
    %1049 = vector.shape_cast %1047 : vector<1x816xf32> to vector<1x1x1x816xf32>
    %1050 = vector.broadcast %1049 : vector<1x1x1x816xf32> to vector<1x1x7x816xf32>
    %1051 = arith.mulf %1048, %1050 : vector<1x1x7x816xf32>
    %1052 = arith.addf %1046, %1051 : vector<1x1x7x816xf32>
    %c16_1015 = arith.constant 16 : index
    %c0_1016 = arith.constant 0 : index
    %1053 = vector.load %arg6[%c16_1015, %c0_1016] : memref<25x816xf32, #tpu.memory_space<vmem>>, vector<1x816xf32>
    %c0_1017 = arith.constant 0 : index
    %c15_1018 = arith.constant 15 : index
    %c0_1019 = arith.constant 0 : index
    %c0_1020 = arith.constant 0 : index
    %1054 = vector.load %arg2[%c0_1017, %c15_1018, %c0_1019, %c0_1020] : memref<1x18x7x816xf32, #tpu.memory_space<vmem>>, vector<1x1x7x816xf32>
    %1055 = vector.shape_cast %1053 : vector<1x816xf32> to vector<1x1x1x816xf32>
    %1056 = vector.broadcast %1055 : vector<1x1x1x816xf32> to vector<1x1x7x816xf32>
    %1057 = arith.mulf %1054, %1056 : vector<1x1x7x816xf32>
    %1058 = arith.addf %1052, %1057 : vector<1x1x7x816xf32>
    %c17_1021 = arith.constant 17 : index
    %c0_1022 = arith.constant 0 : index
    %1059 = vector.load %arg6[%c17_1021, %c0_1022] : memref<25x816xf32, #tpu.memory_space<vmem>>, vector<1x816xf32>
    %c0_1023 = arith.constant 0 : index
    %c15_1024 = arith.constant 15 : index
    %c0_1025 = arith.constant 0 : index
    %c0_1026 = arith.constant 0 : index
    %1060 = vector.load %arg3[%c0_1023, %c15_1024, %c0_1025, %c0_1026] : memref<1x18x7x816xf32, #tpu.memory_space<vmem>>, vector<1x1x7x816xf32>
    %1061 = vector.shape_cast %1059 : vector<1x816xf32> to vector<1x1x1x816xf32>
    %1062 = vector.broadcast %1061 : vector<1x1x1x816xf32> to vector<1x1x7x816xf32>
    %1063 = arith.mulf %1060, %1062 : vector<1x1x7x816xf32>
    %1064 = arith.addf %1058, %1063 : vector<1x1x7x816xf32>
    %c18_1027 = arith.constant 18 : index
    %c0_1028 = arith.constant 0 : index
    %1065 = vector.load %arg6[%c18_1027, %c0_1028] : memref<25x816xf32, #tpu.memory_space<vmem>>, vector<1x816xf32>
    %c0_1029 = arith.constant 0 : index
    %c15_1030 = arith.constant 15 : index
    %c0_1031 = arith.constant 0 : index
    %c0_1032 = arith.constant 0 : index
    %1066 = vector.load %arg4[%c0_1029, %c15_1030, %c0_1031, %c0_1032] : memref<1x18x7x816xf32, #tpu.memory_space<vmem>>, vector<1x1x7x816xf32>
    %1067 = vector.shape_cast %1065 : vector<1x816xf32> to vector<1x1x1x816xf32>
    %1068 = vector.broadcast %1067 : vector<1x1x1x816xf32> to vector<1x1x7x816xf32>
    %1069 = arith.mulf %1066, %1068 : vector<1x1x7x816xf32>
    %1070 = arith.addf %1064, %1069 : vector<1x1x7x816xf32>
    %c19_1033 = arith.constant 19 : index
    %c0_1034 = arith.constant 0 : index
    %1071 = vector.load %arg6[%c19_1033, %c0_1034] : memref<25x816xf32, #tpu.memory_space<vmem>>, vector<1x816xf32>
    %c0_1035 = arith.constant 0 : index
    %c15_1036 = arith.constant 15 : index
    %c0_1037 = arith.constant 0 : index
    %c0_1038 = arith.constant 0 : index
    %1072 = vector.load %arg5[%c0_1035, %c15_1036, %c0_1037, %c0_1038] : memref<1x18x7x816xf32, #tpu.memory_space<vmem>>, vector<1x1x7x816xf32>
    %1073 = vector.shape_cast %1071 : vector<1x816xf32> to vector<1x1x1x816xf32>
    %1074 = vector.broadcast %1073 : vector<1x1x1x816xf32> to vector<1x1x7x816xf32>
    %1075 = arith.mulf %1072, %1074 : vector<1x1x7x816xf32>
    %1076 = arith.addf %1070, %1075 : vector<1x1x7x816xf32>
    %c20_1039 = arith.constant 20 : index
    %c0_1040 = arith.constant 0 : index
    %1077 = vector.load %arg6[%c20_1039, %c0_1040] : memref<25x816xf32, #tpu.memory_space<vmem>>, vector<1x816xf32>
    %c0_1041 = arith.constant 0 : index
    %c16_1042 = arith.constant 16 : index
    %c0_1043 = arith.constant 0 : index
    %c0_1044 = arith.constant 0 : index
    %1078 = vector.load %arg1[%c0_1041, %c16_1042, %c0_1043, %c0_1044] : memref<1x18x7x816xf32, #tpu.memory_space<vmem>>, vector<1x1x7x816xf32>
    %1079 = vector.shape_cast %1077 : vector<1x816xf32> to vector<1x1x1x816xf32>
    %1080 = vector.broadcast %1079 : vector<1x1x1x816xf32> to vector<1x1x7x816xf32>
    %1081 = arith.mulf %1078, %1080 : vector<1x1x7x816xf32>
    %1082 = arith.addf %1076, %1081 : vector<1x1x7x816xf32>
    %c21_1045 = arith.constant 21 : index
    %c0_1046 = arith.constant 0 : index
    %1083 = vector.load %arg6[%c21_1045, %c0_1046] : memref<25x816xf32, #tpu.memory_space<vmem>>, vector<1x816xf32>
    %c0_1047 = arith.constant 0 : index
    %c16_1048 = arith.constant 16 : index
    %c0_1049 = arith.constant 0 : index
    %c0_1050 = arith.constant 0 : index
    %1084 = vector.load %arg2[%c0_1047, %c16_1048, %c0_1049, %c0_1050] : memref<1x18x7x816xf32, #tpu.memory_space<vmem>>, vector<1x1x7x816xf32>
    %1085 = vector.shape_cast %1083 : vector<1x816xf32> to vector<1x1x1x816xf32>
    %1086 = vector.broadcast %1085 : vector<1x1x1x816xf32> to vector<1x1x7x816xf32>
    %1087 = arith.mulf %1084, %1086 : vector<1x1x7x816xf32>
    %1088 = arith.addf %1082, %1087 : vector<1x1x7x816xf32>
    %c22_1051 = arith.constant 22 : index
    %c0_1052 = arith.constant 0 : index
    %1089 = vector.load %arg6[%c22_1051, %c0_1052] : memref<25x816xf32, #tpu.memory_space<vmem>>, vector<1x816xf32>
    %c0_1053 = arith.constant 0 : index
    %c16_1054 = arith.constant 16 : index
    %c0_1055 = arith.constant 0 : index
    %c0_1056 = arith.constant 0 : index
    %1090 = vector.load %arg3[%c0_1053, %c16_1054, %c0_1055, %c0_1056] : memref<1x18x7x816xf32, #tpu.memory_space<vmem>>, vector<1x1x7x816xf32>
    %1091 = vector.shape_cast %1089 : vector<1x816xf32> to vector<1x1x1x816xf32>
    %1092 = vector.broadcast %1091 : vector<1x1x1x816xf32> to vector<1x1x7x816xf32>
    %1093 = arith.mulf %1090, %1092 : vector<1x1x7x816xf32>
    %1094 = arith.addf %1088, %1093 : vector<1x1x7x816xf32>
    %c23_1057 = arith.constant 23 : index
    %c0_1058 = arith.constant 0 : index
    %1095 = vector.load %arg6[%c23_1057, %c0_1058] : memref<25x816xf32, #tpu.memory_space<vmem>>, vector<1x816xf32>
    %c0_1059 = arith.constant 0 : index
    %c16_1060 = arith.constant 16 : index
    %c0_1061 = arith.constant 0 : index
    %c0_1062 = arith.constant 0 : index
    %1096 = vector.load %arg4[%c0_1059, %c16_1060, %c0_1061, %c0_1062] : memref<1x18x7x816xf32, #tpu.memory_space<vmem>>, vector<1x1x7x816xf32>
    %1097 = vector.shape_cast %1095 : vector<1x816xf32> to vector<1x1x1x816xf32>
    %1098 = vector.broadcast %1097 : vector<1x1x1x816xf32> to vector<1x1x7x816xf32>
    %1099 = arith.mulf %1096, %1098 : vector<1x1x7x816xf32>
    %1100 = arith.addf %1094, %1099 : vector<1x1x7x816xf32>
    %c24_1063 = arith.constant 24 : index
    %c0_1064 = arith.constant 0 : index
    %1101 = vector.load %arg6[%c24_1063, %c0_1064] : memref<25x816xf32, #tpu.memory_space<vmem>>, vector<1x816xf32>
    %c0_1065 = arith.constant 0 : index
    %c16_1066 = arith.constant 16 : index
    %c0_1067 = arith.constant 0 : index
    %c0_1068 = arith.constant 0 : index
    %1102 = vector.load %arg5[%c0_1065, %c16_1066, %c0_1067, %c0_1068] : memref<1x18x7x816xf32, #tpu.memory_space<vmem>>, vector<1x1x7x816xf32>
    %1103 = vector.shape_cast %1101 : vector<1x816xf32> to vector<1x1x1x816xf32>
    %1104 = vector.broadcast %1103 : vector<1x1x1x816xf32> to vector<1x1x7x816xf32>
    %1105 = arith.mulf %1102, %1104 : vector<1x1x7x816xf32>
    %1106 = arith.addf %1100, %1105 : vector<1x1x7x816xf32>
    %c0_1069 = arith.constant 0 : index
    %c6_1070 = arith.constant 6 : index
    %c0_1071 = arith.constant 0 : index
    %c0_1072 = arith.constant 0 : index
    %1107 = vector.load %arg9[%c0_1069, %c6_1070, %c0_1071, %c0_1072] : memref<1x7x7x816xf32, #tpu.memory_space<vmem>>, vector<1x1x7x816xf32>
    tpu.vector_store %arg9[%c0_1069, %c6_1070, %c0_1071, %c0_1072], %1106 {strides = array<i32>} : memref<1x7x7x816xf32, #tpu.memory_space<vmem>>, vector<1x1x7x816xf32>,
    %cst_1073 = arith.constant dense<0.000000e+00> : vector<1x7x816xf32>
    %1108 = vector.multi_reduction <add>, %1106, %cst_1073 [0] : vector<1x1x7x816xf32> to vector<1x7x816xf32>
    %1109 = vector.shape_cast %1108 : vector<1x7x816xf32> to vector<1x1x7x816xf32>
    %1110 = arith.addf %951, %1109 : vector<1x1x7x816xf32>
    %1111 = arith.mulf %1106, %1106 : vector<1x1x7x816xf32>
    %cst_1074 = arith.constant dense<0.000000e+00> : vector<1x7x816xf32>
    %1112 = vector.multi_reduction <add>, %1111, %cst_1074 [0] : vector<1x1x7x816xf32> to vector<1x7x816xf32>
    %1113 = vector.shape_cast %1112 : vector<1x7x816xf32> to vector<1x1x7x816xf32>
    %1114 = arith.addf %955, %1113 : vector<1x1x7x816xf32>
    %cst_1075 = arith.constant dense<0.000000e+00> : vector<1x1x816xf32>
    %1115 = vector.multi_reduction <add>, %1110, %cst_1075 [2] : vector<1x1x7x816xf32> to vector<1x1x816xf32>
    %1116 = vector.shape_cast %1115 : vector<1x1x816xf32> to vector<1x1x1x816xf32>
    %cst_1076 = arith.constant dense<0.000000e+00> : vector<1x1x816xf32>
    %1117 = vector.multi_reduction <add>, %1114, %cst_1076 [2] : vector<1x1x7x816xf32> to vector<1x1x816xf32>
    %1118 = vector.shape_cast %1117 : vector<1x1x816xf32> to vector<1x1x1x816xf32>
    %cst_1077 = arith.constant 0.0204081628 : f32
    %1119 = vector.broadcast %cst_1077 : f32 to vector<1x1x1x816xf32>
    %1120 = arith.mulf %1116, %1119 : vector<1x1x1x816xf32>
    %cst_1078 = arith.constant 0.0204081628 : f32
    %1121 = vector.broadcast %cst_1078 : f32 to vector<1x1x1x816xf32>
    %1122 = arith.mulf %1118, %1121 : vector<1x1x1x816xf32>
    %1123 = arith.mulf %1120, %1120 : vector<1x1x1x816xf32>
    %1124 = arith.subf %1122, %1123 : vector<1x1x1x816xf32>
    %cst_1079 = arith.constant 9.99999974E-6 : f32
    %1125 = vector.broadcast %cst_1079 : f32 to vector<1x1x1x816xf32>
    %1126 = arith.addf %1124, %1125 : vector<1x1x1x816xf32>
    %1127 = math.rsqrt %1126 : vector<1x1x1x816xf32>
    %c0_1080 = arith.constant 0 : index
    %c0_1081 = arith.constant 0 : index
    %c0_1082 = arith.constant 0 : index
    %c0_1083 = arith.constant 0 : index
    %1128 = vector.load %arg7[%c0_1080, %c0_1081, %c0_1082, %c0_1083] : memref<1x1x1x816xf32, #tpu.memory_space<vmem>>, vector<1x1x1x816xf32>
    %1129 = arith.mulf %1127, %1128 : vector<1x1x1x816xf32>
    %c0_1084 = arith.constant 0 : index
    %c0_1085 = arith.constant 0 : index
    %c0_1086 = arith.constant 0 : index
    %c0_1087 = arith.constant 0 : index
    %1130 = vector.load %arg8[%c0_1084, %c0_1085, %c0_1086, %c0_1087] : memref<1x1x1x816xf32, #tpu.memory_space<vmem>>, vector<1x1x1x816xf32>
    %1131 = arith.mulf %1120, %1129 : vector<1x1x1x816xf32>
    %1132 = arith.subf %1130, %1131 : vector<1x1x1x816xf32>
    %c0_1088 = arith.constant 0 : index
    %c0_1089 = arith.constant 0 : index
    %c0_1090 = arith.constant 0 : index
    %c0_1091 = arith.constant 0 : index
    %1133 = vector.load %arg9[%c0_1088, %c0_1089, %c0_1090, %c0_1091] : memref<1x7x7x816xf32, #tpu.memory_space<vmem>>, vector<1x7x7x816xf32>
    %1134 = vector.broadcast %1129 : vector<1x1x1x816xf32> to vector<1x7x7x816xf32>
    %1135 = arith.mulf %1133, %1134 : vector<1x7x7x816xf32>
    %1136 = vector.broadcast %1132 : vector<1x1x1x816xf32> to vector<1x7x7x816xf32>
    %1137 = arith.addf %1135, %1136 : vector<1x7x7x816xf32>
    %c0_1092 = arith.constant 0 : index
    %c0_1093 = arith.constant 0 : index
    %c0_1094 = arith.constant 0 : index
    %c0_1095 = arith.constant 0 : index
    %1138 = vector.load %arg9[%c0_1092, %c0_1093, %c0_1094, %c0_1095] : memref<1x7x7x816xf32, #tpu.memory_space<vmem>>, vector<1x7x7x816xf32>
    tpu.vector_store %arg9[%c0_1092, %c0_1093, %c0_1094, %c0_1095], %1137 {strides = array<i32>} : memref<1x7x7x816xf32, #tpu.memory_space<vmem>>, vector<1x7x7x816xf32>,
    return
  }
  func.func @transform_0(%arg0: i32) -> (i32, i32, i32, i32) {
    %c0_i32 = arith.constant 0 : i32
    %c0_i32_0 = arith.constant 0 : i32
    %c0_i32_1 = arith.constant 0 : i32
    %c0_i32_2 = arith.constant 0 : i32
    %c0_i32_3 = arith.constant 0 : i32
    return %c0_i32, %c0_i32_0, %c0_i32_1, %c0_i32_2 : i32, i32, i32, i32
  }
  func.func @transform_1(%arg0: i32) -> (i32, i32, i32, i32) {
    %c0_i32 = arith.constant 0 : i32
    %c0_i32_0 = arith.constant 0 : i32
    %c0_i32_1 = arith.constant 0 : i32
    %c0_i32_2 = arith.constant 0 : i32
    %c0_i32_3 = arith.constant 0 : i32
    return %c0_i32, %c0_i32_0, %c0_i32_1, %c0_i32_2 : i32, i32, i32, i32
  }
  func.func @transform_2(%arg0: i32) -> (i32, i32, i32, i32) {
    %c0_i32 = arith.constant 0 : i32
    %c0_i32_0 = arith.constant 0 : i32
    %c0_i32_1 = arith.constant 0 : i32
    %c0_i32_2 = arith.constant 0 : i32
    %c0_i32_3 = arith.constant 0 : i32
    return %c0_i32, %c0_i32_0, %c0_i32_1, %c0_i32_2 : i32, i32, i32, i32
  }
  func.func @transform_3(%arg0: i32) -> (i32, i32, i32, i32) {
    %c0_i32 = arith.constant 0 : i32
    %c0_i32_0 = arith.constant 0 : i32
    %c0_i32_1 = arith.constant 0 : i32
    %c0_i32_2 = arith.constant 0 : i32
    %c0_i32_3 = arith.constant 0 : i32
    return %c0_i32, %c0_i32_0, %c0_i32_1, %c0_i32_2 : i32, i32, i32, i32
  }
  func.func @transform_4(%arg0: i32) -> (i32, i32, i32, i32) {
    %c0_i32 = arith.constant 0 : i32
    %c0_i32_0 = arith.constant 0 : i32
    %c0_i32_1 = arith.constant 0 : i32
    %c0_i32_2 = arith.constant 0 : i32
    %c0_i32_3 = arith.constant 0 : i32
    return %c0_i32, %c0_i32_0, %c0_i32_1, %c0_i32_2 : i32, i32, i32, i32
  }
  func.func @transform_5(%arg0: i32) -> (i32, i32) {
    %c0_i32 = arith.constant 0 : i32
    %c0_i32_0 = arith.constant 0 : i32
    %c0_i32_1 = arith.constant 0 : i32
    return %c0_i32, %c0_i32_0 : i32, i32
  }
  func.func @transform_6(%arg0: i32) -> (i32, i32, i32, i32) {
    %c0_i32 = arith.constant 0 : i32
    %c0_i32_0 = arith.constant 0 : i32
    %c0_i32_1 = arith.constant 0 : i32
    %c0_i32_2 = arith.constant 0 : i32
    %c0_i32_3 = arith.constant 0 : i32
    return %c0_i32, %c0_i32_0, %c0_i32_1, %c0_i32_2 : i32, i32, i32, i32
  }
  func.func @transform_7(%arg0: i32) -> (i32, i32, i32, i32) {
    %c0_i32 = arith.constant 0 : i32
    %c0_i32_0 = arith.constant 0 : i32
    %c0_i32_1 = arith.constant 0 : i32
    %c0_i32_2 = arith.constant 0 : i32
    %c0_i32_3 = arith.constant 0 : i32
    return %c0_i32, %c0_i32_0, %c0_i32_1, %c0_i32_2 : i32, i32, i32, i32
  }
  func.func @transform_8(%arg0: i32) -> (i32, i32, i32, i32) {
    %c0_i32 = arith.constant 0 : i32
    %c0_i32_0 = arith.constant 0 : i32
    %c0_i32_1 = arith.constant 0 : i32
    %c0_i32_2 = arith.constant 0 : i32
    %c0_i32_3 = arith.constant 0 : i32
    return %c0_i32, %c0_i32_0, %c0_i32_1, %c0_i32_2 : i32, i32, i32, i32
  }
}

</mosaic_0001>

<llo_original>
// kernel: tpu_custom_call.1
$region0: #{tpu_custom_call.1}
  #allocation0 [shape = 'u32[]', space=smem, size = 0x4, offset = 0x4, fixed_abs, tag = 'smem constant byte address 0x4 - core index']
  #allocation1 [shape = 'u32[72,128]{1,0:T(1,128)}', space=vmem, size = 0x9000, scoped, tag = 'internal scratch']
  %s0 = inlined_call_operand.vmem [shape: f32[1,18,7,816], index: 0, kind: input, shape index: {}]
  %s1 = inlined_call_operand.vmem [shape: f32[1,18,7,816], index: 1, kind: input, shape index: {}]
  %s2 = inlined_call_operand.vmem [shape: f32[1,18,7,816], index: 2, kind: input, shape index: {}]
  %s3 = inlined_call_operand.vmem [shape: f32[1,18,7,816], index: 3, kind: input, shape index: {}]
  %s4 = inlined_call_operand.vmem [shape: f32[1,18,7,816], index: 4, kind: input, shape index: {}]
  %s5 = inlined_call_operand.vmem [shape: f32[25,816], index: 5, kind: input, shape index: {}]
  %s6 = inlined_call_operand.vmem [shape: f32[1,1,1,816], index: 6, kind: input, shape index: {}]
  %s7 = inlined_call_operand.vmem [shape: f32[1,1,1,816], index: 7, kind: input, shape index: {}]
  %s8 = inlined_call_operand.vmem [shape: f32[1,7,7,816], index: 8, kind: output, shape index: {}]
  %s9 = sld [smem:[#allocation0]]
  $region42: #{tpu_custom_call.1} parent=0
    _
  %s11 = ssub.s32 1, %s9
  %s12 = scalar_select 0, %s11, %s9
  // Predicated region
  $region2: #{tpu_custom_call.1} parent=0 // pred_check
    _
  $region3: #{tpu_custom_call.1} parent=0 // pred_check_branch
    %14 = sbr.rel (0) target = $region5
  $region4: #{tpu_custom_call.1} parent=0 // pred_region
    _
  $region5: #{tpu_custom_call.1} parent=0 // pred_fallthru
    _
  // Predicated region
  $region6: #{tpu_custom_call.1} parent=0 // pred_check
    _
  $region7: #{tpu_custom_call.1} parent=0 // pred_check_branch
    %16 = sbr.rel (0) target = $region9
  $region8: #{tpu_custom_call.1} parent=0 // pred_region
    _
  $region9: #{tpu_custom_call.1} parent=0 // pred_fallthru
    _
  // Predicated region
  $region10: #{tpu_custom_call.1} parent=0 // pred_check
    _
  $region11: #{tpu_custom_call.1} parent=0 // pred_check_branch
    %18 = sbr.rel (0) target = $region13
  $region12: #{tpu_custom_call.1} parent=0 // pred_region
    _
  $region13: #{tpu_custom_call.1} parent=0 // pred_fallthru
    _
  // Predicated region
  $region14: #{tpu_custom_call.1} parent=0 // pred_check
    _
  $region15: #{tpu_custom_call.1} parent=0 // pred_check_branch
    %20 = sbr.rel (0) target = $region17
  $region16: #{tpu_custom_call.1} parent=0 // pred_region
    _
  $region17: #{tpu_custom_call.1} parent=0 // pred_fallthru
    _
  // Predicated region
  $region18: #{tpu_custom_call.1} parent=0 // pred_check
    _
  $region19: #{tpu_custom_call.1} parent=0 // pred_check_branch
    %22 = sbr.rel (0) target = $region21
  $region20: #{tpu_custom_call.1} parent=0 // pred_region
    _
  $region21: #{tpu_custom_call.1} parent=0 // pred_fallthru
    _
  // Predicated region
  $region22: #{tpu_custom_call.1} parent=0 // pred_check
    _
  $region23: #{tpu_custom_call.1} parent=0 // pred_check_branch
    %24 = sbr.rel (0) target = $region25
  $region24: #{tpu_custom_call.1} parent=0 // pred_region
    _
  $region25: #{tpu_custom_call.1} parent=0 // pred_fallthru
    _
  // Predicated region
  $region26: #{tpu_custom_call.1} parent=0 // pred_check
    _
  $region27: #{tpu_custom_call.1} parent=0 // pred_check_branch
    %26 = sbr.rel (0) target = $region29
  $region28: #{tpu_custom_call.1} parent=0 // pred_region
    _
  $region29: #{tpu_custom_call.1} parent=0 // pred_fallthru
    _
  // Predicated region
  $region30: #{tpu_custom_call.1} parent=0 // pred_check
    _
  $region31: #{tpu_custom_call.1} parent=0 // pred_check_branch
    %28 = sbr.rel (0) target = $region33
  $region32: #{tpu_custom_call.1} parent=0 // pred_region
    _
  $region33: #{tpu_custom_call.1} parent=0 // pred_fallthru
    _
  %v29 = vld [vmem:[%s5] ss:$8 sm:$0xf]
  %v30 = vld [vmem:[%s5] ss:$8 sm:$0x70]
  %v31 = vor.u32 %v29, %v30
  %v32 = vld [vmem:[%s0] sm:$0x7f]
  %v33 = vld [vmem:[%s0 + $0x8] sm:$0x7f]
  %v34 = vld [vmem:[%s0 + $0x10] sm:$0x7f]
  %v35 = vld [vmem:[%s0 + $0x18] sm:$0x7f]
  %v36 = vld [vmem:[%s0 + $0x20] sm:$0x7f]
  %v37 = vld [vmem:[%s0 + $0x28] sm:$0x7f]
  %v38 = vld [vmem:[%s0 + $0x30] sm:$0x7f]
  %v40 = vperm.slane %v31, 0
  %v41 = vperm.slane %v31, 1
  %v42 = vperm.slane %v31, 2
  %v43 = vperm.slane %v31, 3
  %v44 = vperm.slane %v31, 4
  %v45 = vperm.slane %v31, 5
  %v46 = vperm.slane %v31, 6
  %v54 = vmul.f32 %v32, %v40
  %v55 = vmul.f32 %v33, %v41
  %v56 = vmul.f32 %v34, %v42
  %v57 = vmul.f32 %v35, %v43
  %v58 = vmul.f32 %v36, %v44
  %v59 = vmul.f32 %v37, %v45
  %v60 = vmul.f32 %v38, %v46
  %v61 = vadd.f32 %v54, 0.0
  %v62 = vadd.f32 %v55, 0.0
  %v63 = vadd.f32 %v56, 0.0
  %v64 = vadd.f32 %v57, 0.0
  %v65 = vadd.f32 %v58, 0.0
  %v66 = vadd.f32 %v59, 0.0
  %v67 = vadd.f32 %v60, 0.0
  %s68 = scalar_lea.vmem %s5, 1
  %v69 = vld [vmem:[%s68] ss:$8 sm:$0xf]
  %v70 = vld [vmem:[%s68] ss:$8 sm:$0x70]
  %v71 = vor.u32 %v69, %v70
  %v72 = vld [vmem:[%s1] sm:$0x7f]
  %v73 = vld [vmem:[%s1 + $0x8] sm:$0x7f]
  %v74 = vld [vmem:[%s1 + $0x10] sm:$0x7f]
  %v75 = vld [vmem:[%s1 + $0x18] sm:$0x7f]
  %v76 = vld [vmem:[%s1 + $0x20] sm:$0x7f]
  %v77 = vld [vmem:[%s1 + $0x28] sm:$0x7f]
  %v78 = vld [vmem:[%s1 + $0x30] sm:$0x7f]
  %v80 = vperm.slane %v71, 0
  %v81 = vperm.slane %v71, 1
  %v82 = vperm.slane %v71, 2
  %v83 = vperm.slane %v71, 3
  %v84 = vperm.slane %v71, 4
  %v85 = vperm.slane %v71, 5
  %v86 = vperm.slane %v71, 6
  %v94 = vmul.f32 %v72, %v80
  %v95 = vmul.f32 %v73, %v81
  %v96 = vmul.f32 %v74, %v82
  %v97 = vmul.f32 %v75, %v83
  %v98 = vmul.f32 %v76, %v84
  %v99 = vmul.f32 %v77, %v85
  %v100 = vmul.f32 %v78, %v86
  %v101 = vadd.f32 %v61, %v94
  %v102 = vadd.f32 %v62, %v95
  %v103 = vadd.f32 %v63, %v96
  %v104 = vadd.f32 %v64, %v97
  %v105 = vadd.f32 %v65, %v98
  %v106 = vadd.f32 %v66, %v99
  %v107 = vadd.f32 %v67, %v100
  %s108 = scalar_lea.vmem %s5, 2
  %v109 = vld [vmem:[%s108] ss:$8 sm:$0xf]
  %v110 = vld [vmem:[%s108] ss:$8 sm:$0x70]
  %v111 = vor.u32 %v109, %v110
  %v112 = vld [vmem:[%s2] sm:$0x7f]
  %v113 = vld [vmem:[%s2 + $0x8] sm:$0x7f]
  %v114 = vld [vmem:[%s2 + $0x10] sm:$0x7f]
  %v115 = vld [vmem:[%s2 + $0x18] sm:$0x7f]
  %v116 = vld [vmem:[%s2 + $0x20] sm:$0x7f]
  %v117 = vld [vmem:[%s2 + $0x28] sm:$0x7f]
  %v118 = vld [vmem:[%s2 + $0x30] sm:$0x7f]
  %v120 = vperm.slane %v111, 0
  %v121 = vperm.slane %v111, 1
  %v122 = vperm.slane %v111, 2
  %v123 = vperm.slane %v111, 3
  %v124 = vperm.slane %v111, 4
  %v125 = vperm.slane %v111, 5
  %v126 = vperm.slane %v111, 6
  %v134 = vmul.f32 %v112, %v120
  %v135 = vmul.f32 %v113, %v121
  %v136 = vmul.f32 %v114, %v122
  %v137 = vmul.f32 %v115, %v123
  %v138 = vmul.f32 %v116, %v124
  %v139 = vmul.f32 %v117, %v125
  %v140 = vmul.f32 %v118, %v126
  %v141 = vadd.f32 %v101, %v134
  %v142 = vadd.f32 %v102, %v135
  %v143 = vadd.f32 %v103, %v136
  %v144 = vadd.f32 %v104, %v137
  %v145 = vadd.f32 %v105, %v138
  %v146 = vadd.f32 %v106, %v139
  %v147 = vadd.f32 %v107, %v140
  %s148 = scalar_lea.vmem %s5, 3
  %v149 = vld [vmem:[%s148] ss:$8 sm:$0xf]
  %v150 = vld [vmem:[%s148] ss:$8 sm:$0x70]
  %v151 = vor.u32 %v149, %v150
  %v152 = vld [vmem:[%s3] sm:$0x7f]
  %v153 = vld [vmem:[%s3 + $0x8] sm:$0x7f]
  %v154 = vld [vmem:[%s3 + $0x10] sm:$0x7f]
  %v155 = vld [vmem:[%s3 + $0x18] sm:$0x7f]
  %v156 = vld [vmem:[%s3 + $0x20] sm:$0x7f]
  %v157 = vld [vmem:[%s3 + $0x28] sm:$0x7f]
  %v158 = vld [vmem:[%s3 + $0x30] sm:$0x7f]
  %v160 = vperm.slane %v151, 0
  %v161 = vperm.slane %v151, 1
  %v162 = vperm.slane %v151, 2
  %v163 = vperm.slane %v151, 3
  %v164 = vperm.slane %v151, 4
  %v165 = vperm.slane %v151, 5
  %v166 = vperm.slane %v151, 6
  %v174 = vmul.f32 %v152, %v160
  %v175 = vmul.f32 %v153, %v161
  %v176 = vmul.f32 %v154, %v162
  %v177 = vmul.f32 %v155, %v163
  %v178 = vmul.f32 %v156, %v164
  %v179 = vmul.f32 %v157, %v165
  %v180 = vmul.f32 %v158, %v166
  %v181 = vadd.f32 %v141, %v174
  %v182 = vadd.f32 %v142, %v175
  %v183 = vadd.f32 %v143, %v176
  %v184 = vadd.f32 %v144, %v177
  %v185 = vadd.f32 %v145, %v178
  %v186 = vadd.f32 %v146, %v179
  %v187 = vadd.f32 %v147, %v180
  %s188 = scalar_lea.vmem %s5, 4
  %v189 = vld [vmem:[%s188] ss:$8 sm:$0xf]
  %v190 = vld [vmem:[%s188] ss:$8 sm:$0x70]
  %v191 = vor.u32 %v189, %v190
  %v192 = vld [vmem:[%s4] sm:$0x7f]
  %v193 = vld [vmem:[%s4 + $0x8] sm:$0x7f]
  %v194 = vld [vmem:[%s4 + $0x10] sm:$0x7f]
  %v195 = vld [vmem:[%s4 + $0x18] sm:$0x7f]
  %v196 = vld [vmem:[%s4 + $0x20] sm:$0x7f]
  %v197 = vld [vmem:[%s4 + $0x28] sm:$0x7f]
  %v198 = vld [vmem:[%s4 + $0x30] sm:$0x7f]
  %v200 = vperm.slane %v191, 0
  %v201 = vperm.slane %v191, 1
  %v202 = vperm.slane %v191, 2
  %v203 = vperm.slane %v191, 3
  %v204 = vperm.slane %v191, 4
  %v205 = vperm.slane %v191, 5
  %v206 = vperm.slane %v191, 6
  %v214 = vmul.f32 %v192, %v200
  %v215 = vmul.f32 %v193, %v201
  %v216 = vmul.f32 %v194, %v202
  %v217 = vmul.f32 %v195, %v203
  %v218 = vmul.f32 %v196, %v204
  %v219 = vmul.f32 %v197, %v205
  %v220 = vmul.f32 %v198, %v206
  %v221 = vadd.f32 %v181, %v214
  %v222 = vadd.f32 %v182, %v215
  %v223 = vadd.f32 %v183, %v216
  %v224 = vadd.f32 %v184, %v217
  %v225 = vadd.f32 %v185, %v218
  %v226 = vadd.f32 %v186, %v219
  %v227 = vadd.f32 %v187, %v220
  %s228 = scalar_lea.vmem %s5, 5
  %v229 = vld [vmem:[%s228] ss:$8 sm:$0xf]
  %v230 = vld [vmem:[%s228] ss:$8 sm:$0x70]
  %v231 = vor.u32 %v229, %v230
  %s232 = scalar_lea.vmem %s0, 56
  %v233 = vld [vmem:[%s232] sm:$0x7f]
  %v234 = vld [vmem:[%s232 + $0x8] sm:$0x7f]
  %v235 = vld [vmem:[%s232 + $0x10] sm:$0x7f]
  %v236 = vld [vmem:[%s232 + $0x18] sm:$0x7f]
  %v237 = vld [vmem:[%s232 + $0x20] sm:$0x7f]
  %v238 = vld [vmem:[%s232 + $0x28] sm:$0x7f]
  %v239 = vld [vmem:[%s232 + $0x30] sm:$0x7f]
  %v241 = vperm.slane %v231, 0
  %v242 = vperm.slane %v231, 1
  %v243 = vperm.slane %v231, 2
  %v244 = vperm.slane %v231, 3
  %v245 = vperm.slane %v231, 4
  %v246 = vperm.slane %v231, 5
  %v247 = vperm.slane %v231, 6
  %v255 = vmul.f32 %v233, %v241
  %v256 = vmul.f32 %v234, %v242
  %v257 = vmul.f32 %v235, %v243
  %v258 = vmul.f32 %v236, %v244
  %v259 = vmul.f32 %v237, %v245
  %v260 = vmul.f32 %v238, %v246
  %v261 = vmul.f32 %v239, %v247
  %v262 = vadd.f32 %v221, %v255
  %v263 = vadd.f32 %v222, %v256
  %v264 = vadd.f32 %v223, %v257
  %v265 = vadd.f32 %v224, %v258
  %v266 = vadd.f32 %v225, %v259
  %v267 = vadd.f32 %v226, %v260
  %v268 = vadd.f32 %v227, %v261
  %s269 = scalar_lea.vmem %s5, 6
  %v270 = vld [vmem:[%s269] ss:$8 sm:$0xf]
  %v271 = vld [vmem:[%s269] ss:$8 sm:$0x70]
  %v272 = vor.u32 %v270, %v271
  %s273 = scalar_lea.vmem %s1, 56
  %v274 = vld [vmem:[%s273] sm:$0x7f]
  %v275 = vld [vmem:[%s273 + $0x8] sm:$0x7f]
  %v276 = vld [vmem:[%s273 + $0x10] sm:$0x7f]
  %v277 = vld [vmem:[%s273 + $0x18] sm:$0x7f]
  %v278 = vld [vmem:[%s273 + $0x20] sm:$0x7f]
  %v279 = vld [vmem:[%s273 + $0x28] sm:$0x7f]
  %v280 = vld [vmem:[%s273 + $0x30] sm:$0x7f]
  %v282 = vperm.slane %v272, 0
  %v283 = vperm.slane %v272, 1
  %v284 = vperm.slane %v272, 2
  %v285 = vperm.slane %v272, 3
  %v286 = vperm.slane %v272, 4
  %v287 = vperm.slane %v272, 5
  %v288 = vperm.slane %v272, 6
  %v296 = vmul.f32 %v274, %v282
  %v297 = vmul.f32 %v275, %v283
  %v298 = vmul.f32 %v276, %v284
  %v299 = vmul.f32 %v277, %v285
  %v300 = vmul.f32 %v278, %v286
  %v301 = vmul.f32 %v279, %v287
  %v302 = vmul.f32 %v280, %v288
  %v303 = vadd.f32 %v262, %v296
  %v304 = vadd.f32 %v263, %v297
  %v305 = vadd.f32 %v264, %v298
  %v306 = vadd.f32 %v265, %v299
  %v307 = vadd.f32 %v266, %v300
  %v308 = vadd.f32 %v267, %v301
  %v309 = vadd.f32 %v268, %v302
  %s310 = scalar_lea.vmem %s5, 7
  %v311 = vld [vmem:[%s310] ss:$8 sm:$0xf]
  %v312 = vld [vmem:[%s310] ss:$8 sm:$0x70]
  %v313 = vor.u32 %v311, %v312
  %s314 = scalar_lea.vmem %s2, 56
  %v315 = vld [vmem:[%s314] sm:$0x7f]
  %v316 = vld [vmem:[%s314 + $0x8] sm:$0x7f]
  %v317 = vld [vmem:[%s314 + $0x10] sm:$0x7f]
  %v318 = vld [vmem:[%s314 + $0x18] sm:$0x7f]
  %v319 = vld [vmem:[%s314 + $0x20] sm:$0x7f]
  %v320 = vld [vmem:[%s314 + $0x28] sm:$0x7f]
  %v321 = vld [vmem:[%s314 + $0x30] sm:$0x7f]
  %v323 = vperm.slane %v313, 0
  %v324 = vperm.slane %v313, 1
  %v325 = vperm.slane %v313, 2
  %v326 = vperm.slane %v313, 3
  %v327 = vperm.slane %v313, 4
  %v328 = vperm.slane %v313, 5
  %v329 = vperm.slane %v313, 6
  %v337 = vmul.f32 %v315, %v323
  %v338 = vmul.f32 %v316, %v324
  %v339 = vmul.f32 %v317, %v325
  %v340 = vmul.f32 %v318, %v326
  %v341 = vmul.f32 %v319, %v327
  %v342 = vmul.f32 %v320, %v328
  %v343 = vmul.f32 %v321, %v329
  %v344 = vadd.f32 %v303, %v337
  %v345 = vadd.f32 %v304, %v338
  %v346 = vadd.f32 %v305, %v339
  %v347 = vadd.f32 %v306, %v340
  %v348 = vadd.f32 %v307, %v341
  %v349 = vadd.f32 %v308, %v342
  %v350 = vadd.f32 %v309, %v343
  %s351 = scalar_lea.vmem %s5, 56
  %v352 = vld [vmem:[%s351] ss:$8 sm:$0xf]
  %v353 = vld [vmem:[%s351] ss:$8 sm:$0x70]
  %v354 = vor.u32 %v352, %v353
  %s355 = scalar_lea.vmem %s3, 56
  %v356 = vld [vmem:[%s355] sm:$0x7f]
  %v357 = vld [vmem:[%s355 + $0x8] sm:$0x7f]
  %v358 = vld [vmem:[%s355 + $0x10] sm:$0x7f]
  %v359 = vld [vmem:[%s355 + $0x18] sm:$0x7f]
  %v360 = vld [vmem:[%s355 + $0x20] sm:$0x7f]
  %v361 = vld [vmem:[%s355 + $0x28] sm:$0x7f]
  %v362 = vld [vmem:[%s355 + $0x30] sm:$0x7f]
  %v364 = vperm.slane %v354, 0
  %v365 = vperm.slane %v354, 1
  %v366 = vperm.slane %v354, 2
  %v367 = vperm.slane %v354, 3
  %v368 = vperm.slane %v354, 4
  %v369 = vperm.slane %v354, 5
  %v370 = vperm.slane %v354, 6
  %v378 = vmul.f32 %v356, %v364
  %v379 = vmul.f32 %v357, %v365
  %v380 = vmul.f32 %v358, %v366
  %v381 = vmul.f32 %v359, %v367
  %v382 = vmul.f32 %v360, %v368
  %v383 = vmul.f32 %v361, %v369
  %v384 = vmul.f32 %v362, %v370
  %v385 = vadd.f32 %v344, %v378
  %v386 = vadd.f32 %v345, %v379
  %v387 = vadd.f32 %v346, %v380
  %v388 = vadd.f32 %v347, %v381
  %v389 = vadd.f32 %v348, %v382
  %v390 = vadd.f32 %v349, %v383
  %v391 = vadd.f32 %v350, %v384
  %s392 = scalar_lea.vmem %s5, 57
  %v393 = vld [vmem:[%s392] ss:$8 sm:$0xf]
  %v394 = vld [vmem:[%s392] ss:$8 sm:$0x70]
  %v395 = vor.u32 %v393, %v394
  %s396 = scalar_lea.vmem %s4, 56
  %v397 = vld [vmem:[%s396] sm:$0x7f]
  %v398 = vld [vmem:[%s396 + $0x8] sm:$0x7f]
  %v399 = vld [vmem:[%s396 + $0x10] sm:$0x7f]
  %v400 = vld [vmem:[%s396 + $0x18] sm:$0x7f]
  %v401 = vld [vmem:[%s396 + $0x20] sm:$0x7f]
  %v402 = vld [vmem:[%s396 + $0x28] sm:$0x7f]
  %v403 = vld [vmem:[%s396 + $0x30] sm:$0x7f]
  %v405 = vperm.slane %v395, 0
  %v406 = vperm.slane %v395, 1
  %v407 = vperm.slane %v395, 2
  %v408 = vperm.slane %v395, 3
  %v409 = vperm.slane %v395, 4
  %v410 = vperm.slane %v395, 5
  %v411 = vperm.slane %v395, 6
  %v419 = vmul.f32 %v397, %v405
  %v420 = vmul.f32 %v398, %v406
  %v421 = vmul.f32 %v399, %v407
  %v422 = vmul.f32 %v400, %v408
  %v423 = vmul.f32 %v401, %v409
  %v424 = vmul.f32 %v402, %v410
  %v425 = vmul.f32 %v403, %v411
  %v426 = vadd.f32 %v385, %v419
  %v427 = vadd.f32 %v386, %v420
  %v428 = vadd.f32 %v387, %v421
  %v429 = vadd.f32 %v388, %v422
  %v430 = vadd.f32 %v389, %v423
  %v431 = vadd.f32 %v390, %v424
  %v432 = vadd.f32 %v391, %v425
  %s433 = scalar_lea.vmem %s5, 58
  %v434 = vld [vmem:[%s433] ss:$8 sm:$0xf]
  %v435 = vld [vmem:[%s433] ss:$8 sm:$0x70]
  %v436 = vor.u32 %v434, %v435
  %s437 = scalar_lea.vmem %s0, 112
  %v438 = vld [vmem:[%s437] sm:$0x7f]
  %v439 = vld [vmem:[%s437 + $0x8] sm:$0x7f]
  %v440 = vld [vmem:[%s437 + $0x10] sm:$0x7f]
  %v441 = vld [vmem:[%s437 + $0x18] sm:$0x7f]
  %v442 = vld [vmem:[%s437 + $0x20] sm:$0x7f]
  %v443 = vld [vmem:[%s437 + $0x28] sm:$0x7f]
  %v444 = vld [vmem:[%s437 + $0x30] sm:$0x7f]
  %v446 = vperm.slane %v436, 0
  %v447 = vperm.slane %v436, 1
  %v448 = vperm.slane %v436, 2
  %v449 = vperm.slane %v436, 3
  %v450 = vperm.slane %v436, 4
  %v451 = vperm.slane %v436, 5
  %v452 = vperm.slane %v436, 6
  %v460 = vmul.f32 %v438, %v446
  %v461 = vmul.f32 %v439, %v447
  %v462 = vmul.f32 %v440, %v448
  %v463 = vmul.f32 %v441, %v449
  %v464 = vmul.f32 %v442, %v450
  %v465 = vmul.f32 %v443, %v451
  %v466 = vmul.f32 %v444, %v452
  %v467 = vadd.f32 %v426, %v460
  %v468 = vadd.f32 %v427, %v461
  %v469 = vadd.f32 %v428, %v462
  %v470 = vadd.f32 %v429, %v463
  %v471 = vadd.f32 %v430, %v464
  %v472 = vadd.f32 %v431, %v465
  %v473 = vadd.f32 %v432, %v466
  %s474 = scalar_lea.vmem %s5, 59
  %v475 = vld [vmem:[%s474] ss:$8 sm:$0xf]
  %v476 = vld [vmem:[%s474] ss:$8 sm:$0x70]
  %v477 = vor.u32 %v475, %v476
  %s478 = scalar_lea.vmem %s1, 112
  %v479 = vld [vmem:[%s478] sm:$0x7f]
  %v480 = vld [vmem:[%s478 + $0x8] sm:$0x7f]
  %v481 = vld [vmem:[%s478 + $0x10] sm:$0x7f]
  %v482 = vld [vmem:[%s478 + $0x18] sm:$0x7f]
  %v483 = vld [vmem:[%s478 + $0x20] sm:$0x7f]
  %v484 = vld [vmem:[%s478 + $0x28] sm:$0x7f]
  %v485 = vld [vmem:[%s478 + $0x30] sm:$0x7f]
  %v487 = vperm.slane %v477, 0
  %v488 = vperm.slane %v477, 1
  %v489 = vperm.slane %v477, 2
  %v490 = vperm.slane %v477, 3
  %v491 = vperm.slane %v477, 4
  %v492 = vperm.slane %v477, 5
  %v493 = vperm.slane %v477, 6
  %v501 = vmul.f32 %v479, %v487
  %v502 = vmul.f32 %v480, %v488
  %v503 = vmul.f32 %v481, %v489
  %v504 = vmul.f32 %v482, %v490
  %v505 = vmul.f32 %v483, %v491
  %v506 = vmul.f32 %v484, %v492
  %v507 = vmul.f32 %v485, %v493
  %v508 = vadd.f32 %v467, %v501
  %v509 = vadd.f32 %v468, %v502
  %v510 = vadd.f32 %v469, %v503
  %v511 = vadd.f32 %v470, %v504
  %v512 = vadd.f32 %v471, %v505
  %v513 = vadd.f32 %v472, %v506
  %v514 = vadd.f32 %v473, %v507
  %s515 = scalar_lea.vmem %s5, 60
  %v516 = vld [vmem:[%s515] ss:$8 sm:$0xf]
  %v517 = vld [vmem:[%s515] ss:$8 sm:$0x70]
  %v518 = vor.u32 %v516, %v517
  %s519 = scalar_lea.vmem %s2, 112
  %v520 = vld [vmem:[%s519] sm:$0x7f]
  %v521 = vld [vmem:[%s519 + $0x8] sm:$0x7f]
  %v522 = vld [vmem:[%s519 + $0x10] sm:$0x7f]
  %v523 = vld [vmem:[%s519 + $0x18] sm:$0x7f]
  %v524 = vld [vmem:[%s519 + $0x20] sm:$0x7f]
  %v525 = vld [vmem:[%s519 + $0x28] sm:$0x7f]
  %v526 = vld [vmem:[%s519 + $0x30] sm:$0x7f]
  %v528 = vperm.slane %v518, 0
  %v529 = vperm.slane %v518, 1
  %v530 = vperm.slane %v518, 2
  %v531 = vperm.slane %v518, 3
  %v532 = vperm.slane %v518, 4
  %v533 = vperm.slane %v518, 5
  %v534 = vperm.slane %v518, 6
  %v542 = vmul.f32 %v520, %v528
  %v543 = vmul.f32 %v521, %v529
  %v544 = vmul.f32 %v522, %v530
  %v545 = vmul.f32 %v523, %v531
  %v546 = vmul.f32 %v524, %v532
  %v547 = vmul.f32 %v525, %v533
  %v548 = vmul.f32 %v526, %v534
  %v549 = vadd.f32 %v508, %v542
  %v550 = vadd.f32 %v509, %v543
  %v551 = vadd.f32 %v510, %v544
  %v552 = vadd.f32 %v511, %v545
  %v553 = vadd.f32 %v512, %v546
  %v554 = vadd.f32 %v513, %v547
  %v555 = vadd.f32 %v514, %v548
  %s556 = scalar_lea.vmem %s5, 61
  %v557 = vld [vmem:[%s556] ss:$8 sm:$0xf]
  %v558 = vld [vmem:[%s556] ss:$8 sm:$0x70]
  %v559 = vor.u32 %v557, %v558
  %s560 = scalar_lea.vmem %s3, 112
  %v561 = vld [vmem:[%s560] sm:$0x7f]
  %v562 = vld [vmem:[%s560 + $0x8] sm:$0x7f]
  %v563 = vld [vmem:[%s560 + $0x10] sm:$0x7f]
  %v564 = vld [vmem:[%s560 + $0x18] sm:$0x7f]
  %v565 = vld [vmem:[%s560 + $0x20] sm:$0x7f]
  %v566 = vld [vmem:[%s560 + $0x28] sm:$0x7f]
  %v567 = vld [vmem:[%s560 + $0x30] sm:$0x7f]
  %v569 = vperm.slane %v559, 0
  %v570 = vperm.slane %v559, 1
  %v571 = vperm.slane %v559, 2
  %v572 = vperm.slane %v559, 3
  %v573 = vperm.slane %v559, 4
  %v574 = vperm.slane %v559, 5
  %v575 = vperm.slane %v559, 6
  %v583 = vmul.f32 %v561, %v569
  %v584 = vmul.f32 %v562, %v570
  %v585 = vmul.f32 %v563, %v571
  %v586 = vmul.f32 %v564, %v572
  %v587 = vmul.f32 %v565, %v573
  %v588 = vmul.f32 %v566, %v574
  %v589 = vmul.f32 %v567, %v575
  %v590 = vadd.f32 %v549, %v583
  %v591 = vadd.f32 %v550, %v584
  %v592 = vadd.f32 %v551, %v585
  %v593 = vadd.f32 %v552, %v586
  %v594 = vadd.f32 %v553, %v587
  %v595 = vadd.f32 %v554, %v588
  %v596 = vadd.f32 %v555, %v589
  %s597 = scalar_lea.vmem %s5, 62
  %v598 = vld [vmem:[%s597] ss:$8 sm:$0xf]
  %v599 = vld [vmem:[%s597] ss:$8 sm:$0x70]
  %v600 = vor.u32 %v598, %v599
  %s601 = scalar_lea.vmem %s4, 112
  %v602 = vld [vmem:[%s601] sm:$0x7f]
  %v603 = vld [vmem:[%s601 + $0x8] sm:$0x7f]
  %v604 = vld [vmem:[%s601 + $0x10] sm:$0x7f]
  %v605 = vld [vmem:[%s601 + $0x18] sm:$0x7f]
  %v606 = vld [vmem:[%s601 + $0x20] sm:$0x7f]
  %v607 = vld [vmem:[%s601 + $0x28] sm:$0x7f]
  %v608 = vld [vmem:[%s601 + $0x30] sm:$0x7f]
  %v610 = vperm.slane %v600, 0
  %v611 = vperm.slane %v600, 1
  %v612 = vperm.slane %v600, 2
  %v613 = vperm.slane %v600, 3
  %v614 = vperm.slane %v600, 4
  %v615 = vperm.slane %v600, 5
  %v616 = vperm.slane %v600, 6
  %v624 = vmul.f32 %v602, %v610
  %v625 = vmul.f32 %v603, %v611
  %v626 = vmul.f32 %v604, %v612
  %v627 = vmul.f32 %v605, %v613
  %v628 = vmul.f32 %v606, %v614
  %v629 = vmul.f32 %v607, %v615
  %v630 = vmul.f32 %v608, %v616
  %v631 = vadd.f32 %v590, %v624
  %v632 = vadd.f32 %v591, %v625
  %v633 = vadd.f32 %v592, %v626
  %v634 = vadd.f32 %v593, %v627
  %v635 = vadd.f32 %v594, %v628
  %v636 = vadd.f32 %v595, %v629
  %v637 = vadd.f32 %v596, %v630
  %s638 = scalar_lea.vmem %s5, 63
  %v639 = vld [vmem:[%s638] ss:$8 sm:$0xf]
  %v640 = vld [vmem:[%s638] ss:$8 sm:$0x70]
  %v641 = vor.u32 %v639, %v640
  %s642 = scalar_lea.vmem %s0, 168
  %v643 = vld [vmem:[%s642] sm:$0x7f]
  %v644 = vld [vmem:[%s642 + $0x8] sm:$0x7f]
  %v645 = vld [vmem:[%s642 + $0x10] sm:$0x7f]
  %v646 = vld [vmem:[%s642 + $0x18] sm:$0x7f]
  %v647 = vld [vmem:[%s642 + $0x20] sm:$0x7f]
  %v648 = vld [vmem:[%s642 + $0x28] sm:$0x7f]
  %v649 = vld [vmem:[%s642 + $0x30] sm:$0x7f]
  %v651 = vperm.slane %v641, 0
  %v652 = vperm.slane %v641, 1
  %v653 = vperm.slane %v641, 2
  %v654 = vperm.slane %v641, 3
  %v655 = vperm.slane %v641, 4
  %v656 = vperm.slane %v641, 5
  %v657 = vperm.slane %v641, 6
  %v665 = vmul.f32 %v643, %v651
  %v666 = vmul.f32 %v644, %v652
  %v667 = vmul.f32 %v645, %v653
  %v668 = vmul.f32 %v646, %v654
  %v669 = vmul.f32 %v647, %v655
  %v670 = vmul.f32 %v648, %v656
  %v671 = vmul.f32 %v649, %v657
  %v672 = vadd.f32 %v631, %v665
  %v673 = vadd.f32 %v632, %v666
  %v674 = vadd.f32 %v633, %v667
  %v675 = vadd.f32 %v634, %v668
  %v676 = vadd.f32 %v635, %v669
  %v677 = vadd.f32 %v636, %v670
  %v678 = vadd.f32 %v637, %v671
  %s679 = scalar_lea.vmem %s5, 112
  %v680 = vld [vmem:[%s679] ss:$8 sm:$0xf]
  %v681 = vld [vmem:[%s679] ss:$8 sm:$0x70]
  %v682 = vor.u32 %v680, %v681
  %s683 = scalar_lea.vmem %s1, 168
  %v684 = vld [vmem:[%s683] sm:$0x7f]
  %v685 = vld [vmem:[%s683 + $0x8] sm:$0x7f]
  %v686 = vld [vmem:[%s683 + $0x10] sm:$0x7f]
  %v687 = vld [vmem:[%s683 + $0x18] sm:$0x7f]
  %v688 = vld [vmem:[%s683 + $0x20] sm:$0x7f]
  %v689 = vld [vmem:[%s683 + $0x28] sm:$0x7f]
  %v690 = vld [vmem:[%s683 + $0x30] sm:$0x7f]
  %v692 = vperm.slane %v682, 0
  %v693 = vperm.slane %v682, 1
  %v694 = vperm.slane %v682, 2
  %v695 = vperm.slane %v682, 3
  %v696 = vperm.slane %v682, 4
  %v697 = vperm.slane %v682, 5
  %v698 = vperm.slane %v682, 6
  %v706 = vmul.f32 %v684, %v692
  %v707 = vmul.f32 %v685, %v693
  %v708 = vmul.f32 %v686, %v694
  %v709 = vmul.f32 %v687, %v695
  %v710 = vmul.f32 %v688, %v696
  %v711 = vmul.f32 %v689, %v697
  %v712 = vmul.f32 %v690, %v698
  %v713 = vadd.f32 %v672, %v706
  %v714 = vadd.f32 %v673, %v707
  %v715 = vadd.f32 %v674, %v708
  %v716 = vadd.f32 %v675, %v709
  %v717 = vadd.f32 %v676, %v710
  %v718 = vadd.f32 %v677, %v711
  %v719 = vadd.f32 %v678, %v712
  %s720 = scalar_lea.vmem %s5, 113
  %v721 = vld [vmem:[%s720] ss:$8 sm:$0xf]
  %v722 = vld [vmem:[%s720] ss:$8 sm:$0x70]
  %v723 = vor.u32 %v721, %v722
  %s724 = scalar_lea.vmem %s2, 168
  %v725 = vld [vmem:[%s724] sm:$0x7f]
  %v726 = vld [vmem:[%s724 + $0x8] sm:$0x7f]
  %v727 = vld [vmem:[%s724 + $0x10] sm:$0x7f]
  %v728 = vld [vmem:[%s724 + $0x18] sm:$0x7f]
  %v729 = vld [vmem:[%s724 + $0x20] sm:$0x7f]
  %v730 = vld [vmem:[%s724 + $0x28] sm:$0x7f]
  %v731 = vld [vmem:[%s724 + $0x30] sm:$0x7f]
  %v733 = vperm.slane %v723, 0
  %v734 = vperm.slane %v723, 1
  %v735 = vperm.slane %v723, 2
  %v736 = vperm.slane %v723, 3
  %v737 = vperm.slane %v723, 4
  %v738 = vperm.slane %v723, 5
  %v739 = vperm.slane %v723, 6
  %v747 = vmul.f32 %v725, %v733
  %v748 = vmul.f32 %v726, %v734
  %v749 = vmul.f32 %v727, %v735
  %v750 = vmul.f32 %v728, %v736
  %v751 = vmul.f32 %v729, %v737
  %v752 = vmul.f32 %v730, %v738
  %v753 = vmul.f32 %v731, %v739
  %v754 = vadd.f32 %v713, %v747
  %v755 = vadd.f32 %v714, %v748
  %v756 = vadd.f32 %v715, %v749
  %v757 = vadd.f32 %v716, %v750
  %v758 = vadd.f32 %v717, %v751
  %v759 = vadd.f32 %v718, %v752
  %v760 = vadd.f32 %v719, %v753
  %s761 = scalar_lea.vmem %s5, 114
  %v762 = vld [vmem:[%s761] ss:$8 sm:$0xf]
  %v763 = vld [vmem:[%s761] ss:$8 sm:$0x70]
  %v764 = vor.u32 %v762, %v763
  %s765 = scalar_lea.vmem %s3, 168
  %v766 = vld [vmem:[%s765] sm:$0x7f]
  %v767 = vld [vmem:[%s765 + $0x8] sm:$0x7f]
  %v768 = vld [vmem:[%s765 + $0x10] sm:$0x7f]
  %v769 = vld [vmem:[%s765 + $0x18] sm:$0x7f]
  %v770 = vld [vmem:[%s765 + $0x20] sm:$0x7f]
  %v771 = vld [vmem:[%s765 + $0x28] sm:$0x7f]
  %v772 = vld [vmem:[%s765 + $0x30] sm:$0x7f]
  %v774 = vperm.slane %v764, 0
  %v775 = vperm.slane %v764, 1
  %v776 = vperm.slane %v764, 2
  %v777 = vperm.slane %v764, 3
  %v778 = vperm.slane %v764, 4
  %v779 = vperm.slane %v764, 5
  %v780 = vperm.slane %v764, 6
  %v788 = vmul.f32 %v766, %v774
  %v789 = vmul.f32 %v767, %v775
  %v790 = vmul.f32 %v768, %v776
  %v791 = vmul.f32 %v769, %v777
  %v792 = vmul.f32 %v770, %v778
  %v793 = vmul.f32 %v771, %v779
  %v794 = vmul.f32 %v772, %v780
  %v795 = vadd.f32 %v754, %v788
  %v796 = vadd.f32 %v755, %v789
  %v797 = vadd.f32 %v756, %v790
  %v798 = vadd.f32 %v757, %v791
  %v799 = vadd.f32 %v758, %v792
  %v800 = vadd.f32 %v759, %v793
  %v801 = vadd.f32 %v760, %v794
  %s802 = scalar_lea.vmem %s5, 115
  %v803 = vld [vmem:[%s802] ss:$8 sm:$0xf]
  %v804 = vld [vmem:[%s802] ss:$8 sm:$0x70]
  %v805 = vor.u32 %v803, %v804
  %s806 = scalar_lea.vmem %s4, 168
  %v807 = vld [vmem:[%s806] sm:$0x7f]
  %v808 = vld [vmem:[%s806 + $0x8] sm:$0x7f]
  %v809 = vld [vmem:[%s806 + $0x10] sm:$0x7f]
  %v810 = vld [vmem:[%s806 + $0x18] sm:$0x7f]
  %v811 = vld [vmem:[%s806 + $0x20] sm:$0x7f]
  %v812 = vld [vmem:[%s806 + $0x28] sm:$0x7f]
  %v813 = vld [vmem:[%s806 + $0x30] sm:$0x7f]
  %v815 = vperm.slane %v805, 0
  %v816 = vperm.slane %v805, 1
  %v817 = vperm.slane %v805, 2
  %v818 = vperm.slane %v805, 3
  %v819 = vperm.slane %v805, 4
  %v820 = vperm.slane %v805, 5
  %v821 = vperm.slane %v805, 6
  %v829 = vmul.f32 %v807, %v815
  %v830 = vmul.f32 %v808, %v816
  %v831 = vmul.f32 %v809, %v817
  %v832 = vmul.f32 %v810, %v818
  %v833 = vmul.f32 %v811, %v819
  %v834 = vmul.f32 %v812, %v820
  %v835 = vmul.f32 %v813, %v821
  %v836 = vadd.f32 %v795, %v829
  %v837 = vadd.f32 %v796, %v830
  %v838 = vadd.f32 %v797, %v831
  %v839 = vadd.f32 %v798, %v832
  %v840 = vadd.f32 %v799, %v833
  %v841 = vadd.f32 %v800, %v834
  %v842 = vadd.f32 %v801, %v835
  %s843 = scalar_lea.vmem %s5, 116
  %v844 = vld [vmem:[%s843] ss:$8 sm:$0xf]
  %v845 = vld [vmem:[%s843] ss:$8 sm:$0x70]
  %v846 = vor.u32 %v844, %v845
  %s847 = scalar_lea.vmem %s0, 224
  %v848 = vld [vmem:[%s847] sm:$0x7f]
  %v849 = vld [vmem:[%s847 + $0x8] sm:$0x7f]
  %v850 = vld [vmem:[%s847 + $0x10] sm:$0x7f]
  %v851 = vld [vmem:[%s847 + $0x18] sm:$0x7f]
  %v852 = vld [vmem:[%s847 + $0x20] sm:$0x7f]
  %v853 = vld [vmem:[%s847 + $0x28] sm:$0x7f]
  %v854 = vld [vmem:[%s847 + $0x30] sm:$0x7f]
  %v856 = vperm.slane %v846, 0
  %v857 = vperm.slane %v846, 1
  %v858 = vperm.slane %v846, 2
  %v859 = vperm.slane %v846, 3
  %v860 = vperm.slane %v846, 4
  %v861 = vperm.slane %v846, 5
  %v862 = vperm.slane %v846, 6
  %v870 = vmul.f32 %v848, %v856
  %v871 = vmul.f32 %v849, %v857
  %v872 = vmul.f32 %v850, %v858
  %v873 = vmul.f32 %v851, %v859
  %v874 = vmul.f32 %v852, %v860
  %v875 = vmul.f32 %v853, %v861
  %v876 = vmul.f32 %v854, %v862
  %v877 = vadd.f32 %v836, %v870
  %v878 = vadd.f32 %v837, %v871
  %v879 = vadd.f32 %v838, %v872
  %v880 = vadd.f32 %v839, %v873
  %v881 = vadd.f32 %v840, %v874
  %v882 = vadd.f32 %v841, %v875
  %v883 = vadd.f32 %v842, %v876
  %s884 = scalar_lea.vmem %s5, 117
  %v885 = vld [vmem:[%s884] ss:$8 sm:$0xf]
  %v886 = vld [vmem:[%s884] ss:$8 sm:$0x70]
  %v887 = vor.u32 %v885, %v886
  %s888 = scalar_lea.vmem %s1, 224
  %v889 = vld [vmem:[%s888] sm:$0x7f]
  %v890 = vld [vmem:[%s888 + $0x8] sm:$0x7f]
  %v891 = vld [vmem:[%s888 + $0x10] sm:$0x7f]
  %v892 = vld [vmem:[%s888 + $0x18] sm:$0x7f]
  %v893 = vld [vmem:[%s888 + $0x20] sm:$0x7f]
  %v894 = vld [vmem:[%s888 + $0x28] sm:$0x7f]
  %v895 = vld [vmem:[%s888 + $0x30] sm:$0x7f]
  %v897 = vperm.slane %v887, 0
  %v898 = vperm.slane %v887, 1
  %v899 = vperm.slane %v887, 2
  %v900 = vperm.slane %v887, 3
  %v901 = vperm.slane %v887, 4
  %v902 = vperm.slane %v887, 5
  %v903 = vperm.slane %v887, 6
  %v911 = vmul.f32 %v889, %v897
  %v912 = vmul.f32 %v890, %v898
  %v913 = vmul.f32 %v891, %v899
  %v914 = vmul.f32 %v892, %v900
  %v915 = vmul.f32 %v893, %v901
  %v916 = vmul.f32 %v894, %v902
  %v917 = vmul.f32 %v895, %v903
  %v918 = vadd.f32 %v877, %v911
  %v919 = vadd.f32 %v878, %v912
  %v920 = vadd.f32 %v879, %v913
  %v921 = vadd.f32 %v880, %v914
  %v922 = vadd.f32 %v881, %v915
  %v923 = vadd.f32 %v882, %v916
  %v924 = vadd.f32 %v883, %v917
  %s925 = scalar_lea.vmem %s5, 118
  %v926 = vld [vmem:[%s925] ss:$8 sm:$0xf]
  %v927 = vld [vmem:[%s925] ss:$8 sm:$0x70]
  %v928 = vor.u32 %v926, %v927
  %s929 = scalar_lea.vmem %s2, 224
  %v930 = vld [vmem:[%s929] sm:$0x7f]
  %v931 = vld [vmem:[%s929 + $0x8] sm:$0x7f]
  %v932 = vld [vmem:[%s929 + $0x10] sm:$0x7f]
  %v933 = vld [vmem:[%s929 + $0x18] sm:$0x7f]
  %v934 = vld [vmem:[%s929 + $0x20] sm:$0x7f]
  %v935 = vld [vmem:[%s929 + $0x28] sm:$0x7f]
  %v936 = vld [vmem:[%s929 + $0x30] sm:$0x7f]
  %v938 = vperm.slane %v928, 0
  %v939 = vperm.slane %v928, 1
  %v940 = vperm.slane %v928, 2
  %v941 = vperm.slane %v928, 3
  %v942 = vperm.slane %v928, 4
  %v943 = vperm.slane %v928, 5
  %v944 = vperm.slane %v928, 6
  %v952 = vmul.f32 %v930, %v938
  %v953 = vmul.f32 %v931, %v939
  %v954 = vmul.f32 %v932, %v940
  %v955 = vmul.f32 %v933, %v941
  %v956 = vmul.f32 %v934, %v942
  %v957 = vmul.f32 %v935, %v943
  %v958 = vmul.f32 %v936, %v944
  %v959 = vadd.f32 %v918, %v952
  %v960 = vadd.f32 %v919, %v953
  %v961 = vadd.f32 %v920, %v954
  %v962 = vadd.f32 %v921, %v955
  %v963 = vadd.f32 %v922, %v956
  %v964 = vadd.f32 %v923, %v957
  %v965 = vadd.f32 %v924, %v958
  %s966 = scalar_lea.vmem %s5, 119
  %v967 = vld [vmem:[%s966] ss:$8 sm:$0xf]
  %v968 = vld [vmem:[%s966] ss:$8 sm:$0x70]
  %v969 = vor.u32 %v967, %v968
  %s970 = scalar_lea.vmem %s3, 224
  %v971 = vld [vmem:[%s970] sm:$0x7f]
  %v972 = vld [vmem:[%s970 + $0x8] sm:$0x7f]
  %v973 = vld [vmem:[%s970 + $0x10] sm:$0x7f]
  %v974 = vld [vmem:[%s970 + $0x18] sm:$0x7f]
  %v975 = vld [vmem:[%s970 + $0x20] sm:$0x7f]
  %v976 = vld [vmem:[%s970 + $0x28] sm:$0x7f]
  %v977 = vld [vmem:[%s970 + $0x30] sm:$0x7f]
  %v979 = vperm.slane %v969, 0
  %v980 = vperm.slane %v969, 1
  %v981 = vperm.slane %v969, 2
  %v982 = vperm.slane %v969, 3
  %v983 = vperm.slane %v969, 4
  %v984 = vperm.slane %v969, 5
  %v985 = vperm.slane %v969, 6
  %v993 = vmul.f32 %v971, %v979
  %v994 = vmul.f32 %v972, %v980
  %v995 = vmul.f32 %v973, %v981
  %v996 = vmul.f32 %v974, %v982
  %v997 = vmul.f32 %v975, %v983
  %v998 = vmul.f32 %v976, %v984
  %v999 = vmul.f32 %v977, %v985
  %v1000 = vadd.f32 %v959, %v993
  %v1001 = vadd.f32 %v960, %v994
  %v1002 = vadd.f32 %v961, %v995
  %v1003 = vadd.f32 %v962, %v996
  %v1004 = vadd.f32 %v963, %v997
  %v1005 = vadd.f32 %v964, %v998
  %v1006 = vadd.f32 %v965, %v999
  %s1007 = scalar_lea.vmem %s5, 168
  %v1008 = vld [vmem:[%s1007] ss:$8 sm:$0xf]
  %v1009 = vld [vmem:[%s1007] ss:$8 sm:$0x70]
  %v1010 = vor.u32 %v1008, %v1009
  %s1011 = scalar_lea.vmem %s4, 224
  %v1012 = vld [vmem:[%s1011] sm:$0x7f]
  %v1013 = vld [vmem:[%s1011 + $0x8] sm:$0x7f]
  %v1014 = vld [vmem:[%s1011 + $0x10] sm:$0x7f]
  %v1015 = vld [vmem:[%s1011 + $0x18] sm:$0x7f]
  %v1016 = vld [vmem:[%s1011 + $0x20] sm:$0x7f]
  %v1017 = vld [vmem:[%s1011 + $0x28] sm:$0x7f]
  %v1018 = vld [vmem:[%s1011 + $0x30] sm:$0x7f]
  %v1020 = vperm.slane %v1010, 0
  %v1021 = vperm.slane %v1010, 1
  %v1022 = vperm.slane %v1010, 2
  %v1023 = vperm.slane %v1010, 3
  %v1024 = vperm.slane %v1010, 4
  %v1025 = vperm.slane %v1010, 5
  %v1026 = vperm.slane %v1010, 6
  %v1034 = vmul.f32 %v1012, %v1020
  %v1035 = vmul.f32 %v1013, %v1021
  %v1036 = vmul.f32 %v1014, %v1022
  %v1037 = vmul.f32 %v1015, %v1023
  %v1038 = vmul.f32 %v1016, %v1024
  %v1039 = vmul.f32 %v1017, %v1025
  %v1040 = vmul.f32 %v1018, %v1026
  %v1041 = vadd.f32 %v1000, %v1034
  %v1042 = vadd.f32 %v1001, %v1035
  %v1043 = vadd.f32 %v1002, %v1036
  %v1044 = vadd.f32 %v1003, %v1037
  %v1045 = vadd.f32 %v1004, %v1038
  %v1046 = vadd.f32 %v1005, %v1039
  %v1047 = vadd.f32 %v1006, %v1040
  %1048 = vst [vmem:[%s8] sm:$0x7f] %v1041
  %1049 = vst [vmem:[%s8 + $0x8] sm:$0x7f] %v1042
  %1050 = vst [vmem:[%s8 + $0x10] sm:$0x7f] %v1043
  %1051 = vst [vmem:[%s8 + $0x18] sm:$0x7f] %v1044
  %1052 = vst [vmem:[%s8 + $0x20] sm:$0x7f] %v1045
  %1053 = vst [vmem:[%s8 + $0x28] sm:$0x7f] %v1046
  %vm1054 = vcmask 391168
  %1055 = vst.msk [vmem:[%s8 + $0x30] sm:$0x7f] %vm1054, %v1047
  %v1056 = vadd.f32 %v1041, 0.0
  %v1057 = vadd.f32 %v1042, 0.0
  %v1058 = vadd.f32 %v1043, 0.0
  %v1059 = vadd.f32 %v1044, 0.0
  %v1060 = vadd.f32 %v1045, 0.0
  %v1061 = vadd.f32 %v1046, 0.0
  %v1062 = vadd.f32 %v1047, 0.0
  %v1063 = vadd.f32 %v1056, 0.0
  %v1064 = vadd.f32 %v1057, 0.0
  %v1065 = vadd.f32 %v1058, 0.0
  %v1066 = vadd.f32 %v1059, 0.0
  %v1067 = vadd.f32 %v1060, 0.0
  %v1068 = vadd.f32 %v1061, 0.0
  %v1069 = vadd.f32 %v1062, 0.0
  %v1070 = vmul.f32 %v1041, %v1041
  %v1071 = vmul.f32 %v1042, %v1042
  %v1072 = vmul.f32 %v1043, %v1043
  %v1073 = vmul.f32 %v1044, %v1044
  %v1074 = vmul.f32 %v1045, %v1045
  %v1075 = vmul.f32 %v1046, %v1046
  %v1076 = vmul.f32 %v1047, %v1047
  %v1077 = vadd.f32 %v1070, 0.0
  %v1078 = vadd.f32 %v1071, 0.0
  %v1079 = vadd.f32 %v1072, 0.0
  %v1080 = vadd.f32 %v1073, 0.0
  %v1081 = vadd.f32 %v1074, 0.0
  %v1082 = vadd.f32 %v1075, 0.0
  %v1083 = vadd.f32 %v1076, 0.0
  %v1084 = vadd.f32 %v1077, 0.0
  %v1085 = vadd.f32 %v1078, 0.0
  %v1086 = vadd.f32 %v1079, 0.0
  %v1087 = vadd.f32 %v1080, 0.0
  %v1088 = vadd.f32 %v1081, 0.0
  %v1089 = vadd.f32 %v1082, 0.0
  %v1090 = vadd.f32 %v1083, 0.0
  %v1091 = vld [vmem:[%s5] ss:$8 sm:$0xf]
  %v1092 = vld [vmem:[%s5] ss:$8 sm:$0x70]
  %v1093 = vor.u32 %v1091, %v1092
  %v1094 = vld [vmem:[%s437] sm:$0x7f]
  %v1095 = vld [vmem:[%s437 + $0x8] sm:$0x7f]
  %v1096 = vld [vmem:[%s437 + $0x10] sm:$0x7f]
  %v1097 = vld [vmem:[%s437 + $0x18] sm:$0x7f]
  %v1098 = vld [vmem:[%s437 + $0x20] sm:$0x7f]
  %v1099 = vld [vmem:[%s437 + $0x28] sm:$0x7f]
  %v1100 = vld [vmem:[%s437 + $0x30] sm:$0x7f]
  %v1102 = vperm.slane %v1093, 0
  %v1103 = vperm.slane %v1093, 1
  %v1104 = vperm.slane %v1093, 2
  %v1105 = vperm.slane %v1093, 3
  %v1106 = vperm.slane %v1093, 4
  %v1107 = vperm.slane %v1093, 5
  %v1108 = vperm.slane %v1093, 6
  %v1116 = vmul.f32 %v1094, %v1102
  %v1117 = vmul.f32 %v1095, %v1103
  %v1118 = vmul.f32 %v1096, %v1104
  %v1119 = vmul.f32 %v1097, %v1105
  %v1120 = vmul.f32 %v1098, %v1106
  %v1121 = vmul.f32 %v1099, %v1107
  %v1122 = vmul.f32 %v1100, %v1108
  %v1123 = vadd.f32 %v1116, 0.0
  %v1124 = vadd.f32 %v1117, 0.0
  %v1125 = vadd.f32 %v1118, 0.0
  %v1126 = vadd.f32 %v1119, 0.0
  %v1127 = vadd.f32 %v1120, 0.0
  %v1128 = vadd.f32 %v1121, 0.0
  %v1129 = vadd.f32 %v1122, 0.0
  %v1130 = vld [vmem:[%s68] ss:$8 sm:$0xf]
  %v1131 = vld [vmem:[%s68] ss:$8 sm:$0x70]
  %v1132 = vor.u32 %v1130, %v1131
  %v1133 = vld [vmem:[%s478] sm:$0x7f]
  %v1134 = vld [vmem:[%s478 + $0x8] sm:$0x7f]
  %v1135 = vld [vmem:[%s478 + $0x10] sm:$0x7f]
  %v1136 = vld [vmem:[%s478 + $0x18] sm:$0x7f]
  %v1137 = vld [vmem:[%s478 + $0x20] sm:$0x7f]
  %v1138 = vld [vmem:[%s478 + $0x28] sm:$0x7f]
  %v1139 = vld [vmem:[%s478 + $0x30] sm:$0x7f]
  %v1141 = vperm.slane %v1132, 0
  %v1142 = vperm.slane %v1132, 1
  %v1143 = vperm.slane %v1132, 2
  %v1144 = vperm.slane %v1132, 3
  %v1145 = vperm.slane %v1132, 4
  %v1146 = vperm.slane %v1132, 5
  %v1147 = vperm.slane %v1132, 6
  %v1155 = vmul.f32 %v1133, %v1141
  %v1156 = vmul.f32 %v1134, %v1142
  %v1157 = vmul.f32 %v1135, %v1143
  %v1158 = vmul.f32 %v1136, %v1144
  %v1159 = vmul.f32 %v1137, %v1145
  %v1160 = vmul.f32 %v1138, %v1146
  %v1161 = vmul.f32 %v1139, %v1147
  %v1162 = vadd.f32 %v1123, %v1155
  %v1163 = vadd.f32 %v1124, %v1156
  %v1164 = vadd.f32 %v1125, %v1157
  %v1165 = vadd.f32 %v1126, %v1158
  %v1166 = vadd.f32 %v1127, %v1159
  %v1167 = vadd.f32 %v1128, %v1160
  %v1168 = vadd.f32 %v1129, %v1161
  %v1169 = vld [vmem:[%s108] ss:$8 sm:$0xf]
  %v1170 = vld [vmem:[%s108] ss:$8 sm:$0x70]
  %v1171 = vor.u32 %v1169, %v1170
  %v1172 = vld [vmem:[%s519] sm:$0x7f]
  %v1173 = vld [vmem:[%s519 + $0x8] sm:$0x7f]
  %v1174 = vld [vmem:[%s519 + $0x10] sm:$0x7f]
  %v1175 = vld [vmem:[%s519 + $0x18] sm:$0x7f]
  %v1176 = vld [vmem:[%s519 + $0x20] sm:$0x7f]
  %v1177 = vld [vmem:[%s519 + $0x28] sm:$0x7f]
  %v1178 = vld [vmem:[%s519 + $0x30] sm:$0x7f]
  %v1180 = vperm.slane %v1171, 0
  %v1181 = vperm.slane %v1171, 1
  %v1182 = vperm.slane %v1171, 2
  %v1183 = vperm.slane %v1171, 3
  %v1184 = vperm.slane %v1171, 4
  %v1185 = vperm.slane %v1171, 5
  %v1186 = vperm.slane %v1171, 6
  %v1194 = vmul.f32 %v1172, %v1180
  %v1195 = vmul.f32 %v1173, %v1181
  %v1196 = vmul.f32 %v1174, %v1182
  %v1197 = vmul.f32 %v1175, %v1183
  %v1198 = vmul.f32 %v1176, %v1184
  %v1199 = vmul.f32 %v1177, %v1185
  %v1200 = vmul.f32 %v1178, %v1186
  %v1201 = vadd.f32 %v1162, %v1194
  %v1202 = vadd.f32 %v1163, %v1195
  %v1203 = vadd.f32 %v1164, %v1196
  %v1204 = vadd.f32 %v1165, %v1197
  %v1205 = vadd.f32 %v1166, %v1198
  %v1206 = vadd.f32 %v1167, %v1199
  %v1207 = vadd.f32 %v1168, %v1200
  %v1208 = vld [vmem:[%s148] ss:$8 sm:$0xf]
  %v1209 = vld [vmem:[%s148] ss:$8 sm:$0x70]
  %v1210 = vor.u32 %v1208, %v1209
  %v1211 = vld [vmem:[%s560] sm:$0x7f]
  %v1212 = vld [vmem:[%s560 + $0x8] sm:$0x7f]
  %v1213 = vld [vmem:[%s560 + $0x10] sm:$0x7f]
  %v1214 = vld [vmem:[%s560 + $0x18] sm:$0x7f]
  %v1215 = vld [vmem:[%s560 + $0x20] sm:$0x7f]
  %v1216 = vld [vmem:[%s560 + $0x28] sm:$0x7f]
  %v1217 = vld [vmem:[%s560 + $0x30] sm:$0x7f]
  %v1219 = vperm.slane %v1210, 0
  %v1220 = vperm.slane %v1210, 1
  %v1221 = vperm.slane %v1210, 2
  %v1222 = vperm.slane %v1210, 3
  %v1223 = vperm.slane %v1210, 4
  %v1224 = vperm.slane %v1210, 5
  %v1225 = vperm.slane %v1210, 6
  %v1233 = vmul.f32 %v1211, %v1219
  %v1234 = vmul.f32 %v1212, %v1220
  %v1235 = vmul.f32 %v1213, %v1221
  %v1236 = vmul.f32 %v1214, %v1222
  %v1237 = vmul.f32 %v1215, %v1223
  %v1238 = vmul.f32 %v1216, %v1224
  %v1239 = vmul.f32 %v1217, %v1225
  %v1240 = vadd.f32 %v1201, %v1233
  %v1241 = vadd.f32 %v1202, %v1234
  %v1242 = vadd.f32 %v1203, %v1235
  %v1243 = vadd.f32 %v1204, %v1236
  %v1244 = vadd.f32 %v1205, %v1237
  %v1245 = vadd.f32 %v1206, %v1238
  %v1246 = vadd.f32 %v1207, %v1239
  %v1247 = vld [vmem:[%s188] ss:$8 sm:$0xf]
  %v1248 = vld [vmem:[%s188] ss:$8 sm:$0x70]
  %v1249 = vor.u32 %v1247, %v1248
  %v1250 = vld [vmem:[%s601] sm:$0x7f]
  %v1251 = vld [vmem:[%s601 + $0x8] sm:$0x7f]
  %v1252 = vld [vmem:[%s601 + $0x10] sm:$0x7f]
  %v1253 = vld [vmem:[%s601 + $0x18] sm:$0x7f]
  %v1254 = vld [vmem:[%s601 + $0x20] sm:$0x7f]
  %v1255 = vld [vmem:[%s601 + $0x28] sm:$0x7f]
  %v1256 = vld [vmem:[%s601 + $0x30] sm:$0x7f]
  %v1258 = vperm.slane %v1249, 0
  %v1259 = vperm.slane %v1249, 1
  %v1260 = vperm.slane %v1249, 2
  %v1261 = vperm.slane %v1249, 3
  %v1262 = vperm.slane %v1249, 4
  %v1263 = vperm.slane %v1249, 5
  %v1264 = vperm.slane %v1249, 6
  %v1272 = vmul.f32 %v1250, %v1258
  %v1273 = vmul.f32 %v1251, %v1259
  %v1274 = vmul.f32 %v1252, %v1260
  %v1275 = vmul.f32 %v1253, %v1261
  %v1276 = vmul.f32 %v1254, %v1262
  %v1277 = vmul.f32 %v1255, %v1263
  %v1278 = vmul.f32 %v1256, %v1264
  %v1279 = vadd.f32 %v1240, %v1272
  %v1280 = vadd.f32 %v1241, %v1273
  %v1281 = vadd.f32 %v1242, %v1274
  %v1282 = vadd.f32 %v1243, %v1275
  %v1283 = vadd.f32 %v1244, %v1276
  %v1284 = vadd.f32 %v1245, %v1277
  %v1285 = vadd.f32 %v1246, %v1278
  %v1286 = vld [vmem:[%s228] ss:$8 sm:$0xf]
  %v1287 = vld [vmem:[%s228] ss:$8 sm:$0x70]
  %v1288 = vor.u32 %v1286, %v1287
  %v1289 = vld [vmem:[%s642] sm:$0x7f]
  %v1290 = vld [vmem:[%s642 + $0x8] sm:$0x7f]
  %v1291 = vld [vmem:[%s642 + $0x10] sm:$0x7f]
  %v1292 = vld [vmem:[%s642 + $0x18] sm:$0x7f]
  %v1293 = vld [vmem:[%s642 + $0x20] sm:$0x7f]
  %v1294 = vld [vmem:[%s642 + $0x28] sm:$0x7f]
  %v1295 = vld [vmem:[%s642 + $0x30] sm:$0x7f]
  %v1297 = vperm.slane %v1288, 0
  %v1298 = vperm.slane %v1288, 1
  %v1299 = vperm.slane %v1288, 2
  %v1300 = vperm.slane %v1288, 3
  %v1301 = vperm.slane %v1288, 4
  %v1302 = vperm.slane %v1288, 5
  %v1303 = vperm.slane %v1288, 6
  %v1311 = vmul.f32 %v1289, %v1297
  %v1312 = vmul.f32 %v1290, %v1298
  %v1313 = vmul.f32 %v1291, %v1299
  %v1314 = vmul.f32 %v1292, %v1300
  %v1315 = vmul.f32 %v1293, %v1301
  %v1316 = vmul.f32 %v1294, %v1302
  %v1317 = vmul.f32 %v1295, %v1303
  %v1318 = vadd.f32 %v1279, %v1311
  %v1319 = vadd.f32 %v1280, %v1312
  %v1320 = vadd.f32 %v1281, %v1313
  %v1321 = vadd.f32 %v1282, %v1314
  %v1322 = vadd.f32 %v1283, %v1315
  %v1323 = vadd.f32 %v1284, %v1316
  %v1324 = vadd.f32 %v1285, %v1317
  %v1325 = vld [vmem:[%s269] ss:$8 sm:$0xf]
  %v1326 = vld [vmem:[%s269] ss:$8 sm:$0x70]
  %v1327 = vor.u32 %v1325, %v1326
  %v1328 = vld [vmem:[%s683] sm:$0x7f]
  %v1329 = vld [vmem:[%s683 + $0x8] sm:$0x7f]
  %v1330 = vld [vmem:[%s683 + $0x10] sm:$0x7f]
  %v1331 = vld [vmem:[%s683 + $0x18] sm:$0x7f]
  %v1332 = vld [vmem:[%s683 + $0x20] sm:$0x7f]
  %v1333 = vld [vmem:[%s683 + $0x28] sm:$0x7f]
  %v1334 = vld [vmem:[%s683 + $0x30] sm:$0x7f]
  %v1336 = vperm.slane %v1327, 0
  %v1337 = vperm.slane %v1327, 1
  %v1338 = vperm.slane %v1327, 2
  %v1339 = vperm.slane %v1327, 3
  %v1340 = vperm.slane %v1327, 4
  %v1341 = vperm.slane %v1327, 5
  %v1342 = vperm.slane %v1327, 6
  %v1350 = vmul.f32 %v1328, %v1336
  %v1351 = vmul.f32 %v1329, %v1337
  %v1352 = vmul.f32 %v1330, %v1338
  %v1353 = vmul.f32 %v1331, %v1339
  %v1354 = vmul.f32 %v1332, %v1340
  %v1355 = vmul.f32 %v1333, %v1341
  %v1356 = vmul.f32 %v1334, %v1342
  %v1357 = vadd.f32 %v1318, %v1350
  %v1358 = vadd.f32 %v1319, %v1351
  %v1359 = vadd.f32 %v1320, %v1352
  %v1360 = vadd.f32 %v1321, %v1353
  %v1361 = vadd.f32 %v1322, %v1354
  %v1362 = vadd.f32 %v1323, %v1355
  %v1363 = vadd.f32 %v1324, %v1356
  %v1364 = vld [vmem:[%s310] ss:$8 sm:$0xf]
  %v1365 = vld [vmem:[%s310] ss:$8 sm:$0x70]
  %v1366 = vor.u32 %v1364, %v1365
  %v1367 = vld [vmem:[%s724] sm:$0x7f]
  %v1368 = vld [vmem:[%s724 + $0x8] sm:$0x7f]
  %v1369 = vld [vmem:[%s724 + $0x10] sm:$0x7f]
  %v1370 = vld [vmem:[%s724 + $0x18] sm:$0x7f]
  %v1371 = vld [vmem:[%s724 + $0x20] sm:$0x7f]
  %v1372 = vld [vmem:[%s724 + $0x28] sm:$0x7f]
  %v1373 = vld [vmem:[%s724 + $0x30] sm:$0x7f]
  %v1375 = vperm.slane %v1366, 0
  %v1376 = vperm.slane %v1366, 1
  %v1377 = vperm.slane %v1366, 2
  %v1378 = vperm.slane %v1366, 3
  %v1379 = vperm.slane %v1366, 4
  %v1380 = vperm.slane %v1366, 5
  %v1381 = vperm.slane %v1366, 6
  %v1389 = vmul.f32 %v1367, %v1375
  %v1390 = vmul.f32 %v1368, %v1376
  %v1391 = vmul.f32 %v1369, %v1377
  %v1392 = vmul.f32 %v1370, %v1378
  %v1393 = vmul.f32 %v1371, %v1379
  %v1394 = vmul.f32 %v1372, %v1380
  %v1395 = vmul.f32 %v1373, %v1381
  %v1396 = vadd.f32 %v1357, %v1389
  %v1397 = vadd.f32 %v1358, %v1390
  %v1398 = vadd.f32 %v1359, %v1391
  %v1399 = vadd.f32 %v1360, %v1392
  %v1400 = vadd.f32 %v1361, %v1393
  %v1401 = vadd.f32 %v1362, %v1394
  %v1402 = vadd.f32 %v1363, %v1395
  %v1403 = vld [vmem:[%s351] ss:$8 sm:$0xf]
  %v1404 = vld [vmem:[%s351] ss:$8 sm:$0x70]
  %v1405 = vor.u32 %v1403, %v1404
  %v1406 = vld [vmem:[%s765] sm:$0x7f]
  %v1407 = vld [vmem:[%s765 + $0x8] sm:$0x7f]
  %v1408 = vld [vmem:[%s765 + $0x10] sm:$0x7f]
  %v1409 = vld [vmem:[%s765 + $0x18] sm:$0x7f]
  %v1410 = vld [vmem:[%s765 + $0x20] sm:$0x7f]
  %v1411 = vld [vmem:[%s765 + $0x28] sm:$0x7f]
  %v1412 = vld [vmem:[%s765 + $0x30] sm:$0x7f]
  %v1414 = vperm.slane %v1405, 0
  %v1415 = vperm.slane %v1405, 1
  %v1416 = vperm.slane %v1405, 2
  %v1417 = vperm.slane %v1405, 3
  %v1418 = vperm.slane %v1405, 4
  %v1419 = vperm.slane %v1405, 5
  %v1420 = vperm.slane %v1405, 6
  %v1428 = vmul.f32 %v1406, %v1414
  %v1429 = vmul.f32 %v1407, %v1415
  %v1430 = vmul.f32 %v1408, %v1416
  %v1431 = vmul.f32 %v1409, %v1417
  %v1432 = vmul.f32 %v1410, %v1418
  %v1433 = vmul.f32 %v1411, %v1419
  %v1434 = vmul.f32 %v1412, %v1420
  %v1435 = vadd.f32 %v1396, %v1428
  %v1436 = vadd.f32 %v1397, %v1429
  %v1437 = vadd.f32 %v1398, %v1430
  %v1438 = vadd.f32 %v1399, %v1431
  %v1439 = vadd.f32 %v1400, %v1432
  %v1440 = vadd.f32 %v1401, %v1433
  %v1441 = vadd.f32 %v1402, %v1434
  %v1442 = vld [vmem:[%s392] ss:$8 sm:$0xf]
  %v1443 = vld [vmem:[%s392] ss:$8 sm:$0x70]
  %v1444 = vor.u32 %v1442, %v1443
  %v1445 = vld [vmem:[%s806] sm:$0x7f]
  %v1446 = vld [vmem:[%s806 + $0x8] sm:$0x7f]
  %v1447 = vld [vmem:[%s806 + $0x10] sm:$0x7f]
  %v1448 = vld [vmem:[%s806 + $0x18] sm:$0x7f]
  %v1449 = vld [vmem:[%s806 + $0x20] sm:$0x7f]
  %v1450 = vld [vmem:[%s806 + $0x28] sm:$0x7f]
  %v1451 = vld [vmem:[%s806 + $0x30] sm:$0x7f]
  %v1453 = vperm.slane %v1444, 0
  %v1454 = vperm.slane %v1444, 1
  %v1455 = vperm.slane %v1444, 2
  %v1456 = vperm.slane %v1444, 3
  %v1457 = vperm.slane %v1444, 4
  %v1458 = vperm.slane %v1444, 5
  %v1459 = vperm.slane %v1444, 6
  %v1467 = vmul.f32 %v1445, %v1453
  %v1468 = vmul.f32 %v1446, %v1454
  %v1469 = vmul.f32 %v1447, %v1455
  %v1470 = vmul.f32 %v1448, %v1456
  %v1471 = vmul.f32 %v1449, %v1457
  %v1472 = vmul.f32 %v1450, %v1458
  %v1473 = vmul.f32 %v1451, %v1459
  %v1474 = vadd.f32 %v1435, %v1467
  %v1475 = vadd.f32 %v1436, %v1468
  %v1476 = vadd.f32 %v1437, %v1469
  %v1477 = vadd.f32 %v1438, %v1470
  %v1478 = vadd.f32 %v1439, %v1471
  %v1479 = vadd.f32 %v1440, %v1472
  %v1480 = vadd.f32 %v1441, %v1473
  %v1481 = vld [vmem:[%s433] ss:$8 sm:$0xf]
  %v1482 = vld [vmem:[%s433] ss:$8 sm:$0x70]
  %v1483 = vor.u32 %v1481, %v1482
  %v1484 = vld [vmem:[%s847] sm:$0x7f]
  %v1485 = vld [vmem:[%s847 + $0x8] sm:$0x7f]
  %v1486 = vld [vmem:[%s847 + $0x10] sm:$0x7f]
  %v1487 = vld [vmem:[%s847 + $0x18] sm:$0x7f]
  %v1488 = vld [vmem:[%s847 + $0x20] sm:$0x7f]
  %v1489 = vld [vmem:[%s847 + $0x28] sm:$0x7f]
  %v1490 = vld [vmem:[%s847 + $0x30] sm:$0x7f]
  %v1492 = vperm.slane %v1483, 0
  %v1493 = vperm.slane %v1483, 1
  %v1494 = vperm.slane %v1483, 2
  %v1495 = vperm.slane %v1483, 3
  %v1496 = vperm.slane %v1483, 4
  %v1497 = vperm.slane %v1483, 5
  %v1498 = vperm.slane %v1483, 6
  %v1506 = vmul.f32 %v1484, %v1492
  %v1507 = vmul.f32 %v1485, %v1493
  %v1508 = vmul.f32 %v1486, %v1494
  %v1509 = vmul.f32 %v1487, %v1495
  %v1510 = vmul.f32 %v1488, %v1496
  %v1511 = vmul.f32 %v1489, %v1497
  %v1512 = vmul.f32 %v1490, %v1498
  %v1513 = vadd.f32 %v1474, %v1506
  %v1514 = vadd.f32 %v1475, %v1507
  %v1515 = vadd.f32 %v1476, %v1508
  %v1516 = vadd.f32 %v1477, %v1509
  %v1517 = vadd.f32 %v1478, %v1510
  %v1518 = vadd.f32 %v1479, %v1511
  %v1519 = vadd.f32 %v1480, %v1512
  %v1520 = vld [vmem:[%s474] ss:$8 sm:$0xf]
  %v1521 = vld [vmem:[%s474] ss:$8 sm:$0x70]
  %v1522 = vor.u32 %v1520, %v1521
  %v1523 = vld [vmem:[%s888] sm:$0x7f]
  %v1524 = vld [vmem:[%s888 + $0x8] sm:$0x7f]
  %v1525 = vld [vmem:[%s888 + $0x10] sm:$0x7f]
  %v1526 = vld [vmem:[%s888 + $0x18] sm:$0x7f]
  %v1527 = vld [vmem:[%s888 + $0x20] sm:$0x7f]
  %v1528 = vld [vmem:[%s888 + $0x28] sm:$0x7f]
  %v1529 = vld [vmem:[%s888 + $0x30] sm:$0x7f]
  %v1531 = vperm.slane %v1522, 0
  %v1532 = vperm.slane %v1522, 1
  %v1533 = vperm.slane %v1522, 2
  %v1534 = vperm.slane %v1522, 3
  %v1535 = vperm.slane %v1522, 4
  %v1536 = vperm.slane %v1522, 5
  %v1537 = vperm.slane %v1522, 6
  %v1545 = vmul.f32 %v1523, %v1531
  %v1546 = vmul.f32 %v1524, %v1532
  %v1547 = vmul.f32 %v1525, %v1533
  %v1548 = vmul.f32 %v1526, %v1534
  %v1549 = vmul.f32 %v1527, %v1535
  %v1550 = vmul.f32 %v1528, %v1536
  %v1551 = vmul.f32 %v1529, %v1537
  %v1552 = vadd.f32 %v1513, %v1545
  %v1553 = vadd.f32 %v1514, %v1546
  %v1554 = vadd.f32 %v1515, %v1547
  %v1555 = vadd.f32 %v1516, %v1548
  %v1556 = vadd.f32 %v1517, %v1549
  %v1557 = vadd.f32 %v1518, %v1550
  %v1558 = vadd.f32 %v1519, %v1551
  %v1559 = vld [vmem:[%s515] ss:$8 sm:$0xf]
  %v1560 = vld [vmem:[%s515] ss:$8 sm:$0x70]
  %v1561 = vor.u32 %v1559, %v1560
  %v1562 = vld [vmem:[%s929] sm:$0x7f]
  %v1563 = vld [vmem:[%s929 + $0x8] sm:$0x7f]
  %v1564 = vld [vmem:[%s929 + $0x10] sm:$0x7f]
  %v1565 = vld [vmem:[%s929 + $0x18] sm:$0x7f]
  %v1566 = vld [vmem:[%s929 + $0x20] sm:$0x7f]
  %v1567 = vld [vmem:[%s929 + $0x28] sm:$0x7f]
  %v1568 = vld [vmem:[%s929 + $0x30] sm:$0x7f]
  %v1570 = vperm.slane %v1561, 0
  %v1571 = vperm.slane %v1561, 1
  %v1572 = vperm.slane %v1561, 2
  %v1573 = vperm.slane %v1561, 3
  %v1574 = vperm.slane %v1561, 4
  %v1575 = vperm.slane %v1561, 5
  %v1576 = vperm.slane %v1561, 6
  %v1584 = vmul.f32 %v1562, %v1570
  %v1585 = vmul.f32 %v1563, %v1571
  %v1586 = vmul.f32 %v1564, %v1572
  %v1587 = vmul.f32 %v1565, %v1573
  %v1588 = vmul.f32 %v1566, %v1574
  %v1589 = vmul.f32 %v1567, %v1575
  %v1590 = vmul.f32 %v1568, %v1576
  %v1591 = vadd.f32 %v1552, %v1584
  %v1592 = vadd.f32 %v1553, %v1585
  %v1593 = vadd.f32 %v1554, %v1586
  %v1594 = vadd.f32 %v1555, %v1587
  %v1595 = vadd.f32 %v1556, %v1588
  %v1596 = vadd.f32 %v1557, %v1589
  %v1597 = vadd.f32 %v1558, %v1590
  %v1598 = vld [vmem:[%s556] ss:$8 sm:$0xf]
  %v1599 = vld [vmem:[%s556] ss:$8 sm:$0x70]
  %v1600 = vor.u32 %v1598, %v1599
  %v1601 = vld [vmem:[%s970] sm:$0x7f]
  %v1602 = vld [vmem:[%s970 + $0x8] sm:$0x7f]
  %v1603 = vld [vmem:[%s970 + $0x10] sm:$0x7f]
  %v1604 = vld [vmem:[%s970 + $0x18] sm:$0x7f]
  %v1605 = vld [vmem:[%s970 + $0x20] sm:$0x7f]
  %v1606 = vld [vmem:[%s970 + $0x28] sm:$0x7f]
  %v1607 = vld [vmem:[%s970 + $0x30] sm:$0x7f]
  %v1609 = vperm.slane %v1600, 0
  %v1610 = vperm.slane %v1600, 1
  %v1611 = vperm.slane %v1600, 2
  %v1612 = vperm.slane %v1600, 3
  %v1613 = vperm.slane %v1600, 4
  %v1614 = vperm.slane %v1600, 5
  %v1615 = vperm.slane %v1600, 6
  %v1623 = vmul.f32 %v1601, %v1609
  %v1624 = vmul.f32 %v1602, %v1610
  %v1625 = vmul.f32 %v1603, %v1611
  %v1626 = vmul.f32 %v1604, %v1612
  %v1627 = vmul.f32 %v1605, %v1613
  %v1628 = vmul.f32 %v1606, %v1614
  %v1629 = vmul.f32 %v1607, %v1615
  %v1630 = vadd.f32 %v1591, %v1623
  %v1631 = vadd.f32 %v1592, %v1624
  %v1632 = vadd.f32 %v1593, %v1625
  %v1633 = vadd.f32 %v1594, %v1626
  %v1634 = vadd.f32 %v1595, %v1627
  %v1635 = vadd.f32 %v1596, %v1628
  %v1636 = vadd.f32 %v1597, %v1629
  %v1637 = vld [vmem:[%s597] ss:$8 sm:$0xf]
  %v1638 = vld [vmem:[%s597] ss:$8 sm:$0x70]
  %v1639 = vor.u32 %v1637, %v1638
  %v1640 = vld [vmem:[%s1011] sm:$0x7f]
  %v1641 = vld [vmem:[%s1011 + $0x8] sm:$0x7f]
  %v1642 = vld [vmem:[%s1011 + $0x10] sm:$0x7f]
  %v1643 = vld [vmem:[%s1011 + $0x18] sm:$0x7f]
  %v1644 = vld [vmem:[%s1011 + $0x20] sm:$0x7f]
  %v1645 = vld [vmem:[%s1011 + $0x28] sm:$0x7f]
  %v1646 = vld [vmem:[%s1011 + $0x30] sm:$0x7f]
  %v1648 = vperm.slane %v1639, 0
  %v1649 = vperm.slane %v1639, 1
  %v1650 = vperm.slane %v1639, 2
  %v1651 = vperm.slane %v1639, 3
  %v1652 = vperm.slane %v1639, 4
  %v1653 = vperm.slane %v1639, 5
  %v1654 = vperm.slane %v1639, 6
  %v1662 = vmul.f32 %v1640, %v1648
  %v1663 = vmul.f32 %v1641, %v1649
  %v1664 = vmul.f32 %v1642, %v1650
  %v1665 = vmul.f32 %v1643, %v1651
  %v1666 = vmul.f32 %v1644, %v1652
  %v1667 = vmul.f32 %v1645, %v1653
  %v1668 = vmul.f32 %v1646, %v1654
  %v1669 = vadd.f32 %v1630, %v1662
  %v1670 = vadd.f32 %v1631, %v1663
  %v1671 = vadd.f32 %v1632, %v1664
  %v1672 = vadd.f32 %v1633, %v1665
  %v1673 = vadd.f32 %v1634, %v1666
  %v1674 = vadd.f32 %v1635, %v1667
  %v1675 = vadd.f32 %v1636, %v1668
  %v1676 = vld [vmem:[%s638] ss:$8 sm:$0xf]
  %v1677 = vld [vmem:[%s638] ss:$8 sm:$0x70]
  %v1678 = vor.u32 %v1676, %v1677
  %s1679 = scalar_lea.vmem %s0, 280
  %v1680 = vld [vmem:[%s1679] sm:$0x7f]
  %v1681 = vld [vmem:[%s1679 + $0x8] sm:$0x7f]
  %v1682 = vld [vmem:[%s1679 + $0x10] sm:$0x7f]
  %v1683 = vld [vmem:[%s1679 + $0x18] sm:$0x7f]
  %v1684 = vld [vmem:[%s1679 + $0x20] sm:$0x7f]
  %v1685 = vld [vmem:[%s1679 + $0x28] sm:$0x7f]
  %v1686 = vld [vmem:[%s1679 + $0x30] sm:$0x7f]
  %v1688 = vperm.slane %v1678, 0
  %v1689 = vperm.slane %v1678, 1
  %v1690 = vperm.slane %v1678, 2
  %v1691 = vperm.slane %v1678, 3
  %v1692 = vperm.slane %v1678, 4
  %v1693 = vperm.slane %v1678, 5
  %v1694 = vperm.slane %v1678, 6
  %v1702 = vmul.f32 %v1680, %v1688
  %v1703 = vmul.f32 %v1681, %v1689
  %v1704 = vmul.f32 %v1682, %v1690
  %v1705 = vmul.f32 %v1683, %v1691
  %v1706 = vmul.f32 %v1684, %v1692
  %v1707 = vmul.f32 %v1685, %v1693
  %v1708 = vmul.f32 %v1686, %v1694
  %v1709 = vadd.f32 %v1669, %v1702
  %v1710 = vadd.f32 %v1670, %v1703
  %v1711 = vadd.f32 %v1671, %v1704
  %v1712 = vadd.f32 %v1672, %v1705
  %v1713 = vadd.f32 %v1673, %v1706
  %v1714 = vadd.f32 %v1674, %v1707
  %v1715 = vadd.f32 %v1675, %v1708
  %v1716 = vld [vmem:[%s679] ss:$8 sm:$0xf]
  %v1717 = vld [vmem:[%s679] ss:$8 sm:$0x70]
  %v1718 = vor.u32 %v1716, %v1717
  %s1719 = scalar_lea.vmem %s1, 280
  %v1720 = vld [vmem:[%s1719] sm:$0x7f]
  %v1721 = vld [vmem:[%s1719 + $0x8] sm:$0x7f]
  %v1722 = vld [vmem:[%s1719 + $0x10] sm:$0x7f]
  %v1723 = vld [vmem:[%s1719 + $0x18] sm:$0x7f]
  %v1724 = vld [vmem:[%s1719 + $0x20] sm:$0x7f]
  %v1725 = vld [vmem:[%s1719 + $0x28] sm:$0x7f]
  %v1726 = vld [vmem:[%s1719 + $0x30] sm:$0x7f]
  %v1728 = vperm.slane %v1718, 0
  %v1729 = vperm.slane %v1718, 1
  %v1730 = vperm.slane %v1718, 2
  %v1731 = vperm.slane %v1718, 3
  %v1732 = vperm.slane %v1718, 4
  %v1733 = vperm.slane %v1718, 5
  %v1734 = vperm.slane %v1718, 6
  %v1742 = vmul.f32 %v1720, %v1728
  %v1743 = vmul.f32 %v1721, %v1729
  %v1744 = vmul.f32 %v1722, %v1730
  %v1745 = vmul.f32 %v1723, %v1731
  %v1746 = vmul.f32 %v1724, %v1732
  %v1747 = vmul.f32 %v1725, %v1733
  %v1748 = vmul.f32 %v1726, %v1734
  %v1749 = vadd.f32 %v1709, %v1742
  %v1750 = vadd.f32 %v1710, %v1743
  %v1751 = vadd.f32 %v1711, %v1744
  %v1752 = vadd.f32 %v1712, %v1745
  %v1753 = vadd.f32 %v1713, %v1746
  %v1754 = vadd.f32 %v1714, %v1747
  %v1755 = vadd.f32 %v1715, %v1748
  %v1756 = vld [vmem:[%s720] ss:$8 sm:$0xf]
  %v1757 = vld [vmem:[%s720] ss:$8 sm:$0x70]
  %v1758 = vor.u32 %v1756, %v1757
  %s1759 = scalar_lea.vmem %s2, 280
  %v1760 = vld [vmem:[%s1759] sm:$0x7f]
  %v1761 = vld [vmem:[%s1759 + $0x8] sm:$0x7f]
  %v1762 = vld [vmem:[%s1759 + $0x10] sm:$0x7f]
  %v1763 = vld [vmem:[%s1759 + $0x18] sm:$0x7f]
  %v1764 = vld [vmem:[%s1759 + $0x20] sm:$0x7f]
  %v1765 = vld [vmem:[%s1759 + $0x28] sm:$0x7f]
  %v1766 = vld [vmem:[%s1759 + $0x30] sm:$0x7f]
  %v1768 = vperm.slane %v1758, 0
  %v1769 = vperm.slane %v1758, 1
  %v1770 = vperm.slane %v1758, 2
  %v1771 = vperm.slane %v1758, 3
  %v1772 = vperm.slane %v1758, 4
  %v1773 = vperm.slane %v1758, 5
  %v1774 = vperm.slane %v1758, 6
  %v1782 = vmul.f32 %v1760, %v1768
  %v1783 = vmul.f32 %v1761, %v1769
  %v1784 = vmul.f32 %v1762, %v1770
  %v1785 = vmul.f32 %v1763, %v1771
  %v1786 = vmul.f32 %v1764, %v1772
  %v1787 = vmul.f32 %v1765, %v1773
  %v1788 = vmul.f32 %v1766, %v1774
  %v1789 = vadd.f32 %v1749, %v1782
  %v1790 = vadd.f32 %v1750, %v1783
  %v1791 = vadd.f32 %v1751, %v1784
  %v1792 = vadd.f32 %v1752, %v1785
  %v1793 = vadd.f32 %v1753, %v1786
  %v1794 = vadd.f32 %v1754, %v1787
  %v1795 = vadd.f32 %v1755, %v1788
  %v1796 = vld [vmem:[%s761] ss:$8 sm:$0xf]
  %v1797 = vld [vmem:[%s761] ss:$8 sm:$0x70]
  %v1798 = vor.u32 %v1796, %v1797
  %s1799 = scalar_lea.vmem %s3, 280
  %v1800 = vld [vmem:[%s1799] sm:$0x7f]
  %v1801 = vld [vmem:[%s1799 + $0x8] sm:$0x7f]
  %v1802 = vld [vmem:[%s1799 + $0x10] sm:$0x7f]
  %v1803 = vld [vmem:[%s1799 + $0x18] sm:$0x7f]
  %v1804 = vld [vmem:[%s1799 + $0x20] sm:$0x7f]
  %v1805 = vld [vmem:[%s1799 + $0x28] sm:$0x7f]
  %v1806 = vld [vmem:[%s1799 + $0x30] sm:$0x7f]
  %v1808 = vperm.slane %v1798, 0
  %v1809 = vperm.slane %v1798, 1
  %v1810 = vperm.slane %v1798, 2
  %v1811 = vperm.slane %v1798, 3
  %v1812 = vperm.slane %v1798, 4
  %v1813 = vperm.slane %v1798, 5
  %v1814 = vperm.slane %v1798, 6
  %v1822 = vmul.f32 %v1800, %v1808
  %v1823 = vmul.f32 %v1801, %v1809
  %v1824 = vmul.f32 %v1802, %v1810
  %v1825 = vmul.f32 %v1803, %v1811
  %v1826 = vmul.f32 %v1804, %v1812
  %v1827 = vmul.f32 %v1805, %v1813
  %v1828 = vmul.f32 %v1806, %v1814
  %v1829 = vadd.f32 %v1789, %v1822
  %v1830 = vadd.f32 %v1790, %v1823
  %v1831 = vadd.f32 %v1791, %v1824
  %v1832 = vadd.f32 %v1792, %v1825
  %v1833 = vadd.f32 %v1793, %v1826
  %v1834 = vadd.f32 %v1794, %v1827
  %v1835 = vadd.f32 %v1795, %v1828
  %v1836 = vld [vmem:[%s802] ss:$8 sm:$0xf]
  %v1837 = vld [vmem:[%s802] ss:$8 sm:$0x70]
  %v1838 = vor.u32 %v1836, %v1837
  %s1839 = scalar_lea.vmem %s4, 280
  %v1840 = vld [vmem:[%s1839] sm:$0x7f]
  %v1841 = vld [vmem:[%s1839 + $0x8] sm:$0x7f]
  %v1842 = vld [vmem:[%s1839 + $0x10] sm:$0x7f]
  %v1843 = vld [vmem:[%s1839 + $0x18] sm:$0x7f]
  %v1844 = vld [vmem:[%s1839 + $0x20] sm:$0x7f]
  %v1845 = vld [vmem:[%s1839 + $0x28] sm:$0x7f]
  %v1846 = vld [vmem:[%s1839 + $0x30] sm:$0x7f]
  %v1848 = vperm.slane %v1838, 0
  %v1849 = vperm.slane %v1838, 1
  %v1850 = vperm.slane %v1838, 2
  %v1851 = vperm.slane %v1838, 3
  %v1852 = vperm.slane %v1838, 4
  %v1853 = vperm.slane %v1838, 5
  %v1854 = vperm.slane %v1838, 6
  %v1862 = vmul.f32 %v1840, %v1848
  %v1863 = vmul.f32 %v1841, %v1849
  %v1864 = vmul.f32 %v1842, %v1850
  %v1865 = vmul.f32 %v1843, %v1851
  %v1866 = vmul.f32 %v1844, %v1852
  %v1867 = vmul.f32 %v1845, %v1853
  %v1868 = vmul.f32 %v1846, %v1854
  %v1869 = vadd.f32 %v1829, %v1862
  %v1870 = vadd.f32 %v1830, %v1863
  %v1871 = vadd.f32 %v1831, %v1864
  %v1872 = vadd.f32 %v1832, %v1865
  %v1873 = vadd.f32 %v1833, %v1866
  %v1874 = vadd.f32 %v1834, %v1867
  %v1875 = vadd.f32 %v1835, %v1868
  %v1876 = vld [vmem:[%s843] ss:$8 sm:$0xf]
  %v1877 = vld [vmem:[%s843] ss:$8 sm:$0x70]
  %v1878 = vor.u32 %v1876, %v1877
  %s1879 = scalar_lea.vmem %s0, 336
  %v1880 = vld [vmem:[%s1879] sm:$0x7f]
  %v1881 = vld [vmem:[%s1879 + $0x8] sm:$0x7f]
  %v1882 = vld [vmem:[%s1879 + $0x10] sm:$0x7f]
  %v1883 = vld [vmem:[%s1879 + $0x18] sm:$0x7f]
  %v1884 = vld [vmem:[%s1879 + $0x20] sm:$0x7f]
  %v1885 = vld [vmem:[%s1879 + $0x28] sm:$0x7f]
  %v1886 = vld [vmem:[%s1879 + $0x30] sm:$0x7f]
  %v1888 = vperm.slane %v1878, 0
  %v1889 = vperm.slane %v1878, 1
  %v1890 = vperm.slane %v1878, 2
  %v1891 = vperm.slane %v1878, 3
  %v1892 = vperm.slane %v1878, 4
  %v1893 = vperm.slane %v1878, 5
  %v1894 = vperm.slane %v1878, 6
  %v1902 = vmul.f32 %v1880, %v1888
  %v1903 = vmul.f32 %v1881, %v1889
  %v1904 = vmul.f32 %v1882, %v1890
  %v1905 = vmul.f32 %v1883, %v1891
  %v1906 = vmul.f32 %v1884, %v1892
  %v1907 = vmul.f32 %v1885, %v1893
  %v1908 = vmul.f32 %v1886, %v1894
  %v1909 = vadd.f32 %v1869, %v1902
  %v1910 = vadd.f32 %v1870, %v1903
  %v1911 = vadd.f32 %v1871, %v1904
  %v1912 = vadd.f32 %v1872, %v1905
  %v1913 = vadd.f32 %v1873, %v1906
  %v1914 = vadd.f32 %v1874, %v1907
  %v1915 = vadd.f32 %v1875, %v1908
  %v1916 = vld [vmem:[%s884] ss:$8 sm:$0xf]
  %v1917 = vld [vmem:[%s884] ss:$8 sm:$0x70]
  %v1918 = vor.u32 %v1916, %v1917
  %s1919 = scalar_lea.vmem %s1, 336
  %v1920 = vld [vmem:[%s1919] sm:$0x7f]
  %v1921 = vld [vmem:[%s1919 + $0x8] sm:$0x7f]
  %v1922 = vld [vmem:[%s1919 + $0x10] sm:$0x7f]
  %v1923 = vld [vmem:[%s1919 + $0x18] sm:$0x7f]
  %v1924 = vld [vmem:[%s1919 + $0x20] sm:$0x7f]
  %v1925 = vld [vmem:[%s1919 + $0x28] sm:$0x7f]
  %v1926 = vld [vmem:[%s1919 + $0x30] sm:$0x7f]
  %v1928 = vperm.slane %v1918, 0
  %v1929 = vperm.slane %v1918, 1
  %v1930 = vperm.slane %v1918, 2
  %v1931 = vperm.slane %v1918, 3
  %v1932 = vperm.slane %v1918, 4
  %v1933 = vperm.slane %v1918, 5
  %v1934 = vperm.slane %v1918, 6
  %v1942 = vmul.f32 %v1920, %v1928
  %v1943 = vmul.f32 %v1921, %v1929
  %v1944 = vmul.f32 %v1922, %v1930
  %v1945 = vmul.f32 %v1923, %v1931
  %v1946 = vmul.f32 %v1924, %v1932
  %v1947 = vmul.f32 %v1925, %v1933
  %v1948 = vmul.f32 %v1926, %v1934
  %v1949 = vadd.f32 %v1909, %v1942
  %v1950 = vadd.f32 %v1910, %v1943
  %v1951 = vadd.f32 %v1911, %v1944
  %v1952 = vadd.f32 %v1912, %v1945
  %v1953 = vadd.f32 %v1913, %v1946
  %v1954 = vadd.f32 %v1914, %v1947
  %v1955 = vadd.f32 %v1915, %v1948
  %v1956 = vld [vmem:[%s925] ss:$8 sm:$0xf]
  %v1957 = vld [vmem:[%s925] ss:$8 sm:$0x70]
  %v1958 = vor.u32 %v1956, %v1957
  %s1959 = scalar_lea.vmem %s2, 336
  %v1960 = vld [vmem:[%s1959] sm:$0x7f]
  %v1961 = vld [vmem:[%s1959 + $0x8] sm:$0x7f]
  %v1962 = vld [vmem:[%s1959 + $0x10] sm:$0x7f]
  %v1963 = vld [vmem:[%s1959 + $0x18] sm:$0x7f]
  %v1964 = vld [vmem:[%s1959 + $0x20] sm:$0x7f]
  %v1965 = vld [vmem:[%s1959 + $0x28] sm:$0x7f]
  %v1966 = vld [vmem:[%s1959 + $0x30] sm:$0x7f]
  %v1968 = vperm.slane %v1958, 0
  %v1969 = vperm.slane %v1958, 1
  %v1970 = vperm.slane %v1958, 2
  %v1971 = vperm.slane %v1958, 3
  %v1972 = vperm.slane %v1958, 4
  %v1973 = vperm.slane %v1958, 5
  %v1974 = vperm.slane %v1958, 6
  %v1982 = vmul.f32 %v1960, %v1968
  %v1983 = vmul.f32 %v1961, %v1969
  %v1984 = vmul.f32 %v1962, %v1970
  %v1985 = vmul.f32 %v1963, %v1971
  %v1986 = vmul.f32 %v1964, %v1972
  %v1987 = vmul.f32 %v1965, %v1973
  %v1988 = vmul.f32 %v1966, %v1974
  %v1989 = vadd.f32 %v1949, %v1982
  %v1990 = vadd.f32 %v1950, %v1983
  %v1991 = vadd.f32 %v1951, %v1984
  %v1992 = vadd.f32 %v1952, %v1985
  %v1993 = vadd.f32 %v1953, %v1986
  %v1994 = vadd.f32 %v1954, %v1987
  %v1995 = vadd.f32 %v1955, %v1988
  %v1996 = vld [vmem:[%s966] ss:$8 sm:$0xf]
  %v1997 = vld [vmem:[%s966] ss:$8 sm:$0x70]
  %v1998 = vor.u32 %v1996, %v1997
  %s1999 = scalar_lea.vmem %s3, 336
  %v2000 = vld [vmem:[%s1999] sm:$0x7f]
  %v2001 = vld [vmem:[%s1999 + $0x8] sm:$0x7f]
  %v2002 = vld [vmem:[%s1999 + $0x10] sm:$0x7f]
  %v2003 = vld [vmem:[%s1999 + $0x18] sm:$0x7f]
  %v2004 = vld [vmem:[%s1999 + $0x20] sm:$0x7f]
  %v2005 = vld [vmem:[%s1999 + $0x28] sm:$0x7f]
  %v2006 = vld [vmem:[%s1999 + $0x30] sm:$0x7f]
  %v2008 = vperm.slane %v1998, 0
  %v2009 = vperm.slane %v1998, 1
  %v2010 = vperm.slane %v1998, 2
  %v2011 = vperm.slane %v1998, 3
  %v2012 = vperm.slane %v1998, 4
  %v2013 = vperm.slane %v1998, 5
  %v2014 = vperm.slane %v1998, 6
  %v2022 = vmul.f32 %v2000, %v2008
  %v2023 = vmul.f32 %v2001, %v2009
  %v2024 = vmul.f32 %v2002, %v2010
  %v2025 = vmul.f32 %v2003, %v2011
  %v2026 = vmul.f32 %v2004, %v2012
  %v2027 = vmul.f32 %v2005, %v2013
  %v2028 = vmul.f32 %v2006, %v2014
  %v2029 = vadd.f32 %v1989, %v2022
  %v2030 = vadd.f32 %v1990, %v2023
  %v2031 = vadd.f32 %v1991, %v2024
  %v2032 = vadd.f32 %v1992, %v2025
  %v2033 = vadd.f32 %v1993, %v2026
  %v2034 = vadd.f32 %v1994, %v2027
  %v2035 = vadd.f32 %v1995, %v2028
  %v2036 = vld [vmem:[%s1007] ss:$8 sm:$0xf]
  %v2037 = vld [vmem:[%s1007] ss:$8 sm:$0x70]
  %v2038 = vor.u32 %v2036, %v2037
  %s2039 = scalar_lea.vmem %s4, 336
  %v2040 = vld [vmem:[%s2039] sm:$0x7f]
  %v2041 = vld [vmem:[%s2039 + $0x8] sm:$0x7f]
  %v2042 = vld [vmem:[%s2039 + $0x10] sm:$0x7f]
  %v2043 = vld [vmem:[%s2039 + $0x18] sm:$0x7f]
  %v2044 = vld [vmem:[%s2039 + $0x20] sm:$0x7f]
  %v2045 = vld [vmem:[%s2039 + $0x28] sm:$0x7f]
  %v2046 = vld [vmem:[%s2039 + $0x30] sm:$0x7f]
  %v2048 = vperm.slane %v2038, 0
  %v2049 = vperm.slane %v2038, 1
  %v2050 = vperm.slane %v2038, 2
  %v2051 = vperm.slane %v2038, 3
  %v2052 = vperm.slane %v2038, 4
  %v2053 = vperm.slane %v2038, 5
  %v2054 = vperm.slane %v2038, 6
  %v2062 = vmul.f32 %v2040, %v2048
  %v2063 = vmul.f32 %v2041, %v2049
  %v2064 = vmul.f32 %v2042, %v2050
  %v2065 = vmul.f32 %v2043, %v2051
  %v2066 = vmul.f32 %v2044, %v2052
  %v2067 = vmul.f32 %v2045, %v2053
  %v2068 = vmul.f32 %v2046, %v2054
  %v2069 = vadd.f32 %v2029, %v2062
  %v2070 = vadd.f32 %v2030, %v2063
  %v2071 = vadd.f32 %v2031, %v2064
  %v2072 = vadd.f32 %v2032, %v2065
  %v2073 = vadd.f32 %v2033, %v2066
  %v2074 = vadd.f32 %v2034, %v2067
  %v2075 = vadd.f32 %v2035, %v2068
  %s2076 = scalar_lea.vmem %s8, 56
  %2077 = vst [vmem:[%s2076] sm:$0x7f] %v2069
  %2078 = vst [vmem:[%s2076 + $0x8] sm:$0x7f] %v2070
  %2079 = vst [vmem:[%s2076 + $0x10] sm:$0x7f] %v2071
  %2080 = vst [vmem:[%s2076 + $0x18] sm:$0x7f] %v2072
  %2081 = vst [vmem:[%s2076 + $0x20] sm:$0x7f] %v2073
  %2082 = vst [vmem:[%s2076 + $0x28] sm:$0x7f] %v2074
  %2083 = vst.msk [vmem:[%s2076 + $0x30] sm:$0x7f] %vm1054, %v2075
  %v2084 = vadd.f32 %v2069, 0.0
  %v2085 = vadd.f32 %v2070, 0.0
  %v2086 = vadd.f32 %v2071, 0.0
  %v2087 = vadd.f32 %v2072, 0.0
  %v2088 = vadd.f32 %v2073, 0.0
  %v2089 = vadd.f32 %v2074, 0.0
  %v2090 = vadd.f32 %v2075, 0.0
  %v2091 = vadd.f32 %v1063, %v2084
  %v2092 = vadd.f32 %v1064, %v2085
  %v2093 = vadd.f32 %v1065, %v2086
  %v2094 = vadd.f32 %v1066, %v2087
  %v2095 = vadd.f32 %v1067, %v2088
  %v2096 = vadd.f32 %v1068, %v2089
  %v2097 = vadd.f32 %v1069, %v2090
  %v2098 = vmul.f32 %v2069, %v2069
  %v2099 = vmul.f32 %v2070, %v2070
  %v2100 = vmul.f32 %v2071, %v2071
  %v2101 = vmul.f32 %v2072, %v2072
  %v2102 = vmul.f32 %v2073, %v2073
  %v2103 = vmul.f32 %v2074, %v2074
  %v2104 = vmul.f32 %v2075, %v2075
  %v2105 = vadd.f32 %v2098, 0.0
  %v2106 = vadd.f32 %v2099, 0.0
  %v2107 = vadd.f32 %v2100, 0.0
  %v2108 = vadd.f32 %v2101, 0.0
  %v2109 = vadd.f32 %v2102, 0.0
  %v2110 = vadd.f32 %v2103, 0.0
  %v2111 = vadd.f32 %v2104, 0.0
  %v2112 = vadd.f32 %v1084, %v2105
  %v2113 = vadd.f32 %v1085, %v2106
  %v2114 = vadd.f32 %v1086, %v2107
  %v2115 = vadd.f32 %v1087, %v2108
  %v2116 = vadd.f32 %v1088, %v2109
  %v2117 = vadd.f32 %v1089, %v2110
  %v2118 = vadd.f32 %v1090, %v2111
  %v2119 = vld [vmem:[%s5] ss:$8 sm:$0xf]
  %v2120 = vld [vmem:[%s5] ss:$8 sm:$0x70]
  %v2121 = vor.u32 %v2119, %v2120
  %v2122 = vld [vmem:[%s847] sm:$0x7f]
  %v2123 = vld [vmem:[%s847 + $0x8] sm:$0x7f]
  %v2124 = vld [vmem:[%s847 + $0x10] sm:$0x7f]
  %v2125 = vld [vmem:[%s847 + $0x18] sm:$0x7f]
  %v2126 = vld [vmem:[%s847 + $0x20] sm:$0x7f]
  %v2127 = vld [vmem:[%s847 + $0x28] sm:$0x7f]
  %v2128 = vld [vmem:[%s847 + $0x30] sm:$0x7f]
  %v2130 = vperm.slane %v2121, 0
  %v2131 = vperm.slane %v2121, 1
  %v2132 = vperm.slane %v2121, 2
  %v2133 = vperm.slane %v2121, 3
  %v2134 = vperm.slane %v2121, 4
  %v2135 = vperm.slane %v2121, 5
  %v2136 = vperm.slane %v2121, 6
  %v2144 = vmul.f32 %v2122, %v2130
  %v2145 = vmul.f32 %v2123, %v2131
  %v2146 = vmul.f32 %v2124, %v2132
  %v2147 = vmul.f32 %v2125, %v2133
  %v2148 = vmul.f32 %v2126, %v2134
  %v2149 = vmul.f32 %v2127, %v2135
  %v2150 = vmul.f32 %v2128, %v2136
  %v2151 = vadd.f32 %v2144, 0.0
  %v2152 = vadd.f32 %v2145, 0.0
  %v2153 = vadd.f32 %v2146, 0.0
  %v2154 = vadd.f32 %v2147, 0.0
  %v2155 = vadd.f32 %v2148, 0.0
  %v2156 = vadd.f32 %v2149, 0.0
  %v2157 = vadd.f32 %v2150, 0.0
  %v2158 = vld [vmem:[%s68] ss:$8 sm:$0xf]
  %v2159 = vld [vmem:[%s68] ss:$8 sm:$0x70]
  %v2160 = vor.u32 %v2158, %v2159
  %v2161 = vld [vmem:[%s888] sm:$0x7f]
  %v2162 = vld [vmem:[%s888 + $0x8] sm:$0x7f]
  %v2163 = vld [vmem:[%s888 + $0x10] sm:$0x7f]
  %v2164 = vld [vmem:[%s888 + $0x18] sm:$0x7f]
  %v2165 = vld [vmem:[%s888 + $0x20] sm:$0x7f]
  %v2166 = vld [vmem:[%s888 + $0x28] sm:$0x7f]
  %v2167 = vld [vmem:[%s888 + $0x30] sm:$0x7f]
  %v2169 = vperm.slane %v2160, 0
  %v2170 = vperm.slane %v2160, 1
  %v2171 = vperm.slane %v2160, 2
  %v2172 = vperm.slane %v2160, 3
  %v2173 = vperm.slane %v2160, 4
  %v2174 = vperm.slane %v2160, 5
  %v2175 = vperm.slane %v2160, 6
  %v2183 = vmul.f32 %v2161, %v2169
  %v2184 = vmul.f32 %v2162, %v2170
  %v2185 = vmul.f32 %v2163, %v2171
  %v2186 = vmul.f32 %v2164, %v2172
  %v2187 = vmul.f32 %v2165, %v2173
  %v2188 = vmul.f32 %v2166, %v2174
  %v2189 = vmul.f32 %v2167, %v2175
  %v2190 = vadd.f32 %v2151, %v2183
  %v2191 = vadd.f32 %v2152, %v2184
  %v2192 = vadd.f32 %v2153, %v2185
  %v2193 = vadd.f32 %v2154, %v2186
  %v2194 = vadd.f32 %v2155, %v2187
  %v2195 = vadd.f32 %v2156, %v2188
  %v2196 = vadd.f32 %v2157, %v2189
  %v2197 = vld [vmem:[%s108] ss:$8 sm:$0xf]
  %v2198 = vld [vmem:[%s108] ss:$8 sm:$0x70]
  %v2199 = vor.u32 %v2197, %v2198
  %v2200 = vld [vmem:[%s929] sm:$0x7f]
  %v2201 = vld [vmem:[%s929 + $0x8] sm:$0x7f]
  %v2202 = vld [vmem:[%s929 + $0x10] sm:$0x7f]
  %v2203 = vld [vmem:[%s929 + $0x18] sm:$0x7f]
  %v2204 = vld [vmem:[%s929 + $0x20] sm:$0x7f]
  %v2205 = vld [vmem:[%s929 + $0x28] sm:$0x7f]
  %v2206 = vld [vmem:[%s929 + $0x30] sm:$0x7f]
  %v2208 = vperm.slane %v2199, 0
  %v2209 = vperm.slane %v2199, 1
  %v2210 = vperm.slane %v2199, 2
  %v2211 = vperm.slane %v2199, 3
  %v2212 = vperm.slane %v2199, 4
  %v2213 = vperm.slane %v2199, 5
  %v2214 = vperm.slane %v2199, 6
  %v2222 = vmul.f32 %v2200, %v2208
  %v2223 = vmul.f32 %v2201, %v2209
  %v2224 = vmul.f32 %v2202, %v2210
  %v2225 = vmul.f32 %v2203, %v2211
  %v2226 = vmul.f32 %v2204, %v2212
  %v2227 = vmul.f32 %v2205, %v2213
  %v2228 = vmul.f32 %v2206, %v2214
  %v2229 = vadd.f32 %v2190, %v2222
  %v2230 = vadd.f32 %v2191, %v2223
  %v2231 = vadd.f32 %v2192, %v2224
  %v2232 = vadd.f32 %v2193, %v2225
  %v2233 = vadd.f32 %v2194, %v2226
  %v2234 = vadd.f32 %v2195, %v2227
  %v2235 = vadd.f32 %v2196, %v2228
  %v2236 = vld [vmem:[%s148] ss:$8 sm:$0xf]
  %v2237 = vld [vmem:[%s148] ss:$8 sm:$0x70]
  %v2238 = vor.u32 %v2236, %v2237
  %v2239 = vld [vmem:[%s970] sm:$0x7f]
  %v2240 = vld [vmem:[%s970 + $0x8] sm:$0x7f]
  %v2241 = vld [vmem:[%s970 + $0x10] sm:$0x7f]
  %v2242 = vld [vmem:[%s970 + $0x18] sm:$0x7f]
  %v2243 = vld [vmem:[%s970 + $0x20] sm:$0x7f]
  %v2244 = vld [vmem:[%s970 + $0x28] sm:$0x7f]
  %v2245 = vld [vmem:[%s970 + $0x30] sm:$0x7f]
  %v2247 = vperm.slane %v2238, 0
  %v2248 = vperm.slane %v2238, 1
  %v2249 = vperm.slane %v2238, 2
  %v2250 = vperm.slane %v2238, 3
  %v2251 = vperm.slane %v2238, 4
  %v2252 = vperm.slane %v2238, 5
  %v2253 = vperm.slane %v2238, 6
  %v2261 = vmul.f32 %v2239, %v2247
  %v2262 = vmul.f32 %v2240, %v2248
  %v2263 = vmul.f32 %v2241, %v2249
  %v2264 = vmul.f32 %v2242, %v2250
  %v2265 = vmul.f32 %v2243, %v2251
  %v2266 = vmul.f32 %v2244, %v2252
  %v2267 = vmul.f32 %v2245, %v2253
  %v2268 = vadd.f32 %v2229, %v2261
  %v2269 = vadd.f32 %v2230, %v2262
  %v2270 = vadd.f32 %v2231, %v2263
  %v2271 = vadd.f32 %v2232, %v2264
  %v2272 = vadd.f32 %v2233, %v2265
  %v2273 = vadd.f32 %v2234, %v2266
  %v2274 = vadd.f32 %v2235, %v2267
  %v2275 = vld [vmem:[%s188] ss:$8 sm:$0xf]
  %v2276 = vld [vmem:[%s188] ss:$8 sm:$0x70]
  %v2277 = vor.u32 %v2275, %v2276
  %v2278 = vld [vmem:[%s1011] sm:$0x7f]
  %v2279 = vld [vmem:[%s1011 + $0x8] sm:$0x7f]
  %v2280 = vld [vmem:[%s1011 + $0x10] sm:$0x7f]
  %v2281 = vld [vmem:[%s1011 + $0x18] sm:$0x7f]
  %v2282 = vld [vmem:[%s1011 + $0x20] sm:$0x7f]
  %v2283 = vld [vmem:[%s1011 + $0x28] sm:$0x7f]
  %v2284 = vld [vmem:[%s1011 + $0x30] sm:$0x7f]
  %v2286 = vperm.slane %v2277, 0
  %v2287 = vperm.slane %v2277, 1
  %v2288 = vperm.slane %v2277, 2
  %v2289 = vperm.slane %v2277, 3
  %v2290 = vperm.slane %v2277, 4
  %v2291 = vperm.slane %v2277, 5
  %v2292 = vperm.slane %v2277, 6
  %v2300 = vmul.f32 %v2278, %v2286
  %v2301 = vmul.f32 %v2279, %v2287
  %v2302 = vmul.f32 %v2280, %v2288
  %v2303 = vmul.f32 %v2281, %v2289
  %v2304 = vmul.f32 %v2282, %v2290
  %v2305 = vmul.f32 %v2283, %v2291
  %v2306 = vmul.f32 %v2284, %v2292
  %v2307 = vadd.f32 %v2268, %v2300
  %v2308 = vadd.f32 %v2269, %v2301
  %v2309 = vadd.f32 %v2270, %v2302
  %v2310 = vadd.f32 %v2271, %v2303
  %v2311 = vadd.f32 %v2272, %v2304
  %v2312 = vadd.f32 %v2273, %v2305
  %v2313 = vadd.f32 %v2274, %v2306
  %v2314 = vld [vmem:[%s228] ss:$8 sm:$0xf]
  %v2315 = vld [vmem:[%s228] ss:$8 sm:$0x70]
  %v2316 = vor.u32 %v2314, %v2315
  %v2317 = vld [vmem:[%s1679] sm:$0x7f]
  %v2318 = vld [vmem:[%s1679 + $0x8] sm:$0x7f]
  %v2319 = vld [vmem:[%s1679 + $0x10] sm:$0x7f]
  %v2320 = vld [vmem:[%s1679 + $0x18] sm:$0x7f]
  %v2321 = vld [vmem:[%s1679 + $0x20] sm:$0x7f]
  %v2322 = vld [vmem:[%s1679 + $0x28] sm:$0x7f]
  %v2323 = vld [vmem:[%s1679 + $0x30] sm:$0x7f]
  %v2325 = vperm.slane %v2316, 0
  %v2326 = vperm.slane %v2316, 1
  %v2327 = vperm.slane %v2316, 2
  %v2328 = vperm.slane %v2316, 3
  %v2329 = vperm.slane %v2316, 4
  %v2330 = vperm.slane %v2316, 5
  %v2331 = vperm.slane %v2316, 6
  %v2339 = vmul.f32 %v2317, %v2325
  %v2340 = vmul.f32 %v2318, %v2326
  %v2341 = vmul.f32 %v2319, %v2327
  %v2342 = vmul.f32 %v2320, %v2328
  %v2343 = vmul.f32 %v2321, %v2329
  %v2344 = vmul.f32 %v2322, %v2330
  %v2345 = vmul.f32 %v2323, %v2331
  %v2346 = vadd.f32 %v2307, %v2339
  %v2347 = vadd.f32 %v2308, %v2340
  %v2348 = vadd.f32 %v2309, %v2341
  %v2349 = vadd.f32 %v2310, %v2342
  %v2350 = vadd.f32 %v2311, %v2343
  %v2351 = vadd.f32 %v2312, %v2344
  %v2352 = vadd.f32 %v2313, %v2345
  %v2353 = vld [vmem:[%s269] ss:$8 sm:$0xf]
  %v2354 = vld [vmem:[%s269] ss:$8 sm:$0x70]
  %v2355 = vor.u32 %v2353, %v2354
  %v2356 = vld [vmem:[%s1719] sm:$0x7f]
  %v2357 = vld [vmem:[%s1719 + $0x8] sm:$0x7f]
  %v2358 = vld [vmem:[%s1719 + $0x10] sm:$0x7f]
  %v2359 = vld [vmem:[%s1719 + $0x18] sm:$0x7f]
  %v2360 = vld [vmem:[%s1719 + $0x20] sm:$0x7f]
  %v2361 = vld [vmem:[%s1719 + $0x28] sm:$0x7f]
  %v2362 = vld [vmem:[%s1719 + $0x30] sm:$0x7f]
  %v2364 = vperm.slane %v2355, 0
  %v2365 = vperm.slane %v2355, 1
  %v2366 = vperm.slane %v2355, 2
  %v2367 = vperm.slane %v2355, 3
  %v2368 = vperm.slane %v2355, 4
  %v2369 = vperm.slane %v2355, 5
  %v2370 = vperm.slane %v2355, 6
  %v2378 = vmul.f32 %v2356, %v2364
  %v2379 = vmul.f32 %v2357, %v2365
  %v2380 = vmul.f32 %v2358, %v2366
  %v2381 = vmul.f32 %v2359, %v2367
  %v2382 = vmul.f32 %v2360, %v2368
  %v2383 = vmul.f32 %v2361, %v2369
  %v2384 = vmul.f32 %v2362, %v2370
  %v2385 = vadd.f32 %v2346, %v2378
  %v2386 = vadd.f32 %v2347, %v2379
  %v2387 = vadd.f32 %v2348, %v2380
  %v2388 = vadd.f32 %v2349, %v2381
  %v2389 = vadd.f32 %v2350, %v2382
  %v2390 = vadd.f32 %v2351, %v2383
  %v2391 = vadd.f32 %v2352, %v2384
  %v2392 = vld [vmem:[%s310] ss:$8 sm:$0xf]
  %v2393 = vld [vmem:[%s310] ss:$8 sm:$0x70]
  %v2394 = vor.u32 %v2392, %v2393
  %v2395 = vld [vmem:[%s1759] sm:$0x7f]
  %v2396 = vld [vmem:[%s1759 + $0x8] sm:$0x7f]
  %v2397 = vld [vmem:[%s1759 + $0x10] sm:$0x7f]
  %v2398 = vld [vmem:[%s1759 + $0x18] sm:$0x7f]
  %v2399 = vld [vmem:[%s1759 + $0x20] sm:$0x7f]
  %v2400 = vld [vmem:[%s1759 + $0x28] sm:$0x7f]
  %v2401 = vld [vmem:[%s1759 + $0x30] sm:$0x7f]
  %v2403 = vperm.slane %v2394, 0
  %v2404 = vperm.slane %v2394, 1
  %v2405 = vperm.slane %v2394, 2
  %v2406 = vperm.slane %v2394, 3
  %v2407 = vperm.slane %v2394, 4
  %v2408 = vperm.slane %v2394, 5
  %v2409 = vperm.slane %v2394, 6
  %v2417 = vmul.f32 %v2395, %v2403
  %v2418 = vmul.f32 %v2396, %v2404
  %v2419 = vmul.f32 %v2397, %v2405
  %v2420 = vmul.f32 %v2398, %v2406
  %v2421 = vmul.f32 %v2399, %v2407
  %v2422 = vmul.f32 %v2400, %v2408
  %v2423 = vmul.f32 %v2401, %v2409
  %v2424 = vadd.f32 %v2385, %v2417
  %v2425 = vadd.f32 %v2386, %v2418
  %v2426 = vadd.f32 %v2387, %v2419
  %v2427 = vadd.f32 %v2388, %v2420
  %v2428 = vadd.f32 %v2389, %v2421
  %v2429 = vadd.f32 %v2390, %v2422
  %v2430 = vadd.f32 %v2391, %v2423
  %v2431 = vld [vmem:[%s351] ss:$8 sm:$0xf]
  %v2432 = vld [vmem:[%s351] ss:$8 sm:$0x70]
  %v2433 = vor.u32 %v2431, %v2432
  %v2434 = vld [vmem:[%s1799] sm:$0x7f]
  %v2435 = vld [vmem:[%s1799 + $0x8] sm:$0x7f]
  %v2436 = vld [vmem:[%s1799 + $0x10] sm:$0x7f]
  %v2437 = vld [vmem:[%s1799 + $0x18] sm:$0x7f]
  %v2438 = vld [vmem:[%s1799 + $0x20] sm:$0x7f]
  %v2439 = vld [vmem:[%s1799 + $0x28] sm:$0x7f]
  %v2440 = vld [vmem:[%s1799 + $0x30] sm:$0x7f]
  %v2442 = vperm.slane %v2433, 0
  %v2443 = vperm.slane %v2433, 1
  %v2444 = vperm.slane %v2433, 2
  %v2445 = vperm.slane %v2433, 3
  %v2446 = vperm.slane %v2433, 4
  %v2447 = vperm.slane %v2433, 5
  %v2448 = vperm.slane %v2433, 6
  %v2456 = vmul.f32 %v2434, %v2442
  %v2457 = vmul.f32 %v2435, %v2443
  %v2458 = vmul.f32 %v2436, %v2444
  %v2459 = vmul.f32 %v2437, %v2445
  %v2460 = vmul.f32 %v2438, %v2446
  %v2461 = vmul.f32 %v2439, %v2447
  %v2462 = vmul.f32 %v2440, %v2448
  %v2463 = vadd.f32 %v2424, %v2456
  %v2464 = vadd.f32 %v2425, %v2457
  %v2465 = vadd.f32 %v2426, %v2458
  %v2466 = vadd.f32 %v2427, %v2459
  %v2467 = vadd.f32 %v2428, %v2460
  %v2468 = vadd.f32 %v2429, %v2461
  %v2469 = vadd.f32 %v2430, %v2462
  %v2470 = vld [vmem:[%s392] ss:$8 sm:$0xf]
  %v2471 = vld [vmem:[%s392] ss:$8 sm:$0x70]
  %v2472 = vor.u32 %v2470, %v2471
  %v2473 = vld [vmem:[%s1839] sm:$0x7f]
  %v2474 = vld [vmem:[%s1839 + $0x8] sm:$0x7f]
  %v2475 = vld [vmem:[%s1839 + $0x10] sm:$0x7f]
  %v2476 = vld [vmem:[%s1839 + $0x18] sm:$0x7f]
  %v2477 = vld [vmem:[%s1839 + $0x20] sm:$0x7f]
  %v2478 = vld [vmem:[%s1839 + $0x28] sm:$0x7f]
  %v2479 = vld [vmem:[%s1839 + $0x30] sm:$0x7f]
  %v2481 = vperm.slane %v2472, 0
  %v2482 = vperm.slane %v2472, 1
  %v2483 = vperm.slane %v2472, 2
  %v2484 = vperm.slane %v2472, 3
  %v2485 = vperm.slane %v2472, 4
  %v2486 = vperm.slane %v2472, 5
  %v2487 = vperm.slane %v2472, 6
  %v2495 = vmul.f32 %v2473, %v2481
  %v2496 = vmul.f32 %v2474, %v2482
  %v2497 = vmul.f32 %v2475, %v2483
  %v2498 = vmul.f32 %v2476, %v2484
  %v2499 = vmul.f32 %v2477, %v2485
  %v2500 = vmul.f32 %v2478, %v2486
  %v2501 = vmul.f32 %v2479, %v2487
  %v2502 = vadd.f32 %v2463, %v2495
  %v2503 = vadd.f32 %v2464, %v2496
  %v2504 = vadd.f32 %v2465, %v2497
  %v2505 = vadd.f32 %v2466, %v2498
  %v2506 = vadd.f32 %v2467, %v2499
  %v2507 = vadd.f32 %v2468, %v2500
  %v2508 = vadd.f32 %v2469, %v2501
  %v2509 = vld [vmem:[%s433] ss:$8 sm:$0xf]
  %v2510 = vld [vmem:[%s433] ss:$8 sm:$0x70]
  %v2511 = vor.u32 %v2509, %v2510
  %v2512 = vld [vmem:[%s1879] sm:$0x7f]
  %v2513 = vld [vmem:[%s1879 + $0x8] sm:$0x7f]
  %v2514 = vld [vmem:[%s1879 + $0x10] sm:$0x7f]
  %v2515 = vld [vmem:[%s1879 + $0x18] sm:$0x7f]
  %v2516 = vld [vmem:[%s1879 + $0x20] sm:$0x7f]
  %v2517 = vld [vmem:[%s1879 + $0x28] sm:$0x7f]
  %v2518 = vld [vmem:[%s1879 + $0x30] sm:$0x7f]
  %v2520 = vperm.slane %v2511, 0
  %v2521 = vperm.slane %v2511, 1
  %v2522 = vperm.slane %v2511, 2
  %v2523 = vperm.slane %v2511, 3
  %v2524 = vperm.slane %v2511, 4
  %v2525 = vperm.slane %v2511, 5
  %v2526 = vperm.slane %v2511, 6
  %v2534 = vmul.f32 %v2512, %v2520
  %v2535 = vmul.f32 %v2513, %v2521
  %v2536 = vmul.f32 %v2514, %v2522
  %v2537 = vmul.f32 %v2515, %v2523
  %v2538 = vmul.f32 %v2516, %v2524
  %v2539 = vmul.f32 %v2517, %v2525
  %v2540 = vmul.f32 %v2518, %v2526
  %v2541 = vadd.f32 %v2502, %v2534
  %v2542 = vadd.f32 %v2503, %v2535
  %v2543 = vadd.f32 %v2504, %v2536
  %v2544 = vadd.f32 %v2505, %v2537
  %v2545 = vadd.f32 %v2506, %v2538
  %v2546 = vadd.f32 %v2507, %v2539
  %v2547 = vadd.f32 %v2508, %v2540
  %v2548 = vld [vmem:[%s474] ss:$8 sm:$0xf]
  %v2549 = vld [vmem:[%s474] ss:$8 sm:$0x70]
  %v2550 = vor.u32 %v2548, %v2549
  %v2551 = vld [vmem:[%s1919] sm:$0x7f]
  %v2552 = vld [vmem:[%s1919 + $0x8] sm:$0x7f]
  %v2553 = vld [vmem:[%s1919 + $0x10] sm:$0x7f]
  %v2554 = vld [vmem:[%s1919 + $0x18] sm:$0x7f]
  %v2555 = vld [vmem:[%s1919 + $0x20] sm:$0x7f]
  %v2556 = vld [vmem:[%s1919 + $0x28] sm:$0x7f]
  %v2557 = vld [vmem:[%s1919 + $0x30] sm:$0x7f]
  %v2559 = vperm.slane %v2550, 0
  %v2560 = vperm.slane %v2550, 1
  %v2561 = vperm.slane %v2550, 2
  %v2562 = vperm.slane %v2550, 3
  %v2563 = vperm.slane %v2550, 4
  %v2564 = vperm.slane %v2550, 5
  %v2565 = vperm.slane %v2550, 6
  %v2573 = vmul.f32 %v2551, %v2559
  %v2574 = vmul.f32 %v2552, %v2560
  %v2575 = vmul.f32 %v2553, %v2561
  %v2576 = vmul.f32 %v2554, %v2562
  %v2577 = vmul.f32 %v2555, %v2563
  %v2578 = vmul.f32 %v2556, %v2564
  %v2579 = vmul.f32 %v2557, %v2565
  %v2580 = vadd.f32 %v2541, %v2573
  %v2581 = vadd.f32 %v2542, %v2574
  %v2582 = vadd.f32 %v2543, %v2575
  %v2583 = vadd.f32 %v2544, %v2576
  %v2584 = vadd.f32 %v2545, %v2577
  %v2585 = vadd.f32 %v2546, %v2578
  %v2586 = vadd.f32 %v2547, %v2579
  %v2587 = vld [vmem:[%s515] ss:$8 sm:$0xf]
  %v2588 = vld [vmem:[%s515] ss:$8 sm:$0x70]
  %v2589 = vor.u32 %v2587, %v2588
  %v2590 = vld [vmem:[%s1959] sm:$0x7f]
  %v2591 = vld [vmem:[%s1959 + $0x8] sm:$0x7f]
  %v2592 = vld [vmem:[%s1959 + $0x10] sm:$0x7f]
  %v2593 = vld [vmem:[%s1959 + $0x18] sm:$0x7f]
  %v2594 = vld [vmem:[%s1959 + $0x20] sm:$0x7f]
  %v2595 = vld [vmem:[%s1959 + $0x28] sm:$0x7f]
  %v2596 = vld [vmem:[%s1959 + $0x30] sm:$0x7f]
  %v2598 = vperm.slane %v2589, 0
  %v2599 = vperm.slane %v2589, 1
  %v2600 = vperm.slane %v2589, 2
  %v2601 = vperm.slane %v2589, 3
  %v2602 = vperm.slane %v2589, 4
  %v2603 = vperm.slane %v2589, 5
  %v2604 = vperm.slane %v2589, 6
  %v2612 = vmul.f32 %v2590, %v2598
  %v2613 = vmul.f32 %v2591, %v2599
  %v2614 = vmul.f32 %v2592, %v2600
  %v2615 = vmul.f32 %v2593, %v2601
  %v2616 = vmul.f32 %v2594, %v2602
  %v2617 = vmul.f32 %v2595, %v2603
  %v2618 = vmul.f32 %v2596, %v2604
  %v2619 = vadd.f32 %v2580, %v2612
  %v2620 = vadd.f32 %v2581, %v2613
  %v2621 = vadd.f32 %v2582, %v2614
  %v2622 = vadd.f32 %v2583, %v2615
  %v2623 = vadd.f32 %v2584, %v2616
  %v2624 = vadd.f32 %v2585, %v2617
  %v2625 = vadd.f32 %v2586, %v2618
  %v2626 = vld [vmem:[%s556] ss:$8 sm:$0xf]
  %v2627 = vld [vmem:[%s556] ss:$8 sm:$0x70]
  %v2628 = vor.u32 %v2626, %v2627
  %v2629 = vld [vmem:[%s1999] sm:$0x7f]
  %v2630 = vld [vmem:[%s1999 + $0x8] sm:$0x7f]
  %v2631 = vld [vmem:[%s1999 + $0x10] sm:$0x7f]
  %v2632 = vld [vmem:[%s1999 + $0x18] sm:$0x7f]
  %v2633 = vld [vmem:[%s1999 + $0x20] sm:$0x7f]
  %v2634 = vld [vmem:[%s1999 + $0x28] sm:$0x7f]
  %v2635 = vld [vmem:[%s1999 + $0x30] sm:$0x7f]
  %v2637 = vperm.slane %v2628, 0
  %v2638 = vperm.slane %v2628, 1
  %v2639 = vperm.slane %v2628, 2
  %v2640 = vperm.slane %v2628, 3
  %v2641 = vperm.slane %v2628, 4
  %v2642 = vperm.slane %v2628, 5
  %v2643 = vperm.slane %v2628, 6
  %v2651 = vmul.f32 %v2629, %v2637
  %v2652 = vmul.f32 %v2630, %v2638
  %v2653 = vmul.f32 %v2631, %v2639
  %v2654 = vmul.f32 %v2632, %v2640
  %v2655 = vmul.f32 %v2633, %v2641
  %v2656 = vmul.f32 %v2634, %v2642
  %v2657 = vmul.f32 %v2635, %v2643
  %v2658 = vadd.f32 %v2619, %v2651
  %v2659 = vadd.f32 %v2620, %v2652
  %v2660 = vadd.f32 %v2621, %v2653
  %v2661 = vadd.f32 %v2622, %v2654
  %v2662 = vadd.f32 %v2623, %v2655
  %v2663 = vadd.f32 %v2624, %v2656
  %v2664 = vadd.f32 %v2625, %v2657
  %v2665 = vld [vmem:[%s597] ss:$8 sm:$0xf]
  %v2666 = vld [vmem:[%s597] ss:$8 sm:$0x70]
  %v2667 = vor.u32 %v2665, %v2666
  %v2668 = vld [vmem:[%s2039] sm:$0x7f]
  %v2669 = vld [vmem:[%s2039 + $0x8] sm:$0x7f]
  %v2670 = vld [vmem:[%s2039 + $0x10] sm:$0x7f]
  %v2671 = vld [vmem:[%s2039 + $0x18] sm:$0x7f]
  %v2672 = vld [vmem:[%s2039 + $0x20] sm:$0x7f]
  %v2673 = vld [vmem:[%s2039 + $0x28] sm:$0x7f]
  %v2674 = vld [vmem:[%s2039 + $0x30] sm:$0x7f]
  %v2676 = vperm.slane %v2667, 0
  %v2677 = vperm.slane %v2667, 1
  %v2678 = vperm.slane %v2667, 2
  %v2679 = vperm.slane %v2667, 3
  %v2680 = vperm.slane %v2667, 4
  %v2681 = vperm.slane %v2667, 5
  %v2682 = vperm.slane %v2667, 6
  %v2690 = vmul.f32 %v2668, %v2676
  %v2691 = vmul.f32 %v2669, %v2677
  %v2692 = vmul.f32 %v2670, %v2678
  %v2693 = vmul.f32 %v2671, %v2679
  %v2694 = vmul.f32 %v2672, %v2680
  %v2695 = vmul.f32 %v2673, %v2681
  %v2696 = vmul.f32 %v2674, %v2682
  %v2697 = vadd.f32 %v2658, %v2690
  %v2698 = vadd.f32 %v2659, %v2691
  %v2699 = vadd.f32 %v2660, %v2692
  %v2700 = vadd.f32 %v2661, %v2693
  %v2701 = vadd.f32 %v2662, %v2694
  %v2702 = vadd.f32 %v2663, %v2695
  %v2703 = vadd.f32 %v2664, %v2696
  %v2704 = vld [vmem:[%s638] ss:$8 sm:$0xf]
  %v2705 = vld [vmem:[%s638] ss:$8 sm:$0x70]
  %v2706 = vor.u32 %v2704, %v2705
  %s2707 = scalar_lea.vmem %s0, 392
  %v2708 = vld [vmem:[%s2707] sm:$0x7f]
  %v2709 = vld [vmem:[%s2707 + $0x8] sm:$0x7f]
  %v2710 = vld [vmem:[%s2707 + $0x10] sm:$0x7f]
  %v2711 = vld [vmem:[%s2707 + $0x18] sm:$0x7f]
  %v2712 = vld [vmem:[%s2707 + $0x20] sm:$0x7f]
  %v2713 = vld [vmem:[%s2707 + $0x28] sm:$0x7f]
  %v2714 = vld [vmem:[%s2707 + $0x30] sm:$0x7f]
  %v2716 = vperm.slane %v2706, 0
  %v2717 = vperm.slane %v2706, 1
  %v2718 = vperm.slane %v2706, 2
  %v2719 = vperm.slane %v2706, 3
  %v2720 = vperm.slane %v2706, 4
  %v2721 = vperm.slane %v2706, 5
  %v2722 = vperm.slane %v2706, 6
  %v2730 = vmul.f32 %v2708, %v2716
  %v2731 = vmul.f32 %v2709, %v2717
  %v2732 = vmul.f32 %v2710, %v2718
  %v2733 = vmul.f32 %v2711, %v2719
  %v2734 = vmul.f32 %v2712, %v2720
  %v2735 = vmul.f32 %v2713, %v2721
  %v2736 = vmul.f32 %v2714, %v2722
  %v2737 = vadd.f32 %v2697, %v2730
  %v2738 = vadd.f32 %v2698, %v2731
  %v2739 = vadd.f32 %v2699, %v2732
  %v2740 = vadd.f32 %v2700, %v2733
  %v2741 = vadd.f32 %v2701, %v2734
  %v2742 = vadd.f32 %v2702, %v2735
  %v2743 = vadd.f32 %v2703, %v2736
  %v2744 = vld [vmem:[%s679] ss:$8 sm:$0xf]
  %v2745 = vld [vmem:[%s679] ss:$8 sm:$0x70]
  %v2746 = vor.u32 %v2744, %v2745
  %s2747 = scalar_lea.vmem %s1, 392
  %v2748 = vld [vmem:[%s2747] sm:$0x7f]
  %v2749 = vld [vmem:[%s2747 + $0x8] sm:$0x7f]
  %v2750 = vld [vmem:[%s2747 + $0x10] sm:$0x7f]
  %v2751 = vld [vmem:[%s2747 + $0x18] sm:$0x7f]
  %v2752 = vld [vmem:[%s2747 + $0x20] sm:$0x7f]
  %v2753 = vld [vmem:[%s2747 + $0x28] sm:$0x7f]
  %v2754 = vld [vmem:[%s2747 + $0x30] sm:$0x7f]
  %v2756 = vperm.slane %v2746, 0
  %v2757 = vperm.slane %v2746, 1
  %v2758 = vperm.slane %v2746, 2
  %v2759 = vperm.slane %v2746, 3
  %v2760 = vperm.slane %v2746, 4
  %v2761 = vperm.slane %v2746, 5
  %v2762 = vperm.slane %v2746, 6
  %v2770 = vmul.f32 %v2748, %v2756
  %v2771 = vmul.f32 %v2749, %v2757
  %v2772 = vmul.f32 %v2750, %v2758
  %v2773 = vmul.f32 %v2751, %v2759
  %v2774 = vmul.f32 %v2752, %v2760
  %v2775 = vmul.f32 %v2753, %v2761
  %v2776 = vmul.f32 %v2754, %v2762
  %v2777 = vadd.f32 %v2737, %v2770
  %v2778 = vadd.f32 %v2738, %v2771
  %v2779 = vadd.f32 %v2739, %v2772
  %v2780 = vadd.f32 %v2740, %v2773
  %v2781 = vadd.f32 %v2741, %v2774
  %v2782 = vadd.f32 %v2742, %v2775
  %v2783 = vadd.f32 %v2743, %v2776
  %v2784 = vld [vmem:[%s720] ss:$8 sm:$0xf]
  %v2785 = vld [vmem:[%s720] ss:$8 sm:$0x70]
  %v2786 = vor.u32 %v2784, %v2785
  %s2787 = scalar_lea.vmem %s2, 392
  %v2788 = vld [vmem:[%s2787] sm:$0x7f]
  %v2789 = vld [vmem:[%s2787 + $0x8] sm:$0x7f]
  %v2790 = vld [vmem:[%s2787 + $0x10] sm:$0x7f]
  %v2791 = vld [vmem:[%s2787 + $0x18] sm:$0x7f]
  %v2792 = vld [vmem:[%s2787 + $0x20] sm:$0x7f]
  %v2793 = vld [vmem:[%s2787 + $0x28] sm:$0x7f]
  %v2794 = vld [vmem:[%s2787 + $0x30] sm:$0x7f]
  %v2796 = vperm.slane %v2786, 0
  %v2797 = vperm.slane %v2786, 1
  %v2798 = vperm.slane %v2786, 2
  %v2799 = vperm.slane %v2786, 3
  %v2800 = vperm.slane %v2786, 4
  %v2801 = vperm.slane %v2786, 5
  %v2802 = vperm.slane %v2786, 6
  %v2810 = vmul.f32 %v2788, %v2796
  %v2811 = vmul.f32 %v2789, %v2797
  %v2812 = vmul.f32 %v2790, %v2798
  %v2813 = vmul.f32 %v2791, %v2799
  %v2814 = vmul.f32 %v2792, %v2800
  %v2815 = vmul.f32 %v2793, %v2801
  %v2816 = vmul.f32 %v2794, %v2802
  %v2817 = vadd.f32 %v2777, %v2810
  %v2818 = vadd.f32 %v2778, %v2811
  %v2819 = vadd.f32 %v2779, %v2812
  %v2820 = vadd.f32 %v2780, %v2813
  %v2821 = vadd.f32 %v2781, %v2814
  %v2822 = vadd.f32 %v2782, %v2815
  %v2823 = vadd.f32 %v2783, %v2816
  %v2824 = vld [vmem:[%s761] ss:$8 sm:$0xf]
  %v2825 = vld [vmem:[%s761] ss:$8 sm:$0x70]
  %v2826 = vor.u32 %v2824, %v2825
  %s2827 = scalar_lea.vmem %s3, 392
  %v2828 = vld [vmem:[%s2827] sm:$0x7f]
  %v2829 = vld [vmem:[%s2827 + $0x8] sm:$0x7f]
  %v2830 = vld [vmem:[%s2827 + $0x10] sm:$0x7f]
  %v2831 = vld [vmem:[%s2827 + $0x18] sm:$0x7f]
  %v2832 = vld [vmem:[%s2827 + $0x20] sm:$0x7f]
  %v2833 = vld [vmem:[%s2827 + $0x28] sm:$0x7f]
  %v2834 = vld [vmem:[%s2827 + $0x30] sm:$0x7f]
  %v2836 = vperm.slane %v2826, 0
  %v2837 = vperm.slane %v2826, 1
  %v2838 = vperm.slane %v2826, 2
  %v2839 = vperm.slane %v2826, 3
  %v2840 = vperm.slane %v2826, 4
  %v2841 = vperm.slane %v2826, 5
  %v2842 = vperm.slane %v2826, 6
  %v2850 = vmul.f32 %v2828, %v2836
  %v2851 = vmul.f32 %v2829, %v2837
  %v2852 = vmul.f32 %v2830, %v2838
  %v2853 = vmul.f32 %v2831, %v2839
  %v2854 = vmul.f32 %v2832, %v2840
  %v2855 = vmul.f32 %v2833, %v2841
  %v2856 = vmul.f32 %v2834, %v2842
  %v2857 = vadd.f32 %v2817, %v2850
  %v2858 = vadd.f32 %v2818, %v2851
  %v2859 = vadd.f32 %v2819, %v2852
  %v2860 = vadd.f32 %v2820, %v2853
  %v2861 = vadd.f32 %v2821, %v2854
  %v2862 = vadd.f32 %v2822, %v2855
  %v2863 = vadd.f32 %v2823, %v2856
  %v2864 = vld [vmem:[%s802] ss:$8 sm:$0xf]
  %v2865 = vld [vmem:[%s802] ss:$8 sm:$0x70]
  %v2866 = vor.u32 %v2864, %v2865
  %s2867 = scalar_lea.vmem %s4, 392
  %v2868 = vld [vmem:[%s2867] sm:$0x7f]
  %v2869 = vld [vmem:[%s2867 + $0x8] sm:$0x7f]
  %v2870 = vld [vmem:[%s2867 + $0x10] sm:$0x7f]
  %v2871 = vld [vmem:[%s2867 + $0x18] sm:$0x7f]
  %v2872 = vld [vmem:[%s2867 + $0x20] sm:$0x7f]
  %v2873 = vld [vmem:[%s2867 + $0x28] sm:$0x7f]
  %v2874 = vld [vmem:[%s2867 + $0x30] sm:$0x7f]
  %v2876 = vperm.slane %v2866, 0
  %v2877 = vperm.slane %v2866, 1
  %v2878 = vperm.slane %v2866, 2
  %v2879 = vperm.slane %v2866, 3
  %v2880 = vperm.slane %v2866, 4
  %v2881 = vperm.slane %v2866, 5
  %v2882 = vperm.slane %v2866, 6
  %v2890 = vmul.f32 %v2868, %v2876
  %v2891 = vmul.f32 %v2869, %v2877
  %v2892 = vmul.f32 %v2870, %v2878
  %v2893 = vmul.f32 %v2871, %v2879
  %v2894 = vmul.f32 %v2872, %v2880
  %v2895 = vmul.f32 %v2873, %v2881
  %v2896 = vmul.f32 %v2874, %v2882
  %v2897 = vadd.f32 %v2857, %v2890
  %v2898 = vadd.f32 %v2858, %v2891
  %v2899 = vadd.f32 %v2859, %v2892
  %v2900 = vadd.f32 %v2860, %v2893
  %v2901 = vadd.f32 %v2861, %v2894
  %v2902 = vadd.f32 %v2862, %v2895
  %v2903 = vadd.f32 %v2863, %v2896
  %v2904 = vld [vmem:[%s843] ss:$8 sm:$0xf]
  %v2905 = vld [vmem:[%s843] ss:$8 sm:$0x70]
  %v2906 = vor.u32 %v2904, %v2905
  %s2907 = scalar_lea.vmem %s0, 448
  %v2908 = vld [vmem:[%s2907] sm:$0x7f]
  %v2909 = vld [vmem:[%s2907 + $0x8] sm:$0x7f]
  %v2910 = vld [vmem:[%s2907 + $0x10] sm:$0x7f]
  %v2911 = vld [vmem:[%s2907 + $0x18] sm:$0x7f]
  %v2912 = vld [vmem:[%s2907 + $0x20] sm:$0x7f]
  %v2913 = vld [vmem:[%s2907 + $0x28] sm:$0x7f]
  %v2914 = vld [vmem:[%s2907 + $0x30] sm:$0x7f]
  %v2916 = vperm.slane %v2906, 0
  %v2917 = vperm.slane %v2906, 1
  %v2918 = vperm.slane %v2906, 2
  %v2919 = vperm.slane %v2906, 3
  %v2920 = vperm.slane %v2906, 4
  %v2921 = vperm.slane %v2906, 5
  %v2922 = vperm.slane %v2906, 6
  %v2930 = vmul.f32 %v2908, %v2916
  %v2931 = vmul.f32 %v2909, %v2917
  %v2932 = vmul.f32 %v2910, %v2918
  %v2933 = vmul.f32 %v2911, %v2919
  %v2934 = vmul.f32 %v2912, %v2920
  %v2935 = vmul.f32 %v2913, %v2921
  %v2936 = vmul.f32 %v2914, %v2922
  %v2937 = vadd.f32 %v2897, %v2930
  %v2938 = vadd.f32 %v2898, %v2931
  %v2939 = vadd.f32 %v2899, %v2932
  %v2940 = vadd.f32 %v2900, %v2933
  %v2941 = vadd.f32 %v2901, %v2934
  %v2942 = vadd.f32 %v2902, %v2935
  %v2943 = vadd.f32 %v2903, %v2936
  %v2944 = vld [vmem:[%s884] ss:$8 sm:$0xf]
  %v2945 = vld [vmem:[%s884] ss:$8 sm:$0x70]
  %v2946 = vor.u32 %v2944, %v2945
  %s2947 = scalar_lea.vmem %s1, 448
  %v2948 = vld [vmem:[%s2947] sm:$0x7f]
  %v2949 = vld [vmem:[%s2947 + $0x8] sm:$0x7f]
  %v2950 = vld [vmem:[%s2947 + $0x10] sm:$0x7f]
  %v2951 = vld [vmem:[%s2947 + $0x18] sm:$0x7f]
  %v2952 = vld [vmem:[%s2947 + $0x20] sm:$0x7f]
  %v2953 = vld [vmem:[%s2947 + $0x28] sm:$0x7f]
  %v2954 = vld [vmem:[%s2947 + $0x30] sm:$0x7f]
  %v2956 = vperm.slane %v2946, 0
  %v2957 = vperm.slane %v2946, 1
  %v2958 = vperm.slane %v2946, 2
  %v2959 = vperm.slane %v2946, 3
  %v2960 = vperm.slane %v2946, 4
  %v2961 = vperm.slane %v2946, 5
  %v2962 = vperm.slane %v2946, 6
  %v2970 = vmul.f32 %v2948, %v2956
  %v2971 = vmul.f32 %v2949, %v2957
  %v2972 = vmul.f32 %v2950, %v2958
  %v2973 = vmul.f32 %v2951, %v2959
  %v2974 = vmul.f32 %v2952, %v2960
  %v2975 = vmul.f32 %v2953, %v2961
  %v2976 = vmul.f32 %v2954, %v2962
  %v2977 = vadd.f32 %v2937, %v2970
  %v2978 = vadd.f32 %v2938, %v2971
  %v2979 = vadd.f32 %v2939, %v2972
  %v2980 = vadd.f32 %v2940, %v2973
  %v2981 = vadd.f32 %v2941, %v2974
  %v2982 = vadd.f32 %v2942, %v2975
  %v2983 = vadd.f32 %v2943, %v2976
  %v2984 = vld [vmem:[%s925] ss:$8 sm:$0xf]
  %v2985 = vld [vmem:[%s925] ss:$8 sm:$0x70]
  %v2986 = vor.u32 %v2984, %v2985
  %s2987 = scalar_lea.vmem %s2, 448
  %v2988 = vld [vmem:[%s2987] sm:$0x7f]
  %v2989 = vld [vmem:[%s2987 + $0x8] sm:$0x7f]
  %v2990 = vld [vmem:[%s2987 + $0x10] sm:$0x7f]
  %v2991 = vld [vmem:[%s2987 + $0x18] sm:$0x7f]
  %v2992 = vld [vmem:[%s2987 + $0x20] sm:$0x7f]
  %v2993 = vld [vmem:[%s2987 + $0x28] sm:$0x7f]
  %v2994 = vld [vmem:[%s2987 + $0x30] sm:$0x7f]
  %v2996 = vperm.slane %v2986, 0
  %v2997 = vperm.slane %v2986, 1
  %v2998 = vperm.slane %v2986, 2
  %v2999 = vperm.slane %v2986, 3
  %v3000 = vperm.slane %v2986, 4
  %v3001 = vperm.slane %v2986, 5
  %v3002 = vperm.slane %v2986, 6
  %v3010 = vmul.f32 %v2988, %v2996
  %v3011 = vmul.f32 %v2989, %v2997
  %v3012 = vmul.f32 %v2990, %v2998
  %v3013 = vmul.f32 %v2991, %v2999
  %v3014 = vmul.f32 %v2992, %v3000
  %v3015 = vmul.f32 %v2993, %v3001
  %v3016 = vmul.f32 %v2994, %v3002
  %v3017 = vadd.f32 %v2977, %v3010
  %v3018 = vadd.f32 %v2978, %v3011
  %v3019 = vadd.f32 %v2979, %v3012
  %v3020 = vadd.f32 %v2980, %v3013
  %v3021 = vadd.f32 %v2981, %v3014
  %v3022 = vadd.f32 %v2982, %v3015
  %v3023 = vadd.f32 %v2983, %v3016
  %v3024 = vld [vmem:[%s966] ss:$8 sm:$0xf]
  %v3025 = vld [vmem:[%s966] ss:$8 sm:$0x70]
  %v3026 = vor.u32 %v3024, %v3025
  %s3027 = scalar_lea.vmem %s3, 448
  %v3028 = vld [vmem:[%s3027] sm:$0x7f]
  %v3029 = vld [vmem:[%s3027 + $0x8] sm:$0x7f]
  %v3030 = vld [vmem:[%s3027 + $0x10] sm:$0x7f]
  %v3031 = vld [vmem:[%s3027 + $0x18] sm:$0x7f]
  %v3032 = vld [vmem:[%s3027 + $0x20] sm:$0x7f]
  %v3033 = vld [vmem:[%s3027 + $0x28] sm:$0x7f]
  %v3034 = vld [vmem:[%s3027 + $0x30] sm:$0x7f]
  %v3036 = vperm.slane %v3026, 0
  %v3037 = vperm.slane %v3026, 1
  %v3038 = vperm.slane %v3026, 2
  %v3039 = vperm.slane %v3026, 3
  %v3040 = vperm.slane %v3026, 4
  %v3041 = vperm.slane %v3026, 5
  %v3042 = vperm.slane %v3026, 6
  %v3050 = vmul.f32 %v3028, %v3036
  %v3051 = vmul.f32 %v3029, %v3037
  %v3052 = vmul.f32 %v3030, %v3038
  %v3053 = vmul.f32 %v3031, %v3039
  %v3054 = vmul.f32 %v3032, %v3040
  %v3055 = vmul.f32 %v3033, %v3041
  %v3056 = vmul.f32 %v3034, %v3042
  %v3057 = vadd.f32 %v3017, %v3050
  %v3058 = vadd.f32 %v3018, %v3051
  %v3059 = vadd.f32 %v3019, %v3052
  %v3060 = vadd.f32 %v3020, %v3053
  %v3061 = vadd.f32 %v3021, %v3054
  %v3062 = vadd.f32 %v3022, %v3055
  %v3063 = vadd.f32 %v3023, %v3056
  %v3064 = vld [vmem:[%s1007] ss:$8 sm:$0xf]
  %v3065 = vld [vmem:[%s1007] ss:$8 sm:$0x70]
  %v3066 = vor.u32 %v3064, %v3065
  %s3067 = scalar_lea.vmem %s4, 448
  %v3068 = vld [vmem:[%s3067] sm:$0x7f]
  %v3069 = vld [vmem:[%s3067 + $0x8] sm:$0x7f]
  %v3070 = vld [vmem:[%s3067 + $0x10] sm:$0x7f]
  %v3071 = vld [vmem:[%s3067 + $0x18] sm:$0x7f]
  %v3072 = vld [vmem:[%s3067 + $0x20] sm:$0x7f]
  %v3073 = vld [vmem:[%s3067 + $0x28] sm:$0x7f]
  %v3074 = vld [vmem:[%s3067 + $0x30] sm:$0x7f]
  %v3076 = vperm.slane %v3066, 0
  %v3077 = vperm.slane %v3066, 1
  %v3078 = vperm.slane %v3066, 2
  %v3079 = vperm.slane %v3066, 3
  %v3080 = vperm.slane %v3066, 4
  %v3081 = vperm.slane %v3066, 5
  %v3082 = vperm.slane %v3066, 6
  %v3090 = vmul.f32 %v3068, %v3076
  %v3091 = vmul.f32 %v3069, %v3077
  %v3092 = vmul.f32 %v3070, %v3078
  %v3093 = vmul.f32 %v3071, %v3079
  %v3094 = vmul.f32 %v3072, %v3080
  %v3095 = vmul.f32 %v3073, %v3081
  %v3096 = vmul.f32 %v3074, %v3082
  %v3097 = vadd.f32 %v3057, %v3090
  %v3098 = vadd.f32 %v3058, %v3091
  %v3099 = vadd.f32 %v3059, %v3092
  %v3100 = vadd.f32 %v3060, %v3093
  %v3101 = vadd.f32 %v3061, %v3094
  %v3102 = vadd.f32 %v3062, %v3095
  %v3103 = vadd.f32 %v3063, %v3096
  %s3104 = scalar_lea.vmem %s8, 112
  %3105 = vst [vmem:[%s3104] sm:$0x7f] %v3097
  %3106 = vst [vmem:[%s3104 + $0x8] sm:$0x7f] %v3098
  %3107 = vst [vmem:[%s3104 + $0x10] sm:$0x7f] %v3099
  %3108 = vst [vmem:[%s3104 + $0x18] sm:$0x7f] %v3100
  %3109 = vst [vmem:[%s3104 + $0x20] sm:$0x7f] %v3101
  %3110 = vst [vmem:[%s3104 + $0x28] sm:$0x7f] %v3102
  %3111 = vst.msk [vmem:[%s3104 + $0x30] sm:$0x7f] %vm1054, %v3103
  %v3112 = vadd.f32 %v3097, 0.0
  %v3113 = vadd.f32 %v3098, 0.0
  %v3114 = vadd.f32 %v3099, 0.0
  %v3115 = vadd.f32 %v3100, 0.0
  %v3116 = vadd.f32 %v3101, 0.0
  %v3117 = vadd.f32 %v3102, 0.0
  %v3118 = vadd.f32 %v3103, 0.0
  %v3119 = vadd.f32 %v2091, %v3112
  %v3120 = vadd.f32 %v2092, %v3113
  %v3121 = vadd.f32 %v2093, %v3114
  %v3122 = vadd.f32 %v2094, %v3115
  %v3123 = vadd.f32 %v2095, %v3116
  %v3124 = vadd.f32 %v2096, %v3117
  %v3125 = vadd.f32 %v2097, %v3118
  %v3126 = vmul.f32 %v3097, %v3097
  %v3127 = vmul.f32 %v3098, %v3098
  %v3128 = vmul.f32 %v3099, %v3099
  %v3129 = vmul.f32 %v3100, %v3100
  %v3130 = vmul.f32 %v3101, %v3101
  %v3131 = vmul.f32 %v3102, %v3102
  %v3132 = vmul.f32 %v3103, %v3103
  %v3133 = vadd.f32 %v3126, 0.0
  %v3134 = vadd.f32 %v3127, 0.0
  %v3135 = vadd.f32 %v3128, 0.0
  %v3136 = vadd.f32 %v3129, 0.0
  %v3137 = vadd.f32 %v3130, 0.0
  %v3138 = vadd.f32 %v3131, 0.0
  %v3139 = vadd.f32 %v3132, 0.0
  %v3140 = vadd.f32 %v2112, %v3133
  %v3141 = vadd.f32 %v2113, %v3134
  %v3142 = vadd.f32 %v2114, %v3135
  %v3143 = vadd.f32 %v2115, %v3136
  %v3144 = vadd.f32 %v2116, %v3137
  %v3145 = vadd.f32 %v2117, %v3138
  %v3146 = vadd.f32 %v2118, %v3139
  %v3147 = vld [vmem:[%s5] ss:$8 sm:$0xf]
  %v3148 = vld [vmem:[%s5] ss:$8 sm:$0x70]
  %v3149 = vor.u32 %v3147, %v3148
  %v3150 = vld [vmem:[%s1879] sm:$0x7f]
  %v3151 = vld [vmem:[%s1879 + $0x8] sm:$0x7f]
  %v3152 = vld [vmem:[%s1879 + $0x10] sm:$0x7f]
  %v3153 = vld [vmem:[%s1879 + $0x18] sm:$0x7f]
  %v3154 = vld [vmem:[%s1879 + $0x20] sm:$0x7f]
  %v3155 = vld [vmem:[%s1879 + $0x28] sm:$0x7f]
  %v3156 = vld [vmem:[%s1879 + $0x30] sm:$0x7f]
  %v3158 = vperm.slane %v3149, 0
  %v3159 = vperm.slane %v3149, 1
  %v3160 = vperm.slane %v3149, 2
  %v3161 = vperm.slane %v3149, 3
  %v3162 = vperm.slane %v3149, 4
  %v3163 = vperm.slane %v3149, 5
  %v3164 = vperm.slane %v3149, 6
  %v3172 = vmul.f32 %v3150, %v3158
  %v3173 = vmul.f32 %v3151, %v3159
  %v3174 = vmul.f32 %v3152, %v3160
  %v3175 = vmul.f32 %v3153, %v3161
  %v3176 = vmul.f32 %v3154, %v3162
  %v3177 = vmul.f32 %v3155, %v3163
  %v3178 = vmul.f32 %v3156, %v3164
  %v3179 = vadd.f32 %v3172, 0.0
  %v3180 = vadd.f32 %v3173, 0.0
  %v3181 = vadd.f32 %v3174, 0.0
  %v3182 = vadd.f32 %v3175, 0.0
  %v3183 = vadd.f32 %v3176, 0.0
  %v3184 = vadd.f32 %v3177, 0.0
  %v3185 = vadd.f32 %v3178, 0.0
  %v3186 = vld [vmem:[%s68] ss:$8 sm:$0xf]
  %v3187 = vld [vmem:[%s68] ss:$8 sm:$0x70]
  %v3188 = vor.u32 %v3186, %v3187
  %v3189 = vld [vmem:[%s1919] sm:$0x7f]
  %v3190 = vld [vmem:[%s1919 + $0x8] sm:$0x7f]
  %v3191 = vld [vmem:[%s1919 + $0x10] sm:$0x7f]
  %v3192 = vld [vmem:[%s1919 + $0x18] sm:$0x7f]
  %v3193 = vld [vmem:[%s1919 + $0x20] sm:$0x7f]
  %v3194 = vld [vmem:[%s1919 + $0x28] sm:$0x7f]
  %v3195 = vld [vmem:[%s1919 + $0x30] sm:$0x7f]
  %v3197 = vperm.slane %v3188, 0
  %v3198 = vperm.slane %v3188, 1
  %v3199 = vperm.slane %v3188, 2
  %v3200 = vperm.slane %v3188, 3
  %v3201 = vperm.slane %v3188, 4
  %v3202 = vperm.slane %v3188, 5
  %v3203 = vperm.slane %v3188, 6
  %v3211 = vmul.f32 %v3189, %v3197
  %v3212 = vmul.f32 %v3190, %v3198
  %v3213 = vmul.f32 %v3191, %v3199
  %v3214 = vmul.f32 %v3192, %v3200
  %v3215 = vmul.f32 %v3193, %v3201
  %v3216 = vmul.f32 %v3194, %v3202
  %v3217 = vmul.f32 %v3195, %v3203
  %v3218 = vadd.f32 %v3179, %v3211
  %v3219 = vadd.f32 %v3180, %v3212
  %v3220 = vadd.f32 %v3181, %v3213
  %v3221 = vadd.f32 %v3182, %v3214
  %v3222 = vadd.f32 %v3183, %v3215
  %v3223 = vadd.f32 %v3184, %v3216
  %v3224 = vadd.f32 %v3185, %v3217
  %v3225 = vld [vmem:[%s108] ss:$8 sm:$0xf]
  %v3226 = vld [vmem:[%s108] ss:$8 sm:$0x70]
  %v3227 = vor.u32 %v3225, %v3226
  %v3228 = vld [vmem:[%s1959] sm:$0x7f]
  %v3229 = vld [vmem:[%s1959 + $0x8] sm:$0x7f]
  %v3230 = vld [vmem:[%s1959 + $0x10] sm:$0x7f]
  %v3231 = vld [vmem:[%s1959 + $0x18] sm:$0x7f]
  %v3232 = vld [vmem:[%s1959 + $0x20] sm:$0x7f]
  %v3233 = vld [vmem:[%s1959 + $0x28] sm:$0x7f]
  %v3234 = vld [vmem:[%s1959 + $0x30] sm:$0x7f]
  %v3236 = vperm.slane %v3227, 0
  %v3237 = vperm.slane %v3227, 1
  %v3238 = vperm.slane %v3227, 2
  %v3239 = vperm.slane %v3227, 3
  %v3240 = vperm.slane %v3227, 4
  %v3241 = vperm.slane %v3227, 5
  %v3242 = vperm.slane %v3227, 6
  %v3250 = vmul.f32 %v3228, %v3236
  %v3251 = vmul.f32 %v3229, %v3237
  %v3252 = vmul.f32 %v3230, %v3238
  %v3253 = vmul.f32 %v3231, %v3239
  %v3254 = vmul.f32 %v3232, %v3240
  %v3255 = vmul.f32 %v3233, %v3241
  %v3256 = vmul.f32 %v3234, %v3242
  %v3257 = vadd.f32 %v3218, %v3250
  %v3258 = vadd.f32 %v3219, %v3251
  %v3259 = vadd.f32 %v3220, %v3252
  %v3260 = vadd.f32 %v3221, %v3253
  %v3261 = vadd.f32 %v3222, %v3254
  %v3262 = vadd.f32 %v3223, %v3255
  %v3263 = vadd.f32 %v3224, %v3256
  %v3264 = vld [vmem:[%s148] ss:$8 sm:$0xf]
  %v3265 = vld [vmem:[%s148] ss:$8 sm:$0x70]
  %v3266 = vor.u32 %v3264, %v3265
  %v3267 = vld [vmem:[%s1999] sm:$0x7f]
  %v3268 = vld [vmem:[%s1999 + $0x8] sm:$0x7f]
  %v3269 = vld [vmem:[%s1999 + $0x10] sm:$0x7f]
  %v3270 = vld [vmem:[%s1999 + $0x18] sm:$0x7f]
  %v3271 = vld [vmem:[%s1999 + $0x20] sm:$0x7f]
  %v3272 = vld [vmem:[%s1999 + $0x28] sm:$0x7f]
  %v3273 = vld [vmem:[%s1999 + $0x30] sm:$0x7f]
  %v3275 = vperm.slane %v3266, 0
  %v3276 = vperm.slane %v3266, 1
  %v3277 = vperm.slane %v3266, 2
  %v3278 = vperm.slane %v3266, 3
  %v3279 = vperm.slane %v3266, 4
  %v3280 = vperm.slane %v3266, 5
  %v3281 = vperm.slane %v3266, 6
  %v3289 = vmul.f32 %v3267, %v3275
  %v3290 = vmul.f32 %v3268, %v3276
  %v3291 = vmul.f32 %v3269, %v3277
  %v3292 = vmul.f32 %v3270, %v3278
  %v3293 = vmul.f32 %v3271, %v3279
  %v3294 = vmul.f32 %v3272, %v3280
  %v3295 = vmul.f32 %v3273, %v3281
  %v3296 = vadd.f32 %v3257, %v3289
  %v3297 = vadd.f32 %v3258, %v3290
  %v3298 = vadd.f32 %v3259, %v3291
  %v3299 = vadd.f32 %v3260, %v3292
  %v3300 = vadd.f32 %v3261, %v3293
  %v3301 = vadd.f32 %v3262, %v3294
  %v3302 = vadd.f32 %v3263, %v3295
  %v3303 = vld [vmem:[%s188] ss:$8 sm:$0xf]
  %v3304 = vld [vmem:[%s188] ss:$8 sm:$0x70]
  %v3305 = vor.u32 %v3303, %v3304
  %v3306 = vld [vmem:[%s2039] sm:$0x7f]
  %v3307 = vld [vmem:[%s2039 + $0x8] sm:$0x7f]
  %v3308 = vld [vmem:[%s2039 + $0x10] sm:$0x7f]
  %v3309 = vld [vmem:[%s2039 + $0x18] sm:$0x7f]
  %v3310 = vld [vmem:[%s2039 + $0x20] sm:$0x7f]
  %v3311 = vld [vmem:[%s2039 + $0x28] sm:$0x7f]
  %v3312 = vld [vmem:[%s2039 + $0x30] sm:$0x7f]
  %v3314 = vperm.slane %v3305, 0
  %v3315 = vperm.slane %v3305, 1
  %v3316 = vperm.slane %v3305, 2
  %v3317 = vperm.slane %v3305, 3
  %v3318 = vperm.slane %v3305, 4
  %v3319 = vperm.slane %v3305, 5
  %v3320 = vperm.slane %v3305, 6
  %v3328 = vmul.f32 %v3306, %v3314
  %v3329 = vmul.f32 %v3307, %v3315
  %v3330 = vmul.f32 %v3308, %v3316
  %v3331 = vmul.f32 %v3309, %v3317
  %v3332 = vmul.f32 %v3310, %v3318
  %v3333 = vmul.f32 %v3311, %v3319
  %v3334 = vmul.f32 %v3312, %v3320
  %v3335 = vadd.f32 %v3296, %v3328
  %v3336 = vadd.f32 %v3297, %v3329
  %v3337 = vadd.f32 %v3298, %v3330
  %v3338 = vadd.f32 %v3299, %v3331
  %v3339 = vadd.f32 %v3300, %v3332
  %v3340 = vadd.f32 %v3301, %v3333
  %v3341 = vadd.f32 %v3302, %v3334
  %v3342 = vld [vmem:[%s228] ss:$8 sm:$0xf]
  %v3343 = vld [vmem:[%s228] ss:$8 sm:$0x70]
  %v3344 = vor.u32 %v3342, %v3343
  %v3345 = vld [vmem:[%s2707] sm:$0x7f]
  %v3346 = vld [vmem:[%s2707 + $0x8] sm:$0x7f]
  %v3347 = vld [vmem:[%s2707 + $0x10] sm:$0x7f]
  %v3348 = vld [vmem:[%s2707 + $0x18] sm:$0x7f]
  %v3349 = vld [vmem:[%s2707 + $0x20] sm:$0x7f]
  %v3350 = vld [vmem:[%s2707 + $0x28] sm:$0x7f]
  %v3351 = vld [vmem:[%s2707 + $0x30] sm:$0x7f]
  %v3353 = vperm.slane %v3344, 0
  %v3354 = vperm.slane %v3344, 1
  %v3355 = vperm.slane %v3344, 2
  %v3356 = vperm.slane %v3344, 3
  %v3357 = vperm.slane %v3344, 4
  %v3358 = vperm.slane %v3344, 5
  %v3359 = vperm.slane %v3344, 6
  %v3367 = vmul.f32 %v3345, %v3353
  %v3368 = vmul.f32 %v3346, %v3354
  %v3369 = vmul.f32 %v3347, %v3355
  %v3370 = vmul.f32 %v3348, %v3356
  %v3371 = vmul.f32 %v3349, %v3357
  %v3372 = vmul.f32 %v3350, %v3358
  %v3373 = vmul.f32 %v3351, %v3359
  %v3374 = vadd.f32 %v3335, %v3367
  %v3375 = vadd.f32 %v3336, %v3368
  %v3376 = vadd.f32 %v3337, %v3369
  %v3377 = vadd.f32 %v3338, %v3370
  %v3378 = vadd.f32 %v3339, %v3371
  %v3379 = vadd.f32 %v3340, %v3372
  %v3380 = vadd.f32 %v3341, %v3373
  %v3381 = vld [vmem:[%s269] ss:$8 sm:$0xf]
  %v3382 = vld [vmem:[%s269] ss:$8 sm:$0x70]
  %v3383 = vor.u32 %v3381, %v3382
  %v3384 = vld [vmem:[%s2747] sm:$0x7f]
  %v3385 = vld [vmem:[%s2747 + $0x8] sm:$0x7f]
  %v3386 = vld [vmem:[%s2747 + $0x10] sm:$0x7f]
  %v3387 = vld [vmem:[%s2747 + $0x18] sm:$0x7f]
  %v3388 = vld [vmem:[%s2747 + $0x20] sm:$0x7f]
  %v3389 = vld [vmem:[%s2747 + $0x28] sm:$0x7f]
  %v3390 = vld [vmem:[%s2747 + $0x30] sm:$0x7f]
  %v3392 = vperm.slane %v3383, 0
  %v3393 = vperm.slane %v3383, 1
  %v3394 = vperm.slane %v3383, 2
  %v3395 = vperm.slane %v3383, 3
  %v3396 = vperm.slane %v3383, 4
  %v3397 = vperm.slane %v3383, 5
  %v3398 = vperm.slane %v3383, 6
  %v3406 = vmul.f32 %v3384, %v3392
  %v3407 = vmul.f32 %v3385, %v3393
  %v3408 = vmul.f32 %v3386, %v3394
  %v3409 = vmul.f32 %v3387, %v3395
  %v3410 = vmul.f32 %v3388, %v3396
  %v3411 = vmul.f32 %v3389, %v3397
  %v3412 = vmul.f32 %v3390, %v3398
  %v3413 = vadd.f32 %v3374, %v3406
  %v3414 = vadd.f32 %v3375, %v3407
  %v3415 = vadd.f32 %v3376, %v3408
  %v3416 = vadd.f32 %v3377, %v3409
  %v3417 = vadd.f32 %v3378, %v3410
  %v3418 = vadd.f32 %v3379, %v3411
  %v3419 = vadd.f32 %v3380, %v3412
  %v3420 = vld [vmem:[%s310] ss:$8 sm:$0xf]
  %v3421 = vld [vmem:[%s310] ss:$8 sm:$0x70]
  %v3422 = vor.u32 %v3420, %v3421
  %v3423 = vld [vmem:[%s2787] sm:$0x7f]
  %v3424 = vld [vmem:[%s2787 + $0x8] sm:$0x7f]
  %v3425 = vld [vmem:[%s2787 + $0x10] sm:$0x7f]
  %v3426 = vld [vmem:[%s2787 + $0x18] sm:$0x7f]
  %v3427 = vld [vmem:[%s2787 + $0x20] sm:$0x7f]
  %v3428 = vld [vmem:[%s2787 + $0x28] sm:$0x7f]
  %v3429 = vld [vmem:[%s2787 + $0x30] sm:$0x7f]
  %v3431 = vperm.slane %v3422, 0
  %v3432 = vperm.slane %v3422, 1
  %v3433 = vperm.slane %v3422, 2
  %v3434 = vperm.slane %v3422, 3
  %v3435 = vperm.slane %v3422, 4
  %v3436 = vperm.slane %v3422, 5
  %v3437 = vperm.slane %v3422, 6
  %v3445 = vmul.f32 %v3423, %v3431
  %v3446 = vmul.f32 %v3424, %v3432
  %v3447 = vmul.f32 %v3425, %v3433
  %v3448 = vmul.f32 %v3426, %v3434
  %v3449 = vmul.f32 %v3427, %v3435
  %v3450 = vmul.f32 %v3428, %v3436
  %v3451 = vmul.f32 %v3429, %v3437
  %v3452 = vadd.f32 %v3413, %v3445
  %v3453 = vadd.f32 %v3414, %v3446
  %v3454 = vadd.f32 %v3415, %v3447
  %v3455 = vadd.f32 %v3416, %v3448
  %v3456 = vadd.f32 %v3417, %v3449
  %v3457 = vadd.f32 %v3418, %v3450
  %v3458 = vadd.f32 %v3419, %v3451
  %v3459 = vld [vmem:[%s351] ss:$8 sm:$0xf]
  %v3460 = vld [vmem:[%s351] ss:$8 sm:$0x70]
  %v3461 = vor.u32 %v3459, %v3460
  %v3462 = vld [vmem:[%s2827] sm:$0x7f]
  %v3463 = vld [vmem:[%s2827 + $0x8] sm:$0x7f]
  %v3464 = vld [vmem:[%s2827 + $0x10] sm:$0x7f]
  %v3465 = vld [vmem:[%s2827 + $0x18] sm:$0x7f]
  %v3466 = vld [vmem:[%s2827 + $0x20] sm:$0x7f]
  %v3467 = vld [vmem:[%s2827 + $0x28] sm:$0x7f]
  %v3468 = vld [vmem:[%s2827 + $0x30] sm:$0x7f]
  %v3470 = vperm.slane %v3461, 0
  %v3471 = vperm.slane %v3461, 1
  %v3472 = vperm.slane %v3461, 2
  %v3473 = vperm.slane %v3461, 3
  %v3474 = vperm.slane %v3461, 4
  %v3475 = vperm.slane %v3461, 5
  %v3476 = vperm.slane %v3461, 6
  %v3484 = vmul.f32 %v3462, %v3470
  %v3485 = vmul.f32 %v3463, %v3471
  %v3486 = vmul.f32 %v3464, %v3472
  %v3487 = vmul.f32 %v3465, %v3473
  %v3488 = vmul.f32 %v3466, %v3474
  %v3489 = vmul.f32 %v3467, %v3475
  %v3490 = vmul.f32 %v3468, %v3476
  %v3491 = vadd.f32 %v3452, %v3484
  %v3492 = vadd.f32 %v3453, %v3485
  %v3493 = vadd.f32 %v3454, %v3486
  %v3494 = vadd.f32 %v3455, %v3487
  %v3495 = vadd.f32 %v3456, %v3488
  %v3496 = vadd.f32 %v3457, %v3489
  %v3497 = vadd.f32 %v3458, %v3490
  %v3498 = vld [vmem:[%s392] ss:$8 sm:$0xf]
  %v3499 = vld [vmem:[%s392] ss:$8 sm:$0x70]
  %v3500 = vor.u32 %v3498, %v3499
  %v3501 = vld [vmem:[%s2867] sm:$0x7f]
  %v3502 = vld [vmem:[%s2867 + $0x8] sm:$0x7f]
  %v3503 = vld [vmem:[%s2867 + $0x10] sm:$0x7f]
  %v3504 = vld [vmem:[%s2867 + $0x18] sm:$0x7f]
  %v3505 = vld [vmem:[%s2867 + $0x20] sm:$0x7f]
  %v3506 = vld [vmem:[%s2867 + $0x28] sm:$0x7f]
  %v3507 = vld [vmem:[%s2867 + $0x30] sm:$0x7f]
  %v3509 = vperm.slane %v3500, 0
  %v3510 = vperm.slane %v3500, 1
  %v3511 = vperm.slane %v3500, 2
  %v3512 = vperm.slane %v3500, 3
  %v3513 = vperm.slane %v3500, 4
  %v3514 = vperm.slane %v3500, 5
  %v3515 = vperm.slane %v3500, 6
  %v3523 = vmul.f32 %v3501, %v3509
  %v3524 = vmul.f32 %v3502, %v3510
  %v3525 = vmul.f32 %v3503, %v3511
  %v3526 = vmul.f32 %v3504, %v3512
  %v3527 = vmul.f32 %v3505, %v3513
  %v3528 = vmul.f32 %v3506, %v3514
  %v3529 = vmul.f32 %v3507, %v3515
  %v3530 = vadd.f32 %v3491, %v3523
  %v3531 = vadd.f32 %v3492, %v3524
  %v3532 = vadd.f32 %v3493, %v3525
  %v3533 = vadd.f32 %v3494, %v3526
  %v3534 = vadd.f32 %v3495, %v3527
  %v3535 = vadd.f32 %v3496, %v3528
  %v3536 = vadd.f32 %v3497, %v3529
  %v3537 = vld [vmem:[%s433] ss:$8 sm:$0xf]
  %v3538 = vld [vmem:[%s433] ss:$8 sm:$0x70]
  %v3539 = vor.u32 %v3537, %v3538
  %v3540 = vld [vmem:[%s2907] sm:$0x7f]
  %v3541 = vld [vmem:[%s2907 + $0x8] sm:$0x7f]
  %v3542 = vld [vmem:[%s2907 + $0x10] sm:$0x7f]
  %v3543 = vld [vmem:[%s2907 + $0x18] sm:$0x7f]
  %v3544 = vld [vmem:[%s2907 + $0x20] sm:$0x7f]
  %v3545 = vld [vmem:[%s2907 + $0x28] sm:$0x7f]
  %v3546 = vld [vmem:[%s2907 + $0x30] sm:$0x7f]
  %v3548 = vperm.slane %v3539, 0
  %v3549 = vperm.slane %v3539, 1
  %v3550 = vperm.slane %v3539, 2
  %v3551 = vperm.slane %v3539, 3
  %v3552 = vperm.slane %v3539, 4
  %v3553 = vperm.slane %v3539, 5
  %v3554 = vperm.slane %v3539, 6
  %v3562 = vmul.f32 %v3540, %v3548
  %v3563 = vmul.f32 %v3541, %v3549
  %v3564 = vmul.f32 %v3542, %v3550
  %v3565 = vmul.f32 %v3543, %v3551
  %v3566 = vmul.f32 %v3544, %v3552
  %v3567 = vmul.f32 %v3545, %v3553
  %v3568 = vmul.f32 %v3546, %v3554
  %v3569 = vadd.f32 %v3530, %v3562
  %v3570 = vadd.f32 %v3531, %v3563
  %v3571 = vadd.f32 %v3532, %v3564
  %v3572 = vadd.f32 %v3533, %v3565
  %v3573 = vadd.f32 %v3534, %v3566
  %v3574 = vadd.f32 %v3535, %v3567
  %v3575 = vadd.f32 %v3536, %v3568
  %v3576 = vld [vmem:[%s474] ss:$8 sm:$0xf]
  %v3577 = vld [vmem:[%s474] ss:$8 sm:$0x70]
  %v3578 = vor.u32 %v3576, %v3577
  %v3579 = vld [vmem:[%s2947] sm:$0x7f]
  %v3580 = vld [vmem:[%s2947 + $0x8] sm:$0x7f]
  %v3581 = vld [vmem:[%s2947 + $0x10] sm:$0x7f]
  %v3582 = vld [vmem:[%s2947 + $0x18] sm:$0x7f]
  %v3583 = vld [vmem:[%s2947 + $0x20] sm:$0x7f]
  %v3584 = vld [vmem:[%s2947 + $0x28] sm:$0x7f]
  %v3585 = vld [vmem:[%s2947 + $0x30] sm:$0x7f]
  %v3587 = vperm.slane %v3578, 0
  %v3588 = vperm.slane %v3578, 1
  %v3589 = vperm.slane %v3578, 2
  %v3590 = vperm.slane %v3578, 3
  %v3591 = vperm.slane %v3578, 4
  %v3592 = vperm.slane %v3578, 5
  %v3593 = vperm.slane %v3578, 6
  %v3601 = vmul.f32 %v3579, %v3587
  %v3602 = vmul.f32 %v3580, %v3588
  %v3603 = vmul.f32 %v3581, %v3589
  %v3604 = vmul.f32 %v3582, %v3590
  %v3605 = vmul.f32 %v3583, %v3591
  %v3606 = vmul.f32 %v3584, %v3592
  %v3607 = vmul.f32 %v3585, %v3593
  %v3608 = vadd.f32 %v3569, %v3601
  %v3609 = vadd.f32 %v3570, %v3602
  %v3610 = vadd.f32 %v3571, %v3603
  %v3611 = vadd.f32 %v3572, %v3604
  %v3612 = vadd.f32 %v3573, %v3605
  %v3613 = vadd.f32 %v3574, %v3606
  %v3614 = vadd.f32 %v3575, %v3607
  %v3615 = vld [vmem:[%s515] ss:$8 sm:$0xf]
  %v3616 = vld [vmem:[%s515] ss:$8 sm:$0x70]
  %v3617 = vor.u32 %v3615, %v3616
  %v3618 = vld [vmem:[%s2987] sm:$0x7f]
  %v3619 = vld [vmem:[%s2987 + $0x8] sm:$0x7f]
  %v3620 = vld [vmem:[%s2987 + $0x10] sm:$0x7f]
  %v3621 = vld [vmem:[%s2987 + $0x18] sm:$0x7f]
  %v3622 = vld [vmem:[%s2987 + $0x20] sm:$0x7f]
  %v3623 = vld [vmem:[%s2987 + $0x28] sm:$0x7f]
  %v3624 = vld [vmem:[%s2987 + $0x30] sm:$0x7f]
  %v3626 = vperm.slane %v3617, 0
  %v3627 = vperm.slane %v3617, 1
  %v3628 = vperm.slane %v3617, 2
  %v3629 = vperm.slane %v3617, 3
  %v3630 = vperm.slane %v3617, 4
  %v3631 = vperm.slane %v3617, 5
  %v3632 = vperm.slane %v3617, 6
  %v3640 = vmul.f32 %v3618, %v3626
  %v3641 = vmul.f32 %v3619, %v3627
  %v3642 = vmul.f32 %v3620, %v3628
  %v3643 = vmul.f32 %v3621, %v3629
  %v3644 = vmul.f32 %v3622, %v3630
  %v3645 = vmul.f32 %v3623, %v3631
  %v3646 = vmul.f32 %v3624, %v3632
  %v3647 = vadd.f32 %v3608, %v3640
  %v3648 = vadd.f32 %v3609, %v3641
  %v3649 = vadd.f32 %v3610, %v3642
  %v3650 = vadd.f32 %v3611, %v3643
  %v3651 = vadd.f32 %v3612, %v3644
  %v3652 = vadd.f32 %v3613, %v3645
  %v3653 = vadd.f32 %v3614, %v3646
  %v3654 = vld [vmem:[%s556] ss:$8 sm:$0xf]
  %v3655 = vld [vmem:[%s556] ss:$8 sm:$0x70]
  %v3656 = vor.u32 %v3654, %v3655
  %v3657 = vld [vmem:[%s3027] sm:$0x7f]
  %v3658 = vld [vmem:[%s3027 + $0x8] sm:$0x7f]
  %v3659 = vld [vmem:[%s3027 + $0x10] sm:$0x7f]
  %v3660 = vld [vmem:[%s3027 + $0x18] sm:$0x7f]
  %v3661 = vld [vmem:[%s3027 + $0x20] sm:$0x7f]
  %v3662 = vld [vmem:[%s3027 + $0x28] sm:$0x7f]
  %v3663 = vld [vmem:[%s3027 + $0x30] sm:$0x7f]
  %v3665 = vperm.slane %v3656, 0
  %v3666 = vperm.slane %v3656, 1
  %v3667 = vperm.slane %v3656, 2
  %v3668 = vperm.slane %v3656, 3
  %v3669 = vperm.slane %v3656, 4
  %v3670 = vperm.slane %v3656, 5
  %v3671 = vperm.slane %v3656, 6
  %v3679 = vmul.f32 %v3657, %v3665
  %v3680 = vmul.f32 %v3658, %v3666
  %v3681 = vmul.f32 %v3659, %v3667
  %v3682 = vmul.f32 %v3660, %v3668
  %v3683 = vmul.f32 %v3661, %v3669
  %v3684 = vmul.f32 %v3662, %v3670
  %v3685 = vmul.f32 %v3663, %v3671
  %v3686 = vadd.f32 %v3647, %v3679
  %v3687 = vadd.f32 %v3648, %v3680
  %v3688 = vadd.f32 %v3649, %v3681
  %v3689 = vadd.f32 %v3650, %v3682
  %v3690 = vadd.f32 %v3651, %v3683
  %v3691 = vadd.f32 %v3652, %v3684
  %v3692 = vadd.f32 %v3653, %v3685
  %v3693 = vld [vmem:[%s597] ss:$8 sm:$0xf]
  %v3694 = vld [vmem:[%s597] ss:$8 sm:$0x70]
  %v3695 = vor.u32 %v3693, %v3694
  %v3696 = vld [vmem:[%s3067] sm:$0x7f]
  %v3697 = vld [vmem:[%s3067 + $0x8] sm:$0x7f]
  %v3698 = vld [vmem:[%s3067 + $0x10] sm:$0x7f]
  %v3699 = vld [vmem:[%s3067 + $0x18] sm:$0x7f]
  %v3700 = vld [vmem:[%s3067 + $0x20] sm:$0x7f]
  %v3701 = vld [vmem:[%s3067 + $0x28] sm:$0x7f]
  %v3702 = vld [vmem:[%s3067 + $0x30] sm:$0x7f]
  %v3704 = vperm.slane %v3695, 0
  %v3705 = vperm.slane %v3695, 1
  %v3706 = vperm.slane %v3695, 2
  %v3707 = vperm.slane %v3695, 3
  %v3708 = vperm.slane %v3695, 4
  %v3709 = vperm.slane %v3695, 5
  %v3710 = vperm.slane %v3695, 6
  %v3718 = vmul.f32 %v3696, %v3704
  %v3719 = vmul.f32 %v3697, %v3705
  %v3720 = vmul.f32 %v3698, %v3706
  %v3721 = vmul.f32 %v3699, %v3707
  %v3722 = vmul.f32 %v3700, %v3708
  %v3723 = vmul.f32 %v3701, %v3709
  %v3724 = vmul.f32 %v3702, %v3710
  %v3725 = vadd.f32 %v3686, %v3718
  %v3726 = vadd.f32 %v3687, %v3719
  %v3727 = vadd.f32 %v3688, %v3720
  %v3728 = vadd.f32 %v3689, %v3721
  %v3729 = vadd.f32 %v3690, %v3722
  %v3730 = vadd.f32 %v3691, %v3723
  %v3731 = vadd.f32 %v3692, %v3724
  %v3732 = vld [vmem:[%s638] ss:$8 sm:$0xf]
  %v3733 = vld [vmem:[%s638] ss:$8 sm:$0x70]
  %v3734 = vor.u32 %v3732, %v3733
  %s3735 = scalar_lea.vmem %s0, 504
  %v3736 = vld [vmem:[%s3735] sm:$0x7f]
  %v3737 = vld [vmem:[%s3735 + $0x8] sm:$0x7f]
  %v3738 = vld [vmem:[%s3735 + $0x10] sm:$0x7f]
  %v3739 = vld [vmem:[%s3735 + $0x18] sm:$0x7f]
  %v3740 = vld [vmem:[%s3735 + $0x20] sm:$0x7f]
  %v3741 = vld [vmem:[%s3735 + $0x28] sm:$0x7f]
  %v3742 = vld [vmem:[%s3735 + $0x30] sm:$0x7f]
  %v3744 = vperm.slane %v3734, 0
  %v3745 = vperm.slane %v3734, 1
  %v3746 = vperm.slane %v3734, 2
  %v3747 = vperm.slane %v3734, 3
  %v3748 = vperm.slane %v3734, 4
  %v3749 = vperm.slane %v3734, 5
  %v3750 = vperm.slane %v3734, 6
  %v3758 = vmul.f32 %v3736, %v3744
  %v3759 = vmul.f32 %v3737, %v3745
  %v3760 = vmul.f32 %v3738, %v3746
  %v3761 = vmul.f32 %v3739, %v3747
  %v3762 = vmul.f32 %v3740, %v3748
  %v3763 = vmul.f32 %v3741, %v3749
  %v3764 = vmul.f32 %v3742, %v3750
  %v3765 = vadd.f32 %v3725, %v3758
  %v3766 = vadd.f32 %v3726, %v3759
  %v3767 = vadd.f32 %v3727, %v3760
  %v3768 = vadd.f32 %v3728, %v3761
  %v3769 = vadd.f32 %v3729, %v3762
  %v3770 = vadd.f32 %v3730, %v3763
  %v3771 = vadd.f32 %v3731, %v3764
  %v3772 = vld [vmem:[%s679] ss:$8 sm:$0xf]
  %v3773 = vld [vmem:[%s679] ss:$8 sm:$0x70]
  %v3774 = vor.u32 %v3772, %v3773
  %s3775 = scalar_lea.vmem %s1, 504
  %v3776 = vld [vmem:[%s3775] sm:$0x7f]
  %v3777 = vld [vmem:[%s3775 + $0x8] sm:$0x7f]
  %v3778 = vld [vmem:[%s3775 + $0x10] sm:$0x7f]
  %v3779 = vld [vmem:[%s3775 + $0x18] sm:$0x7f]
  %v3780 = vld [vmem:[%s3775 + $0x20] sm:$0x7f]
  %v3781 = vld [vmem:[%s3775 + $0x28] sm:$0x7f]
  %v3782 = vld [vmem:[%s3775 + $0x30] sm:$0x7f]
  %v3784 = vperm.slane %v3774, 0
  %v3785 = vperm.slane %v3774, 1
  %v3786 = vperm.slane %v3774, 2
  %v3787 = vperm.slane %v3774, 3
  %v3788 = vperm.slane %v3774, 4
  %v3789 = vperm.slane %v3774, 5
  %v3790 = vperm.slane %v3774, 6
  %v3798 = vmul.f32 %v3776, %v3784
  %v3799 = vmul.f32 %v3777, %v3785
  %v3800 = vmul.f32 %v3778, %v3786
  %v3801 = vmul.f32 %v3779, %v3787
  %v3802 = vmul.f32 %v3780, %v3788
  %v3803 = vmul.f32 %v3781, %v3789
  %v3804 = vmul.f32 %v3782, %v3790
  %v3805 = vadd.f32 %v3765, %v3798
  %v3806 = vadd.f32 %v3766, %v3799
  %v3807 = vadd.f32 %v3767, %v3800
  %v3808 = vadd.f32 %v3768, %v3801
  %v3809 = vadd.f32 %v3769, %v3802
  %v3810 = vadd.f32 %v3770, %v3803
  %v3811 = vadd.f32 %v3771, %v3804
  %v3812 = vld [vmem:[%s720] ss:$8 sm:$0xf]
  %v3813 = vld [vmem:[%s720] ss:$8 sm:$0x70]
  %v3814 = vor.u32 %v3812, %v3813
  %s3815 = scalar_lea.vmem %s2, 504
  %v3816 = vld [vmem:[%s3815] sm:$0x7f]
  %v3817 = vld [vmem:[%s3815 + $0x8] sm:$0x7f]
  %v3818 = vld [vmem:[%s3815 + $0x10] sm:$0x7f]
  %v3819 = vld [vmem:[%s3815 + $0x18] sm:$0x7f]
  %v3820 = vld [vmem:[%s3815 + $0x20] sm:$0x7f]
  %v3821 = vld [vmem:[%s3815 + $0x28] sm:$0x7f]
  %v3822 = vld [vmem:[%s3815 + $0x30] sm:$0x7f]
  %v3824 = vperm.slane %v3814, 0
  %v3825 = vperm.slane %v3814, 1
  %v3826 = vperm.slane %v3814, 2
  %v3827 = vperm.slane %v3814, 3
  %v3828 = vperm.slane %v3814, 4
  %v3829 = vperm.slane %v3814, 5
  %v3830 = vperm.slane %v3814, 6
  %v3838 = vmul.f32 %v3816, %v3824
  %v3839 = vmul.f32 %v3817, %v3825
  %v3840 = vmul.f32 %v3818, %v3826
  %v3841 = vmul.f32 %v3819, %v3827
  %v3842 = vmul.f32 %v3820, %v3828
  %v3843 = vmul.f32 %v3821, %v3829
  %v3844 = vmul.f32 %v3822, %v3830
  %v3845 = vadd.f32 %v3805, %v3838
  %v3846 = vadd.f32 %v3806, %v3839
  %v3847 = vadd.f32 %v3807, %v3840
  %v3848 = vadd.f32 %v3808, %v3841
  %v3849 = vadd.f32 %v3809, %v3842
  %v3850 = vadd.f32 %v3810, %v3843
  %v3851 = vadd.f32 %v3811, %v3844
  %v3852 = vld [vmem:[%s761] ss:$8 sm:$0xf]
  %v3853 = vld [vmem:[%s761] ss:$8 sm:$0x70]
  %v3854 = vor.u32 %v3852, %v3853
  %s3855 = scalar_lea.vmem %s3, 504
  %v3856 = vld [vmem:[%s3855] sm:$0x7f]
  %v3857 = vld [vmem:[%s3855 + $0x8] sm:$0x7f]
  %v3858 = vld [vmem:[%s3855 + $0x10] sm:$0x7f]
  %v3859 = vld [vmem:[%s3855 + $0x18] sm:$0x7f]
  %v3860 = vld [vmem:[%s3855 + $0x20] sm:$0x7f]
  %v3861 = vld [vmem:[%s3855 + $0x28] sm:$0x7f]
  %v3862 = vld [vmem:[%s3855 + $0x30] sm:$0x7f]
  %v3864 = vperm.slane %v3854, 0
  %v3865 = vperm.slane %v3854, 1
  %v3866 = vperm.slane %v3854, 2
  %v3867 = vperm.slane %v3854, 3
  %v3868 = vperm.slane %v3854, 4
  %v3869 = vperm.slane %v3854, 5
  %v3870 = vperm.slane %v3854, 6
  %v3878 = vmul.f32 %v3856, %v3864
  %v3879 = vmul.f32 %v3857, %v3865
  %v3880 = vmul.f32 %v3858, %v3866
  %v3881 = vmul.f32 %v3859, %v3867
  %v3882 = vmul.f32 %v3860, %v3868
  %v3883 = vmul.f32 %v3861, %v3869
  %v3884 = vmul.f32 %v3862, %v3870
  %v3885 = vadd.f32 %v3845, %v3878
  %v3886 = vadd.f32 %v3846, %v3879
  %v3887 = vadd.f32 %v3847, %v3880
  %v3888 = vadd.f32 %v3848, %v3881
  %v3889 = vadd.f32 %v3849, %v3882
  %v3890 = vadd.f32 %v3850, %v3883
  %v3891 = vadd.f32 %v3851, %v3884
  %v3892 = vld [vmem:[%s802] ss:$8 sm:$0xf]
  %v3893 = vld [vmem:[%s802] ss:$8 sm:$0x70]
  %v3894 = vor.u32 %v3892, %v3893
  %s3895 = scalar_lea.vmem %s4, 504
  %v3896 = vld [vmem:[%s3895] sm:$0x7f]
  %v3897 = vld [vmem:[%s3895 + $0x8] sm:$0x7f]
  %v3898 = vld [vmem:[%s3895 + $0x10] sm:$0x7f]
  %v3899 = vld [vmem:[%s3895 + $0x18] sm:$0x7f]
  %v3900 = vld [vmem:[%s3895 + $0x20] sm:$0x7f]
  %v3901 = vld [vmem:[%s3895 + $0x28] sm:$0x7f]
  %v3902 = vld [vmem:[%s3895 + $0x30] sm:$0x7f]
  %v3904 = vperm.slane %v3894, 0
  %v3905 = vperm.slane %v3894, 1
  %v3906 = vperm.slane %v3894, 2
  %v3907 = vperm.slane %v3894, 3
  %v3908 = vperm.slane %v3894, 4
  %v3909 = vperm.slane %v3894, 5
  %v3910 = vperm.slane %v3894, 6
  %v3918 = vmul.f32 %v3896, %v3904
  %v3919 = vmul.f32 %v3897, %v3905
  %v3920 = vmul.f32 %v3898, %v3906
  %v3921 = vmul.f32 %v3899, %v3907
  %v3922 = vmul.f32 %v3900, %v3908
  %v3923 = vmul.f32 %v3901, %v3909
  %v3924 = vmul.f32 %v3902, %v3910
  %v3925 = vadd.f32 %v3885, %v3918
  %v3926 = vadd.f32 %v3886, %v3919
  %v3927 = vadd.f32 %v3887, %v3920
  %v3928 = vadd.f32 %v3888, %v3921
  %v3929 = vadd.f32 %v3889, %v3922
  %v3930 = vadd.f32 %v3890, %v3923
  %v3931 = vadd.f32 %v3891, %v3924
  %v3932 = vld [vmem:[%s843] ss:$8 sm:$0xf]
  %v3933 = vld [vmem:[%s843] ss:$8 sm:$0x70]
  %v3934 = vor.u32 %v3932, %v3933
  %s3935 = scalar_lea.vmem %s0, 560
  %v3936 = vld [vmem:[%s3935] sm:$0x7f]
  %v3937 = vld [vmem:[%s3935 + $0x8] sm:$0x7f]
  %v3938 = vld [vmem:[%s3935 + $0x10] sm:$0x7f]
  %v3939 = vld [vmem:[%s3935 + $0x18] sm:$0x7f]
  %v3940 = vld [vmem:[%s3935 + $0x20] sm:$0x7f]
  %v3941 = vld [vmem:[%s3935 + $0x28] sm:$0x7f]
  %v3942 = vld [vmem:[%s3935 + $0x30] sm:$0x7f]
  %v3944 = vperm.slane %v3934, 0
  %v3945 = vperm.slane %v3934, 1
  %v3946 = vperm.slane %v3934, 2
  %v3947 = vperm.slane %v3934, 3
  %v3948 = vperm.slane %v3934, 4
  %v3949 = vperm.slane %v3934, 5
  %v3950 = vperm.slane %v3934, 6
  %v3958 = vmul.f32 %v3936, %v3944
  %v3959 = vmul.f32 %v3937, %v3945
  %v3960 = vmul.f32 %v3938, %v3946
  %v3961 = vmul.f32 %v3939, %v3947
  %v3962 = vmul.f32 %v3940, %v3948
  %v3963 = vmul.f32 %v3941, %v3949
  %v3964 = vmul.f32 %v3942, %v3950
  %v3965 = vadd.f32 %v3925, %v3958
  %v3966 = vadd.f32 %v3926, %v3959
  %v3967 = vadd.f32 %v3927, %v3960
  %v3968 = vadd.f32 %v3928, %v3961
  %v3969 = vadd.f32 %v3929, %v3962
  %v3970 = vadd.f32 %v3930, %v3963
  %v3971 = vadd.f32 %v3931, %v3964
  %v3972 = vld [vmem:[%s884] ss:$8 sm:$0xf]
  %v3973 = vld [vmem:[%s884] ss:$8 sm:$0x70]
  %v3974 = vor.u32 %v3972, %v3973
  %s3975 = scalar_lea.vmem %s1, 560
  %v3976 = vld [vmem:[%s3975] sm:$0x7f]
  %v3977 = vld [vmem:[%s3975 + $0x8] sm:$0x7f]
  %v3978 = vld [vmem:[%s3975 + $0x10] sm:$0x7f]
  %v3979 = vld [vmem:[%s3975 + $0x18] sm:$0x7f]
  %v3980 = vld [vmem:[%s3975 + $0x20] sm:$0x7f]
  %v3981 = vld [vmem:[%s3975 + $0x28] sm:$0x7f]
  %v3982 = vld [vmem:[%s3975 + $0x30] sm:$0x7f]
  %v3984 = vperm.slane %v3974, 0
  %v3985 = vperm.slane %v3974, 1
  %v3986 = vperm.slane %v3974, 2
  %v3987 = vperm.slane %v3974, 3
  %v3988 = vperm.slane %v3974, 4
  %v3989 = vperm.slane %v3974, 5
  %v3990 = vperm.slane %v3974, 6
  %v3998 = vmul.f32 %v3976, %v3984
  %v3999 = vmul.f32 %v3977, %v3985
  %v4000 = vmul.f32 %v3978, %v3986
  %v4001 = vmul.f32 %v3979, %v3987
  %v4002 = vmul.f32 %v3980, %v3988
  %v4003 = vmul.f32 %v3981, %v3989
  %v4004 = vmul.f32 %v3982, %v3990
  %v4005 = vadd.f32 %v3965, %v3998
  %v4006 = vadd.f32 %v3966, %v3999
  %v4007 = vadd.f32 %v3967, %v4000
  %v4008 = vadd.f32 %v3968, %v4001
  %v4009 = vadd.f32 %v3969, %v4002
  %v4010 = vadd.f32 %v3970, %v4003
  %v4011 = vadd.f32 %v3971, %v4004
  %v4012 = vld [vmem:[%s925] ss:$8 sm:$0xf]
  %v4013 = vld [vmem:[%s925] ss:$8 sm:$0x70]
  %v4014 = vor.u32 %v4012, %v4013
  %s4015 = scalar_lea.vmem %s2, 560
  %v4016 = vld [vmem:[%s4015] sm:$0x7f]
  %v4017 = vld [vmem:[%s4015 + $0x8] sm:$0x7f]
  %v4018 = vld [vmem:[%s4015 + $0x10] sm:$0x7f]
  %v4019 = vld [vmem:[%s4015 + $0x18] sm:$0x7f]
  %v4020 = vld [vmem:[%s4015 + $0x20] sm:$0x7f]
  %v4021 = vld [vmem:[%s4015 + $0x28] sm:$0x7f]
  %v4022 = vld [vmem:[%s4015 + $0x30] sm:$0x7f]
  %v4024 = vperm.slane %v4014, 0
  %v4025 = vperm.slane %v4014, 1
  %v4026 = vperm.slane %v4014, 2
  %v4027 = vperm.slane %v4014, 3
  %v4028 = vperm.slane %v4014, 4
  %v4029 = vperm.slane %v4014, 5
  %v4030 = vperm.slane %v4014, 6
  %v4038 = vmul.f32 %v4016, %v4024
  %v4039 = vmul.f32 %v4017, %v4025
  %v4040 = vmul.f32 %v4018, %v4026
  %v4041 = vmul.f32 %v4019, %v4027
  %v4042 = vmul.f32 %v4020, %v4028
  %v4043 = vmul.f32 %v4021, %v4029
  %v4044 = vmul.f32 %v4022, %v4030
  %v4045 = vadd.f32 %v4005, %v4038
  %v4046 = vadd.f32 %v4006, %v4039
  %v4047 = vadd.f32 %v4007, %v4040
  %v4048 = vadd.f32 %v4008, %v4041
  %v4049 = vadd.f32 %v4009, %v4042
  %v4050 = vadd.f32 %v4010, %v4043
  %v4051 = vadd.f32 %v4011, %v4044
  %v4052 = vld [vmem:[%s966] ss:$8 sm:$0xf]
  %v4053 = vld [vmem:[%s966] ss:$8 sm:$0x70]
  %v4054 = vor.u32 %v4052, %v4053
  %s4055 = scalar_lea.vmem %s3, 560
  %v4056 = vld [vmem:[%s4055] sm:$0x7f]
  %v4057 = vld [vmem:[%s4055 + $0x8] sm:$0x7f]
  %v4058 = vld [vmem:[%s4055 + $0x10] sm:$0x7f]
  %v4059 = vld [vmem:[%s4055 + $0x18] sm:$0x7f]
  %v4060 = vld [vmem:[%s4055 + $0x20] sm:$0x7f]
  %v4061 = vld [vmem:[%s4055 + $0x28] sm:$0x7f]
  %v4062 = vld [vmem:[%s4055 + $0x30] sm:$0x7f]
  %v4064 = vperm.slane %v4054, 0
  %v4065 = vperm.slane %v4054, 1
  %v4066 = vperm.slane %v4054, 2
  %v4067 = vperm.slane %v4054, 3
  %v4068 = vperm.slane %v4054, 4
  %v4069 = vperm.slane %v4054, 5
  %v4070 = vperm.slane %v4054, 6
  %v4078 = vmul.f32 %v4056, %v4064
  %v4079 = vmul.f32 %v4057, %v4065
  %v4080 = vmul.f32 %v4058, %v4066
  %v4081 = vmul.f32 %v4059, %v4067
  %v4082 = vmul.f32 %v4060, %v4068
  %v4083 = vmul.f32 %v4061, %v4069
  %v4084 = vmul.f32 %v4062, %v4070
  %v4085 = vadd.f32 %v4045, %v4078
  %v4086 = vadd.f32 %v4046, %v4079
  %v4087 = vadd.f32 %v4047, %v4080
  %v4088 = vadd.f32 %v4048, %v4081
  %v4089 = vadd.f32 %v4049, %v4082
  %v4090 = vadd.f32 %v4050, %v4083
  %v4091 = vadd.f32 %v4051, %v4084
  %v4092 = vld [vmem:[%s1007] ss:$8 sm:$0xf]
  %v4093 = vld [vmem:[%s1007] ss:$8 sm:$0x70]
  %v4094 = vor.u32 %v4092, %v4093
  %s4095 = scalar_lea.vmem %s4, 560
  %v4096 = vld [vmem:[%s4095] sm:$0x7f]
  %v4097 = vld [vmem:[%s4095 + $0x8] sm:$0x7f]
  %v4098 = vld [vmem:[%s4095 + $0x10] sm:$0x7f]
  %v4099 = vld [vmem:[%s4095 + $0x18] sm:$0x7f]
  %v4100 = vld [vmem:[%s4095 + $0x20] sm:$0x7f]
  %v4101 = vld [vmem:[%s4095 + $0x28] sm:$0x7f]
  %v4102 = vld [vmem:[%s4095 + $0x30] sm:$0x7f]
  %v4104 = vperm.slane %v4094, 0
  %v4105 = vperm.slane %v4094, 1
  %v4106 = vperm.slane %v4094, 2
  %v4107 = vperm.slane %v4094, 3
  %v4108 = vperm.slane %v4094, 4
  %v4109 = vperm.slane %v4094, 5
  %v4110 = vperm.slane %v4094, 6
  %v4118 = vmul.f32 %v4096, %v4104
  %v4119 = vmul.f32 %v4097, %v4105
  %v4120 = vmul.f32 %v4098, %v4106
  %v4121 = vmul.f32 %v4099, %v4107
  %v4122 = vmul.f32 %v4100, %v4108
  %v4123 = vmul.f32 %v4101, %v4109
  %v4124 = vmul.f32 %v4102, %v4110
  %v4125 = vadd.f32 %v4085, %v4118
  %v4126 = vadd.f32 %v4086, %v4119
  %v4127 = vadd.f32 %v4087, %v4120
  %v4128 = vadd.f32 %v4088, %v4121
  %v4129 = vadd.f32 %v4089, %v4122
  %v4130 = vadd.f32 %v4090, %v4123
  %v4131 = vadd.f32 %v4091, %v4124
  %s4132 = scalar_lea.vmem %s8, 168
  %4133 = vst [vmem:[%s4132] sm:$0x7f] %v4125
  %4134 = vst [vmem:[%s4132 + $0x8] sm:$0x7f] %v4126
  %4135 = vst [vmem:[%s4132 + $0x10] sm:$0x7f] %v4127
  %4136 = vst [vmem:[%s4132 + $0x18] sm:$0x7f] %v4128
  %4137 = vst [vmem:[%s4132 + $0x20] sm:$0x7f] %v4129
  %4138 = vst [vmem:[%s4132 + $0x28] sm:$0x7f] %v4130
  %4139 = vst.msk [vmem:[%s4132 + $0x30] sm:$0x7f] %vm1054, %v4131
  %v4140 = vadd.f32 %v4125, 0.0
  %v4141 = vadd.f32 %v4126, 0.0
  %v4142 = vadd.f32 %v4127, 0.0
  %v4143 = vadd.f32 %v4128, 0.0
  %v4144 = vadd.f32 %v4129, 0.0
  %v4145 = vadd.f32 %v4130, 0.0
  %v4146 = vadd.f32 %v4131, 0.0
  %v4147 = vadd.f32 %v3119, %v4140
  %v4148 = vadd.f32 %v3120, %v4141
  %v4149 = vadd.f32 %v3121, %v4142
  %v4150 = vadd.f32 %v3122, %v4143
  %v4151 = vadd.f32 %v3123, %v4144
  %v4152 = vadd.f32 %v3124, %v4145
  %v4153 = vadd.f32 %v3125, %v4146
  %v4154 = vmul.f32 %v4125, %v4125
  %v4155 = vmul.f32 %v4126, %v4126
  %v4156 = vmul.f32 %v4127, %v4127
  %v4157 = vmul.f32 %v4128, %v4128
  %v4158 = vmul.f32 %v4129, %v4129
  %v4159 = vmul.f32 %v4130, %v4130
  %v4160 = vmul.f32 %v4131, %v4131
  %v4161 = vadd.f32 %v4154, 0.0
  %v4162 = vadd.f32 %v4155, 0.0
  %v4163 = vadd.f32 %v4156, 0.0
  %v4164 = vadd.f32 %v4157, 0.0
  %v4165 = vadd.f32 %v4158, 0.0
  %v4166 = vadd.f32 %v4159, 0.0
  %v4167 = vadd.f32 %v4160, 0.0
  %v4168 = vadd.f32 %v3140, %v4161
  %v4169 = vadd.f32 %v3141, %v4162
  %v4170 = vadd.f32 %v3142, %v4163
  %v4171 = vadd.f32 %v3143, %v4164
  %v4172 = vadd.f32 %v3144, %v4165
  %v4173 = vadd.f32 %v3145, %v4166
  %v4174 = vadd.f32 %v3146, %v4167
  %v4175 = vld [vmem:[%s5] ss:$8 sm:$0xf]
  %v4176 = vld [vmem:[%s5] ss:$8 sm:$0x70]
  %v4177 = vor.u32 %v4175, %v4176
  %v4178 = vld [vmem:[%s2907] sm:$0x7f]
  %v4179 = vld [vmem:[%s2907 + $0x8] sm:$0x7f]
  %v4180 = vld [vmem:[%s2907 + $0x10] sm:$0x7f]
  %v4181 = vld [vmem:[%s2907 + $0x18] sm:$0x7f]
  %v4182 = vld [vmem:[%s2907 + $0x20] sm:$0x7f]
  %v4183 = vld [vmem:[%s2907 + $0x28] sm:$0x7f]
  %v4184 = vld [vmem:[%s2907 + $0x30] sm:$0x7f]
  %v4186 = vperm.slane %v4177, 0
  %v4187 = vperm.slane %v4177, 1
  %v4188 = vperm.slane %v4177, 2
  %v4189 = vperm.slane %v4177, 3
  %v4190 = vperm.slane %v4177, 4
  %v4191 = vperm.slane %v4177, 5
  %v4192 = vperm.slane %v4177, 6
  %v4200 = vmul.f32 %v4178, %v4186
  %v4201 = vmul.f32 %v4179, %v4187
  %v4202 = vmul.f32 %v4180, %v4188
  %v4203 = vmul.f32 %v4181, %v4189
  %v4204 = vmul.f32 %v4182, %v4190
  %v4205 = vmul.f32 %v4183, %v4191
  %v4206 = vmul.f32 %v4184, %v4192
  %v4207 = vadd.f32 %v4200, 0.0
  %v4208 = vadd.f32 %v4201, 0.0
  %v4209 = vadd.f32 %v4202, 0.0
  %v4210 = vadd.f32 %v4203, 0.0
  %v4211 = vadd.f32 %v4204, 0.0
  %v4212 = vadd.f32 %v4205, 0.0
  %v4213 = vadd.f32 %v4206, 0.0
  %v4214 = vld [vmem:[%s68] ss:$8 sm:$0xf]
  %v4215 = vld [vmem:[%s68] ss:$8 sm:$0x70]
  %v4216 = vor.u32 %v4214, %v4215
  %v4217 = vld [vmem:[%s2947] sm:$0x7f]
  %v4218 = vld [vmem:[%s2947 + $0x8] sm:$0x7f]
  %v4219 = vld [vmem:[%s2947 + $0x10] sm:$0x7f]
  %v4220 = vld [vmem:[%s2947 + $0x18] sm:$0x7f]
  %v4221 = vld [vmem:[%s2947 + $0x20] sm:$0x7f]
  %v4222 = vld [vmem:[%s2947 + $0x28] sm:$0x7f]
  %v4223 = vld [vmem:[%s2947 + $0x30] sm:$0x7f]
  %v4225 = vperm.slane %v4216, 0
  %v4226 = vperm.slane %v4216, 1
  %v4227 = vperm.slane %v4216, 2
  %v4228 = vperm.slane %v4216, 3
  %v4229 = vperm.slane %v4216, 4
  %v4230 = vperm.slane %v4216, 5
  %v4231 = vperm.slane %v4216, 6
  %v4239 = vmul.f32 %v4217, %v4225
  %v4240 = vmul.f32 %v4218, %v4226
  %v4241 = vmul.f32 %v4219, %v4227
  %v4242 = vmul.f32 %v4220, %v4228
  %v4243 = vmul.f32 %v4221, %v4229
  %v4244 = vmul.f32 %v4222, %v4230
  %v4245 = vmul.f32 %v4223, %v4231
  %v4246 = vadd.f32 %v4207, %v4239
  %v4247 = vadd.f32 %v4208, %v4240
  %v4248 = vadd.f32 %v4209, %v4241
  %v4249 = vadd.f32 %v4210, %v4242
  %v4250 = vadd.f32 %v4211, %v4243
  %v4251 = vadd.f32 %v4212, %v4244
  %v4252 = vadd.f32 %v4213, %v4245
  %v4253 = vld [vmem:[%s108] ss:$8 sm:$0xf]
  %v4254 = vld [vmem:[%s108] ss:$8 sm:$0x70]
  %v4255 = vor.u32 %v4253, %v4254
  %v4256 = vld [vmem:[%s2987] sm:$0x7f]
  %v4257 = vld [vmem:[%s2987 + $0x8] sm:$0x7f]
  %v4258 = vld [vmem:[%s2987 + $0x10] sm:$0x7f]
  %v4259 = vld [vmem:[%s2987 + $0x18] sm:$0x7f]
  %v4260 = vld [vmem:[%s2987 + $0x20] sm:$0x7f]
  %v4261 = vld [vmem:[%s2987 + $0x28] sm:$0x7f]
  %v4262 = vld [vmem:[%s2987 + $0x30] sm:$0x7f]
  %v4264 = vperm.slane %v4255, 0
  %v4265 = vperm.slane %v4255, 1
  %v4266 = vperm.slane %v4255, 2
  %v4267 = vperm.slane %v4255, 3
  %v4268 = vperm.slane %v4255, 4
  %v4269 = vperm.slane %v4255, 5
  %v4270 = vperm.slane %v4255, 6
  %v4278 = vmul.f32 %v4256, %v4264
  %v4279 = vmul.f32 %v4257, %v4265
  %v4280 = vmul.f32 %v4258, %v4266
  %v4281 = vmul.f32 %v4259, %v4267
  %v4282 = vmul.f32 %v4260, %v4268
  %v4283 = vmul.f32 %v4261, %v4269
  %v4284 = vmul.f32 %v4262, %v4270
  %v4285 = vadd.f32 %v4246, %v4278
  %v4286 = vadd.f32 %v4247, %v4279
  %v4287 = vadd.f32 %v4248, %v4280
  %v4288 = vadd.f32 %v4249, %v4281
  %v4289 = vadd.f32 %v4250, %v4282
  %v4290 = vadd.f32 %v4251, %v4283
  %v4291 = vadd.f32 %v4252, %v4284
  %v4292 = vld [vmem:[%s148] ss:$8 sm:$0xf]
  %v4293 = vld [vmem:[%s148] ss:$8 sm:$0x70]
  %v4294 = vor.u32 %v4292, %v4293
  %v4295 = vld [vmem:[%s3027] sm:$0x7f]
  %v4296 = vld [vmem:[%s3027 + $0x8] sm:$0x7f]
  %v4297 = vld [vmem:[%s3027 + $0x10] sm:$0x7f]
  %v4298 = vld [vmem:[%s3027 + $0x18] sm:$0x7f]
  %v4299 = vld [vmem:[%s3027 + $0x20] sm:$0x7f]
  %v4300 = vld [vmem:[%s3027 + $0x28] sm:$0x7f]
  %v4301 = vld [vmem:[%s3027 + $0x30] sm:$0x7f]
  %v4303 = vperm.slane %v4294, 0
  %v4304 = vperm.slane %v4294, 1
  %v4305 = vperm.slane %v4294, 2
  %v4306 = vperm.slane %v4294, 3
  %v4307 = vperm.slane %v4294, 4
  %v4308 = vperm.slane %v4294, 5
  %v4309 = vperm.slane %v4294, 6
  %v4317 = vmul.f32 %v4295, %v4303
  %v4318 = vmul.f32 %v4296, %v4304
  %v4319 = vmul.f32 %v4297, %v4305
  %v4320 = vmul.f32 %v4298, %v4306
  %v4321 = vmul.f32 %v4299, %v4307
  %v4322 = vmul.f32 %v4300, %v4308
  %v4323 = vmul.f32 %v4301, %v4309
  %v4324 = vadd.f32 %v4285, %v4317
  %v4325 = vadd.f32 %v4286, %v4318
  %v4326 = vadd.f32 %v4287, %v4319
  %v4327 = vadd.f32 %v4288, %v4320
  %v4328 = vadd.f32 %v4289, %v4321
  %v4329 = vadd.f32 %v4290, %v4322
  %v4330 = vadd.f32 %v4291, %v4323
  %v4331 = vld [vmem:[%s188] ss:$8 sm:$0xf]
  %v4332 = vld [vmem:[%s188] ss:$8 sm:$0x70]
  %v4333 = vor.u32 %v4331, %v4332
  %v4334 = vld [vmem:[%s3067] sm:$0x7f]
  %v4335 = vld [vmem:[%s3067 + $0x8] sm:$0x7f]
  %v4336 = vld [vmem:[%s3067 + $0x10] sm:$0x7f]
  %v4337 = vld [vmem:[%s3067 + $0x18] sm:$0x7f]
  %v4338 = vld [vmem:[%s3067 + $0x20] sm:$0x7f]
  %v4339 = vld [vmem:[%s3067 + $0x28] sm:$0x7f]
  %v4340 = vld [vmem:[%s3067 + $0x30] sm:$0x7f]
  %v4342 = vperm.slane %v4333, 0
  %v4343 = vperm.slane %v4333, 1
  %v4344 = vperm.slane %v4333, 2
  %v4345 = vperm.slane %v4333, 3
  %v4346 = vperm.slane %v4333, 4
  %v4347 = vperm.slane %v4333, 5
  %v4348 = vperm.slane %v4333, 6
  %v4356 = vmul.f32 %v4334, %v4342
  %v4357 = vmul.f32 %v4335, %v4343
  %v4358 = vmul.f32 %v4336, %v4344
  %v4359 = vmul.f32 %v4337, %v4345
  %v4360 = vmul.f32 %v4338, %v4346
  %v4361 = vmul.f32 %v4339, %v4347
  %v4362 = vmul.f32 %v4340, %v4348
  %v4363 = vadd.f32 %v4324, %v4356
  %v4364 = vadd.f32 %v4325, %v4357
  %v4365 = vadd.f32 %v4326, %v4358
  %v4366 = vadd.f32 %v4327, %v4359
  %v4367 = vadd.f32 %v4328, %v4360
  %v4368 = vadd.f32 %v4329, %v4361
  %v4369 = vadd.f32 %v4330, %v4362
  %v4370 = vld [vmem:[%s228] ss:$8 sm:$0xf]
  %v4371 = vld [vmem:[%s228] ss:$8 sm:$0x70]
  %v4372 = vor.u32 %v4370, %v4371
  %v4373 = vld [vmem:[%s3735] sm:$0x7f]
  %v4374 = vld [vmem:[%s3735 + $0x8] sm:$0x7f]
  %v4375 = vld [vmem:[%s3735 + $0x10] sm:$0x7f]
  %v4376 = vld [vmem:[%s3735 + $0x18] sm:$0x7f]
  %v4377 = vld [vmem:[%s3735 + $0x20] sm:$0x7f]
  %v4378 = vld [vmem:[%s3735 + $0x28] sm:$0x7f]
  %v4379 = vld [vmem:[%s3735 + $0x30] sm:$0x7f]
  %v4381 = vperm.slane %v4372, 0
  %v4382 = vperm.slane %v4372, 1
  %v4383 = vperm.slane %v4372, 2
  %v4384 = vperm.slane %v4372, 3
  %v4385 = vperm.slane %v4372, 4
  %v4386 = vperm.slane %v4372, 5
  %v4387 = vperm.slane %v4372, 6
  %v4395 = vmul.f32 %v4373, %v4381
  %v4396 = vmul.f32 %v4374, %v4382
  %v4397 = vmul.f32 %v4375, %v4383
  %v4398 = vmul.f32 %v4376, %v4384
  %v4399 = vmul.f32 %v4377, %v4385
  %v4400 = vmul.f32 %v4378, %v4386
  %v4401 = vmul.f32 %v4379, %v4387
  %v4402 = vadd.f32 %v4363, %v4395
  %v4403 = vadd.f32 %v4364, %v4396
  %v4404 = vadd.f32 %v4365, %v4397
  %v4405 = vadd.f32 %v4366, %v4398
  %v4406 = vadd.f32 %v4367, %v4399
  %v4407 = vadd.f32 %v4368, %v4400
  %v4408 = vadd.f32 %v4369, %v4401
  %v4409 = vld [vmem:[%s269] ss:$8 sm:$0xf]
  %v4410 = vld [vmem:[%s269] ss:$8 sm:$0x70]
  %v4411 = vor.u32 %v4409, %v4410
  %v4412 = vld [vmem:[%s3775] sm:$0x7f]
  %v4413 = vld [vmem:[%s3775 + $0x8] sm:$0x7f]
  %v4414 = vld [vmem:[%s3775 + $0x10] sm:$0x7f]
  %v4415 = vld [vmem:[%s3775 + $0x18] sm:$0x7f]
  %v4416 = vld [vmem:[%s3775 + $0x20] sm:$0x7f]
  %v4417 = vld [vmem:[%s3775 + $0x28] sm:$0x7f]
  %v4418 = vld [vmem:[%s3775 + $0x30] sm:$0x7f]
  %v4420 = vperm.slane %v4411, 0
  %v4421 = vperm.slane %v4411, 1
  %v4422 = vperm.slane %v4411, 2
  %v4423 = vperm.slane %v4411, 3
  %v4424 = vperm.slane %v4411, 4
  %v4425 = vperm.slane %v4411, 5
  %v4426 = vperm.slane %v4411, 6
  %v4434 = vmul.f32 %v4412, %v4420
  %v4435 = vmul.f32 %v4413, %v4421
  %v4436 = vmul.f32 %v4414, %v4422
  %v4437 = vmul.f32 %v4415, %v4423
  %v4438 = vmul.f32 %v4416, %v4424
  %v4439 = vmul.f32 %v4417, %v4425
  %v4440 = vmul.f32 %v4418, %v4426
  %v4441 = vadd.f32 %v4402, %v4434
  %v4442 = vadd.f32 %v4403, %v4435
  %v4443 = vadd.f32 %v4404, %v4436
  %v4444 = vadd.f32 %v4405, %v4437
  %v4445 = vadd.f32 %v4406, %v4438
  %v4446 = vadd.f32 %v4407, %v4439
  %v4447 = vadd.f32 %v4408, %v4440
  %v4448 = vld [vmem:[%s310] ss:$8 sm:$0xf]
  %v4449 = vld [vmem:[%s310] ss:$8 sm:$0x70]
  %v4450 = vor.u32 %v4448, %v4449
  %v4451 = vld [vmem:[%s3815] sm:$0x7f]
  %v4452 = vld [vmem:[%s3815 + $0x8] sm:$0x7f]
  %v4453 = vld [vmem:[%s3815 + $0x10] sm:$0x7f]
  %v4454 = vld [vmem:[%s3815 + $0x18] sm:$0x7f]
  %v4455 = vld [vmem:[%s3815 + $0x20] sm:$0x7f]
  %v4456 = vld [vmem:[%s3815 + $0x28] sm:$0x7f]
  %v4457 = vld [vmem:[%s3815 + $0x30] sm:$0x7f]
  %v4459 = vperm.slane %v4450, 0
  %v4460 = vperm.slane %v4450, 1
  %v4461 = vperm.slane %v4450, 2
  %v4462 = vperm.slane %v4450, 3
  %v4463 = vperm.slane %v4450, 4
  %v4464 = vperm.slane %v4450, 5
  %v4465 = vperm.slane %v4450, 6
  %v4473 = vmul.f32 %v4451, %v4459
  %v4474 = vmul.f32 %v4452, %v4460
  %v4475 = vmul.f32 %v4453, %v4461
  %v4476 = vmul.f32 %v4454, %v4462
  %v4477 = vmul.f32 %v4455, %v4463
  %v4478 = vmul.f32 %v4456, %v4464
  %v4479 = vmul.f32 %v4457, %v4465
  %v4480 = vadd.f32 %v4441, %v4473
  %v4481 = vadd.f32 %v4442, %v4474
  %v4482 = vadd.f32 %v4443, %v4475
  %v4483 = vadd.f32 %v4444, %v4476
  %v4484 = vadd.f32 %v4445, %v4477
  %v4485 = vadd.f32 %v4446, %v4478
  %v4486 = vadd.f32 %v4447, %v4479
  %v4487 = vld [vmem:[%s351] ss:$8 sm:$0xf]
  %v4488 = vld [vmem:[%s351] ss:$8 sm:$0x70]
  %v4489 = vor.u32 %v4487, %v4488
  %v4490 = vld [vmem:[%s3855] sm:$0x7f]
  %v4491 = vld [vmem:[%s3855 + $0x8] sm:$0x7f]
  %v4492 = vld [vmem:[%s3855 + $0x10] sm:$0x7f]
  %v4493 = vld [vmem:[%s3855 + $0x18] sm:$0x7f]
  %v4494 = vld [vmem:[%s3855 + $0x20] sm:$0x7f]
  %v4495 = vld [vmem:[%s3855 + $0x28] sm:$0x7f]
  %v4496 = vld [vmem:[%s3855 + $0x30] sm:$0x7f]
  %v4498 = vperm.slane %v4489, 0
  %v4499 = vperm.slane %v4489, 1
  %v4500 = vperm.slane %v4489, 2
  %v4501 = vperm.slane %v4489, 3
  %v4502 = vperm.slane %v4489, 4
  %v4503 = vperm.slane %v4489, 5
  %v4504 = vperm.slane %v4489, 6
  %v4512 = vmul.f32 %v4490, %v4498
  %v4513 = vmul.f32 %v4491, %v4499
  %v4514 = vmul.f32 %v4492, %v4500
  %v4515 = vmul.f32 %v4493, %v4501
  %v4516 = vmul.f32 %v4494, %v4502
  %v4517 = vmul.f32 %v4495, %v4503
  %v4518 = vmul.f32 %v4496, %v4504
  %v4519 = vadd.f32 %v4480, %v4512
  %v4520 = vadd.f32 %v4481, %v4513
  %v4521 = vadd.f32 %v4482, %v4514
  %v4522 = vadd.f32 %v4483, %v4515
  %v4523 = vadd.f32 %v4484, %v4516
  %v4524 = vadd.f32 %v4485, %v4517
  %v4525 = vadd.f32 %v4486, %v4518
  %v4526 = vld [vmem:[%s392] ss:$8 sm:$0xf]
  %v4527 = vld [vmem:[%s392] ss:$8 sm:$0x70]
  %v4528 = vor.u32 %v4526, %v4527
  %v4529 = vld [vmem:[%s3895] sm:$0x7f]
  %v4530 = vld [vmem:[%s3895 + $0x8] sm:$0x7f]
  %v4531 = vld [vmem:[%s3895 + $0x10] sm:$0x7f]
  %v4532 = vld [vmem:[%s3895 + $0x18] sm:$0x7f]
  %v4533 = vld [vmem:[%s3895 + $0x20] sm:$0x7f]
  %v4534 = vld [vmem:[%s3895 + $0x28] sm:$0x7f]
  %v4535 = vld [vmem:[%s3895 + $0x30] sm:$0x7f]
  %v4537 = vperm.slane %v4528, 0
  %v4538 = vperm.slane %v4528, 1
  %v4539 = vperm.slane %v4528, 2
  %v4540 = vperm.slane %v4528, 3
  %v4541 = vperm.slane %v4528, 4
  %v4542 = vperm.slane %v4528, 5
  %v4543 = vperm.slane %v4528, 6
  %v4551 = vmul.f32 %v4529, %v4537
  %v4552 = vmul.f32 %v4530, %v4538
  %v4553 = vmul.f32 %v4531, %v4539
  %v4554 = vmul.f32 %v4532, %v4540
  %v4555 = vmul.f32 %v4533, %v4541
  %v4556 = vmul.f32 %v4534, %v4542
  %v4557 = vmul.f32 %v4535, %v4543
  %v4558 = vadd.f32 %v4519, %v4551
  %v4559 = vadd.f32 %v4520, %v4552
  %v4560 = vadd.f32 %v4521, %v4553
  %v4561 = vadd.f32 %v4522, %v4554
  %v4562 = vadd.f32 %v4523, %v4555
  %v4563 = vadd.f32 %v4524, %v4556
  %v4564 = vadd.f32 %v4525, %v4557
  %v4565 = vld [vmem:[%s433] ss:$8 sm:$0xf]
  %v4566 = vld [vmem:[%s433] ss:$8 sm:$0x70]
  %v4567 = vor.u32 %v4565, %v4566
  %v4568 = vld [vmem:[%s3935] sm:$0x7f]
  %v4569 = vld [vmem:[%s3935 + $0x8] sm:$0x7f]
  %v4570 = vld [vmem:[%s3935 + $0x10] sm:$0x7f]
  %v4571 = vld [vmem:[%s3935 + $0x18] sm:$0x7f]
  %v4572 = vld [vmem:[%s3935 + $0x20] sm:$0x7f]
  %v4573 = vld [vmem:[%s3935 + $0x28] sm:$0x7f]
  %v4574 = vld [vmem:[%s3935 + $0x30] sm:$0x7f]
  %v4576 = vperm.slane %v4567, 0
  %v4577 = vperm.slane %v4567, 1
  %v4578 = vperm.slane %v4567, 2
  %v4579 = vperm.slane %v4567, 3
  %v4580 = vperm.slane %v4567, 4
  %v4581 = vperm.slane %v4567, 5
  %v4582 = vperm.slane %v4567, 6
  %v4590 = vmul.f32 %v4568, %v4576
  %v4591 = vmul.f32 %v4569, %v4577
  %v4592 = vmul.f32 %v4570, %v4578
  %v4593 = vmul.f32 %v4571, %v4579
  %v4594 = vmul.f32 %v4572, %v4580
  %v4595 = vmul.f32 %v4573, %v4581
  %v4596 = vmul.f32 %v4574, %v4582
  %v4597 = vadd.f32 %v4558, %v4590
  %v4598 = vadd.f32 %v4559, %v4591
  %v4599 = vadd.f32 %v4560, %v4592
  %v4600 = vadd.f32 %v4561, %v4593
  %v4601 = vadd.f32 %v4562, %v4594
  %v4602 = vadd.f32 %v4563, %v4595
  %v4603 = vadd.f32 %v4564, %v4596
  %v4604 = vld [vmem:[%s474] ss:$8 sm:$0xf]
  %v4605 = vld [vmem:[%s474] ss:$8 sm:$0x70]
  %v4606 = vor.u32 %v4604, %v4605
  %v4607 = vld [vmem:[%s3975] sm:$0x7f]
  %v4608 = vld [vmem:[%s3975 + $0x8] sm:$0x7f]
  %v4609 = vld [vmem:[%s3975 + $0x10] sm:$0x7f]
  %v4610 = vld [vmem:[%s3975 + $0x18] sm:$0x7f]
  %v4611 = vld [vmem:[%s3975 + $0x20] sm:$0x7f]
  %v4612 = vld [vmem:[%s3975 + $0x28] sm:$0x7f]
  %v4613 = vld [vmem:[%s3975 + $0x30] sm:$0x7f]
  %v4615 = vperm.slane %v4606, 0
  %v4616 = vperm.slane %v4606, 1
  %v4617 = vperm.slane %v4606, 2
  %v4618 = vperm.slane %v4606, 3
  %v4619 = vperm.slane %v4606, 4
  %v4620 = vperm.slane %v4606, 5
  %v4621 = vperm.slane %v4606, 6
  %v4629 = vmul.f32 %v4607, %v4615
  %v4630 = vmul.f32 %v4608, %v4616
  %v4631 = vmul.f32 %v4609, %v4617
  %v4632 = vmul.f32 %v4610, %v4618
  %v4633 = vmul.f32 %v4611, %v4619
  %v4634 = vmul.f32 %v4612, %v4620
  %v4635 = vmul.f32 %v4613, %v4621
  %v4636 = vadd.f32 %v4597, %v4629
  %v4637 = vadd.f32 %v4598, %v4630
  %v4638 = vadd.f32 %v4599, %v4631
  %v4639 = vadd.f32 %v4600, %v4632
  %v4640 = vadd.f32 %v4601, %v4633
  %v4641 = vadd.f32 %v4602, %v4634
  %v4642 = vadd.f32 %v4603, %v4635
  %v4643 = vld [vmem:[%s515] ss:$8 sm:$0xf]
  %v4644 = vld [vmem:[%s515] ss:$8 sm:$0x70]
  %v4645 = vor.u32 %v4643, %v4644
  %v4646 = vld [vmem:[%s4015] sm:$0x7f]
  %v4647 = vld [vmem:[%s4015 + $0x8] sm:$0x7f]
  %v4648 = vld [vmem:[%s4015 + $0x10] sm:$0x7f]
  %v4649 = vld [vmem:[%s4015 + $0x18] sm:$0x7f]
  %v4650 = vld [vmem:[%s4015 + $0x20] sm:$0x7f]
  %v4651 = vld [vmem:[%s4015 + $0x28] sm:$0x7f]
  %v4652 = vld [vmem:[%s4015 + $0x30] sm:$0x7f]
  %v4654 = vperm.slane %v4645, 0
  %v4655 = vperm.slane %v4645, 1
  %v4656 = vperm.slane %v4645, 2
  %v4657 = vperm.slane %v4645, 3
  %v4658 = vperm.slane %v4645, 4
  %v4659 = vperm.slane %v4645, 5
  %v4660 = vperm.slane %v4645, 6
  %v4668 = vmul.f32 %v4646, %v4654
  %v4669 = vmul.f32 %v4647, %v4655
  %v4670 = vmul.f32 %v4648, %v4656
  %v4671 = vmul.f32 %v4649, %v4657
  %v4672 = vmul.f32 %v4650, %v4658
  %v4673 = vmul.f32 %v4651, %v4659
  %v4674 = vmul.f32 %v4652, %v4660
  %v4675 = vadd.f32 %v4636, %v4668
  %v4676 = vadd.f32 %v4637, %v4669
  %v4677 = vadd.f32 %v4638, %v4670
  %v4678 = vadd.f32 %v4639, %v4671
  %v4679 = vadd.f32 %v4640, %v4672
  %v4680 = vadd.f32 %v4641, %v4673
  %v4681 = vadd.f32 %v4642, %v4674
  %v4682 = vld [vmem:[%s556] ss:$8 sm:$0xf]
  %v4683 = vld [vmem:[%s556] ss:$8 sm:$0x70]
  %v4684 = vor.u32 %v4682, %v4683
  %v4685 = vld [vmem:[%s4055] sm:$0x7f]
  %v4686 = vld [vmem:[%s4055 + $0x8] sm:$0x7f]
  %v4687 = vld [vmem:[%s4055 + $0x10] sm:$0x7f]
  %v4688 = vld [vmem:[%s4055 + $0x18] sm:$0x7f]
  %v4689 = vld [vmem:[%s4055 + $0x20] sm:$0x7f]
  %v4690 = vld [vmem:[%s4055 + $0x28] sm:$0x7f]
  %v4691 = vld [vmem:[%s4055 + $0x30] sm:$0x7f]
  %v4693 = vperm.slane %v4684, 0
  %v4694 = vperm.slane %v4684, 1
  %v4695 = vperm.slane %v4684, 2
  %v4696 = vperm.slane %v4684, 3
  %v4697 = vperm.slane %v4684, 4
  %v4698 = vperm.slane %v4684, 5
  %v4699 = vperm.slane %v4684, 6
  %v4707 = vmul.f32 %v4685, %v4693
  %v4708 = vmul.f32 %v4686, %v4694
  %v4709 = vmul.f32 %v4687, %v4695
  %v4710 = vmul.f32 %v4688, %v4696
  %v4711 = vmul.f32 %v4689, %v4697
  %v4712 = vmul.f32 %v4690, %v4698
  %v4713 = vmul.f32 %v4691, %v4699
  %v4714 = vadd.f32 %v4675, %v4707
  %v4715 = vadd.f32 %v4676, %v4708
  %v4716 = vadd.f32 %v4677, %v4709
  %v4717 = vadd.f32 %v4678, %v4710
  %v4718 = vadd.f32 %v4679, %v4711
  %v4719 = vadd.f32 %v4680, %v4712
  %v4720 = vadd.f32 %v4681, %v4713
  %v4721 = vld [vmem:[%s597] ss:$8 sm:$0xf]
  %v4722 = vld [vmem:[%s597] ss:$8 sm:$0x70]
  %v4723 = vor.u32 %v4721, %v4722
  %v4724 = vld [vmem:[%s4095] sm:$0x7f]
  %v4725 = vld [vmem:[%s4095 + $0x8] sm:$0x7f]
  %v4726 = vld [vmem:[%s4095 + $0x10] sm:$0x7f]
  %v4727 = vld [vmem:[%s4095 + $0x18] sm:$0x7f]
  %v4728 = vld [vmem:[%s4095 + $0x20] sm:$0x7f]
  %v4729 = vld [vmem:[%s4095 + $0x28] sm:$0x7f]
  %v4730 = vld [vmem:[%s4095 + $0x30] sm:$0x7f]
  %v4732 = vperm.slane %v4723, 0
  %v4733 = vperm.slane %v4723, 1
  %v4734 = vperm.slane %v4723, 2
  %v4735 = vperm.slane %v4723, 3
  %v4736 = vperm.slane %v4723, 4
  %v4737 = vperm.slane %v4723, 5
  %v4738 = vperm.slane %v4723, 6
  %v4746 = vmul.f32 %v4724, %v4732
  %v4747 = vmul.f32 %v4725, %v4733
  %v4748 = vmul.f32 %v4726, %v4734
  %v4749 = vmul.f32 %v4727, %v4735
  %v4750 = vmul.f32 %v4728, %v4736
  %v4751 = vmul.f32 %v4729, %v4737
  %v4752 = vmul.f32 %v4730, %v4738
  %v4753 = vadd.f32 %v4714, %v4746
  %v4754 = vadd.f32 %v4715, %v4747
  %v4755 = vadd.f32 %v4716, %v4748
  %v4756 = vadd.f32 %v4717, %v4749
  %v4757 = vadd.f32 %v4718, %v4750
  %v4758 = vadd.f32 %v4719, %v4751
  %v4759 = vadd.f32 %v4720, %v4752
  %v4760 = vld [vmem:[%s638] ss:$8 sm:$0xf]
  %v4761 = vld [vmem:[%s638] ss:$8 sm:$0x70]
  %v4762 = vor.u32 %v4760, %v4761
  %s4763 = scalar_lea.vmem %s0, 616
  %v4764 = vld [vmem:[%s4763] sm:$0x7f]
  %v4765 = vld [vmem:[%s4763 + $0x8] sm:$0x7f]
  %v4766 = vld [vmem:[%s4763 + $0x10] sm:$0x7f]
  %v4767 = vld [vmem:[%s4763 + $0x18] sm:$0x7f]
  %v4768 = vld [vmem:[%s4763 + $0x20] sm:$0x7f]
  %v4769 = vld [vmem:[%s4763 + $0x28] sm:$0x7f]
  %v4770 = vld [vmem:[%s4763 + $0x30] sm:$0x7f]
  %v4772 = vperm.slane %v4762, 0
  %v4773 = vperm.slane %v4762, 1
  %v4774 = vperm.slane %v4762, 2
  %v4775 = vperm.slane %v4762, 3
  %v4776 = vperm.slane %v4762, 4
  %v4777 = vperm.slane %v4762, 5
  %v4778 = vperm.slane %v4762, 6
  %v4786 = vmul.f32 %v4764, %v4772
  %v4787 = vmul.f32 %v4765, %v4773
  %v4788 = vmul.f32 %v4766, %v4774
  %v4789 = vmul.f32 %v4767, %v4775
  %v4790 = vmul.f32 %v4768, %v4776
  %v4791 = vmul.f32 %v4769, %v4777
  %v4792 = vmul.f32 %v4770, %v4778
  %v4793 = vadd.f32 %v4753, %v4786
  %v4794 = vadd.f32 %v4754, %v4787
  %v4795 = vadd.f32 %v4755, %v4788
  %v4796 = vadd.f32 %v4756, %v4789
  %v4797 = vadd.f32 %v4757, %v4790
  %v4798 = vadd.f32 %v4758, %v4791
  %v4799 = vadd.f32 %v4759, %v4792
  %v4800 = vld [vmem:[%s679] ss:$8 sm:$0xf]
  %v4801 = vld [vmem:[%s679] ss:$8 sm:$0x70]
  %v4802 = vor.u32 %v4800, %v4801
  %s4803 = scalar_lea.vmem %s1, 616
  %v4804 = vld [vmem:[%s4803] sm:$0x7f]
  %v4805 = vld [vmem:[%s4803 + $0x8] sm:$0x7f]
  %v4806 = vld [vmem:[%s4803 + $0x10] sm:$0x7f]
  %v4807 = vld [vmem:[%s4803 + $0x18] sm:$0x7f]
  %v4808 = vld [vmem:[%s4803 + $0x20] sm:$0x7f]
  %v4809 = vld [vmem:[%s4803 + $0x28] sm:$0x7f]
  %v4810 = vld [vmem:[%s4803 + $0x30] sm:$0x7f]
  %v4812 = vperm.slane %v4802, 0
  %v4813 = vperm.slane %v4802, 1
  %v4814 = vperm.slane %v4802, 2
  %v4815 = vperm.slane %v4802, 3
  %v4816 = vperm.slane %v4802, 4
  %v4817 = vperm.slane %v4802, 5
  %v4818 = vperm.slane %v4802, 6
  %v4826 = vmul.f32 %v4804, %v4812
  %v4827 = vmul.f32 %v4805, %v4813
  %v4828 = vmul.f32 %v4806, %v4814
  %v4829 = vmul.f32 %v4807, %v4815
  %v4830 = vmul.f32 %v4808, %v4816
  %v4831 = vmul.f32 %v4809, %v4817
  %v4832 = vmul.f32 %v4810, %v4818
  %v4833 = vadd.f32 %v4793, %v4826
  %v4834 = vadd.f32 %v4794, %v4827
  %v4835 = vadd.f32 %v4795, %v4828
  %v4836 = vadd.f32 %v4796, %v4829
  %v4837 = vadd.f32 %v4797, %v4830
  %v4838 = vadd.f32 %v4798, %v4831
  %v4839 = vadd.f32 %v4799, %v4832
  %v4840 = vld [vmem:[%s720] ss:$8 sm:$0xf]
  %v4841 = vld [vmem:[%s720] ss:$8 sm:$0x70]
  %v4842 = vor.u32 %v4840, %v4841
  %s4843 = scalar_lea.vmem %s2, 616
  %v4844 = vld [vmem:[%s4843] sm:$0x7f]
  %v4845 = vld [vmem:[%s4843 + $0x8] sm:$0x7f]
  %v4846 = vld [vmem:[%s4843 + $0x10] sm:$0x7f]
  %v4847 = vld [vmem:[%s4843 + $0x18] sm:$0x7f]
  %v4848 = vld [vmem:[%s4843 + $0x20] sm:$0x7f]
  %v4849 = vld [vmem:[%s4843 + $0x28] sm:$0x7f]
  %v4850 = vld [vmem:[%s4843 + $0x30] sm:$0x7f]
  %v4852 = vperm.slane %v4842, 0
  %v4853 = vperm.slane %v4842, 1
  %v4854 = vperm.slane %v4842, 2
  %v4855 = vperm.slane %v4842, 3
  %v4856 = vperm.slane %v4842, 4
  %v4857 = vperm.slane %v4842, 5
  %v4858 = vperm.slane %v4842, 6
  %v4866 = vmul.f32 %v4844, %v4852
  %v4867 = vmul.f32 %v4845, %v4853
  %v4868 = vmul.f32 %v4846, %v4854
  %v4869 = vmul.f32 %v4847, %v4855
  %v4870 = vmul.f32 %v4848, %v4856
  %v4871 = vmul.f32 %v4849, %v4857
  %v4872 = vmul.f32 %v4850, %v4858
  %v4873 = vadd.f32 %v4833, %v4866
  %v4874 = vadd.f32 %v4834, %v4867
  %v4875 = vadd.f32 %v4835, %v4868
  %v4876 = vadd.f32 %v4836, %v4869
  %v4877 = vadd.f32 %v4837, %v4870
  %v4878 = vadd.f32 %v4838, %v4871
  %v4879 = vadd.f32 %v4839, %v4872
  %v4880 = vld [vmem:[%s761] ss:$8 sm:$0xf]
  %v4881 = vld [vmem:[%s761] ss:$8 sm:$0x70]
  %v4882 = vor.u32 %v4880, %v4881
  %s4883 = scalar_lea.vmem %s3, 616
  %v4884 = vld [vmem:[%s4883] sm:$0x7f]
  %v4885 = vld [vmem:[%s4883 + $0x8] sm:$0x7f]
  %v4886 = vld [vmem:[%s4883 + $0x10] sm:$0x7f]
  %v4887 = vld [vmem:[%s4883 + $0x18] sm:$0x7f]
  %v4888 = vld [vmem:[%s4883 + $0x20] sm:$0x7f]
  %v4889 = vld [vmem:[%s4883 + $0x28] sm:$0x7f]
  %v4890 = vld [vmem:[%s4883 + $0x30] sm:$0x7f]
  %v4892 = vperm.slane %v4882, 0
  %v4893 = vperm.slane %v4882, 1
  %v4894 = vperm.slane %v4882, 2
  %v4895 = vperm.slane %v4882, 3
  %v4896 = vperm.slane %v4882, 4
  %v4897 = vperm.slane %v4882, 5
  %v4898 = vperm.slane %v4882, 6
  %v4906 = vmul.f32 %v4884, %v4892
  %v4907 = vmul.f32 %v4885, %v4893
  %v4908 = vmul.f32 %v4886, %v4894
  %v4909 = vmul.f32 %v4887, %v4895
  %v4910 = vmul.f32 %v4888, %v4896
  %v4911 = vmul.f32 %v4889, %v4897
  %v4912 = vmul.f32 %v4890, %v4898
  %v4913 = vadd.f32 %v4873, %v4906
  %v4914 = vadd.f32 %v4874, %v4907
  %v4915 = vadd.f32 %v4875, %v4908
  %v4916 = vadd.f32 %v4876, %v4909
  %v4917 = vadd.f32 %v4877, %v4910
  %v4918 = vadd.f32 %v4878, %v4911
  %v4919 = vadd.f32 %v4879, %v4912
  %v4920 = vld [vmem:[%s802] ss:$8 sm:$0xf]
  %v4921 = vld [vmem:[%s802] ss:$8 sm:$0x70]
  %v4922 = vor.u32 %v4920, %v4921
  %s4923 = scalar_lea.vmem %s4, 616
  %v4924 = vld [vmem:[%s4923] sm:$0x7f]
  %v4925 = vld [vmem:[%s4923 + $0x8] sm:$0x7f]
  %v4926 = vld [vmem:[%s4923 + $0x10] sm:$0x7f]
  %v4927 = vld [vmem:[%s4923 + $0x18] sm:$0x7f]
  %v4928 = vld [vmem:[%s4923 + $0x20] sm:$0x7f]
  %v4929 = vld [vmem:[%s4923 + $0x28] sm:$0x7f]
  %v4930 = vld [vmem:[%s4923 + $0x30] sm:$0x7f]
  %v4932 = vperm.slane %v4922, 0
  %v4933 = vperm.slane %v4922, 1
  %v4934 = vperm.slane %v4922, 2
  %v4935 = vperm.slane %v4922, 3
  %v4936 = vperm.slane %v4922, 4
  %v4937 = vperm.slane %v4922, 5
  %v4938 = vperm.slane %v4922, 6
  %v4946 = vmul.f32 %v4924, %v4932
  %v4947 = vmul.f32 %v4925, %v4933
  %v4948 = vmul.f32 %v4926, %v4934
  %v4949 = vmul.f32 %v4927, %v4935
  %v4950 = vmul.f32 %v4928, %v4936
  %v4951 = vmul.f32 %v4929, %v4937
  %v4952 = vmul.f32 %v4930, %v4938
  %v4953 = vadd.f32 %v4913, %v4946
  %v4954 = vadd.f32 %v4914, %v4947
  %v4955 = vadd.f32 %v4915, %v4948
  %v4956 = vadd.f32 %v4916, %v4949
  %v4957 = vadd.f32 %v4917, %v4950
  %v4958 = vadd.f32 %v4918, %v4951
  %v4959 = vadd.f32 %v4919, %v4952
  %v4960 = vld [vmem:[%s843] ss:$8 sm:$0xf]
  %v4961 = vld [vmem:[%s843] ss:$8 sm:$0x70]
  %v4962 = vor.u32 %v4960, %v4961
  %s4963 = scalar_lea.vmem %s0, 672
  %v4964 = vld [vmem:[%s4963] sm:$0x7f]
  %v4965 = vld [vmem:[%s4963 + $0x8] sm:$0x7f]
  %v4966 = vld [vmem:[%s4963 + $0x10] sm:$0x7f]
  %v4967 = vld [vmem:[%s4963 + $0x18] sm:$0x7f]
  %v4968 = vld [vmem:[%s4963 + $0x20] sm:$0x7f]
  %v4969 = vld [vmem:[%s4963 + $0x28] sm:$0x7f]
  %v4970 = vld [vmem:[%s4963 + $0x30] sm:$0x7f]
  %v4972 = vperm.slane %v4962, 0
  %v4973 = vperm.slane %v4962, 1
  %v4974 = vperm.slane %v4962, 2
  %v4975 = vperm.slane %v4962, 3
  %v4976 = vperm.slane %v4962, 4
  %v4977 = vperm.slane %v4962, 5
  %v4978 = vperm.slane %v4962, 6
  %v4986 = vmul.f32 %v4964, %v4972
  %v4987 = vmul.f32 %v4965, %v4973
  %v4988 = vmul.f32 %v4966, %v4974
  %v4989 = vmul.f32 %v4967, %v4975
  %v4990 = vmul.f32 %v4968, %v4976
  %v4991 = vmul.f32 %v4969, %v4977
  %v4992 = vmul.f32 %v4970, %v4978
  %v4993 = vadd.f32 %v4953, %v4986
  %v4994 = vadd.f32 %v4954, %v4987
  %v4995 = vadd.f32 %v4955, %v4988
  %v4996 = vadd.f32 %v4956, %v4989
  %v4997 = vadd.f32 %v4957, %v4990
  %v4998 = vadd.f32 %v4958, %v4991
  %v4999 = vadd.f32 %v4959, %v4992
  %v5000 = vld [vmem:[%s884] ss:$8 sm:$0xf]
  %v5001 = vld [vmem:[%s884] ss:$8 sm:$0x70]
  %v5002 = vor.u32 %v5000, %v5001
  %s5003 = scalar_lea.vmem %s1, 672
  %v5004 = vld [vmem:[%s5003] sm:$0x7f]
  %v5005 = vld [vmem:[%s5003 + $0x8] sm:$0x7f]
  %v5006 = vld [vmem:[%s5003 + $0x10] sm:$0x7f]
  %v5007 = vld [vmem:[%s5003 + $0x18] sm:$0x7f]
  %v5008 = vld [vmem:[%s5003 + $0x20] sm:$0x7f]
  %v5009 = vld [vmem:[%s5003 + $0x28] sm:$0x7f]
  %v5010 = vld [vmem:[%s5003 + $0x30] sm:$0x7f]
  %v5012 = vperm.slane %v5002, 0
  %v5013 = vperm.slane %v5002, 1
  %v5014 = vperm.slane %v5002, 2
  %v5015 = vperm.slane %v5002, 3
  %v5016 = vperm.slane %v5002, 4
  %v5017 = vperm.slane %v5002, 5
  %v5018 = vperm.slane %v5002, 6
  %v5026 = vmul.f32 %v5004, %v5012
  %v5027 = vmul.f32 %v5005, %v5013
  %v5028 = vmul.f32 %v5006, %v5014
  %v5029 = vmul.f32 %v5007, %v5015
  %v5030 = vmul.f32 %v5008, %v5016
  %v5031 = vmul.f32 %v5009, %v5017
  %v5032 = vmul.f32 %v5010, %v5018
  %v5033 = vadd.f32 %v4993, %v5026
  %v5034 = vadd.f32 %v4994, %v5027
  %v5035 = vadd.f32 %v4995, %v5028
  %v5036 = vadd.f32 %v4996, %v5029
  %v5037 = vadd.f32 %v4997, %v5030
  %v5038 = vadd.f32 %v4998, %v5031
  %v5039 = vadd.f32 %v4999, %v5032
  %v5040 = vld [vmem:[%s925] ss:$8 sm:$0xf]
  %v5041 = vld [vmem:[%s925] ss:$8 sm:$0x70]
  %v5042 = vor.u32 %v5040, %v5041
  %s5043 = scalar_lea.vmem %s2, 672
  %v5044 = vld [vmem:[%s5043] sm:$0x7f]
  %v5045 = vld [vmem:[%s5043 + $0x8] sm:$0x7f]
  %v5046 = vld [vmem:[%s5043 + $0x10] sm:$0x7f]
  %v5047 = vld [vmem:[%s5043 + $0x18] sm:$0x7f]
  %v5048 = vld [vmem:[%s5043 + $0x20] sm:$0x7f]
  %v5049 = vld [vmem:[%s5043 + $0x28] sm:$0x7f]
  %v5050 = vld [vmem:[%s5043 + $0x30] sm:$0x7f]
  %v5052 = vperm.slane %v5042, 0
  %v5053 = vperm.slane %v5042, 1
  %v5054 = vperm.slane %v5042, 2
  %v5055 = vperm.slane %v5042, 3
  %v5056 = vperm.slane %v5042, 4
  %v5057 = vperm.slane %v5042, 5
  %v5058 = vperm.slane %v5042, 6
  %v5066 = vmul.f32 %v5044, %v5052
  %v5067 = vmul.f32 %v5045, %v5053
  %v5068 = vmul.f32 %v5046, %v5054
  %v5069 = vmul.f32 %v5047, %v5055
  %v5070 = vmul.f32 %v5048, %v5056
  %v5071 = vmul.f32 %v5049, %v5057
  %v5072 = vmul.f32 %v5050, %v5058
  %v5073 = vadd.f32 %v5033, %v5066
  %v5074 = vadd.f32 %v5034, %v5067
  %v5075 = vadd.f32 %v5035, %v5068
  %v5076 = vadd.f32 %v5036, %v5069
  %v5077 = vadd.f32 %v5037, %v5070
  %v5078 = vadd.f32 %v5038, %v5071
  %v5079 = vadd.f32 %v5039, %v5072
  %v5080 = vld [vmem:[%s966] ss:$8 sm:$0xf]
  %v5081 = vld [vmem:[%s966] ss:$8 sm:$0x70]
  %v5082 = vor.u32 %v5080, %v5081
  %s5083 = scalar_lea.vmem %s3, 672
  %v5084 = vld [vmem:[%s5083] sm:$0x7f]
  %v5085 = vld [vmem:[%s5083 + $0x8] sm:$0x7f]
  %v5086 = vld [vmem:[%s5083 + $0x10] sm:$0x7f]
  %v5087 = vld [vmem:[%s5083 + $0x18] sm:$0x7f]
  %v5088 = vld [vmem:[%s5083 + $0x20] sm:$0x7f]
  %v5089 = vld [vmem:[%s5083 + $0x28] sm:$0x7f]
  %v5090 = vld [vmem:[%s5083 + $0x30] sm:$0x7f]
  %v5092 = vperm.slane %v5082, 0
  %v5093 = vperm.slane %v5082, 1
  %v5094 = vperm.slane %v5082, 2
  %v5095 = vperm.slane %v5082, 3
  %v5096 = vperm.slane %v5082, 4
  %v5097 = vperm.slane %v5082, 5
  %v5098 = vperm.slane %v5082, 6
  %v5106 = vmul.f32 %v5084, %v5092
  %v5107 = vmul.f32 %v5085, %v5093
  %v5108 = vmul.f32 %v5086, %v5094
  %v5109 = vmul.f32 %v5087, %v5095
  %v5110 = vmul.f32 %v5088, %v5096
  %v5111 = vmul.f32 %v5089, %v5097
  %v5112 = vmul.f32 %v5090, %v5098
  %v5113 = vadd.f32 %v5073, %v5106
  %v5114 = vadd.f32 %v5074, %v5107
  %v5115 = vadd.f32 %v5075, %v5108
  %v5116 = vadd.f32 %v5076, %v5109
  %v5117 = vadd.f32 %v5077, %v5110
  %v5118 = vadd.f32 %v5078, %v5111
  %v5119 = vadd.f32 %v5079, %v5112
  %v5120 = vld [vmem:[%s1007] ss:$8 sm:$0xf]
  %v5121 = vld [vmem:[%s1007] ss:$8 sm:$0x70]
  %v5122 = vor.u32 %v5120, %v5121
  %s5123 = scalar_lea.vmem %s4, 672
  %v5124 = vld [vmem:[%s5123] sm:$0x7f]
  %v5125 = vld [vmem:[%s5123 + $0x8] sm:$0x7f]
  %v5126 = vld [vmem:[%s5123 + $0x10] sm:$0x7f]
  %v5127 = vld [vmem:[%s5123 + $0x18] sm:$0x7f]
  %v5128 = vld [vmem:[%s5123 + $0x20] sm:$0x7f]
  %v5129 = vld [vmem:[%s5123 + $0x28] sm:$0x7f]
  %v5130 = vld [vmem:[%s5123 + $0x30] sm:$0x7f]
  %v5132 = vperm.slane %v5122, 0
  %v5133 = vperm.slane %v5122, 1
  %v5134 = vperm.slane %v5122, 2
  %v5135 = vperm.slane %v5122, 3
  %v5136 = vperm.slane %v5122, 4
  %v5137 = vperm.slane %v5122, 5
  %v5138 = vperm.slane %v5122, 6
  %v5146 = vmul.f32 %v5124, %v5132
  %v5147 = vmul.f32 %v5125, %v5133
  %v5148 = vmul.f32 %v5126, %v5134
  %v5149 = vmul.f32 %v5127, %v5135
  %v5150 = vmul.f32 %v5128, %v5136
  %v5151 = vmul.f32 %v5129, %v5137
  %v5152 = vmul.f32 %v5130, %v5138
  %v5153 = vadd.f32 %v5113, %v5146
  %v5154 = vadd.f32 %v5114, %v5147
  %v5155 = vadd.f32 %v5115, %v5148
  %v5156 = vadd.f32 %v5116, %v5149
  %v5157 = vadd.f32 %v5117, %v5150
  %v5158 = vadd.f32 %v5118, %v5151
  %v5159 = vadd.f32 %v5119, %v5152
  %s5160 = scalar_lea.vmem %s8, 224
  %5161 = vst [vmem:[%s5160] sm:$0x7f] %v5153
  %5162 = vst [vmem:[%s5160 + $0x8] sm:$0x7f] %v5154
  %5163 = vst [vmem:[%s5160 + $0x10] sm:$0x7f] %v5155
  %5164 = vst [vmem:[%s5160 + $0x18] sm:$0x7f] %v5156
  %5165 = vst [vmem:[%s5160 + $0x20] sm:$0x7f] %v5157
  %5166 = vst [vmem:[%s5160 + $0x28] sm:$0x7f] %v5158
  %5167 = vst.msk [vmem:[%s5160 + $0x30] sm:$0x7f] %vm1054, %v5159
  %v5168 = vadd.f32 %v5153, 0.0
  %v5169 = vadd.f32 %v5154, 0.0
  %v5170 = vadd.f32 %v5155, 0.0
  %v5171 = vadd.f32 %v5156, 0.0
  %v5172 = vadd.f32 %v5157, 0.0
  %v5173 = vadd.f32 %v5158, 0.0
  %v5174 = vadd.f32 %v5159, 0.0
  %v5175 = vadd.f32 %v4147, %v5168
  %v5176 = vadd.f32 %v4148, %v5169
  %v5177 = vadd.f32 %v4149, %v5170
  %v5178 = vadd.f32 %v4150, %v5171
  %v5179 = vadd.f32 %v4151, %v5172
  %v5180 = vadd.f32 %v4152, %v5173
  %v5181 = vadd.f32 %v4153, %v5174
  %v5182 = vmul.f32 %v5153, %v5153
  %v5183 = vmul.f32 %v5154, %v5154
  %v5184 = vmul.f32 %v5155, %v5155
  %v5185 = vmul.f32 %v5156, %v5156
  %v5186 = vmul.f32 %v5157, %v5157
  %v5187 = vmul.f32 %v5158, %v5158
  %v5188 = vmul.f32 %v5159, %v5159
  %v5189 = vadd.f32 %v5182, 0.0
  %v5190 = vadd.f32 %v5183, 0.0
  %v5191 = vadd.f32 %v5184, 0.0
  %v5192 = vadd.f32 %v5185, 0.0
  %v5193 = vadd.f32 %v5186, 0.0
  %v5194 = vadd.f32 %v5187, 0.0
  %v5195 = vadd.f32 %v5188, 0.0
  %v5196 = vadd.f32 %v4168, %v5189
  %v5197 = vadd.f32 %v4169, %v5190
  %v5198 = vadd.f32 %v4170, %v5191
  %v5199 = vadd.f32 %v4171, %v5192
  %v5200 = vadd.f32 %v4172, %v5193
  %v5201 = vadd.f32 %v4173, %v5194
  %v5202 = vadd.f32 %v4174, %v5195
  %v5203 = vld [vmem:[%s5] ss:$8 sm:$0xf]
  %v5204 = vld [vmem:[%s5] ss:$8 sm:$0x70]
  %v5205 = vor.u32 %v5203, %v5204
  %v5206 = vld [vmem:[%s3935] sm:$0x7f]
  %v5207 = vld [vmem:[%s3935 + $0x8] sm:$0x7f]
  %v5208 = vld [vmem:[%s3935 + $0x10] sm:$0x7f]
  %v5209 = vld [vmem:[%s3935 + $0x18] sm:$0x7f]
  %v5210 = vld [vmem:[%s3935 + $0x20] sm:$0x7f]
  %v5211 = vld [vmem:[%s3935 + $0x28] sm:$0x7f]
  %v5212 = vld [vmem:[%s3935 + $0x30] sm:$0x7f]
  %v5214 = vperm.slane %v5205, 0
  %v5215 = vperm.slane %v5205, 1
  %v5216 = vperm.slane %v5205, 2
  %v5217 = vperm.slane %v5205, 3
  %v5218 = vperm.slane %v5205, 4
  %v5219 = vperm.slane %v5205, 5
  %v5220 = vperm.slane %v5205, 6
  %v5228 = vmul.f32 %v5206, %v5214
  %v5229 = vmul.f32 %v5207, %v5215
  %v5230 = vmul.f32 %v5208, %v5216
  %v5231 = vmul.f32 %v5209, %v5217
  %v5232 = vmul.f32 %v5210, %v5218
  %v5233 = vmul.f32 %v5211, %v5219
  %v5234 = vmul.f32 %v5212, %v5220
  %v5235 = vadd.f32 %v5228, 0.0
  %v5236 = vadd.f32 %v5229, 0.0
  %v5237 = vadd.f32 %v5230, 0.0
  %v5238 = vadd.f32 %v5231, 0.0
  %v5239 = vadd.f32 %v5232, 0.0
  %v5240 = vadd.f32 %v5233, 0.0
  %v5241 = vadd.f32 %v5234, 0.0
  %v5242 = vld [vmem:[%s68] ss:$8 sm:$0xf]
  %v5243 = vld [vmem:[%s68] ss:$8 sm:$0x70]
  %v5244 = vor.u32 %v5242, %v5243
  %v5245 = vld [vmem:[%s3975] sm:$0x7f]
  %v5246 = vld [vmem:[%s3975 + $0x8] sm:$0x7f]
  %v5247 = vld [vmem:[%s3975 + $0x10] sm:$0x7f]
  %v5248 = vld [vmem:[%s3975 + $0x18] sm:$0x7f]
  %v5249 = vld [vmem:[%s3975 + $0x20] sm:$0x7f]
  %v5250 = vld [vmem:[%s3975 + $0x28] sm:$0x7f]
  %v5251 = vld [vmem:[%s3975 + $0x30] sm:$0x7f]
  %v5253 = vperm.slane %v5244, 0
  %v5254 = vperm.slane %v5244, 1
  %v5255 = vperm.slane %v5244, 2
  %v5256 = vperm.slane %v5244, 3
  %v5257 = vperm.slane %v5244, 4
  %v5258 = vperm.slane %v5244, 5
  %v5259 = vperm.slane %v5244, 6
  %v5267 = vmul.f32 %v5245, %v5253
  %v5268 = vmul.f32 %v5246, %v5254
  %v5269 = vmul.f32 %v5247, %v5255
  %v5270 = vmul.f32 %v5248, %v5256
  %v5271 = vmul.f32 %v5249, %v5257
  %v5272 = vmul.f32 %v5250, %v5258
  %v5273 = vmul.f32 %v5251, %v5259
  %v5274 = vadd.f32 %v5235, %v5267
  %v5275 = vadd.f32 %v5236, %v5268
  %v5276 = vadd.f32 %v5237, %v5269
  %v5277 = vadd.f32 %v5238, %v5270
  %v5278 = vadd.f32 %v5239, %v5271
  %v5279 = vadd.f32 %v5240, %v5272
  %v5280 = vadd.f32 %v5241, %v5273
  %v5281 = vld [vmem:[%s108] ss:$8 sm:$0xf]
  %v5282 = vld [vmem:[%s108] ss:$8 sm:$0x70]
  %v5283 = vor.u32 %v5281, %v5282
  %v5284 = vld [vmem:[%s4015] sm:$0x7f]
  %v5285 = vld [vmem:[%s4015 + $0x8] sm:$0x7f]
  %v5286 = vld [vmem:[%s4015 + $0x10] sm:$0x7f]
  %v5287 = vld [vmem:[%s4015 + $0x18] sm:$0x7f]
  %v5288 = vld [vmem:[%s4015 + $0x20] sm:$0x7f]
  %v5289 = vld [vmem:[%s4015 + $0x28] sm:$0x7f]
  %v5290 = vld [vmem:[%s4015 + $0x30] sm:$0x7f]
  %v5292 = vperm.slane %v5283, 0
  %v5293 = vperm.slane %v5283, 1
  %v5294 = vperm.slane %v5283, 2
  %v5295 = vperm.slane %v5283, 3
  %v5296 = vperm.slane %v5283, 4
  %v5297 = vperm.slane %v5283, 5
  %v5298 = vperm.slane %v5283, 6
  %v5306 = vmul.f32 %v5284, %v5292
  %v5307 = vmul.f32 %v5285, %v5293
  %v5308 = vmul.f32 %v5286, %v5294
  %v5309 = vmul.f32 %v5287, %v5295
  %v5310 = vmul.f32 %v5288, %v5296
  %v5311 = vmul.f32 %v5289, %v5297
  %v5312 = vmul.f32 %v5290, %v5298
  %v5313 = vadd.f32 %v5274, %v5306
  %v5314 = vadd.f32 %v5275, %v5307
  %v5315 = vadd.f32 %v5276, %v5308
  %v5316 = vadd.f32 %v5277, %v5309
  %v5317 = vadd.f32 %v5278, %v5310
  %v5318 = vadd.f32 %v5279, %v5311
  %v5319 = vadd.f32 %v5280, %v5312
  %v5320 = vld [vmem:[%s148] ss:$8 sm:$0xf]
  %v5321 = vld [vmem:[%s148] ss:$8 sm:$0x70]
  %v5322 = vor.u32 %v5320, %v5321
  %v5323 = vld [vmem:[%s4055] sm:$0x7f]
  %v5324 = vld [vmem:[%s4055 + $0x8] sm:$0x7f]
  %v5325 = vld [vmem:[%s4055 + $0x10] sm:$0x7f]
  %v5326 = vld [vmem:[%s4055 + $0x18] sm:$0x7f]
  %v5327 = vld [vmem:[%s4055 + $0x20] sm:$0x7f]
  %v5328 = vld [vmem:[%s4055 + $0x28] sm:$0x7f]
  %v5329 = vld [vmem:[%s4055 + $0x30] sm:$0x7f]
  %v5331 = vperm.slane %v5322, 0
  %v5332 = vperm.slane %v5322, 1
  %v5333 = vperm.slane %v5322, 2
  %v5334 = vperm.slane %v5322, 3
  %v5335 = vperm.slane %v5322, 4
  %v5336 = vperm.slane %v5322, 5
  %v5337 = vperm.slane %v5322, 6
  %v5345 = vmul.f32 %v5323, %v5331
  %v5346 = vmul.f32 %v5324, %v5332
  %v5347 = vmul.f32 %v5325, %v5333
  %v5348 = vmul.f32 %v5326, %v5334
  %v5349 = vmul.f32 %v5327, %v5335
  %v5350 = vmul.f32 %v5328, %v5336
  %v5351 = vmul.f32 %v5329, %v5337
  %v5352 = vadd.f32 %v5313, %v5345
  %v5353 = vadd.f32 %v5314, %v5346
  %v5354 = vadd.f32 %v5315, %v5347
  %v5355 = vadd.f32 %v5316, %v5348
  %v5356 = vadd.f32 %v5317, %v5349
  %v5357 = vadd.f32 %v5318, %v5350
  %v5358 = vadd.f32 %v5319, %v5351
  %v5359 = vld [vmem:[%s188] ss:$8 sm:$0xf]
  %v5360 = vld [vmem:[%s188] ss:$8 sm:$0x70]
  %v5361 = vor.u32 %v5359, %v5360
  %v5362 = vld [vmem:[%s4095] sm:$0x7f]
  %v5363 = vld [vmem:[%s4095 + $0x8] sm:$0x7f]
  %v5364 = vld [vmem:[%s4095 + $0x10] sm:$0x7f]
  %v5365 = vld [vmem:[%s4095 + $0x18] sm:$0x7f]
  %v5366 = vld [vmem:[%s4095 + $0x20] sm:$0x7f]
  %v5367 = vld [vmem:[%s4095 + $0x28] sm:$0x7f]
  %v5368 = vld [vmem:[%s4095 + $0x30] sm:$0x7f]
  %v5370 = vperm.slane %v5361, 0
  %v5371 = vperm.slane %v5361, 1
  %v5372 = vperm.slane %v5361, 2
  %v5373 = vperm.slane %v5361, 3
  %v5374 = vperm.slane %v5361, 4
  %v5375 = vperm.slane %v5361, 5
  %v5376 = vperm.slane %v5361, 6
  %v5384 = vmul.f32 %v5362, %v5370
  %v5385 = vmul.f32 %v5363, %v5371
  %v5386 = vmul.f32 %v5364, %v5372
  %v5387 = vmul.f32 %v5365, %v5373
  %v5388 = vmul.f32 %v5366, %v5374
  %v5389 = vmul.f32 %v5367, %v5375
  %v5390 = vmul.f32 %v5368, %v5376
  %v5391 = vadd.f32 %v5352, %v5384
  %v5392 = vadd.f32 %v5353, %v5385
  %v5393 = vadd.f32 %v5354, %v5386
  %v5394 = vadd.f32 %v5355, %v5387
  %v5395 = vadd.f32 %v5356, %v5388
  %v5396 = vadd.f32 %v5357, %v5389
  %v5397 = vadd.f32 %v5358, %v5390
  %v5398 = vld [vmem:[%s228] ss:$8 sm:$0xf]
  %v5399 = vld [vmem:[%s228] ss:$8 sm:$0x70]
  %v5400 = vor.u32 %v5398, %v5399
  %v5401 = vld [vmem:[%s4763] sm:$0x7f]
  %v5402 = vld [vmem:[%s4763 + $0x8] sm:$0x7f]
  %v5403 = vld [vmem:[%s4763 + $0x10] sm:$0x7f]
  %v5404 = vld [vmem:[%s4763 + $0x18] sm:$0x7f]
  %v5405 = vld [vmem:[%s4763 + $0x20] sm:$0x7f]
  %v5406 = vld [vmem:[%s4763 + $0x28] sm:$0x7f]
  %v5407 = vld [vmem:[%s4763 + $0x30] sm:$0x7f]
  %v5409 = vperm.slane %v5400, 0
  %v5410 = vperm.slane %v5400, 1
  %v5411 = vperm.slane %v5400, 2
  %v5412 = vperm.slane %v5400, 3
  %v5413 = vperm.slane %v5400, 4
  %v5414 = vperm.slane %v5400, 5
  %v5415 = vperm.slane %v5400, 6
  %v5423 = vmul.f32 %v5401, %v5409
  %v5424 = vmul.f32 %v5402, %v5410
  %v5425 = vmul.f32 %v5403, %v5411
  %v5426 = vmul.f32 %v5404, %v5412
  %v5427 = vmul.f32 %v5405, %v5413
  %v5428 = vmul.f32 %v5406, %v5414
  %v5429 = vmul.f32 %v5407, %v5415
  %v5430 = vadd.f32 %v5391, %v5423
  %v5431 = vadd.f32 %v5392, %v5424
  %v5432 = vadd.f32 %v5393, %v5425
  %v5433 = vadd.f32 %v5394, %v5426
  %v5434 = vadd.f32 %v5395, %v5427
  %v5435 = vadd.f32 %v5396, %v5428
  %v5436 = vadd.f32 %v5397, %v5429
  %v5437 = vld [vmem:[%s269] ss:$8 sm:$0xf]
  %v5438 = vld [vmem:[%s269] ss:$8 sm:$0x70]
  %v5439 = vor.u32 %v5437, %v5438
  %v5440 = vld [vmem:[%s4803] sm:$0x7f]
  %v5441 = vld [vmem:[%s4803 + $0x8] sm:$0x7f]
  %v5442 = vld [vmem:[%s4803 + $0x10] sm:$0x7f]
  %v5443 = vld [vmem:[%s4803 + $0x18] sm:$0x7f]
  %v5444 = vld [vmem:[%s4803 + $0x20] sm:$0x7f]
  %v5445 = vld [vmem:[%s4803 + $0x28] sm:$0x7f]
  %v5446 = vld [vmem:[%s4803 + $0x30] sm:$0x7f]
  %v5448 = vperm.slane %v5439, 0
  %v5449 = vperm.slane %v5439, 1
  %v5450 = vperm.slane %v5439, 2
  %v5451 = vperm.slane %v5439, 3
  %v5452 = vperm.slane %v5439, 4
  %v5453 = vperm.slane %v5439, 5
  %v5454 = vperm.slane %v5439, 6
  %v5462 = vmul.f32 %v5440, %v5448
  %v5463 = vmul.f32 %v5441, %v5449
  %v5464 = vmul.f32 %v5442, %v5450
  %v5465 = vmul.f32 %v5443, %v5451
  %v5466 = vmul.f32 %v5444, %v5452
  %v5467 = vmul.f32 %v5445, %v5453
  %v5468 = vmul.f32 %v5446, %v5454
  %v5469 = vadd.f32 %v5430, %v5462
  %v5470 = vadd.f32 %v5431, %v5463
  %v5471 = vadd.f32 %v5432, %v5464
  %v5472 = vadd.f32 %v5433, %v5465
  %v5473 = vadd.f32 %v5434, %v5466
  %v5474 = vadd.f32 %v5435, %v5467
  %v5475 = vadd.f32 %v5436, %v5468
  %v5476 = vld [vmem:[%s310] ss:$8 sm:$0xf]
  %v5477 = vld [vmem:[%s310] ss:$8 sm:$0x70]
  %v5478 = vor.u32 %v5476, %v5477
  %v5479 = vld [vmem:[%s4843] sm:$0x7f]
  %v5480 = vld [vmem:[%s4843 + $0x8] sm:$0x7f]
  %v5481 = vld [vmem:[%s4843 + $0x10] sm:$0x7f]
  %v5482 = vld [vmem:[%s4843 + $0x18] sm:$0x7f]
  %v5483 = vld [vmem:[%s4843 + $0x20] sm:$0x7f]
  %v5484 = vld [vmem:[%s4843 + $0x28] sm:$0x7f]
  %v5485 = vld [vmem:[%s4843 + $0x30] sm:$0x7f]
  %v5487 = vperm.slane %v5478, 0
  %v5488 = vperm.slane %v5478, 1
  %v5489 = vperm.slane %v5478, 2
  %v5490 = vperm.slane %v5478, 3
  %v5491 = vperm.slane %v5478, 4
  %v5492 = vperm.slane %v5478, 5
  %v5493 = vperm.slane %v5478, 6
  %v5501 = vmul.f32 %v5479, %v5487
  %v5502 = vmul.f32 %v5480, %v5488
  %v5503 = vmul.f32 %v5481, %v5489
  %v5504 = vmul.f32 %v5482, %v5490
  %v5505 = vmul.f32 %v5483, %v5491
  %v5506 = vmul.f32 %v5484, %v5492
  %v5507 = vmul.f32 %v5485, %v5493
  %v5508 = vadd.f32 %v5469, %v5501
  %v5509 = vadd.f32 %v5470, %v5502
  %v5510 = vadd.f32 %v5471, %v5503
  %v5511 = vadd.f32 %v5472, %v5504
  %v5512 = vadd.f32 %v5473, %v5505
  %v5513 = vadd.f32 %v5474, %v5506
  %v5514 = vadd.f32 %v5475, %v5507
  %v5515 = vld [vmem:[%s351] ss:$8 sm:$0xf]
  %v5516 = vld [vmem:[%s351] ss:$8 sm:$0x70]
  %v5517 = vor.u32 %v5515, %v5516
  %v5518 = vld [vmem:[%s4883] sm:$0x7f]
  %v5519 = vld [vmem:[%s4883 + $0x8] sm:$0x7f]
  %v5520 = vld [vmem:[%s4883 + $0x10] sm:$0x7f]
  %v5521 = vld [vmem:[%s4883 + $0x18] sm:$0x7f]
  %v5522 = vld [vmem:[%s4883 + $0x20] sm:$0x7f]
  %v5523 = vld [vmem:[%s4883 + $0x28] sm:$0x7f]
  %v5524 = vld [vmem:[%s4883 + $0x30] sm:$0x7f]
  %v5526 = vperm.slane %v5517, 0
  %v5527 = vperm.slane %v5517, 1
  %v5528 = vperm.slane %v5517, 2
  %v5529 = vperm.slane %v5517, 3
  %v5530 = vperm.slane %v5517, 4
  %v5531 = vperm.slane %v5517, 5
  %v5532 = vperm.slane %v5517, 6
  %v5540 = vmul.f32 %v5518, %v5526
  %v5541 = vmul.f32 %v5519, %v5527
  %v5542 = vmul.f32 %v5520, %v5528
  %v5543 = vmul.f32 %v5521, %v5529
  %v5544 = vmul.f32 %v5522, %v5530
  %v5545 = vmul.f32 %v5523, %v5531
  %v5546 = vmul.f32 %v5524, %v5532
  %v5547 = vadd.f32 %v5508, %v5540
  %v5548 = vadd.f32 %v5509, %v5541
  %v5549 = vadd.f32 %v5510, %v5542
  %v5550 = vadd.f32 %v5511, %v5543
  %v5551 = vadd.f32 %v5512, %v5544
  %v5552 = vadd.f32 %v5513, %v5545
  %v5553 = vadd.f32 %v5514, %v5546
  %v5554 = vld [vmem:[%s392] ss:$8 sm:$0xf]
  %v5555 = vld [vmem:[%s392] ss:$8 sm:$0x70]
  %v5556 = vor.u32 %v5554, %v5555
  %v5557 = vld [vmem:[%s4923] sm:$0x7f]
  %v5558 = vld [vmem:[%s4923 + $0x8] sm:$0x7f]
  %v5559 = vld [vmem:[%s4923 + $0x10] sm:$0x7f]
  %v5560 = vld [vmem:[%s4923 + $0x18] sm:$0x7f]
  %v5561 = vld [vmem:[%s4923 + $0x20] sm:$0x7f]
  %v5562 = vld [vmem:[%s4923 + $0x28] sm:$0x7f]
  %v5563 = vld [vmem:[%s4923 + $0x30] sm:$0x7f]
  %v5565 = vperm.slane %v5556, 0
  %v5566 = vperm.slane %v5556, 1
  %v5567 = vperm.slane %v5556, 2
  %v5568 = vperm.slane %v5556, 3
  %v5569 = vperm.slane %v5556, 4
  %v5570 = vperm.slane %v5556, 5
  %v5571 = vperm.slane %v5556, 6
  %v5579 = vmul.f32 %v5557, %v5565
  %v5580 = vmul.f32 %v5558, %v5566
  %v5581 = vmul.f32 %v5559, %v5567
  %v5582 = vmul.f32 %v5560, %v5568
  %v5583 = vmul.f32 %v5561, %v5569
  %v5584 = vmul.f32 %v5562, %v5570
  %v5585 = vmul.f32 %v5563, %v5571
  %v5586 = vadd.f32 %v5547, %v5579
  %v5587 = vadd.f32 %v5548, %v5580
  %v5588 = vadd.f32 %v5549, %v5581
  %v5589 = vadd.f32 %v5550, %v5582
  %v5590 = vadd.f32 %v5551, %v5583
  %v5591 = vadd.f32 %v5552, %v5584
  %v5592 = vadd.f32 %v5553, %v5585
  %v5593 = vld [vmem:[%s433] ss:$8 sm:$0xf]
  %v5594 = vld [vmem:[%s433] ss:$8 sm:$0x70]
  %v5595 = vor.u32 %v5593, %v5594
  %v5596 = vld [vmem:[%s4963] sm:$0x7f]
  %v5597 = vld [vmem:[%s4963 + $0x8] sm:$0x7f]
  %v5598 = vld [vmem:[%s4963 + $0x10] sm:$0x7f]
  %v5599 = vld [vmem:[%s4963 + $0x18] sm:$0x7f]
  %v5600 = vld [vmem:[%s4963 + $0x20] sm:$0x7f]
  %v5601 = vld [vmem:[%s4963 + $0x28] sm:$0x7f]
  %v5602 = vld [vmem:[%s4963 + $0x30] sm:$0x7f]
  %v5604 = vperm.slane %v5595, 0
  %v5605 = vperm.slane %v5595, 1
  %v5606 = vperm.slane %v5595, 2
  %v5607 = vperm.slane %v5595, 3
  %v5608 = vperm.slane %v5595, 4
  %v5609 = vperm.slane %v5595, 5
  %v5610 = vperm.slane %v5595, 6
  %v5618 = vmul.f32 %v5596, %v5604
  %v5619 = vmul.f32 %v5597, %v5605
  %v5620 = vmul.f32 %v5598, %v5606
  %v5621 = vmul.f32 %v5599, %v5607
  %v5622 = vmul.f32 %v5600, %v5608
  %v5623 = vmul.f32 %v5601, %v5609
  %v5624 = vmul.f32 %v5602, %v5610
  %v5625 = vadd.f32 %v5586, %v5618
  %v5626 = vadd.f32 %v5587, %v5619
  %v5627 = vadd.f32 %v5588, %v5620
  %v5628 = vadd.f32 %v5589, %v5621
  %v5629 = vadd.f32 %v5590, %v5622
  %v5630 = vadd.f32 %v5591, %v5623
  %v5631 = vadd.f32 %v5592, %v5624
  %v5632 = vld [vmem:[%s474] ss:$8 sm:$0xf]
  %v5633 = vld [vmem:[%s474] ss:$8 sm:$0x70]
  %v5634 = vor.u32 %v5632, %v5633
  %v5635 = vld [vmem:[%s5003] sm:$0x7f]
  %v5636 = vld [vmem:[%s5003 + $0x8] sm:$0x7f]
  %v5637 = vld [vmem:[%s5003 + $0x10] sm:$0x7f]
  %v5638 = vld [vmem:[%s5003 + $0x18] sm:$0x7f]
  %v5639 = vld [vmem:[%s5003 + $0x20] sm:$0x7f]
  %v5640 = vld [vmem:[%s5003 + $0x28] sm:$0x7f]
  %v5641 = vld [vmem:[%s5003 + $0x30] sm:$0x7f]
  %v5643 = vperm.slane %v5634, 0
  %v5644 = vperm.slane %v5634, 1
  %v5645 = vperm.slane %v5634, 2
  %v5646 = vperm.slane %v5634, 3
  %v5647 = vperm.slane %v5634, 4
  %v5648 = vperm.slane %v5634, 5
  %v5649 = vperm.slane %v5634, 6
  %v5657 = vmul.f32 %v5635, %v5643
  %v5658 = vmul.f32 %v5636, %v5644
  %v5659 = vmul.f32 %v5637, %v5645
  %v5660 = vmul.f32 %v5638, %v5646
  %v5661 = vmul.f32 %v5639, %v5647
  %v5662 = vmul.f32 %v5640, %v5648
  %v5663 = vmul.f32 %v5641, %v5649
  %v5664 = vadd.f32 %v5625, %v5657
  %v5665 = vadd.f32 %v5626, %v5658
  %v5666 = vadd.f32 %v5627, %v5659
  %v5667 = vadd.f32 %v5628, %v5660
  %v5668 = vadd.f32 %v5629, %v5661
  %v5669 = vadd.f32 %v5630, %v5662
  %v5670 = vadd.f32 %v5631, %v5663
  %v5671 = vld [vmem:[%s515] ss:$8 sm:$0xf]
  %v5672 = vld [vmem:[%s515] ss:$8 sm:$0x70]
  %v5673 = vor.u32 %v5671, %v5672
  %v5674 = vld [vmem:[%s5043] sm:$0x7f]
  %v5675 = vld [vmem:[%s5043 + $0x8] sm:$0x7f]
  %v5676 = vld [vmem:[%s5043 + $0x10] sm:$0x7f]
  %v5677 = vld [vmem:[%s5043 + $0x18] sm:$0x7f]
  %v5678 = vld [vmem:[%s5043 + $0x20] sm:$0x7f]
  %v5679 = vld [vmem:[%s5043 + $0x28] sm:$0x7f]
  %v5680 = vld [vmem:[%s5043 + $0x30] sm:$0x7f]
  %v5682 = vperm.slane %v5673, 0
  %v5683 = vperm.slane %v5673, 1
  %v5684 = vperm.slane %v5673, 2
  %v5685 = vperm.slane %v5673, 3
  %v5686 = vperm.slane %v5673, 4
  %v5687 = vperm.slane %v5673, 5
  %v5688 = vperm.slane %v5673, 6
  %v5696 = vmul.f32 %v5674, %v5682
  %v5697 = vmul.f32 %v5675, %v5683
  %v5698 = vmul.f32 %v5676, %v5684
  %v5699 = vmul.f32 %v5677, %v5685
  %v5700 = vmul.f32 %v5678, %v5686
  %v5701 = vmul.f32 %v5679, %v5687
  %v5702 = vmul.f32 %v5680, %v5688
  %v5703 = vadd.f32 %v5664, %v5696
  %v5704 = vadd.f32 %v5665, %v5697
  %v5705 = vadd.f32 %v5666, %v5698
  %v5706 = vadd.f32 %v5667, %v5699
  %v5707 = vadd.f32 %v5668, %v5700
  %v5708 = vadd.f32 %v5669, %v5701
  %v5709 = vadd.f32 %v5670, %v5702
  %v5710 = vld [vmem:[%s556] ss:$8 sm:$0xf]
  %v5711 = vld [vmem:[%s556] ss:$8 sm:$0x70]
  %v5712 = vor.u32 %v5710, %v5711
  %v5713 = vld [vmem:[%s5083] sm:$0x7f]
  %v5714 = vld [vmem:[%s5083 + $0x8] sm:$0x7f]
  %v5715 = vld [vmem:[%s5083 + $0x10] sm:$0x7f]
  %v5716 = vld [vmem:[%s5083 + $0x18] sm:$0x7f]
  %v5717 = vld [vmem:[%s5083 + $0x20] sm:$0x7f]
  %v5718 = vld [vmem:[%s5083 + $0x28] sm:$0x7f]
  %v5719 = vld [vmem:[%s5083 + $0x30] sm:$0x7f]
  %v5721 = vperm.slane %v5712, 0
  %v5722 = vperm.slane %v5712, 1
  %v5723 = vperm.slane %v5712, 2
  %v5724 = vperm.slane %v5712, 3
  %v5725 = vperm.slane %v5712, 4
  %v5726 = vperm.slane %v5712, 5
  %v5727 = vperm.slane %v5712, 6
  %v5735 = vmul.f32 %v5713, %v5721
  %v5736 = vmul.f32 %v5714, %v5722
  %v5737 = vmul.f32 %v5715, %v5723
  %v5738 = vmul.f32 %v5716, %v5724
  %v5739 = vmul.f32 %v5717, %v5725
  %v5740 = vmul.f32 %v5718, %v5726
  %v5741 = vmul.f32 %v5719, %v5727
  %v5742 = vadd.f32 %v5703, %v5735
  %v5743 = vadd.f32 %v5704, %v5736
  %v5744 = vadd.f32 %v5705, %v5737
  %v5745 = vadd.f32 %v5706, %v5738
  %v5746 = vadd.f32 %v5707, %v5739
  %v5747 = vadd.f32 %v5708, %v5740
  %v5748 = vadd.f32 %v5709, %v5741
  %v5749 = vld [vmem:[%s597] ss:$8 sm:$0xf]
  %v5750 = vld [vmem:[%s597] ss:$8 sm:$0x70]
  %v5751 = vor.u32 %v5749, %v5750
  %v5752 = vld [vmem:[%s5123] sm:$0x7f]
  %v5753 = vld [vmem:[%s5123 + $0x8] sm:$0x7f]
  %v5754 = vld [vmem:[%s5123 + $0x10] sm:$0x7f]
  %v5755 = vld [vmem:[%s5123 + $0x18] sm:$0x7f]
  %v5756 = vld [vmem:[%s5123 + $0x20] sm:$0x7f]
  %v5757 = vld [vmem:[%s5123 + $0x28] sm:$0x7f]
  %v5758 = vld [vmem:[%s5123 + $0x30] sm:$0x7f]
  %v5760 = vperm.slane %v5751, 0
  %v5761 = vperm.slane %v5751, 1
  %v5762 = vperm.slane %v5751, 2
  %v5763 = vperm.slane %v5751, 3
  %v5764 = vperm.slane %v5751, 4
  %v5765 = vperm.slane %v5751, 5
  %v5766 = vperm.slane %v5751, 6
  %v5774 = vmul.f32 %v5752, %v5760
  %v5775 = vmul.f32 %v5753, %v5761
  %v5776 = vmul.f32 %v5754, %v5762
  %v5777 = vmul.f32 %v5755, %v5763
  %v5778 = vmul.f32 %v5756, %v5764
  %v5779 = vmul.f32 %v5757, %v5765
  %v5780 = vmul.f32 %v5758, %v5766
  %v5781 = vadd.f32 %v5742, %v5774
  %v5782 = vadd.f32 %v5743, %v5775
  %v5783 = vadd.f32 %v5744, %v5776
  %v5784 = vadd.f32 %v5745, %v5777
  %v5785 = vadd.f32 %v5746, %v5778
  %v5786 = vadd.f32 %v5747, %v5779
  %v5787 = vadd.f32 %v5748, %v5780
  %v5788 = vld [vmem:[%s638] ss:$8 sm:$0xf]
  %v5789 = vld [vmem:[%s638] ss:$8 sm:$0x70]
  %v5790 = vor.u32 %v5788, %v5789
  %s5791 = scalar_lea.vmem %s0, 728
  %v5792 = vld [vmem:[%s5791] sm:$0x7f]
  %v5793 = vld [vmem:[%s5791 + $0x8] sm:$0x7f]
  %v5794 = vld [vmem:[%s5791 + $0x10] sm:$0x7f]
  %v5795 = vld [vmem:[%s5791 + $0x18] sm:$0x7f]
  %v5796 = vld [vmem:[%s5791 + $0x20] sm:$0x7f]
  %v5797 = vld [vmem:[%s5791 + $0x28] sm:$0x7f]
  %v5798 = vld [vmem:[%s5791 + $0x30] sm:$0x7f]
  %v5800 = vperm.slane %v5790, 0
  %v5801 = vperm.slane %v5790, 1
  %v5802 = vperm.slane %v5790, 2
  %v5803 = vperm.slane %v5790, 3
  %v5804 = vperm.slane %v5790, 4
  %v5805 = vperm.slane %v5790, 5
  %v5806 = vperm.slane %v5790, 6
  %v5814 = vmul.f32 %v5792, %v5800
  %v5815 = vmul.f32 %v5793, %v5801
  %v5816 = vmul.f32 %v5794, %v5802
  %v5817 = vmul.f32 %v5795, %v5803
  %v5818 = vmul.f32 %v5796, %v5804
  %v5819 = vmul.f32 %v5797, %v5805
  %v5820 = vmul.f32 %v5798, %v5806
  %v5821 = vadd.f32 %v5781, %v5814
  %v5822 = vadd.f32 %v5782, %v5815
  %v5823 = vadd.f32 %v5783, %v5816
  %v5824 = vadd.f32 %v5784, %v5817
  %v5825 = vadd.f32 %v5785, %v5818
  %v5826 = vadd.f32 %v5786, %v5819
  %v5827 = vadd.f32 %v5787, %v5820
  %v5828 = vld [vmem:[%s679] ss:$8 sm:$0xf]
  %v5829 = vld [vmem:[%s679] ss:$8 sm:$0x70]
  %v5830 = vor.u32 %v5828, %v5829
  %s5831 = scalar_lea.vmem %s1, 728
  %v5832 = vld [vmem:[%s5831] sm:$0x7f]
  %v5833 = vld [vmem:[%s5831 + $0x8] sm:$0x7f]
  %v5834 = vld [vmem:[%s5831 + $0x10] sm:$0x7f]
  %v5835 = vld [vmem:[%s5831 + $0x18] sm:$0x7f]
  %v5836 = vld [vmem:[%s5831 + $0x20] sm:$0x7f]
  %v5837 = vld [vmem:[%s5831 + $0x28] sm:$0x7f]
  %v5838 = vld [vmem:[%s5831 + $0x30] sm:$0x7f]
  %v5840 = vperm.slane %v5830, 0
  %v5841 = vperm.slane %v5830, 1
  %v5842 = vperm.slane %v5830, 2
  %v5843 = vperm.slane %v5830, 3
  %v5844 = vperm.slane %v5830, 4
  %v5845 = vperm.slane %v5830, 5
  %v5846 = vperm.slane %v5830, 6
  %v5854 = vmul.f32 %v5832, %v5840
  %v5855 = vmul.f32 %v5833, %v5841
  %v5856 = vmul.f32 %v5834, %v5842
  %v5857 = vmul.f32 %v5835, %v5843
  %v5858 = vmul.f32 %v5836, %v5844
  %v5859 = vmul.f32 %v5837, %v5845
  %v5860 = vmul.f32 %v5838, %v5846
  %v5861 = vadd.f32 %v5821, %v5854
  %v5862 = vadd.f32 %v5822, %v5855
  %v5863 = vadd.f32 %v5823, %v5856
  %v5864 = vadd.f32 %v5824, %v5857
  %v5865 = vadd.f32 %v5825, %v5858
  %v5866 = vadd.f32 %v5826, %v5859
  %v5867 = vadd.f32 %v5827, %v5860
  %v5868 = vld [vmem:[%s720] ss:$8 sm:$0xf]
  %v5869 = vld [vmem:[%s720] ss:$8 sm:$0x70]
  %v5870 = vor.u32 %v5868, %v5869
  %s5871 = scalar_lea.vmem %s2, 728
  %v5872 = vld [vmem:[%s5871] sm:$0x7f]
  %v5873 = vld [vmem:[%s5871 + $0x8] sm:$0x7f]
  %v5874 = vld [vmem:[%s5871 + $0x10] sm:$0x7f]
  %v5875 = vld [vmem:[%s5871 + $0x18] sm:$0x7f]
  %v5876 = vld [vmem:[%s5871 + $0x20] sm:$0x7f]
  %v5877 = vld [vmem:[%s5871 + $0x28] sm:$0x7f]
  %v5878 = vld [vmem:[%s5871 + $0x30] sm:$0x7f]
  %v5880 = vperm.slane %v5870, 0
  %v5881 = vperm.slane %v5870, 1
  %v5882 = vperm.slane %v5870, 2
  %v5883 = vperm.slane %v5870, 3
  %v5884 = vperm.slane %v5870, 4
  %v5885 = vperm.slane %v5870, 5
  %v5886 = vperm.slane %v5870, 6
  %v5894 = vmul.f32 %v5872, %v5880
  %v5895 = vmul.f32 %v5873, %v5881
  %v5896 = vmul.f32 %v5874, %v5882
  %v5897 = vmul.f32 %v5875, %v5883
  %v5898 = vmul.f32 %v5876, %v5884
  %v5899 = vmul.f32 %v5877, %v5885
  %v5900 = vmul.f32 %v5878, %v5886
  %v5901 = vadd.f32 %v5861, %v5894
  %v5902 = vadd.f32 %v5862, %v5895
  %v5903 = vadd.f32 %v5863, %v5896
  %v5904 = vadd.f32 %v5864, %v5897
  %v5905 = vadd.f32 %v5865, %v5898
  %v5906 = vadd.f32 %v5866, %v5899
  %v5907 = vadd.f32 %v5867, %v5900
  %v5908 = vld [vmem:[%s761] ss:$8 sm:$0xf]
  %v5909 = vld [vmem:[%s761] ss:$8 sm:$0x70]
  %v5910 = vor.u32 %v5908, %v5909
  %s5911 = scalar_lea.vmem %s3, 728
  %v5912 = vld [vmem:[%s5911] sm:$0x7f]
  %v5913 = vld [vmem:[%s5911 + $0x8] sm:$0x7f]
  %v5914 = vld [vmem:[%s5911 + $0x10] sm:$0x7f]
  %v5915 = vld [vmem:[%s5911 + $0x18] sm:$0x7f]
  %v5916 = vld [vmem:[%s5911 + $0x20] sm:$0x7f]
  %v5917 = vld [vmem:[%s5911 + $0x28] sm:$0x7f]
  %v5918 = vld [vmem:[%s5911 + $0x30] sm:$0x7f]
  %v5920 = vperm.slane %v5910, 0
  %v5921 = vperm.slane %v5910, 1
  %v5922 = vperm.slane %v5910, 2
  %v5923 = vperm.slane %v5910, 3
  %v5924 = vperm.slane %v5910, 4
  %v5925 = vperm.slane %v5910, 5
  %v5926 = vperm.slane %v5910, 6
  %v5934 = vmul.f32 %v5912, %v5920
  %v5935 = vmul.f32 %v5913, %v5921
  %v5936 = vmul.f32 %v5914, %v5922
  %v5937 = vmul.f32 %v5915, %v5923
  %v5938 = vmul.f32 %v5916, %v5924
  %v5939 = vmul.f32 %v5917, %v5925
  %v5940 = vmul.f32 %v5918, %v5926
  %v5941 = vadd.f32 %v5901, %v5934
  %v5942 = vadd.f32 %v5902, %v5935
  %v5943 = vadd.f32 %v5903, %v5936
  %v5944 = vadd.f32 %v5904, %v5937
  %v5945 = vadd.f32 %v5905, %v5938
  %v5946 = vadd.f32 %v5906, %v5939
  %v5947 = vadd.f32 %v5907, %v5940
  %v5948 = vld [vmem:[%s802] ss:$8 sm:$0xf]
  %v5949 = vld [vmem:[%s802] ss:$8 sm:$0x70]
  %v5950 = vor.u32 %v5948, %v5949
  %s5951 = scalar_lea.vmem %s4, 728
  %v5952 = vld [vmem:[%s5951] sm:$0x7f]
  %v5953 = vld [vmem:[%s5951 + $0x8] sm:$0x7f]
  %v5954 = vld [vmem:[%s5951 + $0x10] sm:$0x7f]
  %v5955 = vld [vmem:[%s5951 + $0x18] sm:$0x7f]
  %v5956 = vld [vmem:[%s5951 + $0x20] sm:$0x7f]
  %v5957 = vld [vmem:[%s5951 + $0x28] sm:$0x7f]
  %v5958 = vld [vmem:[%s5951 + $0x30] sm:$0x7f]
  %v5960 = vperm.slane %v5950, 0
  %v5961 = vperm.slane %v5950, 1
  %v5962 = vperm.slane %v5950, 2
  %v5963 = vperm.slane %v5950, 3
  %v5964 = vperm.slane %v5950, 4
  %v5965 = vperm.slane %v5950, 5
  %v5966 = vperm.slane %v5950, 6
  %v5974 = vmul.f32 %v5952, %v5960
  %v5975 = vmul.f32 %v5953, %v5961
  %v5976 = vmul.f32 %v5954, %v5962
  %v5977 = vmul.f32 %v5955, %v5963
  %v5978 = vmul.f32 %v5956, %v5964
  %v5979 = vmul.f32 %v5957, %v5965
  %v5980 = vmul.f32 %v5958, %v5966
  %v5981 = vadd.f32 %v5941, %v5974
  %v5982 = vadd.f32 %v5942, %v5975
  %v5983 = vadd.f32 %v5943, %v5976
  %v5984 = vadd.f32 %v5944, %v5977
  %v5985 = vadd.f32 %v5945, %v5978
  %v5986 = vadd.f32 %v5946, %v5979
  %v5987 = vadd.f32 %v5947, %v5980
  %v5988 = vld [vmem:[%s843] ss:$8 sm:$0xf]
  %v5989 = vld [vmem:[%s843] ss:$8 sm:$0x70]
  %v5990 = vor.u32 %v5988, %v5989
  %s5991 = scalar_lea.vmem %s0, 784
  %v5992 = vld [vmem:[%s5991] sm:$0x7f]
  %v5993 = vld [vmem:[%s5991 + $0x8] sm:$0x7f]
  %v5994 = vld [vmem:[%s5991 + $0x10] sm:$0x7f]
  %v5995 = vld [vmem:[%s5991 + $0x18] sm:$0x7f]
  %v5996 = vld [vmem:[%s5991 + $0x20] sm:$0x7f]
  %v5997 = vld [vmem:[%s5991 + $0x28] sm:$0x7f]
  %v5998 = vld [vmem:[%s5991 + $0x30] sm:$0x7f]
  %v6000 = vperm.slane %v5990, 0
  %v6001 = vperm.slane %v5990, 1
  %v6002 = vperm.slane %v5990, 2
  %v6003 = vperm.slane %v5990, 3
  %v6004 = vperm.slane %v5990, 4
  %v6005 = vperm.slane %v5990, 5
  %v6006 = vperm.slane %v5990, 6
  %v6014 = vmul.f32 %v5992, %v6000
  %v6015 = vmul.f32 %v5993, %v6001
  %v6016 = vmul.f32 %v5994, %v6002
  %v6017 = vmul.f32 %v5995, %v6003
  %v6018 = vmul.f32 %v5996, %v6004
  %v6019 = vmul.f32 %v5997, %v6005
  %v6020 = vmul.f32 %v5998, %v6006
  %v6021 = vadd.f32 %v5981, %v6014
  %v6022 = vadd.f32 %v5982, %v6015
  %v6023 = vadd.f32 %v5983, %v6016
  %v6024 = vadd.f32 %v5984, %v6017
  %v6025 = vadd.f32 %v5985, %v6018
  %v6026 = vadd.f32 %v5986, %v6019
  %v6027 = vadd.f32 %v5987, %v6020
  %v6028 = vld [vmem:[%s884] ss:$8 sm:$0xf]
  %v6029 = vld [vmem:[%s884] ss:$8 sm:$0x70]
  %v6030 = vor.u32 %v6028, %v6029
  %s6031 = scalar_lea.vmem %s1, 784
  %v6032 = vld [vmem:[%s6031] sm:$0x7f]
  %v6033 = vld [vmem:[%s6031 + $0x8] sm:$0x7f]
  %v6034 = vld [vmem:[%s6031 + $0x10] sm:$0x7f]
  %v6035 = vld [vmem:[%s6031 + $0x18] sm:$0x7f]
  %v6036 = vld [vmem:[%s6031 + $0x20] sm:$0x7f]
  %v6037 = vld [vmem:[%s6031 + $0x28] sm:$0x7f]
  %v6038 = vld [vmem:[%s6031 + $0x30] sm:$0x7f]
  %v6040 = vperm.slane %v6030, 0
  %v6041 = vperm.slane %v6030, 1
  %v6042 = vperm.slane %v6030, 2
  %v6043 = vperm.slane %v6030, 3
  %v6044 = vperm.slane %v6030, 4
  %v6045 = vperm.slane %v6030, 5
  %v6046 = vperm.slane %v6030, 6
  %v6054 = vmul.f32 %v6032, %v6040
  %v6055 = vmul.f32 %v6033, %v6041
  %v6056 = vmul.f32 %v6034, %v6042
  %v6057 = vmul.f32 %v6035, %v6043
  %v6058 = vmul.f32 %v6036, %v6044
  %v6059 = vmul.f32 %v6037, %v6045
  %v6060 = vmul.f32 %v6038, %v6046
  %v6061 = vadd.f32 %v6021, %v6054
  %v6062 = vadd.f32 %v6022, %v6055
  %v6063 = vadd.f32 %v6023, %v6056
  %v6064 = vadd.f32 %v6024, %v6057
  %v6065 = vadd.f32 %v6025, %v6058
  %v6066 = vadd.f32 %v6026, %v6059
  %v6067 = vadd.f32 %v6027, %v6060
  %v6068 = vld [vmem:[%s925] ss:$8 sm:$0xf]
  %v6069 = vld [vmem:[%s925] ss:$8 sm:$0x70]
  %v6070 = vor.u32 %v6068, %v6069
  %s6071 = scalar_lea.vmem %s2, 784
  %v6072 = vld [vmem:[%s6071] sm:$0x7f]
  %v6073 = vld [vmem:[%s6071 + $0x8] sm:$0x7f]
  %v6074 = vld [vmem:[%s6071 + $0x10] sm:$0x7f]
  %v6075 = vld [vmem:[%s6071 + $0x18] sm:$0x7f]
  %v6076 = vld [vmem:[%s6071 + $0x20] sm:$0x7f]
  %v6077 = vld [vmem:[%s6071 + $0x28] sm:$0x7f]
  %v6078 = vld [vmem:[%s6071 + $0x30] sm:$0x7f]
  %v6080 = vperm.slane %v6070, 0
  %v6081 = vperm.slane %v6070, 1
  %v6082 = vperm.slane %v6070, 2
  %v6083 = vperm.slane %v6070, 3
  %v6084 = vperm.slane %v6070, 4
  %v6085 = vperm.slane %v6070, 5
  %v6086 = vperm.slane %v6070, 6
  %v6094 = vmul.f32 %v6072, %v6080
  %v6095 = vmul.f32 %v6073, %v6081
  %v6096 = vmul.f32 %v6074, %v6082
  %v6097 = vmul.f32 %v6075, %v6083
  %v6098 = vmul.f32 %v6076, %v6084
  %v6099 = vmul.f32 %v6077, %v6085
  %v6100 = vmul.f32 %v6078, %v6086
  %v6101 = vadd.f32 %v6061, %v6094
  %v6102 = vadd.f32 %v6062, %v6095
  %v6103 = vadd.f32 %v6063, %v6096
  %v6104 = vadd.f32 %v6064, %v6097
  %v6105 = vadd.f32 %v6065, %v6098
  %v6106 = vadd.f32 %v6066, %v6099
  %v6107 = vadd.f32 %v6067, %v6100
  %v6108 = vld [vmem:[%s966] ss:$8 sm:$0xf]
  %v6109 = vld [vmem:[%s966] ss:$8 sm:$0x70]
  %v6110 = vor.u32 %v6108, %v6109
  %s6111 = scalar_lea.vmem %s3, 784
  %v6112 = vld [vmem:[%s6111] sm:$0x7f]
  %v6113 = vld [vmem:[%s6111 + $0x8] sm:$0x7f]
  %v6114 = vld [vmem:[%s6111 + $0x10] sm:$0x7f]
  %v6115 = vld [vmem:[%s6111 + $0x18] sm:$0x7f]
  %v6116 = vld [vmem:[%s6111 + $0x20] sm:$0x7f]
  %v6117 = vld [vmem:[%s6111 + $0x28] sm:$0x7f]
  %v6118 = vld [vmem:[%s6111 + $0x30] sm:$0x7f]
  %v6120 = vperm.slane %v6110, 0
  %v6121 = vperm.slane %v6110, 1
  %v6122 = vperm.slane %v6110, 2
  %v6123 = vperm.slane %v6110, 3
  %v6124 = vperm.slane %v6110, 4
  %v6125 = vperm.slane %v6110, 5
  %v6126 = vperm.slane %v6110, 6
  %v6134 = vmul.f32 %v6112, %v6120
  %v6135 = vmul.f32 %v6113, %v6121
  %v6136 = vmul.f32 %v6114, %v6122
  %v6137 = vmul.f32 %v6115, %v6123
  %v6138 = vmul.f32 %v6116, %v6124
  %v6139 = vmul.f32 %v6117, %v6125
  %v6140 = vmul.f32 %v6118, %v6126
  %v6141 = vadd.f32 %v6101, %v6134
  %v6142 = vadd.f32 %v6102, %v6135
  %v6143 = vadd.f32 %v6103, %v6136
  %v6144 = vadd.f32 %v6104, %v6137
  %v6145 = vadd.f32 %v6105, %v6138
  %v6146 = vadd.f32 %v6106, %v6139
  %v6147 = vadd.f32 %v6107, %v6140
  %v6148 = vld [vmem:[%s1007] ss:$8 sm:$0xf]
  %v6149 = vld [vmem:[%s1007] ss:$8 sm:$0x70]
  %v6150 = vor.u32 %v6148, %v6149
  %s6151 = scalar_lea.vmem %s4, 784
  %v6152 = vld [vmem:[%s6151] sm:$0x7f]
  %v6153 = vld [vmem:[%s6151 + $0x8] sm:$0x7f]
  %v6154 = vld [vmem:[%s6151 + $0x10] sm:$0x7f]
  %v6155 = vld [vmem:[%s6151 + $0x18] sm:$0x7f]
  %v6156 = vld [vmem:[%s6151 + $0x20] sm:$0x7f]
  %v6157 = vld [vmem:[%s6151 + $0x28] sm:$0x7f]
  %v6158 = vld [vmem:[%s6151 + $0x30] sm:$0x7f]
  %v6160 = vperm.slane %v6150, 0
  %v6161 = vperm.slane %v6150, 1
  %v6162 = vperm.slane %v6150, 2
  %v6163 = vperm.slane %v6150, 3
  %v6164 = vperm.slane %v6150, 4
  %v6165 = vperm.slane %v6150, 5
  %v6166 = vperm.slane %v6150, 6
  %v6174 = vmul.f32 %v6152, %v6160
  %v6175 = vmul.f32 %v6153, %v6161
  %v6176 = vmul.f32 %v6154, %v6162
  %v6177 = vmul.f32 %v6155, %v6163
  %v6178 = vmul.f32 %v6156, %v6164
  %v6179 = vmul.f32 %v6157, %v6165
  %v6180 = vmul.f32 %v6158, %v6166
  %v6181 = vadd.f32 %v6141, %v6174
  %v6182 = vadd.f32 %v6142, %v6175
  %v6183 = vadd.f32 %v6143, %v6176
  %v6184 = vadd.f32 %v6144, %v6177
  %v6185 = vadd.f32 %v6145, %v6178
  %v6186 = vadd.f32 %v6146, %v6179
  %v6187 = vadd.f32 %v6147, %v6180
  %s6188 = scalar_lea.vmem %s8, 280
  %6189 = vst [vmem:[%s6188] sm:$0x7f] %v6181
  %6190 = vst [vmem:[%s6188 + $0x8] sm:$0x7f] %v6182
  %6191 = vst [vmem:[%s6188 + $0x10] sm:$0x7f] %v6183
  %6192 = vst [vmem:[%s6188 + $0x18] sm:$0x7f] %v6184
  %6193 = vst [vmem:[%s6188 + $0x20] sm:$0x7f] %v6185
  %6194 = vst [vmem:[%s6188 + $0x28] sm:$0x7f] %v6186
  %6195 = vst.msk [vmem:[%s6188 + $0x30] sm:$0x7f] %vm1054, %v6187
  %v6196 = vadd.f32 %v6181, 0.0
  %v6197 = vadd.f32 %v6182, 0.0
  %v6198 = vadd.f32 %v6183, 0.0
  %v6199 = vadd.f32 %v6184, 0.0
  %v6200 = vadd.f32 %v6185, 0.0
  %v6201 = vadd.f32 %v6186, 0.0
  %v6202 = vadd.f32 %v6187, 0.0
  %v6203 = vadd.f32 %v5175, %v6196
  %v6204 = vadd.f32 %v5176, %v6197
  %v6205 = vadd.f32 %v5177, %v6198
  %v6206 = vadd.f32 %v5178, %v6199
  %v6207 = vadd.f32 %v5179, %v6200
  %v6208 = vadd.f32 %v5180, %v6201
  %v6209 = vadd.f32 %v5181, %v6202
  %v6210 = vmul.f32 %v6181, %v6181
  %v6211 = vmul.f32 %v6182, %v6182
  %v6212 = vmul.f32 %v6183, %v6183
  %v6213 = vmul.f32 %v6184, %v6184
  %v6214 = vmul.f32 %v6185, %v6185
  %v6215 = vmul.f32 %v6186, %v6186
  %v6216 = vmul.f32 %v6187, %v6187
  %v6217 = vadd.f32 %v6210, 0.0
  %v6218 = vadd.f32 %v6211, 0.0
  %v6219 = vadd.f32 %v6212, 0.0
  %v6220 = vadd.f32 %v6213, 0.0
  %v6221 = vadd.f32 %v6214, 0.0
  %v6222 = vadd.f32 %v6215, 0.0
  %v6223 = vadd.f32 %v6216, 0.0
  %v6224 = vadd.f32 %v5196, %v6217
  %v6225 = vadd.f32 %v5197, %v6218
  %v6226 = vadd.f32 %v5198, %v6219
  %v6227 = vadd.f32 %v5199, %v6220
  %v6228 = vadd.f32 %v5200, %v6221
  %v6229 = vadd.f32 %v5201, %v6222
  %v6230 = vadd.f32 %v5202, %v6223
  %v6231 = vld [vmem:[%s5] ss:$8 sm:$0xf]
  %v6232 = vld [vmem:[%s5] ss:$8 sm:$0x70]
  %v6233 = vor.u32 %v6231, %v6232
  %v6234 = vld [vmem:[%s4963] sm:$0x7f]
  %v6235 = vld [vmem:[%s4963 + $0x8] sm:$0x7f]
  %v6236 = vld [vmem:[%s4963 + $0x10] sm:$0x7f]
  %v6237 = vld [vmem:[%s4963 + $0x18] sm:$0x7f]
  %v6238 = vld [vmem:[%s4963 + $0x20] sm:$0x7f]
  %v6239 = vld [vmem:[%s4963 + $0x28] sm:$0x7f]
  %v6240 = vld [vmem:[%s4963 + $0x30] sm:$0x7f]
  %v6242 = vperm.slane %v6233, 0
  %v6243 = vperm.slane %v6233, 1
  %v6244 = vperm.slane %v6233, 2
  %v6245 = vperm.slane %v6233, 3
  %v6246 = vperm.slane %v6233, 4
  %v6247 = vperm.slane %v6233, 5
  %v6248 = vperm.slane %v6233, 6
  %v6256 = vmul.f32 %v6234, %v6242
  %v6257 = vmul.f32 %v6235, %v6243
  %v6258 = vmul.f32 %v6236, %v6244
  %v6259 = vmul.f32 %v6237, %v6245
  %v6260 = vmul.f32 %v6238, %v6246
  %v6261 = vmul.f32 %v6239, %v6247
  %v6262 = vmul.f32 %v6240, %v6248
  %v6263 = vadd.f32 %v6256, 0.0
  %v6264 = vadd.f32 %v6257, 0.0
  %v6265 = vadd.f32 %v6258, 0.0
  %v6266 = vadd.f32 %v6259, 0.0
  %v6267 = vadd.f32 %v6260, 0.0
  %v6268 = vadd.f32 %v6261, 0.0
  %v6269 = vadd.f32 %v6262, 0.0
  %v6270 = vld [vmem:[%s68] ss:$8 sm:$0xf]
  %v6271 = vld [vmem:[%s68] ss:$8 sm:$0x70]
  %v6272 = vor.u32 %v6270, %v6271
  %v6273 = vld [vmem:[%s5003] sm:$0x7f]
  %v6274 = vld [vmem:[%s5003 + $0x8] sm:$0x7f]
  %v6275 = vld [vmem:[%s5003 + $0x10] sm:$0x7f]
  %v6276 = vld [vmem:[%s5003 + $0x18] sm:$0x7f]
  %v6277 = vld [vmem:[%s5003 + $0x20] sm:$0x7f]
  %v6278 = vld [vmem:[%s5003 + $0x28] sm:$0x7f]
  %v6279 = vld [vmem:[%s5003 + $0x30] sm:$0x7f]
  %v6281 = vperm.slane %v6272, 0
  %v6282 = vperm.slane %v6272, 1
  %v6283 = vperm.slane %v6272, 2
  %v6284 = vperm.slane %v6272, 3
  %v6285 = vperm.slane %v6272, 4
  %v6286 = vperm.slane %v6272, 5
  %v6287 = vperm.slane %v6272, 6
  %v6295 = vmul.f32 %v6273, %v6281
  %v6296 = vmul.f32 %v6274, %v6282
  %v6297 = vmul.f32 %v6275, %v6283
  %v6298 = vmul.f32 %v6276, %v6284
  %v6299 = vmul.f32 %v6277, %v6285
  %v6300 = vmul.f32 %v6278, %v6286
  %v6301 = vmul.f32 %v6279, %v6287
  %v6302 = vadd.f32 %v6263, %v6295
  %v6303 = vadd.f32 %v6264, %v6296
  %v6304 = vadd.f32 %v6265, %v6297
  %v6305 = vadd.f32 %v6266, %v6298
  %v6306 = vadd.f32 %v6267, %v6299
  %v6307 = vadd.f32 %v6268, %v6300
  %v6308 = vadd.f32 %v6269, %v6301
  %v6309 = vld [vmem:[%s108] ss:$8 sm:$0xf]
  %v6310 = vld [vmem:[%s108] ss:$8 sm:$0x70]
  %v6311 = vor.u32 %v6309, %v6310
  %v6312 = vld [vmem:[%s5043] sm:$0x7f]
  %v6313 = vld [vmem:[%s5043 + $0x8] sm:$0x7f]
  %v6314 = vld [vmem:[%s5043 + $0x10] sm:$0x7f]
  %v6315 = vld [vmem:[%s5043 + $0x18] sm:$0x7f]
  %v6316 = vld [vmem:[%s5043 + $0x20] sm:$0x7f]
  %v6317 = vld [vmem:[%s5043 + $0x28] sm:$0x7f]
  %v6318 = vld [vmem:[%s5043 + $0x30] sm:$0x7f]
  %v6320 = vperm.slane %v6311, 0
  %v6321 = vperm.slane %v6311, 1
  %v6322 = vperm.slane %v6311, 2
  %v6323 = vperm.slane %v6311, 3
  %v6324 = vperm.slane %v6311, 4
  %v6325 = vperm.slane %v6311, 5
  %v6326 = vperm.slane %v6311, 6
  %v6334 = vmul.f32 %v6312, %v6320
  %v6335 = vmul.f32 %v6313, %v6321
  %v6336 = vmul.f32 %v6314, %v6322
  %v6337 = vmul.f32 %v6315, %v6323
  %v6338 = vmul.f32 %v6316, %v6324
  %v6339 = vmul.f32 %v6317, %v6325
  %v6340 = vmul.f32 %v6318, %v6326
  %v6341 = vadd.f32 %v6302, %v6334
  %v6342 = vadd.f32 %v6303, %v6335
  %v6343 = vadd.f32 %v6304, %v6336
  %v6344 = vadd.f32 %v6305, %v6337
  %v6345 = vadd.f32 %v6306, %v6338
  %v6346 = vadd.f32 %v6307, %v6339
  %v6347 = vadd.f32 %v6308, %v6340
  %v6348 = vld [vmem:[%s148] ss:$8 sm:$0xf]
  %v6349 = vld [vmem:[%s148] ss:$8 sm:$0x70]
  %v6350 = vor.u32 %v6348, %v6349
  %v6351 = vld [vmem:[%s5083] sm:$0x7f]
  %v6352 = vld [vmem:[%s5083 + $0x8] sm:$0x7f]
  %v6353 = vld [vmem:[%s5083 + $0x10] sm:$0x7f]
  %v6354 = vld [vmem:[%s5083 + $0x18] sm:$0x7f]
  %v6355 = vld [vmem:[%s5083 + $0x20] sm:$0x7f]
  %v6356 = vld [vmem:[%s5083 + $0x28] sm:$0x7f]
  %v6357 = vld [vmem:[%s5083 + $0x30] sm:$0x7f]
  %v6359 = vperm.slane %v6350, 0
  %v6360 = vperm.slane %v6350, 1
  %v6361 = vperm.slane %v6350, 2
  %v6362 = vperm.slane %v6350, 3
  %v6363 = vperm.slane %v6350, 4
  %v6364 = vperm.slane %v6350, 5
  %v6365 = vperm.slane %v6350, 6
  %v6373 = vmul.f32 %v6351, %v6359
  %v6374 = vmul.f32 %v6352, %v6360
  %v6375 = vmul.f32 %v6353, %v6361
  %v6376 = vmul.f32 %v6354, %v6362
  %v6377 = vmul.f32 %v6355, %v6363
  %v6378 = vmul.f32 %v6356, %v6364
  %v6379 = vmul.f32 %v6357, %v6365
  %v6380 = vadd.f32 %v6341, %v6373
  %v6381 = vadd.f32 %v6342, %v6374
  %v6382 = vadd.f32 %v6343, %v6375
  %v6383 = vadd.f32 %v6344, %v6376
  %v6384 = vadd.f32 %v6345, %v6377
  %v6385 = vadd.f32 %v6346, %v6378
  %v6386 = vadd.f32 %v6347, %v6379
  %v6387 = vld [vmem:[%s188] ss:$8 sm:$0xf]
  %v6388 = vld [vmem:[%s188] ss:$8 sm:$0x70]
  %v6389 = vor.u32 %v6387, %v6388
  %v6390 = vld [vmem:[%s5123] sm:$0x7f]
  %v6391 = vld [vmem:[%s5123 + $0x8] sm:$0x7f]
  %v6392 = vld [vmem:[%s5123 + $0x10] sm:$0x7f]
  %v6393 = vld [vmem:[%s5123 + $0x18] sm:$0x7f]
  %v6394 = vld [vmem:[%s5123 + $0x20] sm:$0x7f]
  %v6395 = vld [vmem:[%s5123 + $0x28] sm:$0x7f]
  %v6396 = vld [vmem:[%s5123 + $0x30] sm:$0x7f]
  %v6398 = vperm.slane %v6389, 0
  %v6399 = vperm.slane %v6389, 1
  %v6400 = vperm.slane %v6389, 2
  %v6401 = vperm.slane %v6389, 3
  %v6402 = vperm.slane %v6389, 4
  %v6403 = vperm.slane %v6389, 5
  %v6404 = vperm.slane %v6389, 6
  %v6412 = vmul.f32 %v6390, %v6398
  %v6413 = vmul.f32 %v6391, %v6399
  %v6414 = vmul.f32 %v6392, %v6400
  %v6415 = vmul.f32 %v6393, %v6401
  %v6416 = vmul.f32 %v6394, %v6402
  %v6417 = vmul.f32 %v6395, %v6403
  %v6418 = vmul.f32 %v6396, %v6404
  %v6419 = vadd.f32 %v6380, %v6412
  %v6420 = vadd.f32 %v6381, %v6413
  %v6421 = vadd.f32 %v6382, %v6414
  %v6422 = vadd.f32 %v6383, %v6415
  %v6423 = vadd.f32 %v6384, %v6416
  %v6424 = vadd.f32 %v6385, %v6417
  %v6425 = vadd.f32 %v6386, %v6418
  %v6426 = vld [vmem:[%s228] ss:$8 sm:$0xf]
  %v6427 = vld [vmem:[%s228] ss:$8 sm:$0x70]
  %v6428 = vor.u32 %v6426, %v6427
  %v6429 = vld [vmem:[%s5791] sm:$0x7f]
  %v6430 = vld [vmem:[%s5791 + $0x8] sm:$0x7f]
  %v6431 = vld [vmem:[%s5791 + $0x10] sm:$0x7f]
  %v6432 = vld [vmem:[%s5791 + $0x18] sm:$0x7f]
  %v6433 = vld [vmem:[%s5791 + $0x20] sm:$0x7f]
  %v6434 = vld [vmem:[%s5791 + $0x28] sm:$0x7f]
  %v6435 = vld [vmem:[%s5791 + $0x30] sm:$0x7f]
  %v6437 = vperm.slane %v6428, 0
  %v6438 = vperm.slane %v6428, 1
  %v6439 = vperm.slane %v6428, 2
  %v6440 = vperm.slane %v6428, 3
  %v6441 = vperm.slane %v6428, 4
  %v6442 = vperm.slane %v6428, 5
  %v6443 = vperm.slane %v6428, 6
  %v6451 = vmul.f32 %v6429, %v6437
  %v6452 = vmul.f32 %v6430, %v6438
  %v6453 = vmul.f32 %v6431, %v6439
  %v6454 = vmul.f32 %v6432, %v6440
  %v6455 = vmul.f32 %v6433, %v6441
  %v6456 = vmul.f32 %v6434, %v6442
  %v6457 = vmul.f32 %v6435, %v6443
  %v6458 = vadd.f32 %v6419, %v6451
  %v6459 = vadd.f32 %v6420, %v6452
  %v6460 = vadd.f32 %v6421, %v6453
  %v6461 = vadd.f32 %v6422, %v6454
  %v6462 = vadd.f32 %v6423, %v6455
  %v6463 = vadd.f32 %v6424, %v6456
  %v6464 = vadd.f32 %v6425, %v6457
  %v6465 = vld [vmem:[%s269] ss:$8 sm:$0xf]
  %v6466 = vld [vmem:[%s269] ss:$8 sm:$0x70]
  %v6467 = vor.u32 %v6465, %v6466
  %v6468 = vld [vmem:[%s5831] sm:$0x7f]
  %v6469 = vld [vmem:[%s5831 + $0x8] sm:$0x7f]
  %v6470 = vld [vmem:[%s5831 + $0x10] sm:$0x7f]
  %v6471 = vld [vmem:[%s5831 + $0x18] sm:$0x7f]
  %v6472 = vld [vmem:[%s5831 + $0x20] sm:$0x7f]
  %v6473 = vld [vmem:[%s5831 + $0x28] sm:$0x7f]
  %v6474 = vld [vmem:[%s5831 + $0x30] sm:$0x7f]
  %v6476 = vperm.slane %v6467, 0
  %v6477 = vperm.slane %v6467, 1
  %v6478 = vperm.slane %v6467, 2
  %v6479 = vperm.slane %v6467, 3
  %v6480 = vperm.slane %v6467, 4
  %v6481 = vperm.slane %v6467, 5
  %v6482 = vperm.slane %v6467, 6
  %v6490 = vmul.f32 %v6468, %v6476
  %v6491 = vmul.f32 %v6469, %v6477
  %v6492 = vmul.f32 %v6470, %v6478
  %v6493 = vmul.f32 %v6471, %v6479
  %v6494 = vmul.f32 %v6472, %v6480
  %v6495 = vmul.f32 %v6473, %v6481
  %v6496 = vmul.f32 %v6474, %v6482
  %v6497 = vadd.f32 %v6458, %v6490
  %v6498 = vadd.f32 %v6459, %v6491
  %v6499 = vadd.f32 %v6460, %v6492
  %v6500 = vadd.f32 %v6461, %v6493
  %v6501 = vadd.f32 %v6462, %v6494
  %v6502 = vadd.f32 %v6463, %v6495
  %v6503 = vadd.f32 %v6464, %v6496
  %v6504 = vld [vmem:[%s310] ss:$8 sm:$0xf]
  %v6505 = vld [vmem:[%s310] ss:$8 sm:$0x70]
  %v6506 = vor.u32 %v6504, %v6505
  %v6507 = vld [vmem:[%s5871] sm:$0x7f]
  %v6508 = vld [vmem:[%s5871 + $0x8] sm:$0x7f]
  %v6509 = vld [vmem:[%s5871 + $0x10] sm:$0x7f]
  %v6510 = vld [vmem:[%s5871 + $0x18] sm:$0x7f]
  %v6511 = vld [vmem:[%s5871 + $0x20] sm:$0x7f]
  %v6512 = vld [vmem:[%s5871 + $0x28] sm:$0x7f]
  %v6513 = vld [vmem:[%s5871 + $0x30] sm:$0x7f]
  %v6515 = vperm.slane %v6506, 0
  %v6516 = vperm.slane %v6506, 1
  %v6517 = vperm.slane %v6506, 2
  %v6518 = vperm.slane %v6506, 3
  %v6519 = vperm.slane %v6506, 4
  %v6520 = vperm.slane %v6506, 5
  %v6521 = vperm.slane %v6506, 6
  %v6529 = vmul.f32 %v6507, %v6515
  %v6530 = vmul.f32 %v6508, %v6516
  %v6531 = vmul.f32 %v6509, %v6517
  %v6532 = vmul.f32 %v6510, %v6518
  %v6533 = vmul.f32 %v6511, %v6519
  %v6534 = vmul.f32 %v6512, %v6520
  %v6535 = vmul.f32 %v6513, %v6521
  %v6536 = vadd.f32 %v6497, %v6529
  %v6537 = vadd.f32 %v6498, %v6530
  %v6538 = vadd.f32 %v6499, %v6531
  %v6539 = vadd.f32 %v6500, %v6532
  %v6540 = vadd.f32 %v6501, %v6533
  %v6541 = vadd.f32 %v6502, %v6534
  %v6542 = vadd.f32 %v6503, %v6535
  %v6543 = vld [vmem:[%s351] ss:$8 sm:$0xf]
  %v6544 = vld [vmem:[%s351] ss:$8 sm:$0x70]
  %v6545 = vor.u32 %v6543, %v6544
  %v6546 = vld [vmem:[%s5911] sm:$0x7f]
  %v6547 = vld [vmem:[%s5911 + $0x8] sm:$0x7f]
  %v6548 = vld [vmem:[%s5911 + $0x10] sm:$0x7f]
  %v6549 = vld [vmem:[%s5911 + $0x18] sm:$0x7f]
  %v6550 = vld [vmem:[%s5911 + $0x20] sm:$0x7f]
  %v6551 = vld [vmem:[%s5911 + $0x28] sm:$0x7f]
  %v6552 = vld [vmem:[%s5911 + $0x30] sm:$0x7f]
  %v6554 = vperm.slane %v6545, 0
  %v6555 = vperm.slane %v6545, 1
  %v6556 = vperm.slane %v6545, 2
  %v6557 = vperm.slane %v6545, 3
  %v6558 = vperm.slane %v6545, 4
  %v6559 = vperm.slane %v6545, 5
  %v6560 = vperm.slane %v6545, 6
  %v6568 = vmul.f32 %v6546, %v6554
  %v6569 = vmul.f32 %v6547, %v6555
  %v6570 = vmul.f32 %v6548, %v6556
  %v6571 = vmul.f32 %v6549, %v6557
  %v6572 = vmul.f32 %v6550, %v6558
  %v6573 = vmul.f32 %v6551, %v6559
  %v6574 = vmul.f32 %v6552, %v6560
  %v6575 = vadd.f32 %v6536, %v6568
  %v6576 = vadd.f32 %v6537, %v6569
  %v6577 = vadd.f32 %v6538, %v6570
  %v6578 = vadd.f32 %v6539, %v6571
  %v6579 = vadd.f32 %v6540, %v6572
  %v6580 = vadd.f32 %v6541, %v6573
  %v6581 = vadd.f32 %v6542, %v6574
  %v6582 = vld [vmem:[%s392] ss:$8 sm:$0xf]
  %v6583 = vld [vmem:[%s392] ss:$8 sm:$0x70]
  %v6584 = vor.u32 %v6582, %v6583
  %v6585 = vld [vmem:[%s5951] sm:$0x7f]
  %v6586 = vld [vmem:[%s5951 + $0x8] sm:$0x7f]
  %v6587 = vld [vmem:[%s5951 + $0x10] sm:$0x7f]
  %v6588 = vld [vmem:[%s5951 + $0x18] sm:$0x7f]
  %v6589 = vld [vmem:[%s5951 + $0x20] sm:$0x7f]
  %v6590 = vld [vmem:[%s5951 + $0x28] sm:$0x7f]
  %v6591 = vld [vmem:[%s5951 + $0x30] sm:$0x7f]
  %v6593 = vperm.slane %v6584, 0
  %v6594 = vperm.slane %v6584, 1
  %v6595 = vperm.slane %v6584, 2
  %v6596 = vperm.slane %v6584, 3
  %v6597 = vperm.slane %v6584, 4
  %v6598 = vperm.slane %v6584, 5
  %v6599 = vperm.slane %v6584, 6
  %v6607 = vmul.f32 %v6585, %v6593
  %v6608 = vmul.f32 %v6586, %v6594
  %v6609 = vmul.f32 %v6587, %v6595
  %v6610 = vmul.f32 %v6588, %v6596
  %v6611 = vmul.f32 %v6589, %v6597
  %v6612 = vmul.f32 %v6590, %v6598
  %v6613 = vmul.f32 %v6591, %v6599
  %v6614 = vadd.f32 %v6575, %v6607
  %v6615 = vadd.f32 %v6576, %v6608
  %v6616 = vadd.f32 %v6577, %v6609
  %v6617 = vadd.f32 %v6578, %v6610
  %v6618 = vadd.f32 %v6579, %v6611
  %v6619 = vadd.f32 %v6580, %v6612
  %v6620 = vadd.f32 %v6581, %v6613
  %v6621 = vld [vmem:[%s433] ss:$8 sm:$0xf]
  %v6622 = vld [vmem:[%s433] ss:$8 sm:$0x70]
  %v6623 = vor.u32 %v6621, %v6622
  %v6624 = vld [vmem:[%s5991] sm:$0x7f]
  %v6625 = vld [vmem:[%s5991 + $0x8] sm:$0x7f]
  %v6626 = vld [vmem:[%s5991 + $0x10] sm:$0x7f]
  %v6627 = vld [vmem:[%s5991 + $0x18] sm:$0x7f]
  %v6628 = vld [vmem:[%s5991 + $0x20] sm:$0x7f]
  %v6629 = vld [vmem:[%s5991 + $0x28] sm:$0x7f]
  %v6630 = vld [vmem:[%s5991 + $0x30] sm:$0x7f]
  %v6632 = vperm.slane %v6623, 0
  %v6633 = vperm.slane %v6623, 1
  %v6634 = vperm.slane %v6623, 2
  %v6635 = vperm.slane %v6623, 3
  %v6636 = vperm.slane %v6623, 4
  %v6637 = vperm.slane %v6623, 5
  %v6638 = vperm.slane %v6623, 6
  %v6646 = vmul.f32 %v6624, %v6632
  %v6647 = vmul.f32 %v6625, %v6633
  %v6648 = vmul.f32 %v6626, %v6634
  %v6649 = vmul.f32 %v6627, %v6635
  %v6650 = vmul.f32 %v6628, %v6636
  %v6651 = vmul.f32 %v6629, %v6637
  %v6652 = vmul.f32 %v6630, %v6638
  %v6653 = vadd.f32 %v6614, %v6646
  %v6654 = vadd.f32 %v6615, %v6647
  %v6655 = vadd.f32 %v6616, %v6648
  %v6656 = vadd.f32 %v6617, %v6649
  %v6657 = vadd.f32 %v6618, %v6650
  %v6658 = vadd.f32 %v6619, %v6651
  %v6659 = vadd.f32 %v6620, %v6652
  %v6660 = vld [vmem:[%s474] ss:$8 sm:$0xf]
  %v6661 = vld [vmem:[%s474] ss:$8 sm:$0x70]
  %v6662 = vor.u32 %v6660, %v6661
  %v6663 = vld [vmem:[%s6031] sm:$0x7f]
  %v6664 = vld [vmem:[%s6031 + $0x8] sm:$0x7f]
  %v6665 = vld [vmem:[%s6031 + $0x10] sm:$0x7f]
  %v6666 = vld [vmem:[%s6031 + $0x18] sm:$0x7f]
  %v6667 = vld [vmem:[%s6031 + $0x20] sm:$0x7f]
  %v6668 = vld [vmem:[%s6031 + $0x28] sm:$0x7f]
  %v6669 = vld [vmem:[%s6031 + $0x30] sm:$0x7f]
  %v6671 = vperm.slane %v6662, 0
  %v6672 = vperm.slane %v6662, 1
  %v6673 = vperm.slane %v6662, 2
  %v6674 = vperm.slane %v6662, 3
  %v6675 = vperm.slane %v6662, 4
  %v6676 = vperm.slane %v6662, 5
  %v6677 = vperm.slane %v6662, 6
  %v6685 = vmul.f32 %v6663, %v6671
  %v6686 = vmul.f32 %v6664, %v6672
  %v6687 = vmul.f32 %v6665, %v6673
  %v6688 = vmul.f32 %v6666, %v6674
  %v6689 = vmul.f32 %v6667, %v6675
  %v6690 = vmul.f32 %v6668, %v6676
  %v6691 = vmul.f32 %v6669, %v6677
  %v6692 = vadd.f32 %v6653, %v6685
  %v6693 = vadd.f32 %v6654, %v6686
  %v6694 = vadd.f32 %v6655, %v6687
  %v6695 = vadd.f32 %v6656, %v6688
  %v6696 = vadd.f32 %v6657, %v6689
  %v6697 = vadd.f32 %v6658, %v6690
  %v6698 = vadd.f32 %v6659, %v6691
  %v6699 = vld [vmem:[%s515] ss:$8 sm:$0xf]
  %v6700 = vld [vmem:[%s515] ss:$8 sm:$0x70]
  %v6701 = vor.u32 %v6699, %v6700
  %v6702 = vld [vmem:[%s6071] sm:$0x7f]
  %v6703 = vld [vmem:[%s6071 + $0x8] sm:$0x7f]
  %v6704 = vld [vmem:[%s6071 + $0x10] sm:$0x7f]
  %v6705 = vld [vmem:[%s6071 + $0x18] sm:$0x7f]
  %v6706 = vld [vmem:[%s6071 + $0x20] sm:$0x7f]
  %v6707 = vld [vmem:[%s6071 + $0x28] sm:$0x7f]
  %v6708 = vld [vmem:[%s6071 + $0x30] sm:$0x7f]
  %v6710 = vperm.slane %v6701, 0
  %v6711 = vperm.slane %v6701, 1
  %v6712 = vperm.slane %v6701, 2
  %v6713 = vperm.slane %v6701, 3
  %v6714 = vperm.slane %v6701, 4
  %v6715 = vperm.slane %v6701, 5
  %v6716 = vperm.slane %v6701, 6
  %v6724 = vmul.f32 %v6702, %v6710
  %v6725 = vmul.f32 %v6703, %v6711
  %v6726 = vmul.f32 %v6704, %v6712
  %v6727 = vmul.f32 %v6705, %v6713
  %v6728 = vmul.f32 %v6706, %v6714
  %v6729 = vmul.f32 %v6707, %v6715
  %v6730 = vmul.f32 %v6708, %v6716
  %v6731 = vadd.f32 %v6692, %v6724
  %v6732 = vadd.f32 %v6693, %v6725
  %v6733 = vadd.f32 %v6694, %v6726
  %v6734 = vadd.f32 %v6695, %v6727
  %v6735 = vadd.f32 %v6696, %v6728
  %v6736 = vadd.f32 %v6697, %v6729
  %v6737 = vadd.f32 %v6698, %v6730
  %v6738 = vld [vmem:[%s556] ss:$8 sm:$0xf]
  %v6739 = vld [vmem:[%s556] ss:$8 sm:$0x70]
  %v6740 = vor.u32 %v6738, %v6739
  %v6741 = vld [vmem:[%s6111] sm:$0x7f]
  %v6742 = vld [vmem:[%s6111 + $0x8] sm:$0x7f]
  %v6743 = vld [vmem:[%s6111 + $0x10] sm:$0x7f]
  %v6744 = vld [vmem:[%s6111 + $0x18] sm:$0x7f]
  %v6745 = vld [vmem:[%s6111 + $0x20] sm:$0x7f]
  %v6746 = vld [vmem:[%s6111 + $0x28] sm:$0x7f]
  %v6747 = vld [vmem:[%s6111 + $0x30] sm:$0x7f]
  %v6749 = vperm.slane %v6740, 0
  %v6750 = vperm.slane %v6740, 1
  %v6751 = vperm.slane %v6740, 2
  %v6752 = vperm.slane %v6740, 3
  %v6753 = vperm.slane %v6740, 4
  %v6754 = vperm.slane %v6740, 5
  %v6755 = vperm.slane %v6740, 6
  %v6763 = vmul.f32 %v6741, %v6749
  %v6764 = vmul.f32 %v6742, %v6750
  %v6765 = vmul.f32 %v6743, %v6751
  %v6766 = vmul.f32 %v6744, %v6752
  %v6767 = vmul.f32 %v6745, %v6753
  %v6768 = vmul.f32 %v6746, %v6754
  %v6769 = vmul.f32 %v6747, %v6755
  %v6770 = vadd.f32 %v6731, %v6763
  %v6771 = vadd.f32 %v6732, %v6764
  %v6772 = vadd.f32 %v6733, %v6765
  %v6773 = vadd.f32 %v6734, %v6766
  %v6774 = vadd.f32 %v6735, %v6767
  %v6775 = vadd.f32 %v6736, %v6768
  %v6776 = vadd.f32 %v6737, %v6769
  %v6777 = vld [vmem:[%s597] ss:$8 sm:$0xf]
  %v6778 = vld [vmem:[%s597] ss:$8 sm:$0x70]
  %v6779 = vor.u32 %v6777, %v6778
  %v6780 = vld [vmem:[%s6151] sm:$0x7f]
  %v6781 = vld [vmem:[%s6151 + $0x8] sm:$0x7f]
  %v6782 = vld [vmem:[%s6151 + $0x10] sm:$0x7f]
  %v6783 = vld [vmem:[%s6151 + $0x18] sm:$0x7f]
  %v6784 = vld [vmem:[%s6151 + $0x20] sm:$0x7f]
  %v6785 = vld [vmem:[%s6151 + $0x28] sm:$0x7f]
  %v6786 = vld [vmem:[%s6151 + $0x30] sm:$0x7f]
  %v6788 = vperm.slane %v6779, 0
  %v6789 = vperm.slane %v6779, 1
  %v6790 = vperm.slane %v6779, 2
  %v6791 = vperm.slane %v6779, 3
  %v6792 = vperm.slane %v6779, 4
  %v6793 = vperm.slane %v6779, 5
  %v6794 = vperm.slane %v6779, 6
  %v6802 = vmul.f32 %v6780, %v6788
  %v6803 = vmul.f32 %v6781, %v6789
  %v6804 = vmul.f32 %v6782, %v6790
  %v6805 = vmul.f32 %v6783, %v6791
  %v6806 = vmul.f32 %v6784, %v6792
  %v6807 = vmul.f32 %v6785, %v6793
  %v6808 = vmul.f32 %v6786, %v6794
  %v6809 = vadd.f32 %v6770, %v6802
  %v6810 = vadd.f32 %v6771, %v6803
  %v6811 = vadd.f32 %v6772, %v6804
  %v6812 = vadd.f32 %v6773, %v6805
  %v6813 = vadd.f32 %v6774, %v6806
  %v6814 = vadd.f32 %v6775, %v6807
  %v6815 = vadd.f32 %v6776, %v6808
  %v6816 = vld [vmem:[%s638] ss:$8 sm:$0xf]
  %v6817 = vld [vmem:[%s638] ss:$8 sm:$0x70]
  %v6818 = vor.u32 %v6816, %v6817
  %s6819 = scalar_lea.vmem %s0, 840
  %v6820 = vld [vmem:[%s6819] sm:$0x7f]
  %v6821 = vld [vmem:[%s6819 + $0x8] sm:$0x7f]
  %v6822 = vld [vmem:[%s6819 + $0x10] sm:$0x7f]
  %v6823 = vld [vmem:[%s6819 + $0x18] sm:$0x7f]
  %v6824 = vld [vmem:[%s6819 + $0x20] sm:$0x7f]
  %v6825 = vld [vmem:[%s6819 + $0x28] sm:$0x7f]
  %v6826 = vld [vmem:[%s6819 + $0x30] sm:$0x7f]
  %v6828 = vperm.slane %v6818, 0
  %v6829 = vperm.slane %v6818, 1
  %v6830 = vperm.slane %v6818, 2
  %v6831 = vperm.slane %v6818, 3
  %v6832 = vperm.slane %v6818, 4
  %v6833 = vperm.slane %v6818, 5
  %v6834 = vperm.slane %v6818, 6
  %v6842 = vmul.f32 %v6820, %v6828
  %v6843 = vmul.f32 %v6821, %v6829
  %v6844 = vmul.f32 %v6822, %v6830
  %v6845 = vmul.f32 %v6823, %v6831
  %v6846 = vmul.f32 %v6824, %v6832
  %v6847 = vmul.f32 %v6825, %v6833
  %v6848 = vmul.f32 %v6826, %v6834
  %v6849 = vadd.f32 %v6809, %v6842
  %v6850 = vadd.f32 %v6810, %v6843
  %v6851 = vadd.f32 %v6811, %v6844
  %v6852 = vadd.f32 %v6812, %v6845
  %v6853 = vadd.f32 %v6813, %v6846
  %v6854 = vadd.f32 %v6814, %v6847
  %v6855 = vadd.f32 %v6815, %v6848
  %v6856 = vld [vmem:[%s679] ss:$8 sm:$0xf]
  %v6857 = vld [vmem:[%s679] ss:$8 sm:$0x70]
  %v6858 = vor.u32 %v6856, %v6857
  %s6859 = scalar_lea.vmem %s1, 840
  %v6860 = vld [vmem:[%s6859] sm:$0x7f]
  %v6861 = vld [vmem:[%s6859 + $0x8] sm:$0x7f]
  %v6862 = vld [vmem:[%s6859 + $0x10] sm:$0x7f]
  %v6863 = vld [vmem:[%s6859 + $0x18] sm:$0x7f]
  %v6864 = vld [vmem:[%s6859 + $0x20] sm:$0x7f]
  %v6865 = vld [vmem:[%s6859 + $0x28] sm:$0x7f]
  %v6866 = vld [vmem:[%s6859 + $0x30] sm:$0x7f]
  %v6868 = vperm.slane %v6858, 0
  %v6869 = vperm.slane %v6858, 1
  %v6870 = vperm.slane %v6858, 2
  %v6871 = vperm.slane %v6858, 3
  %v6872 = vperm.slane %v6858, 4
  %v6873 = vperm.slane %v6858, 5
  %v6874 = vperm.slane %v6858, 6
  %v6882 = vmul.f32 %v6860, %v6868
  %v6883 = vmul.f32 %v6861, %v6869
  %v6884 = vmul.f32 %v6862, %v6870
  %v6885 = vmul.f32 %v6863, %v6871
  %v6886 = vmul.f32 %v6864, %v6872
  %v6887 = vmul.f32 %v6865, %v6873
  %v6888 = vmul.f32 %v6866, %v6874
  %v6889 = vadd.f32 %v6849, %v6882
  %v6890 = vadd.f32 %v6850, %v6883
  %v6891 = vadd.f32 %v6851, %v6884
  %v6892 = vadd.f32 %v6852, %v6885
  %v6893 = vadd.f32 %v6853, %v6886
  %v6894 = vadd.f32 %v6854, %v6887
  %v6895 = vadd.f32 %v6855, %v6888
  %v6896 = vld [vmem:[%s720] ss:$8 sm:$0xf]
  %v6897 = vld [vmem:[%s720] ss:$8 sm:$0x70]
  %v6898 = vor.u32 %v6896, %v6897
  %s6899 = scalar_lea.vmem %s2, 840
  %v6900 = vld [vmem:[%s6899] sm:$0x7f]
  %v6901 = vld [vmem:[%s6899 + $0x8] sm:$0x7f]
  %v6902 = vld [vmem:[%s6899 + $0x10] sm:$0x7f]
  %v6903 = vld [vmem:[%s6899 + $0x18] sm:$0x7f]
  %v6904 = vld [vmem:[%s6899 + $0x20] sm:$0x7f]
  %v6905 = vld [vmem:[%s6899 + $0x28] sm:$0x7f]
  %v6906 = vld [vmem:[%s6899 + $0x30] sm:$0x7f]
  %v6908 = vperm.slane %v6898, 0
  %v6909 = vperm.slane %v6898, 1
  %v6910 = vperm.slane %v6898, 2
  %v6911 = vperm.slane %v6898, 3
  %v6912 = vperm.slane %v6898, 4
  %v6913 = vperm.slane %v6898, 5
  %v6914 = vperm.slane %v6898, 6
  %v6922 = vmul.f32 %v6900, %v6908
  %v6923 = vmul.f32 %v6901, %v6909
  %v6924 = vmul.f32 %v6902, %v6910
  %v6925 = vmul.f32 %v6903, %v6911
  %v6926 = vmul.f32 %v6904, %v6912
  %v6927 = vmul.f32 %v6905, %v6913
  %v6928 = vmul.f32 %v6906, %v6914
  %v6929 = vadd.f32 %v6889, %v6922
  %v6930 = vadd.f32 %v6890, %v6923
  %v6931 = vadd.f32 %v6891, %v6924
  %v6932 = vadd.f32 %v6892, %v6925
  %v6933 = vadd.f32 %v6893, %v6926
  %v6934 = vadd.f32 %v6894, %v6927
  %v6935 = vadd.f32 %v6895, %v6928
  %v6936 = vld [vmem:[%s761] ss:$8 sm:$0xf]
  %v6937 = vld [vmem:[%s761] ss:$8 sm:$0x70]
  %v6938 = vor.u32 %v6936, %v6937
  %s6939 = scalar_lea.vmem %s3, 840
  %v6940 = vld [vmem:[%s6939] sm:$0x7f]
  %v6941 = vld [vmem:[%s6939 + $0x8] sm:$0x7f]
  %v6942 = vld [vmem:[%s6939 + $0x10] sm:$0x7f]
  %v6943 = vld [vmem:[%s6939 + $0x18] sm:$0x7f]
  %v6944 = vld [vmem:[%s6939 + $0x20] sm:$0x7f]
  %v6945 = vld [vmem:[%s6939 + $0x28] sm:$0x7f]
  %v6946 = vld [vmem:[%s6939 + $0x30] sm:$0x7f]
  %v6948 = vperm.slane %v6938, 0
  %v6949 = vperm.slane %v6938, 1
  %v6950 = vperm.slane %v6938, 2
  %v6951 = vperm.slane %v6938, 3
  %v6952 = vperm.slane %v6938, 4
  %v6953 = vperm.slane %v6938, 5
  %v6954 = vperm.slane %v6938, 6
  %v6962 = vmul.f32 %v6940, %v6948
  %v6963 = vmul.f32 %v6941, %v6949
  %v6964 = vmul.f32 %v6942, %v6950
  %v6965 = vmul.f32 %v6943, %v6951
  %v6966 = vmul.f32 %v6944, %v6952
  %v6967 = vmul.f32 %v6945, %v6953
  %v6968 = vmul.f32 %v6946, %v6954
  %v6969 = vadd.f32 %v6929, %v6962
  %v6970 = vadd.f32 %v6930, %v6963
  %v6971 = vadd.f32 %v6931, %v6964
  %v6972 = vadd.f32 %v6932, %v6965
  %v6973 = vadd.f32 %v6933, %v6966
  %v6974 = vadd.f32 %v6934, %v6967
  %v6975 = vadd.f32 %v6935, %v6968
  %v6976 = vld [vmem:[%s802] ss:$8 sm:$0xf]
  %v6977 = vld [vmem:[%s802] ss:$8 sm:$0x70]
  %v6978 = vor.u32 %v6976, %v6977
  %s6979 = scalar_lea.vmem %s4, 840
  %v6980 = vld [vmem:[%s6979] sm:$0x7f]
  %v6981 = vld [vmem:[%s6979 + $0x8] sm:$0x7f]
  %v6982 = vld [vmem:[%s6979 + $0x10] sm:$0x7f]
  %v6983 = vld [vmem:[%s6979 + $0x18] sm:$0x7f]
  %v6984 = vld [vmem:[%s6979 + $0x20] sm:$0x7f]
  %v6985 = vld [vmem:[%s6979 + $0x28] sm:$0x7f]
  %v6986 = vld [vmem:[%s6979 + $0x30] sm:$0x7f]
  %v6988 = vperm.slane %v6978, 0
  %v6989 = vperm.slane %v6978, 1
  %v6990 = vperm.slane %v6978, 2
  %v6991 = vperm.slane %v6978, 3
  %v6992 = vperm.slane %v6978, 4
  %v6993 = vperm.slane %v6978, 5
  %v6994 = vperm.slane %v6978, 6
  %v7002 = vmul.f32 %v6980, %v6988
  %v7003 = vmul.f32 %v6981, %v6989
  %v7004 = vmul.f32 %v6982, %v6990
  %v7005 = vmul.f32 %v6983, %v6991
  %v7006 = vmul.f32 %v6984, %v6992
  %v7007 = vmul.f32 %v6985, %v6993
  %v7008 = vmul.f32 %v6986, %v6994
  %v7009 = vadd.f32 %v6969, %v7002
  %v7010 = vadd.f32 %v6970, %v7003
  %v7011 = vadd.f32 %v6971, %v7004
  %v7012 = vadd.f32 %v6972, %v7005
  %v7013 = vadd.f32 %v6973, %v7006
  %v7014 = vadd.f32 %v6974, %v7007
  %v7015 = vadd.f32 %v6975, %v7008
  %v7016 = vld [vmem:[%s843] ss:$8 sm:$0xf]
  %v7017 = vld [vmem:[%s843] ss:$8 sm:$0x70]
  %v7018 = vor.u32 %v7016, %v7017
  %s7019 = scalar_lea.vmem %s0, 896
  %v7020 = vld [vmem:[%s7019] sm:$0x7f]
  %v7021 = vld [vmem:[%s7019 + $0x8] sm:$0x7f]
  %v7022 = vld [vmem:[%s7019 + $0x10] sm:$0x7f]
  %v7023 = vld [vmem:[%s7019 + $0x18] sm:$0x7f]
  %v7024 = vld [vmem:[%s7019 + $0x20] sm:$0x7f]
  %v7025 = vld [vmem:[%s7019 + $0x28] sm:$0x7f]
  %v7026 = vld [vmem:[%s7019 + $0x30] sm:$0x7f]
  %v7028 = vperm.slane %v7018, 0
  %v7029 = vperm.slane %v7018, 1
  %v7030 = vperm.slane %v7018, 2
  %v7031 = vperm.slane %v7018, 3
  %v7032 = vperm.slane %v7018, 4
  %v7033 = vperm.slane %v7018, 5
  %v7034 = vperm.slane %v7018, 6
  %v7042 = vmul.f32 %v7020, %v7028
  %v7043 = vmul.f32 %v7021, %v7029
  %v7044 = vmul.f32 %v7022, %v7030
  %v7045 = vmul.f32 %v7023, %v7031
  %v7046 = vmul.f32 %v7024, %v7032
  %v7047 = vmul.f32 %v7025, %v7033
  %v7048 = vmul.f32 %v7026, %v7034
  %v7049 = vadd.f32 %v7009, %v7042
  %v7050 = vadd.f32 %v7010, %v7043
  %v7051 = vadd.f32 %v7011, %v7044
  %v7052 = vadd.f32 %v7012, %v7045
  %v7053 = vadd.f32 %v7013, %v7046
  %v7054 = vadd.f32 %v7014, %v7047
  %v7055 = vadd.f32 %v7015, %v7048
  %v7056 = vld [vmem:[%s884] ss:$8 sm:$0xf]
  %v7057 = vld [vmem:[%s884] ss:$8 sm:$0x70]
  %v7058 = vor.u32 %v7056, %v7057
  %s7059 = scalar_lea.vmem %s1, 896
  %v7060 = vld [vmem:[%s7059] sm:$0x7f]
  %v7061 = vld [vmem:[%s7059 + $0x8] sm:$0x7f]
  %v7062 = vld [vmem:[%s7059 + $0x10] sm:$0x7f]
  %v7063 = vld [vmem:[%s7059 + $0x18] sm:$0x7f]
  %v7064 = vld [vmem:[%s7059 + $0x20] sm:$0x7f]
  %v7065 = vld [vmem:[%s7059 + $0x28] sm:$0x7f]
  %v7066 = vld [vmem:[%s7059 + $0x30] sm:$0x7f]
  %v7068 = vperm.slane %v7058, 0
  %v7069 = vperm.slane %v7058, 1
  %v7070 = vperm.slane %v7058, 2
  %v7071 = vperm.slane %v7058, 3
  %v7072 = vperm.slane %v7058, 4
  %v7073 = vperm.slane %v7058, 5
  %v7074 = vperm.slane %v7058, 6
  %v7082 = vmul.f32 %v7060, %v7068
  %v7083 = vmul.f32 %v7061, %v7069
  %v7084 = vmul.f32 %v7062, %v7070
  %v7085 = vmul.f32 %v7063, %v7071
  %v7086 = vmul.f32 %v7064, %v7072
  %v7087 = vmul.f32 %v7065, %v7073
  %v7088 = vmul.f32 %v7066, %v7074
  %v7089 = vadd.f32 %v7049, %v7082
  %v7090 = vadd.f32 %v7050, %v7083
  %v7091 = vadd.f32 %v7051, %v7084
  %v7092 = vadd.f32 %v7052, %v7085
  %v7093 = vadd.f32 %v7053, %v7086
  %v7094 = vadd.f32 %v7054, %v7087
  %v7095 = vadd.f32 %v7055, %v7088
  %v7096 = vld [vmem:[%s925] ss:$8 sm:$0xf]
  %v7097 = vld [vmem:[%s925] ss:$8 sm:$0x70]
  %v7098 = vor.u32 %v7096, %v7097
  %s7099 = scalar_lea.vmem %s2, 896
  %v7100 = vld [vmem:[%s7099] sm:$0x7f]
  %v7101 = vld [vmem:[%s7099 + $0x8] sm:$0x7f]
  %v7102 = vld [vmem:[%s7099 + $0x10] sm:$0x7f]
  %v7103 = vld [vmem:[%s7099 + $0x18] sm:$0x7f]
  %v7104 = vld [vmem:[%s7099 + $0x20] sm:$0x7f]
  %v7105 = vld [vmem:[%s7099 + $0x28] sm:$0x7f]
  %v7106 = vld [vmem:[%s7099 + $0x30] sm:$0x7f]
  %v7108 = vperm.slane %v7098, 0
  %v7109 = vperm.slane %v7098, 1
  %v7110 = vperm.slane %v7098, 2
  %v7111 = vperm.slane %v7098, 3
  %v7112 = vperm.slane %v7098, 4
  %v7113 = vperm.slane %v7098, 5
  %v7114 = vperm.slane %v7098, 6
  %v7122 = vmul.f32 %v7100, %v7108
  %v7123 = vmul.f32 %v7101, %v7109
  %v7124 = vmul.f32 %v7102, %v7110
  %v7125 = vmul.f32 %v7103, %v7111
  %v7126 = vmul.f32 %v7104, %v7112
  %v7127 = vmul.f32 %v7105, %v7113
  %v7128 = vmul.f32 %v7106, %v7114
  %v7129 = vadd.f32 %v7089, %v7122
  %v7130 = vadd.f32 %v7090, %v7123
  %v7131 = vadd.f32 %v7091, %v7124
  %v7132 = vadd.f32 %v7092, %v7125
  %v7133 = vadd.f32 %v7093, %v7126
  %v7134 = vadd.f32 %v7094, %v7127
  %v7135 = vadd.f32 %v7095, %v7128
  %v7136 = vld [vmem:[%s966] ss:$8 sm:$0xf]
  %v7137 = vld [vmem:[%s966] ss:$8 sm:$0x70]
  %v7138 = vor.u32 %v7136, %v7137
  %s7139 = scalar_lea.vmem %s3, 896
  %v7140 = vld [vmem:[%s7139] sm:$0x7f]
  %v7141 = vld [vmem:[%s7139 + $0x8] sm:$0x7f]
  %v7142 = vld [vmem:[%s7139 + $0x10] sm:$0x7f]
  %v7143 = vld [vmem:[%s7139 + $0x18] sm:$0x7f]
  %v7144 = vld [vmem:[%s7139 + $0x20] sm:$0x7f]
  %v7145 = vld [vmem:[%s7139 + $0x28] sm:$0x7f]
  %v7146 = vld [vmem:[%s7139 + $0x30] sm:$0x7f]
  %v7148 = vperm.slane %v7138, 0
  %v7149 = vperm.slane %v7138, 1
  %v7150 = vperm.slane %v7138, 2
  %v7151 = vperm.slane %v7138, 3
  %v7152 = vperm.slane %v7138, 4
  %v7153 = vperm.slane %v7138, 5
  %v7154 = vperm.slane %v7138, 6
  %v7162 = vmul.f32 %v7140, %v7148
  %v7163 = vmul.f32 %v7141, %v7149
  %v7164 = vmul.f32 %v7142, %v7150
  %v7165 = vmul.f32 %v7143, %v7151
  %v7166 = vmul.f32 %v7144, %v7152
  %v7167 = vmul.f32 %v7145, %v7153
  %v7168 = vmul.f32 %v7146, %v7154
  %v7169 = vadd.f32 %v7129, %v7162
  %v7170 = vadd.f32 %v7130, %v7163
  %v7171 = vadd.f32 %v7131, %v7164
  %v7172 = vadd.f32 %v7132, %v7165
  %v7173 = vadd.f32 %v7133, %v7166
  %v7174 = vadd.f32 %v7134, %v7167
  %v7175 = vadd.f32 %v7135, %v7168
  %v7176 = vld [vmem:[%s1007] ss:$8 sm:$0xf]
  %v7177 = vld [vmem:[%s1007] ss:$8 sm:$0x70]
  %v7178 = vor.u32 %v7176, %v7177
  %s7179 = scalar_lea.vmem %s4, 896
  %v7180 = vld [vmem:[%s7179] sm:$0x7f]
  %v7181 = vld [vmem:[%s7179 + $0x8] sm:$0x7f]
  %v7182 = vld [vmem:[%s7179 + $0x10] sm:$0x7f]
  %v7183 = vld [vmem:[%s7179 + $0x18] sm:$0x7f]
  %v7184 = vld [vmem:[%s7179 + $0x20] sm:$0x7f]
  %v7185 = vld [vmem:[%s7179 + $0x28] sm:$0x7f]
  %v7186 = vld [vmem:[%s7179 + $0x30] sm:$0x7f]
  %v7188 = vperm.slane %v7178, 0
  %v7189 = vperm.slane %v7178, 1
  %v7190 = vperm.slane %v7178, 2
  %v7191 = vperm.slane %v7178, 3
  %v7192 = vperm.slane %v7178, 4
  %v7193 = vperm.slane %v7178, 5
  %v7194 = vperm.slane %v7178, 6
  %v7202 = vmul.f32 %v7180, %v7188
  %v7203 = vmul.f32 %v7181, %v7189
  %v7204 = vmul.f32 %v7182, %v7190
  %v7205 = vmul.f32 %v7183, %v7191
  %v7206 = vmul.f32 %v7184, %v7192
  %v7207 = vmul.f32 %v7185, %v7193
  %v7208 = vmul.f32 %v7186, %v7194
  %v7209 = vadd.f32 %v7169, %v7202
  %v7210 = vadd.f32 %v7170, %v7203
  %v7211 = vadd.f32 %v7171, %v7204
  %v7212 = vadd.f32 %v7172, %v7205
  %v7213 = vadd.f32 %v7173, %v7206
  %v7214 = vadd.f32 %v7174, %v7207
  %v7215 = vadd.f32 %v7175, %v7208
  %s7216 = scalar_lea.vmem %s8, 336
  %7217 = vst [vmem:[%s7216] sm:$0x7f] %v7209
  %7218 = vst [vmem:[%s7216 + $0x8] sm:$0x7f] %v7210
  %7219 = vst [vmem:[%s7216 + $0x10] sm:$0x7f] %v7211
  %7220 = vst [vmem:[%s7216 + $0x18] sm:$0x7f] %v7212
  %7221 = vst [vmem:[%s7216 + $0x20] sm:$0x7f] %v7213
  %7222 = vst [vmem:[%s7216 + $0x28] sm:$0x7f] %v7214
  %7223 = vst.msk [vmem:[%s7216 + $0x30] sm:$0x7f] %vm1054, %v7215
  %v7224 = vadd.f32 %v7209, 0.0
  %v7225 = vadd.f32 %v7210, 0.0
  %v7226 = vadd.f32 %v7211, 0.0
  %v7227 = vadd.f32 %v7212, 0.0
  %v7228 = vadd.f32 %v7213, 0.0
  %v7229 = vadd.f32 %v7214, 0.0
  %v7230 = vadd.f32 %v7215, 0.0
  %v7231 = vadd.f32 %v6203, %v7224
  %v7232 = vadd.f32 %v6204, %v7225
  %v7233 = vadd.f32 %v6205, %v7226
  %v7234 = vadd.f32 %v6206, %v7227
  %v7235 = vadd.f32 %v6207, %v7228
  %v7236 = vadd.f32 %v6208, %v7229
  %v7237 = vadd.f32 %v6209, %v7230
  %v7238 = vmul.f32 %v7209, %v7209
  %v7239 = vmul.f32 %v7210, %v7210
  %v7240 = vmul.f32 %v7211, %v7211
  %v7241 = vmul.f32 %v7212, %v7212
  %v7242 = vmul.f32 %v7213, %v7213
  %v7243 = vmul.f32 %v7214, %v7214
  %v7244 = vmul.f32 %v7215, %v7215
  %v7245 = vadd.f32 %v7238, 0.0
  %v7246 = vadd.f32 %v7239, 0.0
  %v7247 = vadd.f32 %v7240, 0.0
  %v7248 = vadd.f32 %v7241, 0.0
  %v7249 = vadd.f32 %v7242, 0.0
  %v7250 = vadd.f32 %v7243, 0.0
  %v7251 = vadd.f32 %v7244, 0.0
  %v7252 = vadd.f32 %v6224, %v7245
  %v7253 = vadd.f32 %v6225, %v7246
  %v7254 = vadd.f32 %v6226, %v7247
  %v7255 = vadd.f32 %v6227, %v7248
  %v7256 = vadd.f32 %v6228, %v7249
  %v7257 = vadd.f32 %v6229, %v7250
  %v7258 = vadd.f32 %v6230, %v7251
  %vm7259 = vcmask 1046528
  %v7260 = vsel %vm7259, %v7231, 0.0
  %v7261 = vrot.slane %v7260, 4
  %v7262 = vadd.f32 %v7260, %v7261
  %v7263 = vrot.slane %v7262, 2
  %v7264 = vadd.f32 %v7262, %v7263
  %v7265 = vrot.slane %v7264, 1
  %v7266 = vadd.f32 %v7264, %v7265
  %v7267 = vsel %vm7259, %v7232, 0.0
  %v7268 = vrot.slane %v7267, 4
  %v7269 = vadd.f32 %v7267, %v7268
  %v7270 = vrot.slane %v7269, 2
  %v7271 = vadd.f32 %v7269, %v7270
  %v7272 = vrot.slane %v7271, 1
  %v7273 = vadd.f32 %v7271, %v7272
  %v7274 = vsel %vm7259, %v7233, 0.0
  %v7275 = vrot.slane %v7274, 4
  %v7276 = vadd.f32 %v7274, %v7275
  %v7277 = vrot.slane %v7276, 2
  %v7278 = vadd.f32 %v7276, %v7277
  %v7279 = vrot.slane %v7278, 1
  %v7280 = vadd.f32 %v7278, %v7279
  %v7281 = vsel %vm7259, %v7234, 0.0
  %v7282 = vrot.slane %v7281, 4
  %v7283 = vadd.f32 %v7281, %v7282
  %v7284 = vrot.slane %v7283, 2
  %v7285 = vadd.f32 %v7283, %v7284
  %v7286 = vrot.slane %v7285, 1
  %v7287 = vadd.f32 %v7285, %v7286
  %v7288 = vsel %vm7259, %v7235, 0.0
  %v7289 = vrot.slane %v7288, 4
  %v7290 = vadd.f32 %v7288, %v7289
  %v7291 = vrot.slane %v7290, 2
  %v7292 = vadd.f32 %v7290, %v7291
  %v7293 = vrot.slane %v7292, 1
  %v7294 = vadd.f32 %v7292, %v7293
  %v7295 = vsel %vm7259, %v7236, 0.0
  %v7296 = vrot.slane %v7295, 4
  %v7297 = vadd.f32 %v7295, %v7296
  %v7298 = vrot.slane %v7297, 2
  %v7299 = vadd.f32 %v7297, %v7298
  %v7300 = vrot.slane %v7299, 1
  %v7301 = vadd.f32 %v7299, %v7300
  %v7302 = vsel %vm1054, %v7237, 0.0
  %v7303 = vrot.slane %v7302, 4
  %v7304 = vadd.f32 %v7302, %v7303
  %v7305 = vrot.slane %v7304, 2
  %v7306 = vadd.f32 %v7304, %v7305
  %v7307 = vrot.slane %v7306, 1
  %v7308 = vadd.f32 %v7306, %v7307
  %v7309 = vsel %vm7259, %v7252, 0.0
  %v7310 = vrot.slane %v7309, 4
  %v7311 = vadd.f32 %v7309, %v7310
  %v7312 = vrot.slane %v7311, 2
  %v7313 = vadd.f32 %v7311, %v7312
  %v7314 = vrot.slane %v7313, 1
  %v7315 = vadd.f32 %v7313, %v7314
  %v7316 = vsel %vm7259, %v7253, 0.0
  %v7317 = vrot.slane %v7316, 4
  %v7318 = vadd.f32 %v7316, %v7317
  %v7319 = vrot.slane %v7318, 2
  %v7320 = vadd.f32 %v7318, %v7319
  %v7321 = vrot.slane %v7320, 1
  %v7322 = vadd.f32 %v7320, %v7321
  %v7323 = vsel %vm7259, %v7254, 0.0
  %v7324 = vrot.slane %v7323, 4
  %v7325 = vadd.f32 %v7323, %v7324
  %v7326 = vrot.slane %v7325, 2
  %v7327 = vadd.f32 %v7325, %v7326
  %v7328 = vrot.slane %v7327, 1
  %v7329 = vadd.f32 %v7327, %v7328
  %v7330 = vsel %vm7259, %v7255, 0.0
  %v7331 = vrot.slane %v7330, 4
  %v7332 = vadd.f32 %v7330, %v7331
  %v7333 = vrot.slane %v7332, 2
  %v7334 = vadd.f32 %v7332, %v7333
  %v7335 = vrot.slane %v7334, 1
  %v7336 = vadd.f32 %v7334, %v7335
  %v7337 = vsel %vm7259, %v7256, 0.0
  %v7338 = vrot.slane %v7337, 4
  %v7339 = vadd.f32 %v7337, %v7338
  %v7340 = vrot.slane %v7339, 2
  %v7341 = vadd.f32 %v7339, %v7340
  %v7342 = vrot.slane %v7341, 1
  %v7343 = vadd.f32 %v7341, %v7342
  %v7344 = vsel %vm7259, %v7257, 0.0
  %v7345 = vrot.slane %v7344, 4
  %v7346 = vadd.f32 %v7344, %v7345
  %v7347 = vrot.slane %v7346, 2
  %v7348 = vadd.f32 %v7346, %v7347
  %v7349 = vrot.slane %v7348, 1
  %v7350 = vadd.f32 %v7348, %v7349
  %v7351 = vsel %vm1054, %v7258, 0.0
  %v7352 = vrot.slane %v7351, 4
  %v7353 = vadd.f32 %v7351, %v7352
  %v7354 = vrot.slane %v7353, 2
  %v7355 = vadd.f32 %v7353, %v7354
  %v7356 = vrot.slane %v7355, 1
  %v7357 = vadd.f32 %v7355, %v7356
  %v7358 = vmul.f32 %v7266, 0.020408163
  %v7359 = vmul.f32 %v7273, 0.020408163
  %v7360 = vmul.f32 %v7280, 0.020408163
  %v7361 = vmul.f32 %v7287, 0.020408163
  %v7362 = vmul.f32 %v7294, 0.020408163
  %v7363 = vmul.f32 %v7301, 0.020408163
  %v7364 = vmul.f32 %v7308, 0.020408163
  %v7365 = vmul.f32 %v7315, 0.020408163
  %v7366 = vmul.f32 %v7322, 0.020408163
  %v7367 = vmul.f32 %v7329, 0.020408163
  %v7368 = vmul.f32 %v7336, 0.020408163
  %v7369 = vmul.f32 %v7343, 0.020408163
  %v7370 = vmul.f32 %v7350, 0.020408163
  %v7371 = vmul.f32 %v7357, 0.020408163
  %v7372 = vmul.f32 %v7358, %v7358
  %v7373 = vmul.f32 %v7359, %v7359
  %v7374 = vmul.f32 %v7360, %v7360
  %v7375 = vmul.f32 %v7361, %v7361
  %v7376 = vmul.f32 %v7362, %v7362
  %v7377 = vmul.f32 %v7363, %v7363
  %v7378 = vmul.f32 %v7364, %v7364
  %v7379 = vsub.f32 %v7365, %v7372
  %v7380 = vsub.f32 %v7366, %v7373
  %v7381 = vsub.f32 %v7367, %v7374
  %v7382 = vsub.f32 %v7368, %v7375
  %v7383 = vsub.f32 %v7369, %v7376
  %v7384 = vsub.f32 %v7370, %v7377
  %v7385 = vsub.f32 %v7371, %v7378
  %v7386 = vadd.f32 %v7379, 1e-05
  %v7387 = vadd.f32 %v7380, 1e-05
  %v7388 = vadd.f32 %v7381, 1e-05
  %v7389 = vadd.f32 %v7382, 1e-05
  %v7390 = vadd.f32 %v7383, 1e-05
  %v7391 = vadd.f32 %v7384, 1e-05
  %v7392 = vadd.f32 %v7385, 1e-05
  %v7393 = vrsqrt.pop %v7386
  %v7394 = vmul.f32 %v7393, %v7386
  %v7395 = vmul.f32 %v7394, %v7393
  %v7396 = vmul.f32 0.5, %v7395
  %v7397 = vsub.f32 1.5, %v7396
  %v7398 = vmul.f32 %v7393, %v7397
  %vm7399 = vweird.f32 %v7386
  %vm7400 = vweird.f32 %v7393
  %vm7401 = vmor %vm7399, %vm7400
  %v7402 = vsel %vm7401, %v7393, %v7398
  %v7403 = vrsqrt.pop %v7387
  %v7404 = vmul.f32 %v7403, %v7387
  %v7405 = vmul.f32 %v7404, %v7403
  %v7406 = vmul.f32 0.5, %v7405
  %v7407 = vsub.f32 1.5, %v7406
  %v7408 = vmul.f32 %v7403, %v7407
  %vm7409 = vweird.f32 %v7387
  %vm7410 = vweird.f32 %v7403
  %vm7411 = vmor %vm7409, %vm7410
  %v7412 = vsel %vm7411, %v7403, %v7408
  %v7413 = vrsqrt.pop %v7388
  %v7414 = vmul.f32 %v7413, %v7388
  %v7415 = vmul.f32 %v7414, %v7413
  %v7416 = vmul.f32 0.5, %v7415
  %v7417 = vsub.f32 1.5, %v7416
  %v7418 = vmul.f32 %v7413, %v7417
  %vm7419 = vweird.f32 %v7388
  %vm7420 = vweird.f32 %v7413
  %vm7421 = vmor %vm7419, %vm7420
  %v7422 = vsel %vm7421, %v7413, %v7418
  %v7423 = vrsqrt.pop %v7389
  %v7424 = vmul.f32 %v7423, %v7389
  %v7425 = vmul.f32 %v7424, %v7423
  %v7426 = vmul.f32 0.5, %v7425
  %v7427 = vsub.f32 1.5, %v7426
  %v7428 = vmul.f32 %v7423, %v7427
  %vm7429 = vweird.f32 %v7389
  %vm7430 = vweird.f32 %v7423
  %vm7431 = vmor %vm7429, %vm7430
  %v7432 = vsel %vm7431, %v7423, %v7428
  %v7433 = vrsqrt.pop %v7390
  %v7434 = vmul.f32 %v7433, %v7390
  %v7435 = vmul.f32 %v7434, %v7433
  %v7436 = vmul.f32 0.5, %v7435
  %v7437 = vsub.f32 1.5, %v7436
  %v7438 = vmul.f32 %v7433, %v7437
  %vm7439 = vweird.f32 %v7390
  %vm7440 = vweird.f32 %v7433
  %vm7441 = vmor %vm7439, %vm7440
  %v7442 = vsel %vm7441, %v7433, %v7438
  %v7443 = vrsqrt.pop %v7391
  %v7444 = vmul.f32 %v7443, %v7391
  %v7445 = vmul.f32 %v7444, %v7443
  %v7446 = vmul.f32 0.5, %v7445
  %v7447 = vsub.f32 1.5, %v7446
  %v7448 = vmul.f32 %v7443, %v7447
  %vm7449 = vweird.f32 %v7391
  %vm7450 = vweird.f32 %v7443
  %vm7451 = vmor %vm7449, %vm7450
  %v7452 = vsel %vm7451, %v7443, %v7448
  %v7453 = vrsqrt.pop %v7392
  %v7454 = vmul.f32 %v7453, %v7392
  %v7455 = vmul.f32 %v7454, %v7453
  %v7456 = vmul.f32 0.5, %v7455
  %v7457 = vsub.f32 1.5, %v7456
  %v7458 = vmul.f32 %v7453, %v7457
  %vm7459 = vweird.f32 %v7392
  %vm7460 = vweird.f32 %v7453
  %vm7461 = vmor %vm7459, %vm7460
  %v7462 = vsel %vm7461, %v7453, %v7458
  %v7463 = vld [vmem:[%s6] sm:$0x7f]
  %v7465 = vperm.slane %v7463, 0
  %v7466 = vperm.slane %v7463, 1
  %v7467 = vperm.slane %v7463, 2
  %v7468 = vperm.slane %v7463, 3
  %v7469 = vperm.slane %v7463, 4
  %v7470 = vperm.slane %v7463, 5
  %v7471 = vperm.slane %v7463, 6
  %v7479 = vmul.f32 %v7402, %v7465
  %v7480 = vmul.f32 %v7412, %v7466
  %v7481 = vmul.f32 %v7422, %v7467
  %v7482 = vmul.f32 %v7432, %v7468
  %v7483 = vmul.f32 %v7442, %v7469
  %v7484 = vmul.f32 %v7452, %v7470
  %v7485 = vmul.f32 %v7462, %v7471
  %v7486 = vld [vmem:[%s7] sm:$0x7f]
  %v7487 = vmul.f32 %v7358, %v7479
  %v7488 = vmul.f32 %v7359, %v7480
  %v7489 = vmul.f32 %v7360, %v7481
  %v7490 = vmul.f32 %v7361, %v7482
  %v7491 = vmul.f32 %v7362, %v7483
  %v7492 = vmul.f32 %v7363, %v7484
  %v7493 = vmul.f32 %v7364, %v7485
  %v7501 = vrot.slane %v7488, 7
  %v7502 = vrot.slane %v7489, 6
  %v7503 = vrot.slane %v7490, 5
  %v7504 = vrot.slane %v7491, 4
  %v7505 = vrot.slane %v7492, 3
  %v7506 = vrot.slane %v7493, 2
  %vm7507 = vcmask 1040384
  %v7508 = vsel %vm7507, %v7487, %v7501
  %vm7509 = vcmask 1042434
  %v7510 = vsel %vm7509, %v7502, %v7503
  %vm7511 = vcmask 1041408
  %v7512 = vsel %vm7511, %v7508, %v7510
  %vm7513 = vcmask 1044484
  %v7514 = vsel %vm7513, %v7504, %v7505
  %vm7515 = vcmask 1045508
  %v7516 = vsel %vm7515, %v7514, %v7506
  %vm7517 = vcmask 1043456
  %v7518 = vsel %vm7517, %v7512, %v7516
  %v7520 = vsub.f32 %v7486, %v7518
  %v7521 = vld [vmem:[%s8] sm:$0x7f]
  %v7522 = vld [vmem:[%s8 + $0x8] sm:$0x7f]
  %v7523 = vld [vmem:[%s8 + $0x10] sm:$0x7f]
  %v7524 = vld [vmem:[%s8 + $0x18] sm:$0x7f]
  %v7525 = vld [vmem:[%s8 + $0x20] sm:$0x7f]
  %v7526 = vld [vmem:[%s8 + $0x28] sm:$0x7f]
  %v7527 = vld [vmem:[%s8 + $0x30] sm:$0x7f]
  %v7528 = vld [vmem:[%s8 + $0x38] sm:$0x7f]
  %v7529 = vld [vmem:[%s8 + $0x40] sm:$0x7f]
  %v7530 = vld [vmem:[%s8 + $0x48] sm:$0x7f]
  %v7531 = vld [vmem:[%s8 + $0x50] sm:$0x7f]
  %v7532 = vld [vmem:[%s8 + $0x58] sm:$0x7f]
  %v7533 = vld [vmem:[%s8 + $0x60] sm:$0x7f]
  %v7534 = vld [vmem:[%s8 + $0x68] sm:$0x7f]
  %v7535 = vld [vmem:[%s8 + $0x70] sm:$0x7f]
  %v7536 = vld [vmem:[%s8 + $0x78] sm:$0x7f]
  %v7537 = vld [vmem:[%s8 + $0x80] sm:$0x7f]
  %v7538 = vld [vmem:[%s8 + $0x88] sm:$0x7f]
  %v7539 = vld [vmem:[%s8 + $0x90] sm:$0x7f]
  %v7540 = vld [vmem:[%s8 + $0x98] sm:$0x7f]
  %v7541 = vld [vmem:[%s8 + $0xa0] sm:$0x7f]
  %v7542 = vld [vmem:[%s8 + $0xa8] sm:$0x7f]
  %v7543 = vld [vmem:[%s8 + $0xb0] sm:$0x7f]
  %v7544 = vld [vmem:[%s8 + $0xb8] sm:$0x7f]
  %v7545 = vld [vmem:[%s8 + $0xc0] sm:$0x7f]
  %v7546 = vld [vmem:[%s8 + $0xc8] sm:$0x7f]
  %v7547 = vld [vmem:[%s8 + $0xd0] sm:$0x7f]
  %v7548 = vld [vmem:[%s8 + $0xd8] sm:$0x7f]
  %v7549 = vld [vmem:[%s8 + $0xe0] sm:$0x7f]
  %v7550 = vld [vmem:[%s8 + $0xe8] sm:$0x7f]
  %v7551 = vld [vmem:[%s8 + $0xf0] sm:$0x7f]
  %v7552 = vld [vmem:[%s8 + $0xf8] sm:$0x7f]
  %v7553 = vld [vmem:[%s8 + $0x100] sm:$0x7f]
  %v7554 = vld [vmem:[%s8 + $0x108] sm:$0x7f]
  %v7555 = vld [vmem:[%s8 + $0x110] sm:$0x7f]
  %v7556 = vld [vmem:[%s8 + $0x118] sm:$0x7f]
  %v7557 = vld [vmem:[%s8 + $0x120] sm:$0x7f]
  %v7558 = vld [vmem:[%s8 + $0x128] sm:$0x7f]
  %v7559 = vld [vmem:[%s8 + $0x130] sm:$0x7f]
  %v7560 = vld [vmem:[%s8 + $0x138] sm:$0x7f]
  %v7561 = vld [vmem:[%s8 + $0x140] sm:$0x7f]
  %v7562 = vld [vmem:[%s8 + $0x148] sm:$0x7f]
  %v7563 = vld [vmem:[%s8 + $0x150] sm:$0x7f]
  %v7564 = vld [vmem:[%s8 + $0x158] sm:$0x7f]
  %v7565 = vld [vmem:[%s8 + $0x160] sm:$0x7f]
  %v7566 = vld [vmem:[%s8 + $0x168] sm:$0x7f]
  %v7567 = vld [vmem:[%s8 + $0x170] sm:$0x7f]
  %v7568 = vld [vmem:[%s8 + $0x178] sm:$0x7f]
  %v7569 = vld [vmem:[%s8 + $0x180] sm:$0x7f]
  %v7570 = vperm.slane %v7479, 0
  %v7571 = vperm.slane %v7480, 0
  %v7572 = vperm.slane %v7481, 0
  %v7573 = vperm.slane %v7482, 0
  %v7574 = vperm.slane %v7483, 0
  %v7575 = vperm.slane %v7484, 0
  %v7576 = vperm.slane %v7485, 0
  %v7577 = vmul.f32 %v7521, %v7570
  %v7578 = vmul.f32 %v7522, %v7571
  %v7579 = vmul.f32 %v7523, %v7572
  %v7580 = vmul.f32 %v7524, %v7573
  %v7581 = vmul.f32 %v7525, %v7574
  %v7582 = vmul.f32 %v7526, %v7575
  %v7583 = vmul.f32 %v7527, %v7576
  %v7584 = vmul.f32 %v7528, %v7570
  %v7585 = vmul.f32 %v7529, %v7571
  %v7586 = vmul.f32 %v7530, %v7572
  %v7587 = vmul.f32 %v7531, %v7573
  %v7588 = vmul.f32 %v7532, %v7574
  %v7589 = vmul.f32 %v7533, %v7575
  %v7590 = vmul.f32 %v7534, %v7576
  %v7591 = vmul.f32 %v7535, %v7570
  %v7592 = vmul.f32 %v7536, %v7571
  %v7593 = vmul.f32 %v7537, %v7572
  %v7594 = vmul.f32 %v7538, %v7573
  %v7595 = vmul.f32 %v7539, %v7574
  %v7596 = vmul.f32 %v7540, %v7575
  %v7597 = vmul.f32 %v7541, %v7576
  %v7598 = vmul.f32 %v7542, %v7570
  %v7599 = vmul.f32 %v7543, %v7571
  %v7600 = vmul.f32 %v7544, %v7572
  %v7601 = vmul.f32 %v7545, %v7573
  %v7602 = vmul.f32 %v7546, %v7574
  %v7603 = vmul.f32 %v7547, %v7575
  %v7604 = vmul.f32 %v7548, %v7576
  %v7605 = vmul.f32 %v7549, %v7570
  %v7606 = vmul.f32 %v7550, %v7571
  %v7607 = vmul.f32 %v7551, %v7572
  %v7608 = vmul.f32 %v7552, %v7573
  %v7609 = vmul.f32 %v7553, %v7574
  %v7610 = vmul.f32 %v7554, %v7575
  %v7611 = vmul.f32 %v7555, %v7576
  %v7612 = vmul.f32 %v7556, %v7570
  %v7613 = vmul.f32 %v7557, %v7571
  %v7614 = vmul.f32 %v7558, %v7572
  %v7615 = vmul.f32 %v7559, %v7573
  %v7616 = vmul.f32 %v7560, %v7574
  %v7617 = vmul.f32 %v7561, %v7575
  %v7618 = vmul.f32 %v7562, %v7576
  %v7619 = vmul.f32 %v7563, %v7570
  %v7620 = vmul.f32 %v7564, %v7571
  %v7621 = vmul.f32 %v7565, %v7572
  %v7622 = vmul.f32 %v7566, %v7573
  %v7623 = vmul.f32 %v7567, %v7574
  %v7624 = vmul.f32 %v7568, %v7575
  %v7625 = vmul.f32 %v7569, %v7576
  %v7627 = vperm.slane %v7520, 0
  %v7628 = vperm.slane %v7520, 1
  %v7629 = vperm.slane %v7520, 2
  %v7630 = vperm.slane %v7520, 3
  %v7631 = vperm.slane %v7520, 4
  %v7632 = vperm.slane %v7520, 5
  %v7633 = vperm.slane %v7520, 6
  %v7641 = vadd.f32 %v7577, %v7627
  %v7642 = vadd.f32 %v7578, %v7628
  %v7643 = vadd.f32 %v7579, %v7629
  %v7644 = vadd.f32 %v7580, %v7630
  %v7645 = vadd.f32 %v7581, %v7631
  %v7646 = vadd.f32 %v7582, %v7632
  %v7647 = vadd.f32 %v7583, %v7633
  %v7648 = vadd.f32 %v7584, %v7627
  %v7649 = vadd.f32 %v7585, %v7628
  %v7650 = vadd.f32 %v7586, %v7629
  %v7651 = vadd.f32 %v7587, %v7630
  %v7652 = vadd.f32 %v7588, %v7631
  %v7653 = vadd.f32 %v7589, %v7632
  %v7654 = vadd.f32 %v7590, %v7633
  %v7655 = vadd.f32 %v7591, %v7627
  %v7656 = vadd.f32 %v7592, %v7628
  %v7657 = vadd.f32 %v7593, %v7629
  %v7658 = vadd.f32 %v7594, %v7630
  %v7659 = vadd.f32 %v7595, %v7631
  %v7660 = vadd.f32 %v7596, %v7632
  %v7661 = vadd.f32 %v7597, %v7633
  %v7662 = vadd.f32 %v7598, %v7627
  %v7663 = vadd.f32 %v7599, %v7628
  %v7664 = vadd.f32 %v7600, %v7629
  %v7665 = vadd.f32 %v7601, %v7630
  %v7666 = vadd.f32 %v7602, %v7631
  %v7667 = vadd.f32 %v7603, %v7632
  %v7668 = vadd.f32 %v7604, %v7633
  %v7669 = vadd.f32 %v7605, %v7627
  %v7670 = vadd.f32 %v7606, %v7628
  %v7671 = vadd.f32 %v7607, %v7629
  %v7672 = vadd.f32 %v7608, %v7630
  %v7673 = vadd.f32 %v7609, %v7631
  %v7674 = vadd.f32 %v7610, %v7632
  %v7675 = vadd.f32 %v7611, %v7633
  %v7676 = vadd.f32 %v7612, %v7627
  %v7677 = vadd.f32 %v7613, %v7628
  %v7678 = vadd.f32 %v7614, %v7629
  %v7679 = vadd.f32 %v7615, %v7630
  %v7680 = vadd.f32 %v7616, %v7631
  %v7681 = vadd.f32 %v7617, %v7632
  %v7682 = vadd.f32 %v7618, %v7633
  %v7683 = vadd.f32 %v7619, %v7627
  %v7684 = vadd.f32 %v7620, %v7628
  %v7685 = vadd.f32 %v7621, %v7629
  %v7686 = vadd.f32 %v7622, %v7630
  %v7687 = vadd.f32 %v7623, %v7631
  %v7688 = vadd.f32 %v7624, %v7632
  %v7689 = vadd.f32 %v7625, %v7633
  %7690 = vst [vmem:[%s8] sm:$0x7f] %v7641
  %7691 = vst [vmem:[%s8 + $0x8] sm:$0x7f] %v7642
  %7692 = vst [vmem:[%s8 + $0x10] sm:$0x7f] %v7643
  %7693 = vst [vmem:[%s8 + $0x18] sm:$0x7f] %v7644
  %7694 = vst [vmem:[%s8 + $0x20] sm:$0x7f] %v7645
  %7695 = vst [vmem:[%s8 + $0x28] sm:$0x7f] %v7646
  %7696 = vst.msk [vmem:[%s8 + $0x30] sm:$0x7f] %vm1054, %v7647
  %7697 = vst [vmem:[%s8 + $0x38] sm:$0x7f] %v7648
  %7698 = vst [vmem:[%s8 + $0x40] sm:$0x7f] %v7649
  %7699 = vst [vmem:[%s8 + $0x48] sm:$0x7f] %v7650
  %7700 = vst [vmem:[%s8 + $0x50] sm:$0x7f] %v7651
  %7701 = vst [vmem:[%s8 + $0x58] sm:$0x7f] %v7652
  %7702 = vst [vmem:[%s8 + $0x60] sm:$0x7f] %v7653
  %7703 = vst.msk [vmem:[%s8 + $0x68] sm:$0x7f] %vm1054, %v7654
  %7704 = vst [vmem:[%s8 + $0x70] sm:$0x7f] %v7655
  %7705 = vst [vmem:[%s8 + $0x78] sm:$0x7f] %v7656
  %7706 = vst [vmem:[%s8 + $0x80] sm:$0x7f] %v7657
  %7707 = vst [vmem:[%s8 + $0x88] sm:$0x7f] %v7658
  %7708 = vst [vmem:[%s8 + $0x90] sm:$0x7f] %v7659
  %7709 = vst [vmem:[%s8 + $0x98] sm:$0x7f] %v7660
  %7710 = vst.msk [vmem:[%s8 + $0xa0] sm:$0x7f] %vm1054, %v7661
  %7711 = vst [vmem:[%s8 + $0xa8] sm:$0x7f] %v7662
  %7712 = vst [vmem:[%s8 + $0xb0] sm:$0x7f] %v7663
  %7713 = vst [vmem:[%s8 + $0xb8] sm:$0x7f] %v7664
  %7714 = vst [vmem:[%s8 + $0xc0] sm:$0x7f] %v7665
  %7715 = vst [vmem:[%s8 + $0xc8] sm:$0x7f] %v7666
  %7716 = vst [vmem:[%s8 + $0xd0] sm:$0x7f] %v7667
  %7717 = vst.msk [vmem:[%s8 + $0xd8] sm:$0x7f] %vm1054, %v7668
  %7718 = vst [vmem:[%s8 + $0xe0] sm:$0x7f] %v7669
  %7719 = vst [vmem:[%s8 + $0xe8] sm:$0x7f] %v7670
  %7720 = vst [vmem:[%s8 + $0xf0] sm:$0x7f] %v7671
  %7721 = vst [vmem:[%s8 + $0xf8] sm:$0x7f] %v7672
  %7722 = vst [vmem:[%s8 + $0x100] sm:$0x7f] %v7673
  %7723 = vst [vmem:[%s8 + $0x108] sm:$0x7f] %v7674
  %7724 = vst.msk [vmem:[%s8 + $0x110] sm:$0x7f] %vm1054, %v7675
  %7725 = vst [vmem:[%s8 + $0x118] sm:$0x7f] %v7676
  %7726 = vst [vmem:[%s8 + $0x120] sm:$0x7f] %v7677
  %7727 = vst [vmem:[%s8 + $0x128] sm:$0x7f] %v7678
  %7728 = vst [vmem:[%s8 + $0x130] sm:$0x7f] %v7679
  %7729 = vst [vmem:[%s8 + $0x138] sm:$0x7f] %v7680
  %7730 = vst [vmem:[%s8 + $0x140] sm:$0x7f] %v7681
  %7731 = vst.msk [vmem:[%s8 + $0x148] sm:$0x7f] %vm1054, %v7682
  %7732 = vst [vmem:[%s8 + $0x150] sm:$0x7f] %v7683
  %7733 = vst [vmem:[%s8 + $0x158] sm:$0x7f] %v7684
  %7734 = vst [vmem:[%s8 + $0x160] sm:$0x7f] %v7685
  %7735 = vst [vmem:[%s8 + $0x168] sm:$0x7f] %v7686
  %7736 = vst [vmem:[%s8 + $0x170] sm:$0x7f] %v7687
  %7737 = vst [vmem:[%s8 + $0x178] sm:$0x7f] %v7688
  %7738 = vst.msk [vmem:[%s8 + $0x180] sm:$0x7f] %vm1054, %v7689
  // Predicated region
  $region34: #{tpu_custom_call.1} parent=0 // pred_check
    _
  $region35: #{tpu_custom_call.1} parent=0 // pred_check_branch
    %7740 = sbr.rel (0) target = $region37
  $region36: #{tpu_custom_call.1} parent=0 // pred_region
    _
  $region37: #{tpu_custom_call.1} parent=0 // pred_fallthru
    _
  // Predicated region
  $region38: #{tpu_custom_call.1} parent=0 // pred_check
    _
  $region39: #{tpu_custom_call.1} parent=0 // pred_check_branch
    %7742 = sbr.rel (0) target = $region41
  $region40: #{tpu_custom_call.1} parent=0 // pred_region
    _
  $region41: #{tpu_custom_call.1} parent=0 // pred_fallthru
    _

</llo_original>
